<compile_context>
chip_gen: v6e
topology: v6e:2x2x1
jax: 0.10.0
libtpu: 0.0.40
codegen_flags: <defaults>
</compile_context>

<pallas_src>
import functools

import jax
import jax.numpy as jnp
from jax import lax
from jax.experimental import pallas as pl
from jax.experimental.pallas import tpu as pltpu

_BN_EPS = 1e-5


def _round_up(x, m):
    return (x + m - 1) // m * m


def _vmem_limit_bytes():
    """Generation-aware VMEM budget: ~3/4 of capacity, capped at 96 MiB."""
    try:
        cap = int(pltpu.get_tpu_info().vmem_capacity_bytes)
    except Exception:  # conservative fallback if the query is unavailable
        cap = 64 * 1024 * 1024
    return min(cap * 3 // 4, 96 * 1024 * 1024)


@functools.partial(jax.jit, static_argnames=("padding", "stride"))
def base_conv(x_nchw, w_oihw, bias, gamma, beta, *, padding=1, stride=1):
    """Conv2d(stride=1) -> BatchNorm2d (training batch stats) -> ReLU.

    NCHW in, NCHW out (bf16 activations, per the review's bf16-store request).
    """
    # The conv bias is exactly cancelled by the training-mode BN mean
    # subtraction, so it is dead math.  (It must be reinstated for eval-mode /
    # running-stat BN.)
    del bias
    assert stride == 1, "this kernel implements the stride=1 BaseConv layers"

    n, cin, h, w = x_nchw.shape
    cout, cin2, kh, kw = w_oihw.shape
    assert cin == cin2

    ho = h + 2 * padding - kh + 1
    wo = w + 2 * padding - kw + 1
    hpad = h + 2 * padding
    wpad = w + 2 * padding
    assert ho >= 1 and wo >= 1

    # Channel padding: lane-dense (multiple of 128) for large Cout; only round
    # to 8 for small Cout so the stored output is not 16x wider than needed.
    cpad = _round_up(cout, 128) if cout >= 128 else _round_up(cout, 8)

    # Flat per-image row index p = ho_ * Wpad + wo_.  Columns wo_ in [Wo, Wpad)
    # are junk (wrap-around) and are masked out of the statistics / sliced off.
    rw = ho * wpad                        # accumulator rows per image (incl. junk cols)
    rwp = _round_up(rw, 8)
    max_off = (kh - 1) * wpad + (kw - 1)
    xr = _round_up(rwp + max_off, 8)      # flat input rows per image (>= Hpad*Wpad)
    tap_offsets = [ih * wpad + iw for ih in range(kh) for iw in range(kw)]

    # ---- wrapper glue: pure layout work, no im2col / 9x inflation ----
    # NCHW -> NHWC (bf16), pad spatially, flatten rows, pad flat rows to XR.
    x = jnp.transpose(x_nchw.astype(jnp.bfloat16), (0, 2, 3, 1))
    x = jnp.pad(x, ((0, 0), (padding, padding), (padding, padding), (0, 0)))
    x = x.reshape(n, hpad * wpad, cin)
    x = jnp.pad(x, ((0, 0), (0, xr - hpad * wpad), (0, 0)))        # (N, XR, Cin)

    # Weights: OIHW -> (KH*KW, Cin, Cpad), bf16.
    w_taps = jnp.transpose(w_oihw, (2, 3, 1, 0)).reshape(kh * kw, cin, cout)
    w_taps = jnp.pad(w_taps, ((0, 0), (0, 0), (0, cpad - cout))).astype(jnp.bfloat16)

    # Row-validity mask (drops junk columns / pad rows from the batch stats).
    rows = jnp.arange(rwp, dtype=jnp.int32)
    mask = ((rows < rw) & (rows % wpad < wo)).astype(jnp.float32).reshape(rwp, 1)

    gamma_p = jnp.pad(gamma.astype(jnp.float32), (0, cpad - cout)).reshape(1, cpad)
    beta_p = jnp.pad(beta.astype(jnp.float32), (0, cpad - cout)).reshape(1, cpad)

    # ---- shared in-kernel conv tile: implicit GEMM over KH*KW shifted dots ----
    def accumulate_conv(x_ref, w_ref, xf_ref, acc_ref):
        # Stage the flat image as f32 once so the per-tap row slices at
        # arbitrary (unaligned) offsets never touch sublane-packed bf16.
        xf_ref[...] = x_ref[...].astype(jnp.float32)
        acc_ref[...] = jnp.zeros_like(acc_ref)
        for t, off in enumerate(tap_offsets):          # unrolled static taps
            xs = xf_ref[off:off + rwp, :].astype(jnp.bfloat16)
            acc_ref[...] += jnp.dot(xs, w_ref[t],
                                    preferred_element_type=jnp.float32)

    # ---- phase 1: per-image channel sum / sum-of-squares of the conv output ----
    def stats_kernel(x_ref, w_ref, mask_ref, sum_ref, sumsq_ref, xf_ref, acc_ref):
        accumulate_conv(x_ref, w_ref, xf_ref, acc_ref)
        y = acc_ref[...] * mask_ref[...]
        sum_ref[...] = jnp.sum(y, axis=0, keepdims=True)
        sumsq_ref[...] = jnp.sum(y * y, axis=0, keepdims=True)

    # ---- phase 2: recompute conv tile -> folded-BN affine -> ReLU (bf16) ----
    def conv_bn_relu_kernel(x_ref, w_ref, scale_ref, shift_ref, out_ref,
                            xf_ref, acc_ref):
        accumulate_conv(x_ref, w_ref, xf_ref, acc_ref)
        y = acc_ref[...] * scale_ref[...] + shift_ref[...]
        out_ref[...] = jnp.maximum(y, 0.0).astype(out_ref.dtype)

    x_spec = pl.BlockSpec((None, xr, cin), lambda i: (i, 0, 0))
    w_spec = pl.BlockSpec((kh * kw, cin, cpad), lambda i: (0, 0, 0))   # resident
    vec_spec = pl.BlockSpec((1, cpad), lambda i: (0, 0))
    mask_spec = pl.BlockSpec((rwp, 1), lambda i: (0, 0))
    stat_spec = pl.BlockSpec((None, 1, cpad), lambda i: (i, 0, 0))

    cparams = pltpu.CompilerParams(
        dimension_semantics=("parallel",),        # per-image blocks; both TCs on v7x
        vmem_limit_bytes=_vmem_limit_bytes())

    def scratch():
        return [pltpu.VMEM((xr, cin), jnp.float32),      # f32-staged input
                pltpu.VMEM((rwp, cpad), jnp.float32)]     # conv accumulator

    ch_sum, ch_sumsq = pl.pallas_call(
        stats_kernel,
        grid=(n,),
        in_specs=[x_spec, w_spec, mask_spec],
        out_specs=(stat_spec, stat_spec),
        out_shape=(jax.ShapeDtypeStruct((n, 1, cpad), jnp.float32),
                   jax.ShapeDtypeStruct((n, 1, cpad), jnp.float32)),
        scratch_shapes=scratch(),
        compiler_params=cparams,
    )(x, w_taps, mask)

    # ---- glue: fold BN (training batch stats, biased var) into scale/shift ----
    cnt = jnp.float32(n * ho * wo)
    mean = jnp.sum(ch_sum[:, 0, :], axis=0, keepdims=True) / cnt       # (1, Cpad)
    e2 = jnp.sum(ch_sumsq[:, 0, :], axis=0, keepdims=True) / cnt
    var = jnp.maximum(e2 - mean * mean, 0.0)
    scale = gamma_p * lax.rsqrt(var + jnp.float32(_BN_EPS))
    shift = beta_p - mean * scale

    out3 = pl.pallas_call(
        conv_bn_relu_kernel,
        grid=(n,),
        in_specs=[x_spec, w_spec, vec_spec, vec_spec],
        out_specs=pl.BlockSpec((None, rwp, cpad), lambda i: (i, 0, 0)),
        out_shape=jax.ShapeDtypeStruct((n, rwp, cpad), jnp.bfloat16),
        scratch_shapes=scratch(),
        compiler_params=cparams,
    )(x, w_taps, scale, shift)

    # ---- glue: drop junk rows/columns and pad channels, rows -> NHWC -> NCHW ----
    out = out3[:, :rw, :cout].reshape(n, ho, wpad, cout)[:, :, :wo, :]
    return jnp.transpose(out, (0, 3, 1, 2))


def ref_base_conv(x_nchw, w_oihw, bias, gamma, beta, *, padding=1):
    """Pure-JAX reference of BaseConv.forward (training-mode BN).

    Conv operands are bf16-rounded to mirror the kernel's MXU inputs; the conv
    bias is kept to demonstrate that it is cancelled by the BN mean.
    """
    xb = x_nchw.astype(jnp.bfloat16).astype(jnp.float32)
    wb = w_oihw.astype(jnp.bfloat16).astype(jnp.float32)
    y = lax.conv_general_dilated(
        xb, wb, window_strides=(1, 1),
        padding=[(padding, padding), (padding, padding)],
        dimension_numbers=("NCHW", "OIHW", "NCHW"))
    y = y + bias[None, :, None, None]
    mean = jnp.mean(y, axis=(0, 2, 3), keepdims=True)
    var = jnp.mean((y - mean) ** 2, axis=(0, 2, 3), keepdims=True)  # biased
    y = (y - mean) / jnp.sqrt(var + _BN_EPS)
    y = y * gamma[None, :, None, None] + beta[None, :, None, None]
    return jnp.maximum(y, 0.0)


if __name__ == "__main__":
    # Shapes consistent with BaseConv(inplanes=4, planes=8, kernel_size=3, padding=1)
    N, CIN, H, W = 2, 4, 16, 16
    COUT, KH, KW = 8, 3, 3
    PAD = 1

    key = jax.random.PRNGKey(0)
    kx, kw_, kb, kg, kbe = jax.random.split(key, 5)
    x = jax.random.normal(kx, (N, CIN, H, W), dtype=jnp.float32)
    w = 0.1 * jax.random.normal(kw_, (COUT, CIN, KH, KW), dtype=jnp.float32)
    b = 0.1 * jax.random.normal(kb, (COUT,), dtype=jnp.float32)
    gamma = 1.0 + 0.1 * jax.random.normal(kg, (COUT,), dtype=jnp.float32)
    beta = 0.05 * jax.random.normal(kbe, (COUT,), dtype=jnp.float32)

    out = base_conv(x, w, b, gamma, beta, padding=PAD)
    out = jax.block_until_ready(out)

    ref = ref_base_conv(x, w, b, gamma, beta, padding=PAD)
    assert out.shape == (N, COUT, H, W)
    err = jnp.max(jnp.abs(out.astype(jnp.float32) - ref))
    assert err < 3e-2, f"mismatch vs reference: {err}"

    print("KERNEL_OK")
</pallas_src>

<mosaic_0001>
module attributes {stable_mosaic.version = 11 : i64} {
  func.func @stats_kernel(%arg0: i32, %arg1: memref<1x328x4xbf16, #tpu.memory_space<vmem>>, %arg2: memref<9x4x8xbf16, #tpu.memory_space<vmem>>, %arg3: memref<288x1xf32, #tpu.memory_space<vmem>>, %arg4: memref<1x1x8xf32, #tpu.memory_space<vmem>>, %arg5: memref<1x1x8xf32, #tpu.memory_space<vmem>>, %arg6: memref<328x4xf32, #tpu.memory_space<vmem>>, %arg7: memref<288x8xf32, #tpu.memory_space<vmem>>) attributes {dimension_semantics = [#tpu.dimension_semantics<parallel>], iteration_bounds = array<i64: 2>, scalar_prefetch = 0 : i64, scratch_operands = 2 : i64, tpu.core_type = #tpu.core_type<tc>, window_params = [{transform_indices = @transform_0, window_bounds = array<i64: 1, 328, 4>}, {pipeline_mode = #tpu.pipeline_mode<synchronous>, transform_indices = @transform_1, window_bounds = array<i64: 9, 4, 8>}, {pipeline_mode = #tpu.pipeline_mode<synchronous>, transform_indices = @transform_2, window_bounds = array<i64: 288, 1>}, {transform_indices = @transform_3, window_bounds = array<i64: 1, 1, 8>}, {transform_indices = @transform_4, window_bounds = array<i64: 1, 1, 8>}]} {
    %c0 = arith.constant 0 : index
    %c0_0 = arith.constant 0 : index
    %c0_1 = arith.constant 0 : index
    %0 = vector.load %arg1[%c0, %c0_0, %c0_1] : memref<1x328x4xbf16, #tpu.memory_space<vmem>>, vector<1x328x4xbf16>
    %1 = vector.shape_cast %0 : vector<1x328x4xbf16> to vector<328x4xbf16>
    %2 = arith.extf %1 : vector<328x4xbf16> to vector<328x4xf32>
    %c0_2 = arith.constant 0 : index
    %c0_3 = arith.constant 0 : index
    %3 = vector.load %arg6[%c0_2, %c0_3] : memref<328x4xf32, #tpu.memory_space<vmem>>, vector<328x4xf32>
    tpu.vector_store %arg6[%c0_2, %c0_3], %2 {strides = array<i32>} : memref<328x4xf32, #tpu.memory_space<vmem>>, vector<328x4xf32>,
    %cst = arith.constant 0.000000e+00 : f32
    %4 = vector.broadcast %cst : f32 to vector<288x8xf32>
    %c0_4 = arith.constant 0 : index
    %c0_5 = arith.constant 0 : index
    %5 = vector.load %arg7[%c0_4, %c0_5] : memref<288x8xf32, #tpu.memory_space<vmem>>, vector<288x8xf32>
    tpu.vector_store %arg7[%c0_4, %c0_5], %4 {strides = array<i32>} : memref<288x8xf32, #tpu.memory_space<vmem>>, vector<288x8xf32>,
    %c0_6 = arith.constant 0 : index
    %c0_7 = arith.constant 0 : index
    %6 = vector.load %arg6[%c0_6, %c0_7] : memref<328x4xf32, #tpu.memory_space<vmem>>, vector<288x4xf32>
    %7 = arith.truncf %6 : vector<288x4xf32> to vector<288x4xbf16>
    %c0_8 = arith.constant 0 : index
    %c0_9 = arith.constant 0 : index
    %8 = vector.load %arg7[%c0_8, %c0_9] : memref<288x8xf32, #tpu.memory_space<vmem>>, vector<288x8xf32>
    %c0_10 = arith.constant 0 : index
    %c0_11 = arith.constant 0 : index
    %c0_12 = arith.constant 0 : index
    %9 = vector.load %arg2[%c0_10, %c0_11, %c0_12] : memref<9x4x8xbf16, #tpu.memory_space<vmem>>, vector<1x4x8xbf16>
    %10 = vector.shape_cast %9 : vector<1x4x8xbf16> to vector<4x8xbf16>
    %cst_13 = arith.constant dense<0.000000e+00> : vector<288x8xf32>
    %11 = tpu.matmul %7, %10, %cst_13 {dimension_numbers = #tpu.dot_dimension_numbers<[1], [0], [0], [1], [0, 0, 1, 1], [], []>} : vector<288x4xbf16>, vector<4x8xbf16>, vector<288x8xf32> -> vector<288x8xf32>
    %12 = arith.addf %8, %11 : vector<288x8xf32>
    %c0_14 = arith.constant 0 : index
    %c0_15 = arith.constant 0 : index
    %13 = vector.load %arg7[%c0_14, %c0_15] : memref<288x8xf32, #tpu.memory_space<vmem>>, vector<288x8xf32>
    tpu.vector_store %arg7[%c0_14, %c0_15], %12 {strides = array<i32>} : memref<288x8xf32, #tpu.memory_space<vmem>>, vector<288x8xf32>,
    %c1 = arith.constant 1 : index
    %c0_16 = arith.constant 0 : index
    %14 = vector.load %arg6[%c1, %c0_16] : memref<328x4xf32, #tpu.memory_space<vmem>>, vector<288x4xf32>
    %15 = arith.truncf %14 : vector<288x4xf32> to vector<288x4xbf16>
    %c0_17 = arith.constant 0 : index
    %c0_18 = arith.constant 0 : index
    %16 = vector.load %arg7[%c0_17, %c0_18] : memref<288x8xf32, #tpu.memory_space<vmem>>, vector<288x8xf32>
    %c1_19 = arith.constant 1 : index
    %c0_20 = arith.constant 0 : index
    %c0_21 = arith.constant 0 : index
    %17 = vector.load %arg2[%c1_19, %c0_20, %c0_21] : memref<9x4x8xbf16, #tpu.memory_space<vmem>>, vector<1x4x8xbf16>
    %18 = vector.shape_cast %17 : vector<1x4x8xbf16> to vector<4x8xbf16>
    %cst_22 = arith.constant dense<0.000000e+00> : vector<288x8xf32>
    %19 = tpu.matmul %15, %18, %cst_22 {dimension_numbers = #tpu.dot_dimension_numbers<[1], [0], [0], [1], [0, 0, 1, 1], [], []>} : vector<288x4xbf16>, vector<4x8xbf16>, vector<288x8xf32> -> vector<288x8xf32>
    %20 = arith.addf %16, %19 : vector<288x8xf32>
    %c0_23 = arith.constant 0 : index
    %c0_24 = arith.constant 0 : index
    %21 = vector.load %arg7[%c0_23, %c0_24] : memref<288x8xf32, #tpu.memory_space<vmem>>, vector<288x8xf32>
    tpu.vector_store %arg7[%c0_23, %c0_24], %20 {strides = array<i32>} : memref<288x8xf32, #tpu.memory_space<vmem>>, vector<288x8xf32>,
    %c2 = arith.constant 2 : index
    %c0_25 = arith.constant 0 : index
    %22 = vector.load %arg6[%c2, %c0_25] : memref<328x4xf32, #tpu.memory_space<vmem>>, vector<288x4xf32>
    %23 = arith.truncf %22 : vector<288x4xf32> to vector<288x4xbf16>
    %c0_26 = arith.constant 0 : index
    %c0_27 = arith.constant 0 : index
    %24 = vector.load %arg7[%c0_26, %c0_27] : memref<288x8xf32, #tpu.memory_space<vmem>>, vector<288x8xf32>
    %c2_28 = arith.constant 2 : index
    %c0_29 = arith.constant 0 : index
    %c0_30 = arith.constant 0 : index
    %25 = vector.load %arg2[%c2_28, %c0_29, %c0_30] : memref<9x4x8xbf16, #tpu.memory_space<vmem>>, vector<1x4x8xbf16>
    %26 = vector.shape_cast %25 : vector<1x4x8xbf16> to vector<4x8xbf16>
    %cst_31 = arith.constant dense<0.000000e+00> : vector<288x8xf32>
    %27 = tpu.matmul %23, %26, %cst_31 {dimension_numbers = #tpu.dot_dimension_numbers<[1], [0], [0], [1], [0, 0, 1, 1], [], []>} : vector<288x4xbf16>, vector<4x8xbf16>, vector<288x8xf32> -> vector<288x8xf32>
    %28 = arith.addf %24, %27 : vector<288x8xf32>
    %c0_32 = arith.constant 0 : index
    %c0_33 = arith.constant 0 : index
    %29 = vector.load %arg7[%c0_32, %c0_33] : memref<288x8xf32, #tpu.memory_space<vmem>>, vector<288x8xf32>
    tpu.vector_store %arg7[%c0_32, %c0_33], %28 {strides = array<i32>} : memref<288x8xf32, #tpu.memory_space<vmem>>, vector<288x8xf32>,
    %c18 = arith.constant 18 : index
    %c0_34 = arith.constant 0 : index
    %30 = vector.load %arg6[%c18, %c0_34] : memref<328x4xf32, #tpu.memory_space<vmem>>, vector<288x4xf32>
    %31 = arith.truncf %30 : vector<288x4xf32> to vector<288x4xbf16>
    %c0_35 = arith.constant 0 : index
    %c0_36 = arith.constant 0 : index
    %32 = vector.load %arg7[%c0_35, %c0_36] : memref<288x8xf32, #tpu.memory_space<vmem>>, vector<288x8xf32>
    %c3 = arith.constant 3 : index
    %c0_37 = arith.constant 0 : index
    %c0_38 = arith.constant 0 : index
    %33 = vector.load %arg2[%c3, %c0_37, %c0_38] : memref<9x4x8xbf16, #tpu.memory_space<vmem>>, vector<1x4x8xbf16>
    %34 = vector.shape_cast %33 : vector<1x4x8xbf16> to vector<4x8xbf16>
    %cst_39 = arith.constant dense<0.000000e+00> : vector<288x8xf32>
    %35 = tpu.matmul %31, %34, %cst_39 {dimension_numbers = #tpu.dot_dimension_numbers<[1], [0], [0], [1], [0, 0, 1, 1], [], []>} : vector<288x4xbf16>, vector<4x8xbf16>, vector<288x8xf32> -> vector<288x8xf32>
    %36 = arith.addf %32, %35 : vector<288x8xf32>
    %c0_40 = arith.constant 0 : index
    %c0_41 = arith.constant 0 : index
    %37 = vector.load %arg7[%c0_40, %c0_41] : memref<288x8xf32, #tpu.memory_space<vmem>>, vector<288x8xf32>
    tpu.vector_store %arg7[%c0_40, %c0_41], %36 {strides = array<i32>} : memref<288x8xf32, #tpu.memory_space<vmem>>, vector<288x8xf32>,
    %c19 = arith.constant 19 : index
    %c0_42 = arith.constant 0 : index
    %38 = vector.load %arg6[%c19, %c0_42] : memref<328x4xf32, #tpu.memory_space<vmem>>, vector<288x4xf32>
    %39 = arith.truncf %38 : vector<288x4xf32> to vector<288x4xbf16>
    %c0_43 = arith.constant 0 : index
    %c0_44 = arith.constant 0 : index
    %40 = vector.load %arg7[%c0_43, %c0_44] : memref<288x8xf32, #tpu.memory_space<vmem>>, vector<288x8xf32>
    %c4 = arith.constant 4 : index
    %c0_45 = arith.constant 0 : index
    %c0_46 = arith.constant 0 : index
    %41 = vector.load %arg2[%c4, %c0_45, %c0_46] : memref<9x4x8xbf16, #tpu.memory_space<vmem>>, vector<1x4x8xbf16>
    %42 = vector.shape_cast %41 : vector<1x4x8xbf16> to vector<4x8xbf16>
    %cst_47 = arith.constant dense<0.000000e+00> : vector<288x8xf32>
    %43 = tpu.matmul %39, %42, %cst_47 {dimension_numbers = #tpu.dot_dimension_numbers<[1], [0], [0], [1], [0, 0, 1, 1], [], []>} : vector<288x4xbf16>, vector<4x8xbf16>, vector<288x8xf32> -> vector<288x8xf32>
    %44 = arith.addf %40, %43 : vector<288x8xf32>
    %c0_48 = arith.constant 0 : index
    %c0_49 = arith.constant 0 : index
    %45 = vector.load %arg7[%c0_48, %c0_49] : memref<288x8xf32, #tpu.memory_space<vmem>>, vector<288x8xf32>
    tpu.vector_store %arg7[%c0_48, %c0_49], %44 {strides = array<i32>} : memref<288x8xf32, #tpu.memory_space<vmem>>, vector<288x8xf32>,
    %c20 = arith.constant 20 : index
    %c0_50 = arith.constant 0 : index
    %46 = vector.load %arg6[%c20, %c0_50] : memref<328x4xf32, #tpu.memory_space<vmem>>, vector<288x4xf32>
    %47 = arith.truncf %46 : vector<288x4xf32> to vector<288x4xbf16>
    %c0_51 = arith.constant 0 : index
    %c0_52 = arith.constant 0 : index
    %48 = vector.load %arg7[%c0_51, %c0_52] : memref<288x8xf32, #tpu.memory_space<vmem>>, vector<288x8xf32>
    %c5 = arith.constant 5 : index
    %c0_53 = arith.constant 0 : index
    %c0_54 = arith.constant 0 : index
    %49 = vector.load %arg2[%c5, %c0_53, %c0_54] : memref<9x4x8xbf16, #tpu.memory_space<vmem>>, vector<1x4x8xbf16>
    %50 = vector.shape_cast %49 : vector<1x4x8xbf16> to vector<4x8xbf16>
    %cst_55 = arith.constant dense<0.000000e+00> : vector<288x8xf32>
    %51 = tpu.matmul %47, %50, %cst_55 {dimension_numbers = #tpu.dot_dimension_numbers<[1], [0], [0], [1], [0, 0, 1, 1], [], []>} : vector<288x4xbf16>, vector<4x8xbf16>, vector<288x8xf32> -> vector<288x8xf32>
    %52 = arith.addf %48, %51 : vector<288x8xf32>
    %c0_56 = arith.constant 0 : index
    %c0_57 = arith.constant 0 : index
    %53 = vector.load %arg7[%c0_56, %c0_57] : memref<288x8xf32, #tpu.memory_space<vmem>>, vector<288x8xf32>
    tpu.vector_store %arg7[%c0_56, %c0_57], %52 {strides = array<i32>} : memref<288x8xf32, #tpu.memory_space<vmem>>, vector<288x8xf32>,
    %c36 = arith.constant 36 : index
    %c0_58 = arith.constant 0 : index
    %54 = vector.load %arg6[%c36, %c0_58] : memref<328x4xf32, #tpu.memory_space<vmem>>, vector<288x4xf32>
    %55 = arith.truncf %54 : vector<288x4xf32> to vector<288x4xbf16>
    %c0_59 = arith.constant 0 : index
    %c0_60 = arith.constant 0 : index
    %56 = vector.load %arg7[%c0_59, %c0_60] : memref<288x8xf32, #tpu.memory_space<vmem>>, vector<288x8xf32>
    %c6 = arith.constant 6 : index
    %c0_61 = arith.constant 0 : index
    %c0_62 = arith.constant 0 : index
    %57 = vector.load %arg2[%c6, %c0_61, %c0_62] : memref<9x4x8xbf16, #tpu.memory_space<vmem>>, vector<1x4x8xbf16>
    %58 = vector.shape_cast %57 : vector<1x4x8xbf16> to vector<4x8xbf16>
    %cst_63 = arith.constant dense<0.000000e+00> : vector<288x8xf32>
    %59 = tpu.matmul %55, %58, %cst_63 {dimension_numbers = #tpu.dot_dimension_numbers<[1], [0], [0], [1], [0, 0, 1, 1], [], []>} : vector<288x4xbf16>, vector<4x8xbf16>, vector<288x8xf32> -> vector<288x8xf32>
    %60 = arith.addf %56, %59 : vector<288x8xf32>
    %c0_64 = arith.constant 0 : index
    %c0_65 = arith.constant 0 : index
    %61 = vector.load %arg7[%c0_64, %c0_65] : memref<288x8xf32, #tpu.memory_space<vmem>>, vector<288x8xf32>
    tpu.vector_store %arg7[%c0_64, %c0_65], %60 {strides = array<i32>} : memref<288x8xf32, #tpu.memory_space<vmem>>, vector<288x8xf32>,
    %c37 = arith.constant 37 : index
    %c0_66 = arith.constant 0 : index
    %62 = vector.load %arg6[%c37, %c0_66] : memref<328x4xf32, #tpu.memory_space<vmem>>, vector<288x4xf32>
    %63 = arith.truncf %62 : vector<288x4xf32> to vector<288x4xbf16>
    %c0_67 = arith.constant 0 : index
    %c0_68 = arith.constant 0 : index
    %64 = vector.load %arg7[%c0_67, %c0_68] : memref<288x8xf32, #tpu.memory_space<vmem>>, vector<288x8xf32>
    %c7 = arith.constant 7 : index
    %c0_69 = arith.constant 0 : index
    %c0_70 = arith.constant 0 : index
    %65 = vector.load %arg2[%c7, %c0_69, %c0_70] : memref<9x4x8xbf16, #tpu.memory_space<vmem>>, vector<1x4x8xbf16>
    %66 = vector.shape_cast %65 : vector<1x4x8xbf16> to vector<4x8xbf16>
    %cst_71 = arith.constant dense<0.000000e+00> : vector<288x8xf32>
    %67 = tpu.matmul %63, %66, %cst_71 {dimension_numbers = #tpu.dot_dimension_numbers<[1], [0], [0], [1], [0, 0, 1, 1], [], []>} : vector<288x4xbf16>, vector<4x8xbf16>, vector<288x8xf32> -> vector<288x8xf32>
    %68 = arith.addf %64, %67 : vector<288x8xf32>
    %c0_72 = arith.constant 0 : index
    %c0_73 = arith.constant 0 : index
    %69 = vector.load %arg7[%c0_72, %c0_73] : memref<288x8xf32, #tpu.memory_space<vmem>>, vector<288x8xf32>
    tpu.vector_store %arg7[%c0_72, %c0_73], %68 {strides = array<i32>} : memref<288x8xf32, #tpu.memory_space<vmem>>, vector<288x8xf32>,
    %c38 = arith.constant 38 : index
    %c0_74 = arith.constant 0 : index
    %70 = vector.load %arg6[%c38, %c0_74] : memref<328x4xf32, #tpu.memory_space<vmem>>, vector<288x4xf32>
    %71 = arith.truncf %70 : vector<288x4xf32> to vector<288x4xbf16>
    %c0_75 = arith.constant 0 : index
    %c0_76 = arith.constant 0 : index
    %72 = vector.load %arg7[%c0_75, %c0_76] : memref<288x8xf32, #tpu.memory_space<vmem>>, vector<288x8xf32>
    %c8 = arith.constant 8 : index
    %c0_77 = arith.constant 0 : index
    %c0_78 = arith.constant 0 : index
    %73 = vector.load %arg2[%c8, %c0_77, %c0_78] : memref<9x4x8xbf16, #tpu.memory_space<vmem>>, vector<1x4x8xbf16>
    %74 = vector.shape_cast %73 : vector<1x4x8xbf16> to vector<4x8xbf16>
    %cst_79 = arith.constant dense<0.000000e+00> : vector<288x8xf32>
    %75 = tpu.matmul %71, %74, %cst_79 {dimension_numbers = #tpu.dot_dimension_numbers<[1], [0], [0], [1], [0, 0, 1, 1], [], []>} : vector<288x4xbf16>, vector<4x8xbf16>, vector<288x8xf32> -> vector<288x8xf32>
    %76 = arith.addf %72, %75 : vector<288x8xf32>
    %c0_80 = arith.constant 0 : index
    %c0_81 = arith.constant 0 : index
    %77 = vector.load %arg7[%c0_80, %c0_81] : memref<288x8xf32, #tpu.memory_space<vmem>>, vector<288x8xf32>
    tpu.vector_store %arg7[%c0_80, %c0_81], %76 {strides = array<i32>} : memref<288x8xf32, #tpu.memory_space<vmem>>, vector<288x8xf32>,
    %c0_82 = arith.constant 0 : index
    %c0_83 = arith.constant 0 : index
    %78 = vector.load %arg7[%c0_82, %c0_83] : memref<288x8xf32, #tpu.memory_space<vmem>>, vector<288x8xf32>
    %c0_84 = arith.constant 0 : index
    %c0_85 = arith.constant 0 : index
    %79 = vector.load %arg3[%c0_84, %c0_85] : memref<288x1xf32, #tpu.memory_space<vmem>>, vector<288x1xf32>
    %80 = vector.broadcast %79 : vector<288x1xf32> to vector<288x8xf32>
    %81 = arith.mulf %78, %80 : vector<288x8xf32>
    %cst_86 = arith.constant dense<0.000000e+00> : vector<8xf32>
    %82 = vector.multi_reduction <add>, %81, %cst_86 [0] : vector<288x8xf32> to vector<8xf32>
    %83 = vector.shape_cast %82 : vector<8xf32> to vector<1x8xf32>
    %c0_87 = arith.constant 0 : index
    %c0_88 = arith.constant 0 : index
    %c0_89 = arith.constant 0 : index
    %84 = vector.load %arg4[%c0_87, %c0_88, %c0_89] : memref<1x1x8xf32, #tpu.memory_space<vmem>>, vector<1x1x8xf32>
    %85 = vector.shape_cast %84 : vector<1x1x8xf32> to vector<1x8xf32>
    %86 = vector.shape_cast %83 : vector<1x8xf32> to vector<1x1x8xf32>
    tpu.vector_store %arg4[%c0_87, %c0_88, %c0_89], %86 {strides = array<i32>} : memref<1x1x8xf32, #tpu.memory_space<vmem>>, vector<1x1x8xf32>,
    %87 = arith.mulf %81, %81 : vector<288x8xf32>
    %cst_90 = arith.constant dense<0.000000e+00> : vector<8xf32>
    %88 = vector.multi_reduction <add>, %87, %cst_90 [0] : vector<288x8xf32> to vector<8xf32>
    %89 = vector.shape_cast %88 : vector<8xf32> to vector<1x8xf32>
    %c0_91 = arith.constant 0 : index
    %c0_92 = arith.constant 0 : index
    %c0_93 = arith.constant 0 : index
    %90 = vector.load %arg5[%c0_91, %c0_92, %c0_93] : memref<1x1x8xf32, #tpu.memory_space<vmem>>, vector<1x1x8xf32>
    %91 = vector.shape_cast %90 : vector<1x1x8xf32> to vector<1x8xf32>
    %92 = vector.shape_cast %89 : vector<1x8xf32> to vector<1x1x8xf32>
    tpu.vector_store %arg5[%c0_91, %c0_92, %c0_93], %92 {strides = array<i32>} : memref<1x1x8xf32, #tpu.memory_space<vmem>>, vector<1x1x8xf32>,
    return
  }
  func.func @transform_0(%arg0: i32) -> (i32, i32, i32) {
    %c0_i32 = arith.constant 0 : i32
    %c0_i32_0 = arith.constant 0 : i32
    %c0_i32_1 = arith.constant 0 : i32
    return %arg0, %c0_i32, %c0_i32_0 : i32, i32, i32
  }
  func.func @transform_1(%arg0: i32) -> (i32, i32, i32) {
    %c0_i32 = arith.constant 0 : i32
    %c0_i32_0 = arith.constant 0 : i32
    %c0_i32_1 = arith.constant 0 : i32
    %c0_i32_2 = arith.constant 0 : i32
    return %c0_i32, %c0_i32_0, %c0_i32_1 : i32, i32, i32
  }
  func.func @transform_2(%arg0: i32) -> (i32, i32) {
    %c0_i32 = arith.constant 0 : i32
    %c0_i32_0 = arith.constant 0 : i32
    %c0_i32_1 = arith.constant 0 : i32
    return %c0_i32, %c0_i32_0 : i32, i32
  }
  func.func @transform_3(%arg0: i32) -> (i32, i32, i32) {
    %c0_i32 = arith.constant 0 : i32
    %c0_i32_0 = arith.constant 0 : i32
    %c0_i32_1 = arith.constant 0 : i32
    return %arg0, %c0_i32, %c0_i32_0 : i32, i32, i32
  }
  func.func @transform_4(%arg0: i32) -> (i32, i32, i32) {
    %c0_i32 = arith.constant 0 : i32
    %c0_i32_0 = arith.constant 0 : i32
    %c0_i32_1 = arith.constant 0 : i32
    return %arg0, %c0_i32, %c0_i32_0 : i32, i32, i32
  }
}

module attributes {stable_mosaic.version = 11 : i64} {
  func.func @conv_bn_relu_kernel(%arg0: i32, %arg1: memref<1x328x4xbf16, #tpu.memory_space<vmem>>, %arg2: memref<9x4x8xbf16, #tpu.memory_space<vmem>>, %arg3: memref<1x8xf32, #tpu.memory_space<vmem>>, %arg4: memref<1x8xf32, #tpu.memory_space<vmem>>, %arg5: memref<1x288x8xbf16, #tpu.memory_space<vmem>>, %arg6: memref<328x4xf32, #tpu.memory_space<vmem>>, %arg7: memref<288x8xf32, #tpu.memory_space<vmem>>) attributes {dimension_semantics = [#tpu.dimension_semantics<parallel>], iteration_bounds = array<i64: 2>, scalar_prefetch = 0 : i64, scratch_operands = 2 : i64, tpu.core_type = #tpu.core_type<tc>, window_params = [{transform_indices = @transform_0, window_bounds = array<i64: 1, 328, 4>}, {pipeline_mode = #tpu.pipeline_mode<synchronous>, transform_indices = @transform_1, window_bounds = array<i64: 9, 4, 8>}, {pipeline_mode = #tpu.pipeline_mode<synchronous>, transform_indices = @transform_2, window_bounds = array<i64: 1, 8>}, {pipeline_mode = #tpu.pipeline_mode<synchronous>, transform_indices = @transform_3, window_bounds = array<i64: 1, 8>}, {transform_indices = @transform_4, window_bounds = array<i64: 1, 288, 8>}]} {
    %c0 = arith.constant 0 : index
    %c0_0 = arith.constant 0 : index
    %c0_1 = arith.constant 0 : index
    %0 = vector.load %arg1[%c0, %c0_0, %c0_1] : memref<1x328x4xbf16, #tpu.memory_space<vmem>>, vector<1x328x4xbf16>
    %1 = vector.shape_cast %0 : vector<1x328x4xbf16> to vector<328x4xbf16>
    %2 = arith.extf %1 : vector<328x4xbf16> to vector<328x4xf32>
    %c0_2 = arith.constant 0 : index
    %c0_3 = arith.constant 0 : index
    %3 = vector.load %arg6[%c0_2, %c0_3] : memref<328x4xf32, #tpu.memory_space<vmem>>, vector<328x4xf32>
    tpu.vector_store %arg6[%c0_2, %c0_3], %2 {strides = array<i32>} : memref<328x4xf32, #tpu.memory_space<vmem>>, vector<328x4xf32>,
    %cst = arith.constant 0.000000e+00 : f32
    %4 = vector.broadcast %cst : f32 to vector<288x8xf32>
    %c0_4 = arith.constant 0 : index
    %c0_5 = arith.constant 0 : index
    %5 = vector.load %arg7[%c0_4, %c0_5] : memref<288x8xf32, #tpu.memory_space<vmem>>, vector<288x8xf32>
    tpu.vector_store %arg7[%c0_4, %c0_5], %4 {strides = array<i32>} : memref<288x8xf32, #tpu.memory_space<vmem>>, vector<288x8xf32>,
    %c0_6 = arith.constant 0 : index
    %c0_7 = arith.constant 0 : index
    %6 = vector.load %arg6[%c0_6, %c0_7] : memref<328x4xf32, #tpu.memory_space<vmem>>, vector<288x4xf32>
    %7 = arith.truncf %6 : vector<288x4xf32> to vector<288x4xbf16>
    %c0_8 = arith.constant 0 : index
    %c0_9 = arith.constant 0 : index
    %8 = vector.load %arg7[%c0_8, %c0_9] : memref<288x8xf32, #tpu.memory_space<vmem>>, vector<288x8xf32>
    %c0_10 = arith.constant 0 : index
    %c0_11 = arith.constant 0 : index
    %c0_12 = arith.constant 0 : index
    %9 = vector.load %arg2[%c0_10, %c0_11, %c0_12] : memref<9x4x8xbf16, #tpu.memory_space<vmem>>, vector<1x4x8xbf16>
    %10 = vector.shape_cast %9 : vector<1x4x8xbf16> to vector<4x8xbf16>
    %cst_13 = arith.constant dense<0.000000e+00> : vector<288x8xf32>
    %11 = tpu.matmul %7, %10, %cst_13 {dimension_numbers = #tpu.dot_dimension_numbers<[1], [0], [0], [1], [0, 0, 1, 1], [], []>} : vector<288x4xbf16>, vector<4x8xbf16>, vector<288x8xf32> -> vector<288x8xf32>
    %12 = arith.addf %8, %11 : vector<288x8xf32>
    %c0_14 = arith.constant 0 : index
    %c0_15 = arith.constant 0 : index
    %13 = vector.load %arg7[%c0_14, %c0_15] : memref<288x8xf32, #tpu.memory_space<vmem>>, vector<288x8xf32>
    tpu.vector_store %arg7[%c0_14, %c0_15], %12 {strides = array<i32>} : memref<288x8xf32, #tpu.memory_space<vmem>>, vector<288x8xf32>,
    %c1 = arith.constant 1 : index
    %c0_16 = arith.constant 0 : index
    %14 = vector.load %arg6[%c1, %c0_16] : memref<328x4xf32, #tpu.memory_space<vmem>>, vector<288x4xf32>
    %15 = arith.truncf %14 : vector<288x4xf32> to vector<288x4xbf16>
    %c0_17 = arith.constant 0 : index
    %c0_18 = arith.constant 0 : index
    %16 = vector.load %arg7[%c0_17, %c0_18] : memref<288x8xf32, #tpu.memory_space<vmem>>, vector<288x8xf32>
    %c1_19 = arith.constant 1 : index
    %c0_20 = arith.constant 0 : index
    %c0_21 = arith.constant 0 : index
    %17 = vector.load %arg2[%c1_19, %c0_20, %c0_21] : memref<9x4x8xbf16, #tpu.memory_space<vmem>>, vector<1x4x8xbf16>
    %18 = vector.shape_cast %17 : vector<1x4x8xbf16> to vector<4x8xbf16>
    %cst_22 = arith.constant dense<0.000000e+00> : vector<288x8xf32>
    %19 = tpu.matmul %15, %18, %cst_22 {dimension_numbers = #tpu.dot_dimension_numbers<[1], [0], [0], [1], [0, 0, 1, 1], [], []>} : vector<288x4xbf16>, vector<4x8xbf16>, vector<288x8xf32> -> vector<288x8xf32>
    %20 = arith.addf %16, %19 : vector<288x8xf32>
    %c0_23 = arith.constant 0 : index
    %c0_24 = arith.constant 0 : index
    %21 = vector.load %arg7[%c0_23, %c0_24] : memref<288x8xf32, #tpu.memory_space<vmem>>, vector<288x8xf32>
    tpu.vector_store %arg7[%c0_23, %c0_24], %20 {strides = array<i32>} : memref<288x8xf32, #tpu.memory_space<vmem>>, vector<288x8xf32>,
    %c2 = arith.constant 2 : index
    %c0_25 = arith.constant 0 : index
    %22 = vector.load %arg6[%c2, %c0_25] : memref<328x4xf32, #tpu.memory_space<vmem>>, vector<288x4xf32>
    %23 = arith.truncf %22 : vector<288x4xf32> to vector<288x4xbf16>
    %c0_26 = arith.constant 0 : index
    %c0_27 = arith.constant 0 : index
    %24 = vector.load %arg7[%c0_26, %c0_27] : memref<288x8xf32, #tpu.memory_space<vmem>>, vector<288x8xf32>
    %c2_28 = arith.constant 2 : index
    %c0_29 = arith.constant 0 : index
    %c0_30 = arith.constant 0 : index
    %25 = vector.load %arg2[%c2_28, %c0_29, %c0_30] : memref<9x4x8xbf16, #tpu.memory_space<vmem>>, vector<1x4x8xbf16>
    %26 = vector.shape_cast %25 : vector<1x4x8xbf16> to vector<4x8xbf16>
    %cst_31 = arith.constant dense<0.000000e+00> : vector<288x8xf32>
    %27 = tpu.matmul %23, %26, %cst_31 {dimension_numbers = #tpu.dot_dimension_numbers<[1], [0], [0], [1], [0, 0, 1, 1], [], []>} : vector<288x4xbf16>, vector<4x8xbf16>, vector<288x8xf32> -> vector<288x8xf32>
    %28 = arith.addf %24, %27 : vector<288x8xf32>
    %c0_32 = arith.constant 0 : index
    %c0_33 = arith.constant 0 : index
    %29 = vector.load %arg7[%c0_32, %c0_33] : memref<288x8xf32, #tpu.memory_space<vmem>>, vector<288x8xf32>
    tpu.vector_store %arg7[%c0_32, %c0_33], %28 {strides = array<i32>} : memref<288x8xf32, #tpu.memory_space<vmem>>, vector<288x8xf32>,
    %c18 = arith.constant 18 : index
    %c0_34 = arith.constant 0 : index
    %30 = vector.load %arg6[%c18, %c0_34] : memref<328x4xf32, #tpu.memory_space<vmem>>, vector<288x4xf32>
    %31 = arith.truncf %30 : vector<288x4xf32> to vector<288x4xbf16>
    %c0_35 = arith.constant 0 : index
    %c0_36 = arith.constant 0 : index
    %32 = vector.load %arg7[%c0_35, %c0_36] : memref<288x8xf32, #tpu.memory_space<vmem>>, vector<288x8xf32>
    %c3 = arith.constant 3 : index
    %c0_37 = arith.constant 0 : index
    %c0_38 = arith.constant 0 : index
    %33 = vector.load %arg2[%c3, %c0_37, %c0_38] : memref<9x4x8xbf16, #tpu.memory_space<vmem>>, vector<1x4x8xbf16>
    %34 = vector.shape_cast %33 : vector<1x4x8xbf16> to vector<4x8xbf16>
    %cst_39 = arith.constant dense<0.000000e+00> : vector<288x8xf32>
    %35 = tpu.matmul %31, %34, %cst_39 {dimension_numbers = #tpu.dot_dimension_numbers<[1], [0], [0], [1], [0, 0, 1, 1], [], []>} : vector<288x4xbf16>, vector<4x8xbf16>, vector<288x8xf32> -> vector<288x8xf32>
    %36 = arith.addf %32, %35 : vector<288x8xf32>
    %c0_40 = arith.constant 0 : index
    %c0_41 = arith.constant 0 : index
    %37 = vector.load %arg7[%c0_40, %c0_41] : memref<288x8xf32, #tpu.memory_space<vmem>>, vector<288x8xf32>
    tpu.vector_store %arg7[%c0_40, %c0_41], %36 {strides = array<i32>} : memref<288x8xf32, #tpu.memory_space<vmem>>, vector<288x8xf32>,
    %c19 = arith.constant 19 : index
    %c0_42 = arith.constant 0 : index
    %38 = vector.load %arg6[%c19, %c0_42] : memref<328x4xf32, #tpu.memory_space<vmem>>, vector<288x4xf32>
    %39 = arith.truncf %38 : vector<288x4xf32> to vector<288x4xbf16>
    %c0_43 = arith.constant 0 : index
    %c0_44 = arith.constant 0 : index
    %40 = vector.load %arg7[%c0_43, %c0_44] : memref<288x8xf32, #tpu.memory_space<vmem>>, vector<288x8xf32>
    %c4 = arith.constant 4 : index
    %c0_45 = arith.constant 0 : index
    %c0_46 = arith.constant 0 : index
    %41 = vector.load %arg2[%c4, %c0_45, %c0_46] : memref<9x4x8xbf16, #tpu.memory_space<vmem>>, vector<1x4x8xbf16>
    %42 = vector.shape_cast %41 : vector<1x4x8xbf16> to vector<4x8xbf16>
    %cst_47 = arith.constant dense<0.000000e+00> : vector<288x8xf32>
    %43 = tpu.matmul %39, %42, %cst_47 {dimension_numbers = #tpu.dot_dimension_numbers<[1], [0], [0], [1], [0, 0, 1, 1], [], []>} : vector<288x4xbf16>, vector<4x8xbf16>, vector<288x8xf32> -> vector<288x8xf32>
    %44 = arith.addf %40, %43 : vector<288x8xf32>
    %c0_48 = arith.constant 0 : index
    %c0_49 = arith.constant 0 : index
    %45 = vector.load %arg7[%c0_48, %c0_49] : memref<288x8xf32, #tpu.memory_space<vmem>>, vector<288x8xf32>
    tpu.vector_store %arg7[%c0_48, %c0_49], %44 {strides = array<i32>} : memref<288x8xf32, #tpu.memory_space<vmem>>, vector<288x8xf32>,
    %c20 = arith.constant 20 : index
    %c0_50 = arith.constant 0 : index
    %46 = vector.load %arg6[%c20, %c0_50] : memref<328x4xf32, #tpu.memory_space<vmem>>, vector<288x4xf32>
    %47 = arith.truncf %46 : vector<288x4xf32> to vector<288x4xbf16>
    %c0_51 = arith.constant 0 : index
    %c0_52 = arith.constant 0 : index
    %48 = vector.load %arg7[%c0_51, %c0_52] : memref<288x8xf32, #tpu.memory_space<vmem>>, vector<288x8xf32>
    %c5 = arith.constant 5 : index
    %c0_53 = arith.constant 0 : index
    %c0_54 = arith.constant 0 : index
    %49 = vector.load %arg2[%c5, %c0_53, %c0_54] : memref<9x4x8xbf16, #tpu.memory_space<vmem>>, vector<1x4x8xbf16>
    %50 = vector.shape_cast %49 : vector<1x4x8xbf16> to vector<4x8xbf16>
    %cst_55 = arith.constant dense<0.000000e+00> : vector<288x8xf32>
    %51 = tpu.matmul %47, %50, %cst_55 {dimension_numbers = #tpu.dot_dimension_numbers<[1], [0], [0], [1], [0, 0, 1, 1], [], []>} : vector<288x4xbf16>, vector<4x8xbf16>, vector<288x8xf32> -> vector<288x8xf32>
    %52 = arith.addf %48, %51 : vector<288x8xf32>
    %c0_56 = arith.constant 0 : index
    %c0_57 = arith.constant 0 : index
    %53 = vector.load %arg7[%c0_56, %c0_57] : memref<288x8xf32, #tpu.memory_space<vmem>>, vector<288x8xf32>
    tpu.vector_store %arg7[%c0_56, %c0_57], %52 {strides = array<i32>} : memref<288x8xf32, #tpu.memory_space<vmem>>, vector<288x8xf32>,
    %c36 = arith.constant 36 : index
    %c0_58 = arith.constant 0 : index
    %54 = vector.load %arg6[%c36, %c0_58] : memref<328x4xf32, #tpu.memory_space<vmem>>, vector<288x4xf32>
    %55 = arith.truncf %54 : vector<288x4xf32> to vector<288x4xbf16>
    %c0_59 = arith.constant 0 : index
    %c0_60 = arith.constant 0 : index
    %56 = vector.load %arg7[%c0_59, %c0_60] : memref<288x8xf32, #tpu.memory_space<vmem>>, vector<288x8xf32>
    %c6 = arith.constant 6 : index
    %c0_61 = arith.constant 0 : index
    %c0_62 = arith.constant 0 : index
    %57 = vector.load %arg2[%c6, %c0_61, %c0_62] : memref<9x4x8xbf16, #tpu.memory_space<vmem>>, vector<1x4x8xbf16>
    %58 = vector.shape_cast %57 : vector<1x4x8xbf16> to vector<4x8xbf16>
    %cst_63 = arith.constant dense<0.000000e+00> : vector<288x8xf32>
    %59 = tpu.matmul %55, %58, %cst_63 {dimension_numbers = #tpu.dot_dimension_numbers<[1], [0], [0], [1], [0, 0, 1, 1], [], []>} : vector<288x4xbf16>, vector<4x8xbf16>, vector<288x8xf32> -> vector<288x8xf32>
    %60 = arith.addf %56, %59 : vector<288x8xf32>
    %c0_64 = arith.constant 0 : index
    %c0_65 = arith.constant 0 : index
    %61 = vector.load %arg7[%c0_64, %c0_65] : memref<288x8xf32, #tpu.memory_space<vmem>>, vector<288x8xf32>
    tpu.vector_store %arg7[%c0_64, %c0_65], %60 {strides = array<i32>} : memref<288x8xf32, #tpu.memory_space<vmem>>, vector<288x8xf32>,
    %c37 = arith.constant 37 : index
    %c0_66 = arith.constant 0 : index
    %62 = vector.load %arg6[%c37, %c0_66] : memref<328x4xf32, #tpu.memory_space<vmem>>, vector<288x4xf32>
    %63 = arith.truncf %62 : vector<288x4xf32> to vector<288x4xbf16>
    %c0_67 = arith.constant 0 : index
    %c0_68 = arith.constant 0 : index
    %64 = vector.load %arg7[%c0_67, %c0_68] : memref<288x8xf32, #tpu.memory_space<vmem>>, vector<288x8xf32>
    %c7 = arith.constant 7 : index
    %c0_69 = arith.constant 0 : index
    %c0_70 = arith.constant 0 : index
    %65 = vector.load %arg2[%c7, %c0_69, %c0_70] : memref<9x4x8xbf16, #tpu.memory_space<vmem>>, vector<1x4x8xbf16>
    %66 = vector.shape_cast %65 : vector<1x4x8xbf16> to vector<4x8xbf16>
    %cst_71 = arith.constant dense<0.000000e+00> : vector<288x8xf32>
    %67 = tpu.matmul %63, %66, %cst_71 {dimension_numbers = #tpu.dot_dimension_numbers<[1], [0], [0], [1], [0, 0, 1, 1], [], []>} : vector<288x4xbf16>, vector<4x8xbf16>, vector<288x8xf32> -> vector<288x8xf32>
    %68 = arith.addf %64, %67 : vector<288x8xf32>
    %c0_72 = arith.constant 0 : index
    %c0_73 = arith.constant 0 : index
    %69 = vector.load %arg7[%c0_72, %c0_73] : memref<288x8xf32, #tpu.memory_space<vmem>>, vector<288x8xf32>
    tpu.vector_store %arg7[%c0_72, %c0_73], %68 {strides = array<i32>} : memref<288x8xf32, #tpu.memory_space<vmem>>, vector<288x8xf32>,
    %c38 = arith.constant 38 : index
    %c0_74 = arith.constant 0 : index
    %70 = vector.load %arg6[%c38, %c0_74] : memref<328x4xf32, #tpu.memory_space<vmem>>, vector<288x4xf32>
    %71 = arith.truncf %70 : vector<288x4xf32> to vector<288x4xbf16>
    %c0_75 = arith.constant 0 : index
    %c0_76 = arith.constant 0 : index
    %72 = vector.load %arg7[%c0_75, %c0_76] : memref<288x8xf32, #tpu.memory_space<vmem>>, vector<288x8xf32>
    %c8 = arith.constant 8 : index
    %c0_77 = arith.constant 0 : index
    %c0_78 = arith.constant 0 : index
    %73 = vector.load %arg2[%c8, %c0_77, %c0_78] : memref<9x4x8xbf16, #tpu.memory_space<vmem>>, vector<1x4x8xbf16>
    %74 = vector.shape_cast %73 : vector<1x4x8xbf16> to vector<4x8xbf16>
    %cst_79 = arith.constant dense<0.000000e+00> : vector<288x8xf32>
    %75 = tpu.matmul %71, %74, %cst_79 {dimension_numbers = #tpu.dot_dimension_numbers<[1], [0], [0], [1], [0, 0, 1, 1], [], []>} : vector<288x4xbf16>, vector<4x8xbf16>, vector<288x8xf32> -> vector<288x8xf32>
    %76 = arith.addf %72, %75 : vector<288x8xf32>
    %c0_80 = arith.constant 0 : index
    %c0_81 = arith.constant 0 : index
    %77 = vector.load %arg7[%c0_80, %c0_81] : memref<288x8xf32, #tpu.memory_space<vmem>>, vector<288x8xf32>
    tpu.vector_store %arg7[%c0_80, %c0_81], %76 {strides = array<i32>} : memref<288x8xf32, #tpu.memory_space<vmem>>, vector<288x8xf32>,
    %c0_82 = arith.constant 0 : index
    %c0_83 = arith.constant 0 : index
    %78 = vector.load %arg7[%c0_82, %c0_83] : memref<288x8xf32, #tpu.memory_space<vmem>>, vector<288x8xf32>
    %c0_84 = arith.constant 0 : index
    %c0_85 = arith.constant 0 : index
    %79 = vector.load %arg3[%c0_84, %c0_85] : memref<1x8xf32, #tpu.memory_space<vmem>>, vector<1x8xf32>
    %80 = vector.broadcast %79 : vector<1x8xf32> to vector<288x8xf32>
    %81 = arith.mulf %78, %80 : vector<288x8xf32>
    %c0_86 = arith.constant 0 : index
    %c0_87 = arith.constant 0 : index
    %82 = vector.load %arg4[%c0_86, %c0_87] : memref<1x8xf32, #tpu.memory_space<vmem>>, vector<1x8xf32>
    %83 = vector.broadcast %82 : vector<1x8xf32> to vector<288x8xf32>
    %84 = arith.addf %81, %83 : vector<288x8xf32>
    %cst_88 = arith.constant 0.000000e+00 : f32
    %85 = vector.broadcast %cst_88 : f32 to vector<288x8xf32>
    %86 = arith.maximumf %84, %85 : vector<288x8xf32>
    %87 = arith.truncf %86 : vector<288x8xf32> to vector<288x8xbf16>
    %c0_89 = arith.constant 0 : index
    %c0_90 = arith.constant 0 : index
    %c0_91 = arith.constant 0 : index
    %88 = vector.load %arg5[%c0_89, %c0_90, %c0_91] : memref<1x288x8xbf16, #tpu.memory_space<vmem>>, vector<1x288x8xbf16>
    %89 = vector.shape_cast %88 : vector<1x288x8xbf16> to vector<288x8xbf16>
    %90 = vector.shape_cast %87 : vector<288x8xbf16> to vector<1x288x8xbf16>
    tpu.vector_store %arg5[%c0_89, %c0_90, %c0_91], %90 {strides = array<i32>} : memref<1x288x8xbf16, #tpu.memory_space<vmem>>, vector<1x288x8xbf16>,
    return
  }
  func.func @transform_0(%arg0: i32) -> (i32, i32, i32) {
    %c0_i32 = arith.constant 0 : i32
    %c0_i32_0 = arith.constant 0 : i32
    %c0_i32_1 = arith.constant 0 : i32
    return %arg0, %c0_i32, %c0_i32_0 : i32, i32, i32
  }
  func.func @transform_1(%arg0: i32) -> (i32, i32, i32) {
    %c0_i32 = arith.constant 0 : i32
    %c0_i32_0 = arith.constant 0 : i32
    %c0_i32_1 = arith.constant 0 : i32
    %c0_i32_2 = arith.constant 0 : i32
    return %c0_i32, %c0_i32_0, %c0_i32_1 : i32, i32, i32
  }
  func.func @transform_2(%arg0: i32) -> (i32, i32) {
    %c0_i32 = arith.constant 0 : i32
    %c0_i32_0 = arith.constant 0 : i32
    %c0_i32_1 = arith.constant 0 : i32
    return %c0_i32, %c0_i32_0 : i32, i32
  }
  func.func @transform_3(%arg0: i32) -> (i32, i32) {
    %c0_i32 = arith.constant 0 : i32
    %c0_i32_0 = arith.constant 0 : i32
    %c0_i32_1 = arith.constant 0 : i32
    return %c0_i32, %c0_i32_0 : i32, i32
  }
  func.func @transform_4(%arg0: i32) -> (i32, i32, i32) {
    %c0_i32 = arith.constant 0 : i32
    %c0_i32_0 = arith.constant 0 : i32
    %c0_i32_1 = arith.constant 0 : i32
    return %arg0, %c0_i32, %c0_i32_0 : i32, i32, i32
  }
}

</mosaic_0001>

<llo_original>
// kernel: base_conv.2
$region0: #{base_conv.2}
  #allocation0 [shape = 'u32[]', space=smem, size = 0x4, offset = 0x4, fixed_abs, tag = 'smem constant byte address 0x4 - core index']
  #allocation1 [shape = 'u32[144,128]{1,0:T(1,128)}', space=vmem, size = 0x12000, scoped, tag = 'internal scratch']
  #allocation2 [shape = 'f32[328,4]{1,0:T(8,128)}', space=vmem, size = 0x29000, scoped, tag = 'scratch operand']
  #allocation3 [shape = 'f32[288,8]{1,0:T(8,128)}', space=vmem, size = 0x24000, scoped, tag = 'scratch operand']
  %s0 = inlined_call_operand.vmem [shape: bf16[2,328,4], index: 0, kind: input, shape index: {}]
  %s1 = inlined_call_operand.vmem [shape: bf16[9,4,8], index: 1, kind: input, shape index: {}]
  %s2 = inlined_call_operand.vmem [shape: f32[288,1], index: 2, kind: input, shape index: {}]
  %s3 = inlined_call_operand.vmem [shape: f32[2,1,8], index: 3, kind: output, shape index: {0}]
  %s4 = inlined_call_operand.vmem [shape: f32[2,1,8], index: 4, kind: output, shape index: {1}]
  %5 = xla_tuple %s3, %s4
  %s6 = sld [smem:[#allocation0]]
  $region53: #{base_conv.2} parent=0
    _
  %s8 = ssub.s32 1, %s6
  %s9 = scalar_select 0, %s8, %s6
  loop: start=0, step=1, limit=4
  $region2: #{base_conv.2} parent=0 // loop_pre_header
    _
  $region3: #{base_conv.2} parent=0 // loop_header
    %s11 = sphi 0, %s15
    %p12 = scmp.ge.s32.totalorder %s11, 4
    %s21 = sphi 0, %s23
    %s24 = sphi 0, %s21
    %s25 = sphi 0, %s24
    %s41 = sphi 0, %s25
    %s45 = sphi 0, %s45
    %s47 = sphi 0, %s45
    %s48 = sphi 0, %s47
    %s62 = sphi 0, %s48
    %s66 = sphi 0, %s66
    %s68 = sphi 0, %s66
    %s69 = sphi 0, %s68
    %s83 = sphi 0, %s69
    %s89 = sphi 0, %s91
    %s92 = sphi 0, %s89
    %s93 = sphi 0, %s92
    %s109 = sphi 0, %s93
    %s115 = sphi 0, %s117
    %s118 = sphi 0, %s115
    %s119 = sphi 0, %s118
    %s135 = sphi 0, %s119
  $region4: #{base_conv.2} parent=0 // loop_header_branch
    %14 = sbr.rel (%p12) target = $region8
  $region5: #{base_conv.2} parent=0 // loop_body
    %s16 = ssub.s32 %s11, 1
    %s17 = ssub.s32 %s11, 2
    %s18 = sadd.s32 %s11, 1
    %s19 = ssub.s32 %s11, %s18
    %p20 = scmp.eq.s32.totalorder %s19, 0
    %s22 = sadd.s32 %s21, 1
    %s23 = scalar_select %p20, %s21, %s22
    %p26 = pneg %p20
    %p27 = scmp.eq.s32.totalorder %s11, 1
    %p28 = por %p26, %p27
    %p29 = scmp.ne.s32.totalorder %s21, %s24
    %p30 = scmp.eq.s32.totalorder %s11, 0
    %p31 = por %p29, %p30
    %p32 = scmp.ne.s32.totalorder %s21, %s24
    %p33 = scmp.eq.s32.totalorder %s16, 1
    %p34 = por %p32, %p33
    %p35 = scmp.ne.s32.totalorder %s24, %s25
    %p36 = scmp.eq.s32.totalorder %s16, 0
    %p37 = por %p35, %p36
    %p38 = scmp.ne.s32.totalorder %s24, %s25
    %p39 = scmp.eq.s32.totalorder %s17, 1
    %p40 = por %p38, %p39
    %p42 = scmp.ne.s32.totalorder %s25, %s41
    %p43 = scmp.eq.s32.totalorder %s17, 0
    %p44 = por %p42, %p43
    %s46 = sadd.s32 %s45, 1
    %p49 = scmp.eq.s32.totalorder %s11, 1
    %p50 = scmp.ne.s32.totalorder %s45, %s47
    %p51 = scmp.eq.s32.totalorder %s11, 0
    %p52 = por %p50, %p51
    %p53 = scmp.ne.s32.totalorder %s45, %s47
    %p54 = scmp.eq.s32.totalorder %s16, 1
    %p55 = por %p53, %p54
    %p56 = scmp.ne.s32.totalorder %s47, %s48
    %p57 = scmp.eq.s32.totalorder %s16, 0
    %p58 = por %p56, %p57
    %p59 = scmp.ne.s32.totalorder %s47, %s48
    %p60 = scmp.eq.s32.totalorder %s17, 1
    %p61 = por %p59, %p60
    %p63 = scmp.ne.s32.totalorder %s48, %s62
    %p64 = scmp.eq.s32.totalorder %s17, 0
    %p65 = por %p63, %p64
    %s67 = sadd.s32 %s66, 1
    %p70 = scmp.eq.s32.totalorder %s11, 1
    %p71 = scmp.ne.s32.totalorder %s66, %s68
    %p72 = scmp.eq.s32.totalorder %s11, 0
    %p73 = por %p71, %p72
    %p74 = scmp.ne.s32.totalorder %s66, %s68
    %p75 = scmp.eq.s32.totalorder %s16, 1
    %p76 = por %p74, %p75
    %p77 = scmp.ne.s32.totalorder %s68, %s69
    %p78 = scmp.eq.s32.totalorder %s16, 0
    %p79 = por %p77, %p78
    %p80 = scmp.ne.s32.totalorder %s68, %s69
    %p81 = scmp.eq.s32.totalorder %s17, 1
    %p82 = por %p80, %p81
    %p84 = scmp.ne.s32.totalorder %s69, %s83
    %p85 = scmp.eq.s32.totalorder %s17, 0
    %p86 = por %p84, %p85
    %s87 = ssub.s32 %s11, %s18
    %p88 = scmp.eq.s32.totalorder %s87, 0
    %s90 = sadd.s32 %s89, 1
    %s91 = scalar_select %p88, %s89, %s90
    %p94 = pneg %p88
    %p95 = scmp.eq.s32.totalorder %s11, 1
    %p96 = por %p94, %p95
    %p97 = scmp.ne.s32.totalorder %s89, %s92
    %p98 = scmp.eq.s32.totalorder %s11, 0
    %p99 = por %p97, %p98
    %p100 = scmp.ne.s32.totalorder %s89, %s92
    %p101 = scmp.eq.s32.totalorder %s16, 1
    %p102 = por %p100, %p101
    %p103 = scmp.ne.s32.totalorder %s92, %s93
    %p104 = scmp.eq.s32.totalorder %s16, 0
    %p105 = por %p103, %p104
    %p106 = scmp.ne.s32.totalorder %s92, %s93
    %p107 = scmp.eq.s32.totalorder %s17, 1
    %p108 = por %p106, %p107
    %p110 = scmp.ne.s32.totalorder %s93, %s109
    %p111 = scmp.eq.s32.totalorder %s17, 0
    %p112 = por %p110, %p111
    %s113 = ssub.s32 %s11, %s18
    %p114 = scmp.eq.s32.totalorder %s113, 0
    %s116 = sadd.s32 %s115, 1
    %s117 = scalar_select %p114, %s115, %s116
    %p120 = pneg %p114
    %p121 = scmp.eq.s32.totalorder %s11, 1
    %p122 = por %p120, %p121
    %p123 = scmp.ne.s32.totalorder %s115, %s118
    %p124 = scmp.eq.s32.totalorder %s11, 0
    %p125 = por %p123, %p124
    %p126 = scmp.ne.s32.totalorder %s115, %s118
    %p127 = scmp.eq.s32.totalorder %s16, 1
    %p128 = por %p126, %p127
    %p129 = scmp.ne.s32.totalorder %s118, %s119
    %p130 = scmp.eq.s32.totalorder %s16, 0
    %p131 = por %p129, %p130
    %p132 = scmp.ne.s32.totalorder %s118, %s119
    %p133 = scmp.eq.s32.totalorder %s17, 1
    %p134 = por %p132, %p133
    %p136 = scmp.ne.s32.totalorder %s119, %s135
    %p137 = scmp.eq.s32.totalorder %s17, 0
    %p138 = por %p136, %p137
    %p139 = scmp.le.s32.totalorder 1, %s11
    %p140 = scmp.lt.s32.totalorder %s11, 3
    %p141 = pnand %p139, %p140
    %p142 = pneg %p141
    // Predicated region
    $region9: #{base_conv.2} parent=5 // pred_check
      _
    $region10: #{base_conv.2} parent=5 // pred_check_branch
      %144 = sbr.rel (%p141) target = $region12
    $region11: #{base_conv.2} parent=5 // pred_region
      %s145 = ssub.s32 %s11, 1
      // Predicated region
      $region13: #{base_conv.2} parent=11 // pred_check
        %p146 = pneg %p58
      $region14: #{base_conv.2} parent=11 // pred_check_branch
        %148 = sbr.rel (%p146) target = $region16
      $region15: #{base_conv.2} parent=11 // pred_region
        _
      $region16: #{base_conv.2} parent=11 // pred_fallthru
        _
      // Predicated region
      $region17: #{base_conv.2} parent=11 // pred_check
        %p149 = pneg %p79
      $region18: #{base_conv.2} parent=11 // pred_check_branch
        %151 = sbr.rel (%p149) target = $region20
      $region19: #{base_conv.2} parent=11 // pred_region
        _
      $region20: #{base_conv.2} parent=11 // pred_fallthru
        _
    $region12: #{base_conv.2} parent=5 // pred_fallthru
      _
    %p152 = scmp.lt.s32.totalorder %s11, 2
    // Predicated region
    $region21: #{base_conv.2} parent=5 // pred_check
      %p153 = pneg %p152
    $region22: #{base_conv.2} parent=5 // pred_check_branch
      %155 = sbr.rel (%p153) target = $region24
    $region23: #{base_conv.2} parent=5 // pred_region
      // Predicated region
      $region25: #{base_conv.2} parent=23 // pred_check
        %p156 = pneg %p31
      $region26: #{base_conv.2} parent=23 // pred_check_branch
        %158 = sbr.rel (%p156) target = $region28
      $region27: #{base_conv.2} parent=23 // pred_region
        %p159 = scmp.lt.s32.totalorder %s11, 1
        %s160 = scalar_select %p159, %s11, 1
        %s161 = smul.addr %s160, 41
        %s162 = smul.addr %s161, 4
        %s163 = scalar_lea.vmem %s0, %s162
      $region28: #{base_conv.2} parent=23 // pred_fallthru
        _
    $region24: #{base_conv.2} parent=5 // pred_fallthru
      _
    %p164 = scmp.le.s32.totalorder 1, %s11
    %p165 = scmp.lt.s32.totalorder %s11, 3
    %p166 = pnand %p164, %p165
    %p167 = pneg %p166
    // Predicated region
    $region29: #{base_conv.2} parent=5 // pred_check
      _
    $region30: #{base_conv.2} parent=5 // pred_check_branch
      %169 = sbr.rel (%p166) target = $region32
    $region31: #{base_conv.2} parent=5 // pred_region
      %s170 = ssub.s32 %s11, 1
      %p171 = scmp.lt.s32.totalorder %s16, 1
      %s172 = scalar_select %p171, %s16, 1
      %s173 = smul.addr %s172, 41
      %s174 = smul.addr %s173, 4
      %s175 = scalar_lea.vmem %s0, %s174
      %p176 = pneg %p37
      %p177 = pneg %p34
      %p178 = pneg %p58
      %p179 = pneg %p55
      %p180 = pneg %p79
      %p181 = pneg %p76
      %p182 = pneg %p105
      %p183 = pneg %p102
      %p184 = scmp.lt.s32.totalorder %s16, 1
      %s185 = scalar_select %p184, %s16, 1
      %s186 = scalar_lea.vmem %s3, %s185
      %p187 = pneg %p131
      %p188 = pneg %p128
      %p189 = scmp.lt.s32.totalorder %s16, 1
      %s190 = scalar_select %p189, %s16, 1
      %s191 = scalar_lea.vmem %s4, %s190
      %p192 = scmp.lt.s32.totalorder %s16, 1
      %s193 = scalar_select %p192, %s16, 1
      %s194 = smul.addr %s193, 41
      %s195 = smul.addr %s194, 4
      %s196 = scalar_lea.vmem %s0, %s195
      %p197 = scmp.lt.s32.totalorder %s16, 1
      %s198 = scalar_select %p197, %s16, 1
      %s199 = scalar_lea.vmem %s3, %s198
      %p200 = scmp.lt.s32.totalorder %s16, 1
      %s201 = scalar_select %p200, %s16, 1
      %s202 = scalar_lea.vmem %s4, %s201
      %v204 = vld [vmem:[%s196] sm:$0xf]
      %v205 = vld [vmem:[%s196 + $0x4] sm:$0xf]
      %v206 = vld [vmem:[%s196 + $0x8] sm:$0xf]
      %v207 = vld [vmem:[%s196 + $0xc] sm:$0xf]
      %v208 = vld [vmem:[%s196 + $0x10] sm:$0xf]
      %v209 = vld [vmem:[%s196 + $0x14] sm:$0xf]
      %v210 = vld [vmem:[%s196 + $0x18] sm:$0xf]
      %v211 = vld [vmem:[%s196 + $0x1c] sm:$0xf]
      %v212 = vld [vmem:[%s196 + $0x20] sm:$0xf]
      %v213 = vld [vmem:[%s196 + $0x24] sm:$0xf]
      %v214 = vld [vmem:[%s196 + $0x28] sm:$0xf]
      %v215 = vld [vmem:[%s196 + $0x2c] sm:$0xf]
      %v216 = vld [vmem:[%s196 + $0x30] sm:$0xf]
      %v217 = vld [vmem:[%s196 + $0x34] sm:$0xf]
      %v218 = vld [vmem:[%s196 + $0x38] sm:$0xf]
      %v219 = vld [vmem:[%s196 + $0x3c] sm:$0xf]
      %v220 = vld [vmem:[%s196 + $0x40] sm:$0xf]
      %v221 = vld [vmem:[%s196 + $0x44] sm:$0xf]
      %v222 = vld [vmem:[%s196 + $0x48] sm:$0xf]
      %v223 = vld [vmem:[%s196 + $0x4c] sm:$0xf]
      %v224 = vld [vmem:[%s196 + $0x50] sm:$0xf]
      %v225 = vld [vmem:[%s196 + $0x54] sm:$0xf]
      %v226 = vld [vmem:[%s196 + $0x58] sm:$0xf]
      %v227 = vld [vmem:[%s196 + $0x5c] sm:$0xf]
      %v228 = vld [vmem:[%s196 + $0x60] sm:$0xf]
      %v229 = vld [vmem:[%s196 + $0x64] sm:$0xf]
      %v230 = vld [vmem:[%s196 + $0x68] sm:$0xf]
      %v231 = vld [vmem:[%s196 + $0x6c] sm:$0xf]
      %v232 = vld [vmem:[%s196 + $0x70] sm:$0xf]
      %v233 = vld [vmem:[%s196 + $0x74] sm:$0xf]
      %v234 = vld [vmem:[%s196 + $0x78] sm:$0xf]
      %v235 = vld [vmem:[%s196 + $0x7c] sm:$0xf]
      %v236 = vld [vmem:[%s196 + $0x80] sm:$0xf]
      %v237 = vld [vmem:[%s196 + $0x84] sm:$0xf]
      %v238 = vld [vmem:[%s196 + $0x88] sm:$0xf]
      %v239 = vld [vmem:[%s196 + $0x8c] sm:$0xf]
      %v240 = vld [vmem:[%s196 + $0x90] sm:$0xf]
      %v241 = vld [vmem:[%s196 + $0x94] sm:$0xf]
      %v242 = vld [vmem:[%s196 + $0x98] sm:$0xf]
      %v243 = vld [vmem:[%s196 + $0x9c] sm:$0xf]
      %v244 = vld [vmem:[%s196 + $0xa0] sm:$0xf]
      %v245 = vunpack.c.l.bf16 %v204
      %v246 = vunpack.c.l.bf16 %v205
      %v247 = vunpack.c.l.bf16 %v206
      %v248 = vunpack.c.l.bf16 %v207
      %v249 = vunpack.c.l.bf16 %v208
      %v250 = vunpack.c.l.bf16 %v209
      %v251 = vunpack.c.l.bf16 %v210
      %v252 = vunpack.c.l.bf16 %v211
      %v253 = vunpack.c.l.bf16 %v212
      %v254 = vunpack.c.l.bf16 %v213
      %v255 = vunpack.c.l.bf16 %v214
      %v256 = vunpack.c.l.bf16 %v215
      %v257 = vunpack.c.l.bf16 %v216
      %v258 = vunpack.c.l.bf16 %v217
      %v259 = vunpack.c.l.bf16 %v218
      %v260 = vunpack.c.l.bf16 %v219
      %v261 = vunpack.c.l.bf16 %v220
      %v262 = vunpack.c.l.bf16 %v221
      %v263 = vunpack.c.l.bf16 %v222
      %v264 = vunpack.c.l.bf16 %v223
      %v265 = vunpack.c.l.bf16 %v224
      %v266 = vunpack.c.l.bf16 %v225
      %v267 = vunpack.c.l.bf16 %v226
      %v268 = vunpack.c.l.bf16 %v227
      %v269 = vunpack.c.l.bf16 %v228
      %v270 = vunpack.c.l.bf16 %v229
      %v271 = vunpack.c.l.bf16 %v230
      %v272 = vunpack.c.l.bf16 %v231
      %v273 = vunpack.c.l.bf16 %v232
      %v274 = vunpack.c.l.bf16 %v233
      %v275 = vunpack.c.l.bf16 %v234
      %v276 = vunpack.c.l.bf16 %v235
      %v277 = vunpack.c.l.bf16 %v236
      %v278 = vunpack.c.l.bf16 %v237
      %v279 = vunpack.c.l.bf16 %v238
      %v280 = vunpack.c.l.bf16 %v239
      %v281 = vunpack.c.l.bf16 %v240
      %v282 = vunpack.c.l.bf16 %v241
      %v283 = vunpack.c.l.bf16 %v242
      %v284 = vunpack.c.l.bf16 %v243
      %v285 = vunpack.c.l.bf16 %v244
      %vm286 = vcmask 31744
      %287 = vst.msk [vmem:[#allocation2] sm:$0xff] %vm286, %v245
      %288 = vst.msk [vmem:[#allocation2 + $0x8] sm:$0xff] %vm286, %v246
      %289 = vst.msk [vmem:[#allocation2 + $0x10] sm:$0xff] %vm286, %v247
      %290 = vst.msk [vmem:[#allocation2 + $0x18] sm:$0xff] %vm286, %v248
      %291 = vst.msk [vmem:[#allocation2 + $0x20] sm:$0xff] %vm286, %v249
      %292 = vst.msk [vmem:[#allocation2 + $0x28] sm:$0xff] %vm286, %v250
      %293 = vst.msk [vmem:[#allocation2 + $0x30] sm:$0xff] %vm286, %v251
      %294 = vst.msk [vmem:[#allocation2 + $0x38] sm:$0xff] %vm286, %v252
      %295 = vst.msk [vmem:[#allocation2 + $0x40] sm:$0xff] %vm286, %v253
      %296 = vst.msk [vmem:[#allocation2 + $0x48] sm:$0xff] %vm286, %v254
      %297 = vst.msk [vmem:[#allocation2 + $0x50] sm:$0xff] %vm286, %v255
      %298 = vst.msk [vmem:[#allocation2 + $0x58] sm:$0xff] %vm286, %v256
      %299 = vst.msk [vmem:[#allocation2 + $0x60] sm:$0xff] %vm286, %v257
      %300 = vst.msk [vmem:[#allocation2 + $0x68] sm:$0xff] %vm286, %v258
      %301 = vst.msk [vmem:[#allocation2 + $0x70] sm:$0xff] %vm286, %v259
      %302 = vst.msk [vmem:[#allocation2 + $0x78] sm:$0xff] %vm286, %v260
      %303 = vst.msk [vmem:[#allocation2 + $0x80] sm:$0xff] %vm286, %v261
      %304 = vst.msk [vmem:[#allocation2 + $0x88] sm:$0xff] %vm286, %v262
      %305 = vst.msk [vmem:[#allocation2 + $0x90] sm:$0xff] %vm286, %v263
      %306 = vst.msk [vmem:[#allocation2 + $0x98] sm:$0xff] %vm286, %v264
      %307 = vst.msk [vmem:[#allocation2 + $0xa0] sm:$0xff] %vm286, %v265
      %308 = vst.msk [vmem:[#allocation2 + $0xa8] sm:$0xff] %vm286, %v266
      %309 = vst.msk [vmem:[#allocation2 + $0xb0] sm:$0xff] %vm286, %v267
      %310 = vst.msk [vmem:[#allocation2 + $0xb8] sm:$0xff] %vm286, %v268
      %311 = vst.msk [vmem:[#allocation2 + $0xc0] sm:$0xff] %vm286, %v269
      %312 = vst.msk [vmem:[#allocation2 + $0xc8] sm:$0xff] %vm286, %v270
      %313 = vst.msk [vmem:[#allocation2 + $0xd0] sm:$0xff] %vm286, %v271
      %314 = vst.msk [vmem:[#allocation2 + $0xd8] sm:$0xff] %vm286, %v272
      %315 = vst.msk [vmem:[#allocation2 + $0xe0] sm:$0xff] %vm286, %v273
      %316 = vst.msk [vmem:[#allocation2 + $0xe8] sm:$0xff] %vm286, %v274
      %317 = vst.msk [vmem:[#allocation2 + $0xf0] sm:$0xff] %vm286, %v275
      %318 = vst.msk [vmem:[#allocation2 + $0xf8] sm:$0xff] %vm286, %v276
      %319 = vst.msk [vmem:[#allocation2 + $0x100] sm:$0xff] %vm286, %v277
      %320 = vst.msk [vmem:[#allocation2 + $0x108] sm:$0xff] %vm286, %v278
      %321 = vst.msk [vmem:[#allocation2 + $0x110] sm:$0xff] %vm286, %v279
      %322 = vst.msk [vmem:[#allocation2 + $0x118] sm:$0xff] %vm286, %v280
      %323 = vst.msk [vmem:[#allocation2 + $0x120] sm:$0xff] %vm286, %v281
      %324 = vst.msk [vmem:[#allocation2 + $0x128] sm:$0xff] %vm286, %v282
      %325 = vst.msk [vmem:[#allocation2 + $0x130] sm:$0xff] %vm286, %v283
      %326 = vst.msk [vmem:[#allocation2 + $0x138] sm:$0xff] %vm286, %v284
      %327 = vst.msk [vmem:[#allocation2 + $0x140] sm:$0xff] %vm286, %v285
      %vm328 = vcmask 64512
      %329 = vst.msk [vmem:[#allocation3] sm:$0xff] %vm328, 0.0
      %330 = vst.msk [vmem:[#allocation3 + $0x8] sm:$0xff] %vm328, 0.0
      %331 = vst.msk [vmem:[#allocation3 + $0x10] sm:$0xff] %vm328, 0.0
      %332 = vst.msk [vmem:[#allocation3 + $0x18] sm:$0xff] %vm328, 0.0
      %333 = vst.msk [vmem:[#allocation3 + $0x20] sm:$0xff] %vm328, 0.0
      %334 = vst.msk [vmem:[#allocation3 + $0x28] sm:$0xff] %vm328, 0.0
      %335 = vst.msk [vmem:[#allocation3 + $0x30] sm:$0xff] %vm328, 0.0
      %336 = vst.msk [vmem:[#allocation3 + $0x38] sm:$0xff] %vm328, 0.0
      %337 = vst.msk [vmem:[#allocation3 + $0x40] sm:$0xff] %vm328, 0.0
      %338 = vst.msk [vmem:[#allocation3 + $0x48] sm:$0xff] %vm328, 0.0
      %339 = vst.msk [vmem:[#allocation3 + $0x50] sm:$0xff] %vm328, 0.0
      %340 = vst.msk [vmem:[#allocation3 + $0x58] sm:$0xff] %vm328, 0.0
      %341 = vst.msk [vmem:[#allocation3 + $0x60] sm:$0xff] %vm328, 0.0
      %342 = vst.msk [vmem:[#allocation3 + $0x68] sm:$0xff] %vm328, 0.0
      %343 = vst.msk [vmem:[#allocation3 + $0x70] sm:$0xff] %vm328, 0.0
      %344 = vst.msk [vmem:[#allocation3 + $0x78] sm:$0xff] %vm328, 0.0
      %345 = vst.msk [vmem:[#allocation3 + $0x80] sm:$0xff] %vm328, 0.0
      %346 = vst.msk [vmem:[#allocation3 + $0x88] sm:$0xff] %vm328, 0.0
      %347 = vst.msk [vmem:[#allocation3 + $0x90] sm:$0xff] %vm328, 0.0
      %348 = vst.msk [vmem:[#allocation3 + $0x98] sm:$0xff] %vm328, 0.0
      %349 = vst.msk [vmem:[#allocation3 + $0xa0] sm:$0xff] %vm328, 0.0
      %350 = vst.msk [vmem:[#allocation3 + $0xa8] sm:$0xff] %vm328, 0.0
      %351 = vst.msk [vmem:[#allocation3 + $0xb0] sm:$0xff] %vm328, 0.0
      %352 = vst.msk [vmem:[#allocation3 + $0xb8] sm:$0xff] %vm328, 0.0
      %353 = vst.msk [vmem:[#allocation3 + $0xc0] sm:$0xff] %vm328, 0.0
      %354 = vst.msk [vmem:[#allocation3 + $0xc8] sm:$0xff] %vm328, 0.0
      %355 = vst.msk [vmem:[#allocation3 + $0xd0] sm:$0xff] %vm328, 0.0
      %356 = vst.msk [vmem:[#allocation3 + $0xd8] sm:$0xff] %vm328, 0.0
      %357 = vst.msk [vmem:[#allocation3 + $0xe0] sm:$0xff] %vm328, 0.0
      %358 = vst.msk [vmem:[#allocation3 + $0xe8] sm:$0xff] %vm328, 0.0
      %359 = vst.msk [vmem:[#allocation3 + $0xf0] sm:$0xff] %vm328, 0.0
      %360 = vst.msk [vmem:[#allocation3 + $0xf8] sm:$0xff] %vm328, 0.0
      %361 = vst.msk [vmem:[#allocation3 + $0x100] sm:$0xff] %vm328, 0.0
      %362 = vst.msk [vmem:[#allocation3 + $0x108] sm:$0xff] %vm328, 0.0
      %363 = vst.msk [vmem:[#allocation3 + $0x110] sm:$0xff] %vm328, 0.0
      %364 = vst.msk [vmem:[#allocation3 + $0x118] sm:$0xff] %vm328, 0.0
      %v365 = vld [vmem:[#allocation2] sm:$0xff]
      %v366 = vld [vmem:[#allocation2 + $0x8] sm:$0xff]
      %v367 = vld [vmem:[#allocation2 + $0x10] sm:$0xff]
      %v368 = vld [vmem:[#allocation2 + $0x18] sm:$0xff]
      %v369 = vld [vmem:[#allocation2 + $0x20] sm:$0xff]
      %v370 = vld [vmem:[#allocation2 + $0x28] sm:$0xff]
      %v371 = vld [vmem:[#allocation2 + $0x30] sm:$0xff]
      %v372 = vld [vmem:[#allocation2 + $0x38] sm:$0xff]
      %v373 = vld [vmem:[#allocation2 + $0x40] sm:$0xff]
      %v374 = vld [vmem:[#allocation2 + $0x48] sm:$0xff]
      %v375 = vld [vmem:[#allocation2 + $0x50] sm:$0xff]
      %v376 = vld [vmem:[#allocation2 + $0x58] sm:$0xff]
      %v377 = vld [vmem:[#allocation2 + $0x60] sm:$0xff]
      %v378 = vld [vmem:[#allocation2 + $0x68] sm:$0xff]
      %v379 = vld [vmem:[#allocation2 + $0x70] sm:$0xff]
      %v380 = vld [vmem:[#allocation2 + $0x78] sm:$0xff]
      %v381 = vld [vmem:[#allocation2 + $0x80] sm:$0xff]
      %v382 = vld [vmem:[#allocation2 + $0x88] sm:$0xff]
      %v383 = vld [vmem:[#allocation2 + $0x90] sm:$0xff]
      %v384 = vld [vmem:[#allocation2 + $0x98] sm:$0xff]
      %v385 = vld [vmem:[#allocation2 + $0xa0] sm:$0xff]
      %v386 = vld [vmem:[#allocation2 + $0xa8] sm:$0xff]
      %v387 = vld [vmem:[#allocation2 + $0xb0] sm:$0xff]
      %v388 = vld [vmem:[#allocation2 + $0xb8] sm:$0xff]
      %v389 = vld [vmem:[#allocation2 + $0xc0] sm:$0xff]
      %v390 = vld [vmem:[#allocation2 + $0xc8] sm:$0xff]
      %v391 = vld [vmem:[#allocation2 + $0xd0] sm:$0xff]
      %v392 = vld [vmem:[#allocation2 + $0xd8] sm:$0xff]
      %v393 = vld [vmem:[#allocation2 + $0xe0] sm:$0xff]
      %v394 = vld [vmem:[#allocation2 + $0xe8] sm:$0xff]
      %v395 = vld [vmem:[#allocation2 + $0xf0] sm:$0xff]
      %v396 = vld [vmem:[#allocation2 + $0xf8] sm:$0xff]
      %v397 = vld [vmem:[#allocation2 + $0x100] sm:$0xff]
      %v398 = vld [vmem:[#allocation2 + $0x108] sm:$0xff]
      %v399 = vld [vmem:[#allocation2 + $0x110] sm:$0xff]
      %v400 = vld [vmem:[#allocation2 + $0x118] sm:$0xff]
      %v401 = vpack.c.bf16 %v366, %v365
      %v402 = vpack.c.bf16 %v368, %v367
      %v403 = vpack.c.bf16 %v370, %v369
      %v404 = vpack.c.bf16 %v372, %v371
      %v405 = vpack.c.bf16 %v374, %v373
      %v406 = vpack.c.bf16 %v376, %v375
      %v407 = vpack.c.bf16 %v378, %v377
      %v408 = vpack.c.bf16 %v380, %v379
      %v409 = vpack.c.bf16 %v382, %v381
      %v410 = vpack.c.bf16 %v384, %v383
      %v411 = vpack.c.bf16 %v386, %v385
      %v412 = vpack.c.bf16 %v388, %v387
      %v413 = vpack.c.bf16 %v390, %v389
      %v414 = vpack.c.bf16 %v392, %v391
      %v415 = vpack.c.bf16 %v394, %v393
      %v416 = vpack.c.bf16 %v396, %v395
      %v417 = vpack.c.bf16 %v398, %v397
      %v418 = vpack.c.bf16 %v400, %v399
      %v419 = vld [vmem:[#allocation3] sm:$0xff]
      %v420 = vld [vmem:[#allocation3 + $0x8] sm:$0xff]
      %v421 = vld [vmem:[#allocation3 + $0x10] sm:$0xff]
      %v422 = vld [vmem:[#allocation3 + $0x18] sm:$0xff]
      %v423 = vld [vmem:[#allocation3 + $0x20] sm:$0xff]
      %v424 = vld [vmem:[#allocation3 + $0x28] sm:$0xff]
      %v425 = vld [vmem:[#allocation3 + $0x30] sm:$0xff]
      %v426 = vld [vmem:[#allocation3 + $0x38] sm:$0xff]
      %v427 = vld [vmem:[#allocation3 + $0x40] sm:$0xff]
      %v428 = vld [vmem:[#allocation3 + $0x48] sm:$0xff]
      %v429 = vld [vmem:[#allocation3 + $0x50] sm:$0xff]
      %v430 = vld [vmem:[#allocation3 + $0x58] sm:$0xff]
      %v431 = vld [vmem:[#allocation3 + $0x60] sm:$0xff]
      %v432 = vld [vmem:[#allocation3 + $0x68] sm:$0xff]
      %v433 = vld [vmem:[#allocation3 + $0x70] sm:$0xff]
      %v434 = vld [vmem:[#allocation3 + $0x78] sm:$0xff]
      %v435 = vld [vmem:[#allocation3 + $0x80] sm:$0xff]
      %v436 = vld [vmem:[#allocation3 + $0x88] sm:$0xff]
      %v437 = vld [vmem:[#allocation3 + $0x90] sm:$0xff]
      %v438 = vld [vmem:[#allocation3 + $0x98] sm:$0xff]
      %v439 = vld [vmem:[#allocation3 + $0xa0] sm:$0xff]
      %v440 = vld [vmem:[#allocation3 + $0xa8] sm:$0xff]
      %v441 = vld [vmem:[#allocation3 + $0xb0] sm:$0xff]
      %v442 = vld [vmem:[#allocation3 + $0xb8] sm:$0xff]
      %v443 = vld [vmem:[#allocation3 + $0xc0] sm:$0xff]
      %v444 = vld [vmem:[#allocation3 + $0xc8] sm:$0xff]
      %v445 = vld [vmem:[#allocation3 + $0xd0] sm:$0xff]
      %v446 = vld [vmem:[#allocation3 + $0xd8] sm:$0xff]
      %v447 = vld [vmem:[#allocation3 + $0xe0] sm:$0xff]
      %v448 = vld [vmem:[#allocation3 + $0xe8] sm:$0xff]
      %v449 = vld [vmem:[#allocation3 + $0xf0] sm:$0xff]
      %v450 = vld [vmem:[#allocation3 + $0xf8] sm:$0xff]
      %v451 = vld [vmem:[#allocation3 + $0x100] sm:$0xff]
      %v452 = vld [vmem:[#allocation3 + $0x108] sm:$0xff]
      %v453 = vld [vmem:[#allocation3 + $0x110] sm:$0xff]
      %v454 = vld [vmem:[#allocation3 + $0x118] sm:$0xff]
      %v455 = vld [vmem:[%s1] sm:$0x3]
      %v457 = vsel %vm286, %v401, 0
      %v460 = vsel %vm286, %v402, 0
      %v463 = vsel %vm286, %v403, 0
      %v466 = vsel %vm286, %v404, 0
      %v469 = vsel %vm286, %v405, 0
      %v472 = vsel %vm286, %v406, 0
      %v475 = vsel %vm286, %v407, 0
      %v478 = vsel %vm286, %v408, 0
      %v481 = vsel %vm286, %v409, 0
      %v484 = vsel %vm286, %v410, 0
      %v487 = vsel %vm286, %v411, 0
      %v490 = vsel %vm286, %v412, 0
      %v493 = vsel %vm286, %v413, 0
      %v496 = vsel %vm286, %v414, 0
      %v499 = vsel %vm286, %v415, 0
      %v502 = vsel %vm286, %v416, 0
      %v505 = vsel %vm286, %v417, 0
      %v508 = vsel %vm286, %v418, 0
      %vm510 = vcmask 1041408
      %v512 = vsel %vm510, %v455, 0
      %514 = vmatprep.subr.bf16.mxu0 0
      %515 = vmatpush1.bf16.msra.mxu0 0
      %516 = vmatprep.subr.bf16.mxu0 0
      %517 = vmatpush1.bf16.msra.mxu0 0
      %518 = vmatprep.subr.bf16.mxu0 0
      %519 = vmatpush1.bf16.msra.mxu0 0
      %520 = vmatprep.subr.bf16.mxu0 0
      %521 = vmatpush1.bf16.msra.mxu0 0
      %522 = vmatprep.subr.bf16.mxu0 0
      %523 = vmatpush1.bf16.msra.mxu0 0
      %524 = vmatprep.subr.bf16.mxu0 0
      %525 = vmatpush1.bf16.msra.mxu0 0
      %526 = vmatprep.subr.bf16.mxu0 0
      %527 = vmatpush1.bf16.msra.mxu0 0
      %528 = vmatprep.subr.bf16.mxu0 0
      %529 = vmatpush1.bf16.msra.mxu0 %v512
      %530 = vmatprep.subr.bf16.mxu0 0
      %531 = vmatpush2.bf16.msra.mxu0 0
      %532 = vmatprep.subr.bf16.mxu0 0
      %533 = vmatpush2.bf16.msra.mxu0 0
      %534 = vmatprep.subr.bf16.mxu0 0
      %535 = vmatpush2.bf16.msra.mxu0 0
      %536 = vmatprep.subr.bf16.mxu0 0
      %537 = vmatpush2.bf16.msra.mxu0 0
      %538 = vmatprep.subr.bf16.mxu0 0
      %539 = vmatpush2.bf16.msra.mxu0 0
      %540 = vmatprep.subr.bf16.mxu0 0
      %541 = vmatpush2.bf16.msra.mxu0 0
      %542 = vmatprep.subr.bf16.mxu0 0
      %543 = vmatpush2.bf16.msra.mxu0 0
      %544 = vmatprep.subr.bf16.mxu0 0
      %545 = vmatpush2.bf16.msra.mxu0 0
      %546 = vmatprep.mubr.bf16.mxu0 0
      %547 = vmatmul.mubr.bf16.gmra.mxu0 %v457
      %v548 = vpop.f32.mrf.mxu0
      %v549 = vadd.f32 0.0, %v548
      %v550 = vpop.f32.mrf.mxu0
      %v551 = vpop.f32.mrf.mxu0
      %v552 = vadd.f32 0.0, %v551
      %v553 = vpop.f32.mrf.mxu0
      %554 = vmatprep.mubr.bf16.mxu0 0
      %555 = vmatmul.mubr.bf16.gmra.mxu0 %v460
      %v556 = vpop.f32.mrf.mxu0
      %v557 = vadd.f32 0.0, %v556
      %v558 = vpop.f32.mrf.mxu0
      %v559 = vpop.f32.mrf.mxu0
      %v560 = vadd.f32 0.0, %v559
      %v561 = vpop.f32.mrf.mxu0
      %562 = vmatprep.mubr.bf16.mxu0 0
      %563 = vmatmul.mubr.bf16.gmra.mxu0 %v463
      %v564 = vpop.f32.mrf.mxu0
      %v565 = vadd.f32 0.0, %v564
      %v566 = vpop.f32.mrf.mxu0
      %v567 = vpop.f32.mrf.mxu0
      %v568 = vadd.f32 0.0, %v567
      %v569 = vpop.f32.mrf.mxu0
      %570 = vmatprep.mubr.bf16.mxu0 0
      %571 = vmatmul.mubr.bf16.gmra.mxu0 %v466
      %v572 = vpop.f32.mrf.mxu0
      %v573 = vadd.f32 0.0, %v572
      %v574 = vpop.f32.mrf.mxu0
      %v575 = vpop.f32.mrf.mxu0
      %v576 = vadd.f32 0.0, %v575
      %v577 = vpop.f32.mrf.mxu0
      %578 = vmatprep.mubr.bf16.mxu0 0
      %579 = vmatmul.mubr.bf16.gmra.mxu0 %v469
      %v580 = vpop.f32.mrf.mxu0
      %v581 = vadd.f32 0.0, %v580
      %v582 = vpop.f32.mrf.mxu0
      %v583 = vpop.f32.mrf.mxu0
      %v584 = vadd.f32 0.0, %v583
      %v585 = vpop.f32.mrf.mxu0
      %586 = vmatprep.mubr.bf16.mxu0 0
      %587 = vmatmul.mubr.bf16.gmra.mxu0 %v472
      %v588 = vpop.f32.mrf.mxu0
      %v589 = vadd.f32 0.0, %v588
      %v590 = vpop.f32.mrf.mxu0
      %v591 = vpop.f32.mrf.mxu0
      %v592 = vadd.f32 0.0, %v591
      %v593 = vpop.f32.mrf.mxu0
      %594 = vmatprep.mubr.bf16.mxu0 0
      %595 = vmatmul.mubr.bf16.gmra.mxu0 %v475
      %v596 = vpop.f32.mrf.mxu0
      %v597 = vadd.f32 0.0, %v596
      %v598 = vpop.f32.mrf.mxu0
      %v599 = vpop.f32.mrf.mxu0
      %v600 = vadd.f32 0.0, %v599
      %v601 = vpop.f32.mrf.mxu0
      %602 = vmatprep.mubr.bf16.mxu0 0
      %603 = vmatmul.mubr.bf16.gmra.mxu0 %v478
      %v604 = vpop.f32.mrf.mxu0
      %v605 = vadd.f32 0.0, %v604
      %v606 = vpop.f32.mrf.mxu0
      %v607 = vpop.f32.mrf.mxu0
      %v608 = vadd.f32 0.0, %v607
      %v609 = vpop.f32.mrf.mxu0
      %610 = vmatprep.mubr.bf16.mxu0 0
      %611 = vmatmul.mubr.bf16.gmra.mxu0 %v481
      %v612 = vpop.f32.mrf.mxu0
      %v613 = vadd.f32 0.0, %v612
      %v614 = vpop.f32.mrf.mxu0
      %v615 = vpop.f32.mrf.mxu0
      %v616 = vadd.f32 0.0, %v615
      %v617 = vpop.f32.mrf.mxu0
      %618 = vmatprep.mubr.bf16.mxu0 0
      %619 = vmatmul.mubr.bf16.gmra.mxu0 %v484
      %v620 = vpop.f32.mrf.mxu0
      %v621 = vadd.f32 0.0, %v620
      %v622 = vpop.f32.mrf.mxu0
      %v623 = vpop.f32.mrf.mxu0
      %v624 = vadd.f32 0.0, %v623
      %v625 = vpop.f32.mrf.mxu0
      %626 = vmatprep.mubr.bf16.mxu0 0
      %627 = vmatmul.mubr.bf16.gmra.mxu0 %v487
      %v628 = vpop.f32.mrf.mxu0
      %v629 = vadd.f32 0.0, %v628
      %v630 = vpop.f32.mrf.mxu0
      %v631 = vpop.f32.mrf.mxu0
      %v632 = vadd.f32 0.0, %v631
      %v633 = vpop.f32.mrf.mxu0
      %634 = vmatprep.mubr.bf16.mxu0 0
      %635 = vmatmul.mubr.bf16.gmra.mxu0 %v490
      %v636 = vpop.f32.mrf.mxu0
      %v637 = vadd.f32 0.0, %v636
      %v638 = vpop.f32.mrf.mxu0
      %v639 = vpop.f32.mrf.mxu0
      %v640 = vadd.f32 0.0, %v639
      %v641 = vpop.f32.mrf.mxu0
      %642 = vmatprep.mubr.bf16.mxu0 0
      %643 = vmatmul.mubr.bf16.gmra.mxu0 %v493
      %v644 = vpop.f32.mrf.mxu0
      %v645 = vadd.f32 0.0, %v644
      %v646 = vpop.f32.mrf.mxu0
      %v647 = vpop.f32.mrf.mxu0
      %v648 = vadd.f32 0.0, %v647
      %v649 = vpop.f32.mrf.mxu0
      %650 = vmatprep.mubr.bf16.mxu0 0
      %651 = vmatmul.mubr.bf16.gmra.mxu0 %v496
      %v652 = vpop.f32.mrf.mxu0
      %v653 = vadd.f32 0.0, %v652
      %v654 = vpop.f32.mrf.mxu0
      %v655 = vpop.f32.mrf.mxu0
      %v656 = vadd.f32 0.0, %v655
      %v657 = vpop.f32.mrf.mxu0
      %658 = vmatprep.mubr.bf16.mxu0 0
      %659 = vmatmul.mubr.bf16.gmra.mxu0 %v499
      %v660 = vpop.f32.mrf.mxu0
      %v661 = vadd.f32 0.0, %v660
      %v662 = vpop.f32.mrf.mxu0
      %v663 = vpop.f32.mrf.mxu0
      %v664 = vadd.f32 0.0, %v663
      %v665 = vpop.f32.mrf.mxu0
      %666 = vmatprep.mubr.bf16.mxu0 0
      %667 = vmatmul.mubr.bf16.gmra.mxu0 %v502
      %v668 = vpop.f32.mrf.mxu0
      %v669 = vadd.f32 0.0, %v668
      %v670 = vpop.f32.mrf.mxu0
      %v671 = vpop.f32.mrf.mxu0
      %v672 = vadd.f32 0.0, %v671
      %v673 = vpop.f32.mrf.mxu0
      %674 = vmatprep.mubr.bf16.mxu0 0
      %675 = vmatmul.mubr.bf16.gmra.mxu0 %v505
      %v676 = vpop.f32.mrf.mxu0
      %v677 = vadd.f32 0.0, %v676
      %v678 = vpop.f32.mrf.mxu0
      %v679 = vpop.f32.mrf.mxu0
      %v680 = vadd.f32 0.0, %v679
      %v681 = vpop.f32.mrf.mxu0
      %682 = vmatprep.mubr.bf16.mxu0 0
      %683 = vmatmul.mubr.bf16.gmra.mxu0 %v508
      %v684 = vpop.f32.mrf.mxu0
      %v685 = vadd.f32 0.0, %v684
      %v686 = vpop.f32.mrf.mxu0
      %v687 = vpop.f32.mrf.mxu0
      %v688 = vadd.f32 0.0, %v687
      %v689 = vpop.f32.mrf.mxu0
      %690 = vdwg.mxu0
      %v691 = vadd.f32 %v419, %v549
      %v692 = vadd.f32 %v420, %v552
      %v693 = vadd.f32 %v421, %v557
      %v694 = vadd.f32 %v422, %v560
      %v695 = vadd.f32 %v423, %v565
      %v696 = vadd.f32 %v424, %v568
      %v697 = vadd.f32 %v425, %v573
      %v698 = vadd.f32 %v426, %v576
      %v699 = vadd.f32 %v427, %v581
      %v700 = vadd.f32 %v428, %v584
      %v701 = vadd.f32 %v429, %v589
      %v702 = vadd.f32 %v430, %v592
      %v703 = vadd.f32 %v431, %v597
      %v704 = vadd.f32 %v432, %v600
      %v705 = vadd.f32 %v433, %v605
      %v706 = vadd.f32 %v434, %v608
      %v707 = vadd.f32 %v435, %v613
      %v708 = vadd.f32 %v436, %v616
      %v709 = vadd.f32 %v437, %v621
      %v710 = vadd.f32 %v438, %v624
      %v711 = vadd.f32 %v439, %v629
      %v712 = vadd.f32 %v440, %v632
      %v713 = vadd.f32 %v441, %v637
      %v714 = vadd.f32 %v442, %v640
      %v715 = vadd.f32 %v443, %v645
      %v716 = vadd.f32 %v444, %v648
      %v717 = vadd.f32 %v445, %v653
      %v718 = vadd.f32 %v446, %v656
      %v719 = vadd.f32 %v447, %v661
      %v720 = vadd.f32 %v448, %v664
      %v721 = vadd.f32 %v449, %v669
      %v722 = vadd.f32 %v450, %v672
      %v723 = vadd.f32 %v451, %v677
      %v724 = vadd.f32 %v452, %v680
      %v725 = vadd.f32 %v453, %v685
      %v726 = vadd.f32 %v454, %v688
      %727 = vst.msk [vmem:[#allocation3] sm:$0xff] %vm328, %v691
      %728 = vst.msk [vmem:[#allocation3 + $0x8] sm:$0xff] %vm328, %v692
      %729 = vst.msk [vmem:[#allocation3 + $0x10] sm:$0xff] %vm328, %v693
      %730 = vst.msk [vmem:[#allocation3 + $0x18] sm:$0xff] %vm328, %v694
      %731 = vst.msk [vmem:[#allocation3 + $0x20] sm:$0xff] %vm328, %v695
      %732 = vst.msk [vmem:[#allocation3 + $0x28] sm:$0xff] %vm328, %v696
      %733 = vst.msk [vmem:[#allocation3 + $0x30] sm:$0xff] %vm328, %v697
      %734 = vst.msk [vmem:[#allocation3 + $0x38] sm:$0xff] %vm328, %v698
      %735 = vst.msk [vmem:[#allocation3 + $0x40] sm:$0xff] %vm328, %v699
      %736 = vst.msk [vmem:[#allocation3 + $0x48] sm:$0xff] %vm328, %v700
      %737 = vst.msk [vmem:[#allocation3 + $0x50] sm:$0xff] %vm328, %v701
      %738 = vst.msk [vmem:[#allocation3 + $0x58] sm:$0xff] %vm328, %v702
      %739 = vst.msk [vmem:[#allocation3 + $0x60] sm:$0xff] %vm328, %v703
      %740 = vst.msk [vmem:[#allocation3 + $0x68] sm:$0xff] %vm328, %v704
      %741 = vst.msk [vmem:[#allocation3 + $0x70] sm:$0xff] %vm328, %v705
      %742 = vst.msk [vmem:[#allocation3 + $0x78] sm:$0xff] %vm328, %v706
      %743 = vst.msk [vmem:[#allocation3 + $0x80] sm:$0xff] %vm328, %v707
      %744 = vst.msk [vmem:[#allocation3 + $0x88] sm:$0xff] %vm328, %v708
      %745 = vst.msk [vmem:[#allocation3 + $0x90] sm:$0xff] %vm328, %v709
      %746 = vst.msk [vmem:[#allocation3 + $0x98] sm:$0xff] %vm328, %v710
      %747 = vst.msk [vmem:[#allocation3 + $0xa0] sm:$0xff] %vm328, %v711
      %748 = vst.msk [vmem:[#allocation3 + $0xa8] sm:$0xff] %vm328, %v712
      %749 = vst.msk [vmem:[#allocation3 + $0xb0] sm:$0xff] %vm328, %v713
      %750 = vst.msk [vmem:[#allocation3 + $0xb8] sm:$0xff] %vm328, %v714
      %751 = vst.msk [vmem:[#allocation3 + $0xc0] sm:$0xff] %vm328, %v715
      %752 = vst.msk [vmem:[#allocation3 + $0xc8] sm:$0xff] %vm328, %v716
      %753 = vst.msk [vmem:[#allocation3 + $0xd0] sm:$0xff] %vm328, %v717
      %754 = vst.msk [vmem:[#allocation3 + $0xd8] sm:$0xff] %vm328, %v718
      %755 = vst.msk [vmem:[#allocation3 + $0xe0] sm:$0xff] %vm328, %v719
      %756 = vst.msk [vmem:[#allocation3 + $0xe8] sm:$0xff] %vm328, %v720
      %757 = vst.msk [vmem:[#allocation3 + $0xf0] sm:$0xff] %vm328, %v721
      %758 = vst.msk [vmem:[#allocation3 + $0xf8] sm:$0xff] %vm328, %v722
      %759 = vst.msk [vmem:[#allocation3 + $0x100] sm:$0xff] %vm328, %v723
      %760 = vst.msk [vmem:[#allocation3 + $0x108] sm:$0xff] %vm328, %v724
      %761 = vst.msk [vmem:[#allocation3 + $0x110] sm:$0xff] %vm328, %v725
      %762 = vst.msk [vmem:[#allocation3 + $0x118] sm:$0xff] %vm328, %v726
      %v763 = vld [vmem:[#allocation2 + $0x1] sm:$0xff]
      %v764 = vld [vmem:[#allocation2 + $0x9] sm:$0xff]
      %v765 = vld [vmem:[#allocation2 + $0x11] sm:$0xff]
      %v766 = vld [vmem:[#allocation2 + $0x19] sm:$0xff]
      %v767 = vld [vmem:[#allocation2 + $0x21] sm:$0xff]
      %v768 = vld [vmem:[#allocation2 + $0x29] sm:$0xff]
      %v769 = vld [vmem:[#allocation2 + $0x31] sm:$0xff]
      %v770 = vld [vmem:[#allocation2 + $0x39] sm:$0xff]
      %v771 = vld [vmem:[#allocation2 + $0x41] sm:$0xff]
      %v772 = vld [vmem:[#allocation2 + $0x49] sm:$0xff]
      %v773 = vld [vmem:[#allocation2 + $0x51] sm:$0xff]
      %v774 = vld [vmem:[#allocation2 + $0x59] sm:$0xff]
      %v775 = vld [vmem:[#allocation2 + $0x61] sm:$0xff]
      %v776 = vld [vmem:[#allocation2 + $0x69] sm:$0xff]
      %v777 = vld [vmem:[#allocation2 + $0x71] sm:$0xff]
      %v778 = vld [vmem:[#allocation2 + $0x79] sm:$0xff]
      %v779 = vld [vmem:[#allocation2 + $0x81] sm:$0xff]
      %v780 = vld [vmem:[#allocation2 + $0x89] sm:$0xff]
      %v781 = vld [vmem:[#allocation2 + $0x91] sm:$0xff]
      %v782 = vld [vmem:[#allocation2 + $0x99] sm:$0xff]
      %v783 = vld [vmem:[#allocation2 + $0xa1] sm:$0xff]
      %v784 = vld [vmem:[#allocation2 + $0xa9] sm:$0xff]
      %v785 = vld [vmem:[#allocation2 + $0xb1] sm:$0xff]
      %v786 = vld [vmem:[#allocation2 + $0xb9] sm:$0xff]
      %v787 = vld [vmem:[#allocation2 + $0xc1] sm:$0xff]
      %v788 = vld [vmem:[#allocation2 + $0xc9] sm:$0xff]
      %v789 = vld [vmem:[#allocation2 + $0xd1] sm:$0xff]
      %v790 = vld [vmem:[#allocation2 + $0xd9] sm:$0xff]
      %v791 = vld [vmem:[#allocation2 + $0xe1] sm:$0xff]
      %v792 = vld [vmem:[#allocation2 + $0xe9] sm:$0xff]
      %v793 = vld [vmem:[#allocation2 + $0xf1] sm:$0xff]
      %v794 = vld [vmem:[#allocation2 + $0xf9] sm:$0xff]
      %v795 = vld [vmem:[#allocation2 + $0x101] sm:$0xff]
      %v796 = vld [vmem:[#allocation2 + $0x109] sm:$0xff]
      %v797 = vld [vmem:[#allocation2 + $0x111] sm:$0xff]
      %v798 = vld [vmem:[#allocation2 + $0x119] sm:$0xff]
      %v799 = vpack.c.bf16 %v764, %v763
      %v800 = vpack.c.bf16 %v766, %v765
      %v801 = vpack.c.bf16 %v768, %v767
      %v802 = vpack.c.bf16 %v770, %v769
      %v803 = vpack.c.bf16 %v772, %v771
      %v804 = vpack.c.bf16 %v774, %v773
      %v805 = vpack.c.bf16 %v776, %v775
      %v806 = vpack.c.bf16 %v778, %v777
      %v807 = vpack.c.bf16 %v780, %v779
      %v808 = vpack.c.bf16 %v782, %v781
      %v809 = vpack.c.bf16 %v784, %v783
      %v810 = vpack.c.bf16 %v786, %v785
      %v811 = vpack.c.bf16 %v788, %v787
      %v812 = vpack.c.bf16 %v790, %v789
      %v813 = vpack.c.bf16 %v792, %v791
      %v814 = vpack.c.bf16 %v794, %v793
      %v815 = vpack.c.bf16 %v796, %v795
      %v816 = vpack.c.bf16 %v798, %v797
      %v817 = vld [vmem:[#allocation3] sm:$0xff]
      %v818 = vld [vmem:[#allocation3 + $0x8] sm:$0xff]
      %v819 = vld [vmem:[#allocation3 + $0x10] sm:$0xff]
      %v820 = vld [vmem:[#allocation3 + $0x18] sm:$0xff]
      %v821 = vld [vmem:[#allocation3 + $0x20] sm:$0xff]
      %v822 = vld [vmem:[#allocation3 + $0x28] sm:$0xff]
      %v823 = vld [vmem:[#allocation3 + $0x30] sm:$0xff]
      %v824 = vld [vmem:[#allocation3 + $0x38] sm:$0xff]
      %v825 = vld [vmem:[#allocation3 + $0x40] sm:$0xff]
      %v826 = vld [vmem:[#allocation3 + $0x48] sm:$0xff]
      %v827 = vld [vmem:[#allocation3 + $0x50] sm:$0xff]
      %v828 = vld [vmem:[#allocation3 + $0x58] sm:$0xff]
      %v829 = vld [vmem:[#allocation3 + $0x60] sm:$0xff]
      %v830 = vld [vmem:[#allocation3 + $0x68] sm:$0xff]
      %v831 = vld [vmem:[#allocation3 + $0x70] sm:$0xff]
      %v832 = vld [vmem:[#allocation3 + $0x78] sm:$0xff]
      %v833 = vld [vmem:[#allocation3 + $0x80] sm:$0xff]
      %v834 = vld [vmem:[#allocation3 + $0x88] sm:$0xff]
      %v835 = vld [vmem:[#allocation3 + $0x90] sm:$0xff]
      %v836 = vld [vmem:[#allocation3 + $0x98] sm:$0xff]
      %v837 = vld [vmem:[#allocation3 + $0xa0] sm:$0xff]
      %v838 = vld [vmem:[#allocation3 + $0xa8] sm:$0xff]
      %v839 = vld [vmem:[#allocation3 + $0xb0] sm:$0xff]
      %v840 = vld [vmem:[#allocation3 + $0xb8] sm:$0xff]
      %v841 = vld [vmem:[#allocation3 + $0xc0] sm:$0xff]
      %v842 = vld [vmem:[#allocation3 + $0xc8] sm:$0xff]
      %v843 = vld [vmem:[#allocation3 + $0xd0] sm:$0xff]
      %v844 = vld [vmem:[#allocation3 + $0xd8] sm:$0xff]
      %v845 = vld [vmem:[#allocation3 + $0xe0] sm:$0xff]
      %v846 = vld [vmem:[#allocation3 + $0xe8] sm:$0xff]
      %v847 = vld [vmem:[#allocation3 + $0xf0] sm:$0xff]
      %v848 = vld [vmem:[#allocation3 + $0xf8] sm:$0xff]
      %v849 = vld [vmem:[#allocation3 + $0x100] sm:$0xff]
      %v850 = vld [vmem:[#allocation3 + $0x108] sm:$0xff]
      %v851 = vld [vmem:[#allocation3 + $0x110] sm:$0xff]
      %v852 = vld [vmem:[#allocation3 + $0x118] sm:$0xff]
      %s853 = scalar_lea.vmem %s1, 2
      %v854 = vld [vmem:[%s853] sm:$0x3]
      %v856 = vsel %vm286, %v799, 0
      %v859 = vsel %vm286, %v800, 0
      %v862 = vsel %vm286, %v801, 0
      %v865 = vsel %vm286, %v802, 0
      %v868 = vsel %vm286, %v803, 0
      %v871 = vsel %vm286, %v804, 0
      %v874 = vsel %vm286, %v805, 0
      %v877 = vsel %vm286, %v806, 0
      %v880 = vsel %vm286, %v807, 0
      %v883 = vsel %vm286, %v808, 0
      %v886 = vsel %vm286, %v809, 0
      %v889 = vsel %vm286, %v810, 0
      %v892 = vsel %vm286, %v811, 0
      %v895 = vsel %vm286, %v812, 0
      %v898 = vsel %vm286, %v813, 0
      %v901 = vsel %vm286, %v814, 0
      %v904 = vsel %vm286, %v815, 0
      %v907 = vsel %vm286, %v816, 0
      %v910 = vsel %vm510, %v854, 0
      %912 = vmatprep.subr.bf16.mxu0 0
      %913 = vmatpush1.bf16.msra.mxu0 0
      %914 = vmatprep.subr.bf16.mxu0 0
      %915 = vmatpush1.bf16.msra.mxu0 0
      %916 = vmatprep.subr.bf16.mxu0 0
      %917 = vmatpush1.bf16.msra.mxu0 0
      %918 = vmatprep.subr.bf16.mxu0 0
      %919 = vmatpush1.bf16.msra.mxu0 0
      %920 = vmatprep.subr.bf16.mxu0 0
      %921 = vmatpush1.bf16.msra.mxu0 0
      %922 = vmatprep.subr.bf16.mxu0 0
      %923 = vmatpush1.bf16.msra.mxu0 0
      %924 = vmatprep.subr.bf16.mxu0 0
      %925 = vmatpush1.bf16.msra.mxu0 0
      %926 = vmatprep.subr.bf16.mxu0 0
      %927 = vmatpush1.bf16.msra.mxu0 %v910
      %928 = vmatprep.subr.bf16.mxu0 0
      %929 = vmatpush2.bf16.msra.mxu0 0
      %930 = vmatprep.subr.bf16.mxu0 0
      %931 = vmatpush2.bf16.msra.mxu0 0
      %932 = vmatprep.subr.bf16.mxu0 0
      %933 = vmatpush2.bf16.msra.mxu0 0
      %934 = vmatprep.subr.bf16.mxu0 0
      %935 = vmatpush2.bf16.msra.mxu0 0
      %936 = vmatprep.subr.bf16.mxu0 0
      %937 = vmatpush2.bf16.msra.mxu0 0
      %938 = vmatprep.subr.bf16.mxu0 0
      %939 = vmatpush2.bf16.msra.mxu0 0
      %940 = vmatprep.subr.bf16.mxu0 0
      %941 = vmatpush2.bf16.msra.mxu0 0
      %942 = vmatprep.subr.bf16.mxu0 0
      %943 = vmatpush2.bf16.msra.mxu0 0
      %944 = vmatprep.mubr.bf16.mxu0 0
      %945 = vmatmul.mubr.bf16.gmra.mxu0 %v856
      %v946 = vpop.f32.mrf.mxu0
      %v947 = vadd.f32 0.0, %v946
      %v948 = vpop.f32.mrf.mxu0
      %v949 = vpop.f32.mrf.mxu0
      %v950 = vadd.f32 0.0, %v949
      %v951 = vpop.f32.mrf.mxu0
      %952 = vmatprep.mubr.bf16.mxu0 0
      %953 = vmatmul.mubr.bf16.gmra.mxu0 %v859
      %v954 = vpop.f32.mrf.mxu0
      %v955 = vadd.f32 0.0, %v954
      %v956 = vpop.f32.mrf.mxu0
      %v957 = vpop.f32.mrf.mxu0
      %v958 = vadd.f32 0.0, %v957
      %v959 = vpop.f32.mrf.mxu0
      %960 = vmatprep.mubr.bf16.mxu0 0
      %961 = vmatmul.mubr.bf16.gmra.mxu0 %v862
      %v962 = vpop.f32.mrf.mxu0
      %v963 = vadd.f32 0.0, %v962
      %v964 = vpop.f32.mrf.mxu0
      %v965 = vpop.f32.mrf.mxu0
      %v966 = vadd.f32 0.0, %v965
      %v967 = vpop.f32.mrf.mxu0
      %968 = vmatprep.mubr.bf16.mxu0 0
      %969 = vmatmul.mubr.bf16.gmra.mxu0 %v865
      %v970 = vpop.f32.mrf.mxu0
      %v971 = vadd.f32 0.0, %v970
      %v972 = vpop.f32.mrf.mxu0
      %v973 = vpop.f32.mrf.mxu0
      %v974 = vadd.f32 0.0, %v973
      %v975 = vpop.f32.mrf.mxu0
      %976 = vmatprep.mubr.bf16.mxu0 0
      %977 = vmatmul.mubr.bf16.gmra.mxu0 %v868
      %v978 = vpop.f32.mrf.mxu0
      %v979 = vadd.f32 0.0, %v978
      %v980 = vpop.f32.mrf.mxu0
      %v981 = vpop.f32.mrf.mxu0
      %v982 = vadd.f32 0.0, %v981
      %v983 = vpop.f32.mrf.mxu0
      %984 = vmatprep.mubr.bf16.mxu0 0
      %985 = vmatmul.mubr.bf16.gmra.mxu0 %v871
      %v986 = vpop.f32.mrf.mxu0
      %v987 = vadd.f32 0.0, %v986
      %v988 = vpop.f32.mrf.mxu0
      %v989 = vpop.f32.mrf.mxu0
      %v990 = vadd.f32 0.0, %v989
      %v991 = vpop.f32.mrf.mxu0
      %992 = vmatprep.mubr.bf16.mxu0 0
      %993 = vmatmul.mubr.bf16.gmra.mxu0 %v874
      %v994 = vpop.f32.mrf.mxu0
      %v995 = vadd.f32 0.0, %v994
      %v996 = vpop.f32.mrf.mxu0
      %v997 = vpop.f32.mrf.mxu0
      %v998 = vadd.f32 0.0, %v997
      %v999 = vpop.f32.mrf.mxu0
      %1000 = vmatprep.mubr.bf16.mxu0 0
      %1001 = vmatmul.mubr.bf16.gmra.mxu0 %v877
      %v1002 = vpop.f32.mrf.mxu0
      %v1003 = vadd.f32 0.0, %v1002
      %v1004 = vpop.f32.mrf.mxu0
      %v1005 = vpop.f32.mrf.mxu0
      %v1006 = vadd.f32 0.0, %v1005
      %v1007 = vpop.f32.mrf.mxu0
      %1008 = vmatprep.mubr.bf16.mxu0 0
      %1009 = vmatmul.mubr.bf16.gmra.mxu0 %v880
      %v1010 = vpop.f32.mrf.mxu0
      %v1011 = vadd.f32 0.0, %v1010
      %v1012 = vpop.f32.mrf.mxu0
      %v1013 = vpop.f32.mrf.mxu0
      %v1014 = vadd.f32 0.0, %v1013
      %v1015 = vpop.f32.mrf.mxu0
      %1016 = vmatprep.mubr.bf16.mxu0 0
      %1017 = vmatmul.mubr.bf16.gmra.mxu0 %v883
      %v1018 = vpop.f32.mrf.mxu0
      %v1019 = vadd.f32 0.0, %v1018
      %v1020 = vpop.f32.mrf.mxu0
      %v1021 = vpop.f32.mrf.mxu0
      %v1022 = vadd.f32 0.0, %v1021
      %v1023 = vpop.f32.mrf.mxu0
      %1024 = vmatprep.mubr.bf16.mxu0 0
      %1025 = vmatmul.mubr.bf16.gmra.mxu0 %v886
      %v1026 = vpop.f32.mrf.mxu0
      %v1027 = vadd.f32 0.0, %v1026
      %v1028 = vpop.f32.mrf.mxu0
      %v1029 = vpop.f32.mrf.mxu0
      %v1030 = vadd.f32 0.0, %v1029
      %v1031 = vpop.f32.mrf.mxu0
      %1032 = vmatprep.mubr.bf16.mxu0 0
      %1033 = vmatmul.mubr.bf16.gmra.mxu0 %v889
      %v1034 = vpop.f32.mrf.mxu0
      %v1035 = vadd.f32 0.0, %v1034
      %v1036 = vpop.f32.mrf.mxu0
      %v1037 = vpop.f32.mrf.mxu0
      %v1038 = vadd.f32 0.0, %v1037
      %v1039 = vpop.f32.mrf.mxu0
      %1040 = vmatprep.mubr.bf16.mxu0 0
      %1041 = vmatmul.mubr.bf16.gmra.mxu0 %v892
      %v1042 = vpop.f32.mrf.mxu0
      %v1043 = vadd.f32 0.0, %v1042
      %v1044 = vpop.f32.mrf.mxu0
      %v1045 = vpop.f32.mrf.mxu0
      %v1046 = vadd.f32 0.0, %v1045
      %v1047 = vpop.f32.mrf.mxu0
      %1048 = vmatprep.mubr.bf16.mxu0 0
      %1049 = vmatmul.mubr.bf16.gmra.mxu0 %v895
      %v1050 = vpop.f32.mrf.mxu0
      %v1051 = vadd.f32 0.0, %v1050
      %v1052 = vpop.f32.mrf.mxu0
      %v1053 = vpop.f32.mrf.mxu0
      %v1054 = vadd.f32 0.0, %v1053
      %v1055 = vpop.f32.mrf.mxu0
      %1056 = vmatprep.mubr.bf16.mxu0 0
      %1057 = vmatmul.mubr.bf16.gmra.mxu0 %v898
      %v1058 = vpop.f32.mrf.mxu0
      %v1059 = vadd.f32 0.0, %v1058
      %v1060 = vpop.f32.mrf.mxu0
      %v1061 = vpop.f32.mrf.mxu0
      %v1062 = vadd.f32 0.0, %v1061
      %v1063 = vpop.f32.mrf.mxu0
      %1064 = vmatprep.mubr.bf16.mxu0 0
      %1065 = vmatmul.mubr.bf16.gmra.mxu0 %v901
      %v1066 = vpop.f32.mrf.mxu0
      %v1067 = vadd.f32 0.0, %v1066
      %v1068 = vpop.f32.mrf.mxu0
      %v1069 = vpop.f32.mrf.mxu0
      %v1070 = vadd.f32 0.0, %v1069
      %v1071 = vpop.f32.mrf.mxu0
      %1072 = vmatprep.mubr.bf16.mxu0 0
      %1073 = vmatmul.mubr.bf16.gmra.mxu0 %v904
      %v1074 = vpop.f32.mrf.mxu0
      %v1075 = vadd.f32 0.0, %v1074
      %v1076 = vpop.f32.mrf.mxu0
      %v1077 = vpop.f32.mrf.mxu0
      %v1078 = vadd.f32 0.0, %v1077
      %v1079 = vpop.f32.mrf.mxu0
      %1080 = vmatprep.mubr.bf16.mxu0 0
      %1081 = vmatmul.mubr.bf16.gmra.mxu0 %v907
      %v1082 = vpop.f32.mrf.mxu0
      %v1083 = vadd.f32 0.0, %v1082
      %v1084 = vpop.f32.mrf.mxu0
      %v1085 = vpop.f32.mrf.mxu0
      %v1086 = vadd.f32 0.0, %v1085
      %v1087 = vpop.f32.mrf.mxu0
      %1088 = vdwg.mxu0
      %v1089 = vadd.f32 %v817, %v947
      %v1090 = vadd.f32 %v818, %v950
      %v1091 = vadd.f32 %v819, %v955
      %v1092 = vadd.f32 %v820, %v958
      %v1093 = vadd.f32 %v821, %v963
      %v1094 = vadd.f32 %v822, %v966
      %v1095 = vadd.f32 %v823, %v971
      %v1096 = vadd.f32 %v824, %v974
      %v1097 = vadd.f32 %v825, %v979
      %v1098 = vadd.f32 %v826, %v982
      %v1099 = vadd.f32 %v827, %v987
      %v1100 = vadd.f32 %v828, %v990
      %v1101 = vadd.f32 %v829, %v995
      %v1102 = vadd.f32 %v830, %v998
      %v1103 = vadd.f32 %v831, %v1003
      %v1104 = vadd.f32 %v832, %v1006
      %v1105 = vadd.f32 %v833, %v1011
      %v1106 = vadd.f32 %v834, %v1014
      %v1107 = vadd.f32 %v835, %v1019
      %v1108 = vadd.f32 %v836, %v1022
      %v1109 = vadd.f32 %v837, %v1027
      %v1110 = vadd.f32 %v838, %v1030
      %v1111 = vadd.f32 %v839, %v1035
      %v1112 = vadd.f32 %v840, %v1038
      %v1113 = vadd.f32 %v841, %v1043
      %v1114 = vadd.f32 %v842, %v1046
      %v1115 = vadd.f32 %v843, %v1051
      %v1116 = vadd.f32 %v844, %v1054
      %v1117 = vadd.f32 %v845, %v1059
      %v1118 = vadd.f32 %v846, %v1062
      %v1119 = vadd.f32 %v847, %v1067
      %v1120 = vadd.f32 %v848, %v1070
      %v1121 = vadd.f32 %v849, %v1075
      %v1122 = vadd.f32 %v850, %v1078
      %v1123 = vadd.f32 %v851, %v1083
      %v1124 = vadd.f32 %v852, %v1086
      %1125 = vst.msk [vmem:[#allocation3] sm:$0xff] %vm328, %v1089
      %1126 = vst.msk [vmem:[#allocation3 + $0x8] sm:$0xff] %vm328, %v1090
      %1127 = vst.msk [vmem:[#allocation3 + $0x10] sm:$0xff] %vm328, %v1091
      %1128 = vst.msk [vmem:[#allocation3 + $0x18] sm:$0xff] %vm328, %v1092
      %1129 = vst.msk [vmem:[#allocation3 + $0x20] sm:$0xff] %vm328, %v1093
      %1130 = vst.msk [vmem:[#allocation3 + $0x28] sm:$0xff] %vm328, %v1094
      %1131 = vst.msk [vmem:[#allocation3 + $0x30] sm:$0xff] %vm328, %v1095
      %1132 = vst.msk [vmem:[#allocation3 + $0x38] sm:$0xff] %vm328, %v1096
      %1133 = vst.msk [vmem:[#allocation3 + $0x40] sm:$0xff] %vm328, %v1097
      %1134 = vst.msk [vmem:[#allocation3 + $0x48] sm:$0xff] %vm328, %v1098
      %1135 = vst.msk [vmem:[#allocation3 + $0x50] sm:$0xff] %vm328, %v1099
      %1136 = vst.msk [vmem:[#allocation3 + $0x58] sm:$0xff] %vm328, %v1100
      %1137 = vst.msk [vmem:[#allocation3 + $0x60] sm:$0xff] %vm328, %v1101
      %1138 = vst.msk [vmem:[#allocation3 + $0x68] sm:$0xff] %vm328, %v1102
      %1139 = vst.msk [vmem:[#allocation3 + $0x70] sm:$0xff] %vm328, %v1103
      %1140 = vst.msk [vmem:[#allocation3 + $0x78] sm:$0xff] %vm328, %v1104
      %1141 = vst.msk [vmem:[#allocation3 + $0x80] sm:$0xff] %vm328, %v1105
      %1142 = vst.msk [vmem:[#allocation3 + $0x88] sm:$0xff] %vm328, %v1106
      %1143 = vst.msk [vmem:[#allocation3 + $0x90] sm:$0xff] %vm328, %v1107
      %1144 = vst.msk [vmem:[#allocation3 + $0x98] sm:$0xff] %vm328, %v1108
      %1145 = vst.msk [vmem:[#allocation3 + $0xa0] sm:$0xff] %vm328, %v1109
      %1146 = vst.msk [vmem:[#allocation3 + $0xa8] sm:$0xff] %vm328, %v1110
      %1147 = vst.msk [vmem:[#allocation3 + $0xb0] sm:$0xff] %vm328, %v1111
      %1148 = vst.msk [vmem:[#allocation3 + $0xb8] sm:$0xff] %vm328, %v1112
      %1149 = vst.msk [vmem:[#allocation3 + $0xc0] sm:$0xff] %vm328, %v1113
      %1150 = vst.msk [vmem:[#allocation3 + $0xc8] sm:$0xff] %vm328, %v1114
      %1151 = vst.msk [vmem:[#allocation3 + $0xd0] sm:$0xff] %vm328, %v1115
      %1152 = vst.msk [vmem:[#allocation3 + $0xd8] sm:$0xff] %vm328, %v1116
      %1153 = vst.msk [vmem:[#allocation3 + $0xe0] sm:$0xff] %vm328, %v1117
      %1154 = vst.msk [vmem:[#allocation3 + $0xe8] sm:$0xff] %vm328, %v1118
      %1155 = vst.msk [vmem:[#allocation3 + $0xf0] sm:$0xff] %vm328, %v1119
      %1156 = vst.msk [vmem:[#allocation3 + $0xf8] sm:$0xff] %vm328, %v1120
      %1157 = vst.msk [vmem:[#allocation3 + $0x100] sm:$0xff] %vm328, %v1121
      %1158 = vst.msk [vmem:[#allocation3 + $0x108] sm:$0xff] %vm328, %v1122
      %1159 = vst.msk [vmem:[#allocation3 + $0x110] sm:$0xff] %vm328, %v1123
      %1160 = vst.msk [vmem:[#allocation3 + $0x118] sm:$0xff] %vm328, %v1124
      %v1161 = vld [vmem:[#allocation2 + $0x2] sm:$0xff]
      %v1162 = vld [vmem:[#allocation2 + $0xa] sm:$0xff]
      %v1163 = vld [vmem:[#allocation2 + $0x12] sm:$0xff]
      %v1164 = vld [vmem:[#allocation2 + $0x1a] sm:$0xff]
      %v1165 = vld [vmem:[#allocation2 + $0x22] sm:$0xff]
      %v1166 = vld [vmem:[#allocation2 + $0x2a] sm:$0xff]
      %v1167 = vld [vmem:[#allocation2 + $0x32] sm:$0xff]
      %v1168 = vld [vmem:[#allocation2 + $0x3a] sm:$0xff]
      %v1169 = vld [vmem:[#allocation2 + $0x42] sm:$0xff]
      %v1170 = vld [vmem:[#allocation2 + $0x4a] sm:$0xff]
      %v1171 = vld [vmem:[#allocation2 + $0x52] sm:$0xff]
      %v1172 = vld [vmem:[#allocation2 + $0x5a] sm:$0xff]
      %v1173 = vld [vmem:[#allocation2 + $0x62] sm:$0xff]
      %v1174 = vld [vmem:[#allocation2 + $0x6a] sm:$0xff]
      %v1175 = vld [vmem:[#allocation2 + $0x72] sm:$0xff]
      %v1176 = vld [vmem:[#allocation2 + $0x7a] sm:$0xff]
      %v1177 = vld [vmem:[#allocation2 + $0x82] sm:$0xff]
      %v1178 = vld [vmem:[#allocation2 + $0x8a] sm:$0xff]
      %v1179 = vld [vmem:[#allocation2 + $0x92] sm:$0xff]
      %v1180 = vld [vmem:[#allocation2 + $0x9a] sm:$0xff]
      %v1181 = vld [vmem:[#allocation2 + $0xa2] sm:$0xff]
      %v1182 = vld [vmem:[#allocation2 + $0xaa] sm:$0xff]
      %v1183 = vld [vmem:[#allocation2 + $0xb2] sm:$0xff]
      %v1184 = vld [vmem:[#allocation2 + $0xba] sm:$0xff]
      %v1185 = vld [vmem:[#allocation2 + $0xc2] sm:$0xff]
      %v1186 = vld [vmem:[#allocation2 + $0xca] sm:$0xff]
      %v1187 = vld [vmem:[#allocation2 + $0xd2] sm:$0xff]
      %v1188 = vld [vmem:[#allocation2 + $0xda] sm:$0xff]
      %v1189 = vld [vmem:[#allocation2 + $0xe2] sm:$0xff]
      %v1190 = vld [vmem:[#allocation2 + $0xea] sm:$0xff]
      %v1191 = vld [vmem:[#allocation2 + $0xf2] sm:$0xff]
      %v1192 = vld [vmem:[#allocation2 + $0xfa] sm:$0xff]
      %v1193 = vld [vmem:[#allocation2 + $0x102] sm:$0xff]
      %v1194 = vld [vmem:[#allocation2 + $0x10a] sm:$0xff]
      %v1195 = vld [vmem:[#allocation2 + $0x112] sm:$0xff]
      %v1196 = vld [vmem:[#allocation2 + $0x11a] sm:$0xff]
      %v1197 = vpack.c.bf16 %v1162, %v1161
      %v1198 = vpack.c.bf16 %v1164, %v1163
      %v1199 = vpack.c.bf16 %v1166, %v1165
      %v1200 = vpack.c.bf16 %v1168, %v1167
      %v1201 = vpack.c.bf16 %v1170, %v1169
      %v1202 = vpack.c.bf16 %v1172, %v1171
      %v1203 = vpack.c.bf16 %v1174, %v1173
      %v1204 = vpack.c.bf16 %v1176, %v1175
      %v1205 = vpack.c.bf16 %v1178, %v1177
      %v1206 = vpack.c.bf16 %v1180, %v1179
      %v1207 = vpack.c.bf16 %v1182, %v1181
      %v1208 = vpack.c.bf16 %v1184, %v1183
      %v1209 = vpack.c.bf16 %v1186, %v1185
      %v1210 = vpack.c.bf16 %v1188, %v1187
      %v1211 = vpack.c.bf16 %v1190, %v1189
      %v1212 = vpack.c.bf16 %v1192, %v1191
      %v1213 = vpack.c.bf16 %v1194, %v1193
      %v1214 = vpack.c.bf16 %v1196, %v1195
      %v1215 = vld [vmem:[#allocation3] sm:$0xff]
      %v1216 = vld [vmem:[#allocation3 + $0x8] sm:$0xff]
      %v1217 = vld [vmem:[#allocation3 + $0x10] sm:$0xff]
      %v1218 = vld [vmem:[#allocation3 + $0x18] sm:$0xff]
      %v1219 = vld [vmem:[#allocation3 + $0x20] sm:$0xff]
      %v1220 = vld [vmem:[#allocation3 + $0x28] sm:$0xff]
      %v1221 = vld [vmem:[#allocation3 + $0x30] sm:$0xff]
      %v1222 = vld [vmem:[#allocation3 + $0x38] sm:$0xff]
      %v1223 = vld [vmem:[#allocation3 + $0x40] sm:$0xff]
      %v1224 = vld [vmem:[#allocation3 + $0x48] sm:$0xff]
      %v1225 = vld [vmem:[#allocation3 + $0x50] sm:$0xff]
      %v1226 = vld [vmem:[#allocation3 + $0x58] sm:$0xff]
      %v1227 = vld [vmem:[#allocation3 + $0x60] sm:$0xff]
      %v1228 = vld [vmem:[#allocation3 + $0x68] sm:$0xff]
      %v1229 = vld [vmem:[#allocation3 + $0x70] sm:$0xff]
      %v1230 = vld [vmem:[#allocation3 + $0x78] sm:$0xff]
      %v1231 = vld [vmem:[#allocation3 + $0x80] sm:$0xff]
      %v1232 = vld [vmem:[#allocation3 + $0x88] sm:$0xff]
      %v1233 = vld [vmem:[#allocation3 + $0x90] sm:$0xff]
      %v1234 = vld [vmem:[#allocation3 + $0x98] sm:$0xff]
      %v1235 = vld [vmem:[#allocation3 + $0xa0] sm:$0xff]
      %v1236 = vld [vmem:[#allocation3 + $0xa8] sm:$0xff]
      %v1237 = vld [vmem:[#allocation3 + $0xb0] sm:$0xff]
      %v1238 = vld [vmem:[#allocation3 + $0xb8] sm:$0xff]
      %v1239 = vld [vmem:[#allocation3 + $0xc0] sm:$0xff]
      %v1240 = vld [vmem:[#allocation3 + $0xc8] sm:$0xff]
      %v1241 = vld [vmem:[#allocation3 + $0xd0] sm:$0xff]
      %v1242 = vld [vmem:[#allocation3 + $0xd8] sm:$0xff]
      %v1243 = vld [vmem:[#allocation3 + $0xe0] sm:$0xff]
      %v1244 = vld [vmem:[#allocation3 + $0xe8] sm:$0xff]
      %v1245 = vld [vmem:[#allocation3 + $0xf0] sm:$0xff]
      %v1246 = vld [vmem:[#allocation3 + $0xf8] sm:$0xff]
      %v1247 = vld [vmem:[#allocation3 + $0x100] sm:$0xff]
      %v1248 = vld [vmem:[#allocation3 + $0x108] sm:$0xff]
      %v1249 = vld [vmem:[#allocation3 + $0x110] sm:$0xff]
      %v1250 = vld [vmem:[#allocation3 + $0x118] sm:$0xff]
      %s1251 = scalar_lea.vmem %s1, 4
      %v1252 = vld [vmem:[%s1251] sm:$0x3]
      %v1254 = vsel %vm286, %v1197, 0
      %v1257 = vsel %vm286, %v1198, 0
      %v1260 = vsel %vm286, %v1199, 0
      %v1263 = vsel %vm286, %v1200, 0
      %v1266 = vsel %vm286, %v1201, 0
      %v1269 = vsel %vm286, %v1202, 0
      %v1272 = vsel %vm286, %v1203, 0
      %v1275 = vsel %vm286, %v1204, 0
      %v1278 = vsel %vm286, %v1205, 0
      %v1281 = vsel %vm286, %v1206, 0
      %v1284 = vsel %vm286, %v1207, 0
      %v1287 = vsel %vm286, %v1208, 0
      %v1290 = vsel %vm286, %v1209, 0
      %v1293 = vsel %vm286, %v1210, 0
      %v1296 = vsel %vm286, %v1211, 0
      %v1299 = vsel %vm286, %v1212, 0
      %v1302 = vsel %vm286, %v1213, 0
      %v1305 = vsel %vm286, %v1214, 0
      %v1308 = vsel %vm510, %v1252, 0
      %1310 = vmatprep.subr.bf16.mxu0 0
      %1311 = vmatpush1.bf16.msra.mxu0 0
      %1312 = vmatprep.subr.bf16.mxu0 0
      %1313 = vmatpush1.bf16.msra.mxu0 0
      %1314 = vmatprep.subr.bf16.mxu0 0
      %1315 = vmatpush1.bf16.msra.mxu0 0
      %1316 = vmatprep.subr.bf16.mxu0 0
      %1317 = vmatpush1.bf16.msra.mxu0 0
      %1318 = vmatprep.subr.bf16.mxu0 0
      %1319 = vmatpush1.bf16.msra.mxu0 0
      %1320 = vmatprep.subr.bf16.mxu0 0
      %1321 = vmatpush1.bf16.msra.mxu0 0
      %1322 = vmatprep.subr.bf16.mxu0 0
      %1323 = vmatpush1.bf16.msra.mxu0 0
      %1324 = vmatprep.subr.bf16.mxu0 0
      %1325 = vmatpush1.bf16.msra.mxu0 %v1308
      %1326 = vmatprep.subr.bf16.mxu0 0
      %1327 = vmatpush2.bf16.msra.mxu0 0
      %1328 = vmatprep.subr.bf16.mxu0 0
      %1329 = vmatpush2.bf16.msra.mxu0 0
      %1330 = vmatprep.subr.bf16.mxu0 0
      %1331 = vmatpush2.bf16.msra.mxu0 0
      %1332 = vmatprep.subr.bf16.mxu0 0
      %1333 = vmatpush2.bf16.msra.mxu0 0
      %1334 = vmatprep.subr.bf16.mxu0 0
      %1335 = vmatpush2.bf16.msra.mxu0 0
      %1336 = vmatprep.subr.bf16.mxu0 0
      %1337 = vmatpush2.bf16.msra.mxu0 0
      %1338 = vmatprep.subr.bf16.mxu0 0
      %1339 = vmatpush2.bf16.msra.mxu0 0
      %1340 = vmatprep.subr.bf16.mxu0 0
      %1341 = vmatpush2.bf16.msra.mxu0 0
      %1342 = vmatprep.mubr.bf16.mxu0 0
      %1343 = vmatmul.mubr.bf16.gmra.mxu0 %v1254
      %v1344 = vpop.f32.mrf.mxu0
      %v1345 = vadd.f32 0.0, %v1344
      %v1346 = vpop.f32.mrf.mxu0
      %v1347 = vpop.f32.mrf.mxu0
      %v1348 = vadd.f32 0.0, %v1347
      %v1349 = vpop.f32.mrf.mxu0
      %1350 = vmatprep.mubr.bf16.mxu0 0
      %1351 = vmatmul.mubr.bf16.gmra.mxu0 %v1257
      %v1352 = vpop.f32.mrf.mxu0
      %v1353 = vadd.f32 0.0, %v1352
      %v1354 = vpop.f32.mrf.mxu0
      %v1355 = vpop.f32.mrf.mxu0
      %v1356 = vadd.f32 0.0, %v1355
      %v1357 = vpop.f32.mrf.mxu0
      %1358 = vmatprep.mubr.bf16.mxu0 0
      %1359 = vmatmul.mubr.bf16.gmra.mxu0 %v1260
      %v1360 = vpop.f32.mrf.mxu0
      %v1361 = vadd.f32 0.0, %v1360
      %v1362 = vpop.f32.mrf.mxu0
      %v1363 = vpop.f32.mrf.mxu0
      %v1364 = vadd.f32 0.0, %v1363
      %v1365 = vpop.f32.mrf.mxu0
      %1366 = vmatprep.mubr.bf16.mxu0 0
      %1367 = vmatmul.mubr.bf16.gmra.mxu0 %v1263
      %v1368 = vpop.f32.mrf.mxu0
      %v1369 = vadd.f32 0.0, %v1368
      %v1370 = vpop.f32.mrf.mxu0
      %v1371 = vpop.f32.mrf.mxu0
      %v1372 = vadd.f32 0.0, %v1371
      %v1373 = vpop.f32.mrf.mxu0
      %1374 = vmatprep.mubr.bf16.mxu0 0
      %1375 = vmatmul.mubr.bf16.gmra.mxu0 %v1266
      %v1376 = vpop.f32.mrf.mxu0
      %v1377 = vadd.f32 0.0, %v1376
      %v1378 = vpop.f32.mrf.mxu0
      %v1379 = vpop.f32.mrf.mxu0
      %v1380 = vadd.f32 0.0, %v1379
      %v1381 = vpop.f32.mrf.mxu0
      %1382 = vmatprep.mubr.bf16.mxu0 0
      %1383 = vmatmul.mubr.bf16.gmra.mxu0 %v1269
      %v1384 = vpop.f32.mrf.mxu0
      %v1385 = vadd.f32 0.0, %v1384
      %v1386 = vpop.f32.mrf.mxu0
      %v1387 = vpop.f32.mrf.mxu0
      %v1388 = vadd.f32 0.0, %v1387
      %v1389 = vpop.f32.mrf.mxu0
      %1390 = vmatprep.mubr.bf16.mxu0 0
      %1391 = vmatmul.mubr.bf16.gmra.mxu0 %v1272
      %v1392 = vpop.f32.mrf.mxu0
      %v1393 = vadd.f32 0.0, %v1392
      %v1394 = vpop.f32.mrf.mxu0
      %v1395 = vpop.f32.mrf.mxu0
      %v1396 = vadd.f32 0.0, %v1395
      %v1397 = vpop.f32.mrf.mxu0
      %1398 = vmatprep.mubr.bf16.mxu0 0
      %1399 = vmatmul.mubr.bf16.gmra.mxu0 %v1275
      %v1400 = vpop.f32.mrf.mxu0
      %v1401 = vadd.f32 0.0, %v1400
      %v1402 = vpop.f32.mrf.mxu0
      %v1403 = vpop.f32.mrf.mxu0
      %v1404 = vadd.f32 0.0, %v1403
      %v1405 = vpop.f32.mrf.mxu0
      %1406 = vmatprep.mubr.bf16.mxu0 0
      %1407 = vmatmul.mubr.bf16.gmra.mxu0 %v1278
      %v1408 = vpop.f32.mrf.mxu0
      %v1409 = vadd.f32 0.0, %v1408
      %v1410 = vpop.f32.mrf.mxu0
      %v1411 = vpop.f32.mrf.mxu0
      %v1412 = vadd.f32 0.0, %v1411
      %v1413 = vpop.f32.mrf.mxu0
      %1414 = vmatprep.mubr.bf16.mxu0 0
      %1415 = vmatmul.mubr.bf16.gmra.mxu0 %v1281
      %v1416 = vpop.f32.mrf.mxu0
      %v1417 = vadd.f32 0.0, %v1416
      %v1418 = vpop.f32.mrf.mxu0
      %v1419 = vpop.f32.mrf.mxu0
      %v1420 = vadd.f32 0.0, %v1419
      %v1421 = vpop.f32.mrf.mxu0
      %1422 = vmatprep.mubr.bf16.mxu0 0
      %1423 = vmatmul.mubr.bf16.gmra.mxu0 %v1284
      %v1424 = vpop.f32.mrf.mxu0
      %v1425 = vadd.f32 0.0, %v1424
      %v1426 = vpop.f32.mrf.mxu0
      %v1427 = vpop.f32.mrf.mxu0
      %v1428 = vadd.f32 0.0, %v1427
      %v1429 = vpop.f32.mrf.mxu0
      %1430 = vmatprep.mubr.bf16.mxu0 0
      %1431 = vmatmul.mubr.bf16.gmra.mxu0 %v1287
      %v1432 = vpop.f32.mrf.mxu0
      %v1433 = vadd.f32 0.0, %v1432
      %v1434 = vpop.f32.mrf.mxu0
      %v1435 = vpop.f32.mrf.mxu0
      %v1436 = vadd.f32 0.0, %v1435
      %v1437 = vpop.f32.mrf.mxu0
      %1438 = vmatprep.mubr.bf16.mxu0 0
      %1439 = vmatmul.mubr.bf16.gmra.mxu0 %v1290
      %v1440 = vpop.f32.mrf.mxu0
      %v1441 = vadd.f32 0.0, %v1440
      %v1442 = vpop.f32.mrf.mxu0
      %v1443 = vpop.f32.mrf.mxu0
      %v1444 = vadd.f32 0.0, %v1443
      %v1445 = vpop.f32.mrf.mxu0
      %1446 = vmatprep.mubr.bf16.mxu0 0
      %1447 = vmatmul.mubr.bf16.gmra.mxu0 %v1293
      %v1448 = vpop.f32.mrf.mxu0
      %v1449 = vadd.f32 0.0, %v1448
      %v1450 = vpop.f32.mrf.mxu0
      %v1451 = vpop.f32.mrf.mxu0
      %v1452 = vadd.f32 0.0, %v1451
      %v1453 = vpop.f32.mrf.mxu0
      %1454 = vmatprep.mubr.bf16.mxu0 0
      %1455 = vmatmul.mubr.bf16.gmra.mxu0 %v1296
      %v1456 = vpop.f32.mrf.mxu0
      %v1457 = vadd.f32 0.0, %v1456
      %v1458 = vpop.f32.mrf.mxu0
      %v1459 = vpop.f32.mrf.mxu0
      %v1460 = vadd.f32 0.0, %v1459
      %v1461 = vpop.f32.mrf.mxu0
      %1462 = vmatprep.mubr.bf16.mxu0 0
      %1463 = vmatmul.mubr.bf16.gmra.mxu0 %v1299
      %v1464 = vpop.f32.mrf.mxu0
      %v1465 = vadd.f32 0.0, %v1464
      %v1466 = vpop.f32.mrf.mxu0
      %v1467 = vpop.f32.mrf.mxu0
      %v1468 = vadd.f32 0.0, %v1467
      %v1469 = vpop.f32.mrf.mxu0
      %1470 = vmatprep.mubr.bf16.mxu0 0
      %1471 = vmatmul.mubr.bf16.gmra.mxu0 %v1302
      %v1472 = vpop.f32.mrf.mxu0
      %v1473 = vadd.f32 0.0, %v1472
      %v1474 = vpop.f32.mrf.mxu0
      %v1475 = vpop.f32.mrf.mxu0
      %v1476 = vadd.f32 0.0, %v1475
      %v1477 = vpop.f32.mrf.mxu0
      %1478 = vmatprep.mubr.bf16.mxu0 0
      %1479 = vmatmul.mubr.bf16.gmra.mxu0 %v1305
      %v1480 = vpop.f32.mrf.mxu0
      %v1481 = vadd.f32 0.0, %v1480
      %v1482 = vpop.f32.mrf.mxu0
      %v1483 = vpop.f32.mrf.mxu0
      %v1484 = vadd.f32 0.0, %v1483
      %v1485 = vpop.f32.mrf.mxu0
      %1486 = vdwg.mxu0
      %v1487 = vadd.f32 %v1215, %v1345
      %v1488 = vadd.f32 %v1216, %v1348
      %v1489 = vadd.f32 %v1217, %v1353
      %v1490 = vadd.f32 %v1218, %v1356
      %v1491 = vadd.f32 %v1219, %v1361
      %v1492 = vadd.f32 %v1220, %v1364
      %v1493 = vadd.f32 %v1221, %v1369
      %v1494 = vadd.f32 %v1222, %v1372
      %v1495 = vadd.f32 %v1223, %v1377
      %v1496 = vadd.f32 %v1224, %v1380
      %v1497 = vadd.f32 %v1225, %v1385
      %v1498 = vadd.f32 %v1226, %v1388
      %v1499 = vadd.f32 %v1227, %v1393
      %v1500 = vadd.f32 %v1228, %v1396
      %v1501 = vadd.f32 %v1229, %v1401
      %v1502 = vadd.f32 %v1230, %v1404
      %v1503 = vadd.f32 %v1231, %v1409
      %v1504 = vadd.f32 %v1232, %v1412
      %v1505 = vadd.f32 %v1233, %v1417
      %v1506 = vadd.f32 %v1234, %v1420
      %v1507 = vadd.f32 %v1235, %v1425
      %v1508 = vadd.f32 %v1236, %v1428
      %v1509 = vadd.f32 %v1237, %v1433
      %v1510 = vadd.f32 %v1238, %v1436
      %v1511 = vadd.f32 %v1239, %v1441
      %v1512 = vadd.f32 %v1240, %v1444
      %v1513 = vadd.f32 %v1241, %v1449
      %v1514 = vadd.f32 %v1242, %v1452
      %v1515 = vadd.f32 %v1243, %v1457
      %v1516 = vadd.f32 %v1244, %v1460
      %v1517 = vadd.f32 %v1245, %v1465
      %v1518 = vadd.f32 %v1246, %v1468
      %v1519 = vadd.f32 %v1247, %v1473
      %v1520 = vadd.f32 %v1248, %v1476
      %v1521 = vadd.f32 %v1249, %v1481
      %v1522 = vadd.f32 %v1250, %v1484
      %1523 = vst.msk [vmem:[#allocation3] sm:$0xff] %vm328, %v1487
      %1524 = vst.msk [vmem:[#allocation3 + $0x8] sm:$0xff] %vm328, %v1488
      %1525 = vst.msk [vmem:[#allocation3 + $0x10] sm:$0xff] %vm328, %v1489
      %1526 = vst.msk [vmem:[#allocation3 + $0x18] sm:$0xff] %vm328, %v1490
      %1527 = vst.msk [vmem:[#allocation3 + $0x20] sm:$0xff] %vm328, %v1491
      %1528 = vst.msk [vmem:[#allocation3 + $0x28] sm:$0xff] %vm328, %v1492
      %1529 = vst.msk [vmem:[#allocation3 + $0x30] sm:$0xff] %vm328, %v1493
      %1530 = vst.msk [vmem:[#allocation3 + $0x38] sm:$0xff] %vm328, %v1494
      %1531 = vst.msk [vmem:[#allocation3 + $0x40] sm:$0xff] %vm328, %v1495
      %1532 = vst.msk [vmem:[#allocation3 + $0x48] sm:$0xff] %vm328, %v1496
      %1533 = vst.msk [vmem:[#allocation3 + $0x50] sm:$0xff] %vm328, %v1497
      %1534 = vst.msk [vmem:[#allocation3 + $0x58] sm:$0xff] %vm328, %v1498
      %1535 = vst.msk [vmem:[#allocation3 + $0x60] sm:$0xff] %vm328, %v1499
      %1536 = vst.msk [vmem:[#allocation3 + $0x68] sm:$0xff] %vm328, %v1500
      %1537 = vst.msk [vmem:[#allocation3 + $0x70] sm:$0xff] %vm328, %v1501
      %1538 = vst.msk [vmem:[#allocation3 + $0x78] sm:$0xff] %vm328, %v1502
      %1539 = vst.msk [vmem:[#allocation3 + $0x80] sm:$0xff] %vm328, %v1503
      %1540 = vst.msk [vmem:[#allocation3 + $0x88] sm:$0xff] %vm328, %v1504
      %1541 = vst.msk [vmem:[#allocation3 + $0x90] sm:$0xff] %vm328, %v1505
      %1542 = vst.msk [vmem:[#allocation3 + $0x98] sm:$0xff] %vm328, %v1506
      %1543 = vst.msk [vmem:[#allocation3 + $0xa0] sm:$0xff] %vm328, %v1507
      %1544 = vst.msk [vmem:[#allocation3 + $0xa8] sm:$0xff] %vm328, %v1508
      %1545 = vst.msk [vmem:[#allocation3 + $0xb0] sm:$0xff] %vm328, %v1509
      %1546 = vst.msk [vmem:[#allocation3 + $0xb8] sm:$0xff] %vm328, %v1510
      %1547 = vst.msk [vmem:[#allocation3 + $0xc0] sm:$0xff] %vm328, %v1511
      %1548 = vst.msk [vmem:[#allocation3 + $0xc8] sm:$0xff] %vm328, %v1512
      %1549 = vst.msk [vmem:[#allocation3 + $0xd0] sm:$0xff] %vm328, %v1513
      %1550 = vst.msk [vmem:[#allocation3 + $0xd8] sm:$0xff] %vm328, %v1514
      %1551 = vst.msk [vmem:[#allocation3 + $0xe0] sm:$0xff] %vm328, %v1515
      %1552 = vst.msk [vmem:[#allocation3 + $0xe8] sm:$0xff] %vm328, %v1516
      %1553 = vst.msk [vmem:[#allocation3 + $0xf0] sm:$0xff] %vm328, %v1517
      %1554 = vst.msk [vmem:[#allocation3 + $0xf8] sm:$0xff] %vm328, %v1518
      %1555 = vst.msk [vmem:[#allocation3 + $0x100] sm:$0xff] %vm328, %v1519
      %1556 = vst.msk [vmem:[#allocation3 + $0x108] sm:$0xff] %vm328, %v1520
      %1557 = vst.msk [vmem:[#allocation3 + $0x110] sm:$0xff] %vm328, %v1521
      %1558 = vst.msk [vmem:[#allocation3 + $0x118] sm:$0xff] %vm328, %v1522
      %v1559 = vld [vmem:[#allocation2 + $0x12] sm:$0xff]
      %v1560 = vld [vmem:[#allocation2 + $0x1a] sm:$0xff]
      %v1561 = vld [vmem:[#allocation2 + $0x22] sm:$0xff]
      %v1562 = vld [vmem:[#allocation2 + $0x2a] sm:$0xff]
      %v1563 = vld [vmem:[#allocation2 + $0x32] sm:$0xff]
      %v1564 = vld [vmem:[#allocation2 + $0x3a] sm:$0xff]
      %v1565 = vld [vmem:[#allocation2 + $0x42] sm:$0xff]
      %v1566 = vld [vmem:[#allocation2 + $0x4a] sm:$0xff]
      %v1567 = vld [vmem:[#allocation2 + $0x52] sm:$0xff]
      %v1568 = vld [vmem:[#allocation2 + $0x5a] sm:$0xff]
      %v1569 = vld [vmem:[#allocation2 + $0x62] sm:$0xff]
      %v1570 = vld [vmem:[#allocation2 + $0x6a] sm:$0xff]
      %v1571 = vld [vmem:[#allocation2 + $0x72] sm:$0xff]
      %v1572 = vld [vmem:[#allocation2 + $0x7a] sm:$0xff]
      %v1573 = vld [vmem:[#allocation2 + $0x82] sm:$0xff]
      %v1574 = vld [vmem:[#allocation2 + $0x8a] sm:$0xff]
      %v1575 = vld [vmem:[#allocation2 + $0x92] sm:$0xff]
      %v1576 = vld [vmem:[#allocation2 + $0x9a] sm:$0xff]
      %v1577 = vld [vmem:[#allocation2 + $0xa2] sm:$0xff]
      %v1578 = vld [vmem:[#allocation2 + $0xaa] sm:$0xff]
      %v1579 = vld [vmem:[#allocation2 + $0xb2] sm:$0xff]
      %v1580 = vld [vmem:[#allocation2 + $0xba] sm:$0xff]
      %v1581 = vld [vmem:[#allocation2 + $0xc2] sm:$0xff]
      %v1582 = vld [vmem:[#allocation2 + $0xca] sm:$0xff]
      %v1583 = vld [vmem:[#allocation2 + $0xd2] sm:$0xff]
      %v1584 = vld [vmem:[#allocation2 + $0xda] sm:$0xff]
      %v1585 = vld [vmem:[#allocation2 + $0xe2] sm:$0xff]
      %v1586 = vld [vmem:[#allocation2 + $0xea] sm:$0xff]
      %v1587 = vld [vmem:[#allocation2 + $0xf2] sm:$0xff]
      %v1588 = vld [vmem:[#allocation2 + $0xfa] sm:$0xff]
      %v1589 = vld [vmem:[#allocation2 + $0x102] sm:$0xff]
      %v1590 = vld [vmem:[#allocation2 + $0x10a] sm:$0xff]
      %v1591 = vld [vmem:[#allocation2 + $0x112] sm:$0xff]
      %v1592 = vld [vmem:[#allocation2 + $0x11a] sm:$0xff]
      %v1593 = vld [vmem:[#allocation2 + $0x122] sm:$0xff]
      %v1594 = vld [vmem:[#allocation2 + $0x12a] sm:$0xff]
      %v1595 = vpack.c.bf16 %v1560, %v1559
      %v1596 = vpack.c.bf16 %v1562, %v1561
      %v1597 = vpack.c.bf16 %v1564, %v1563
      %v1598 = vpack.c.bf16 %v1566, %v1565
      %v1599 = vpack.c.bf16 %v1568, %v1567
      %v1600 = vpack.c.bf16 %v1570, %v1569
      %v1601 = vpack.c.bf16 %v1572, %v1571
      %v1602 = vpack.c.bf16 %v1574, %v1573
      %v1603 = vpack.c.bf16 %v1576, %v1575
      %v1604 = vpack.c.bf16 %v1578, %v1577
      %v1605 = vpack.c.bf16 %v1580, %v1579
      %v1606 = vpack.c.bf16 %v1582, %v1581
      %v1607 = vpack.c.bf16 %v1584, %v1583
      %v1608 = vpack.c.bf16 %v1586, %v1585
      %v1609 = vpack.c.bf16 %v1588, %v1587
      %v1610 = vpack.c.bf16 %v1590, %v1589
      %v1611 = vpack.c.bf16 %v1592, %v1591
      %v1612 = vpack.c.bf16 %v1594, %v1593
      %v1613 = vld [vmem:[#allocation3] sm:$0xff]
      %v1614 = vld [vmem:[#allocation3 + $0x8] sm:$0xff]
      %v1615 = vld [vmem:[#allocation3 + $0x10] sm:$0xff]
      %v1616 = vld [vmem:[#allocation3 + $0x18] sm:$0xff]
      %v1617 = vld [vmem:[#allocation3 + $0x20] sm:$0xff]
      %v1618 = vld [vmem:[#allocation3 + $0x28] sm:$0xff]
      %v1619 = vld [vmem:[#allocation3 + $0x30] sm:$0xff]
      %v1620 = vld [vmem:[#allocation3 + $0x38] sm:$0xff]
      %v1621 = vld [vmem:[#allocation3 + $0x40] sm:$0xff]
      %v1622 = vld [vmem:[#allocation3 + $0x48] sm:$0xff]
      %v1623 = vld [vmem:[#allocation3 + $0x50] sm:$0xff]
      %v1624 = vld [vmem:[#allocation3 + $0x58] sm:$0xff]
      %v1625 = vld [vmem:[#allocation3 + $0x60] sm:$0xff]
      %v1626 = vld [vmem:[#allocation3 + $0x68] sm:$0xff]
      %v1627 = vld [vmem:[#allocation3 + $0x70] sm:$0xff]
      %v1628 = vld [vmem:[#allocation3 + $0x78] sm:$0xff]
      %v1629 = vld [vmem:[#allocation3 + $0x80] sm:$0xff]
      %v1630 = vld [vmem:[#allocation3 + $0x88] sm:$0xff]
      %v1631 = vld [vmem:[#allocation3 + $0x90] sm:$0xff]
      %v1632 = vld [vmem:[#allocation3 + $0x98] sm:$0xff]
      %v1633 = vld [vmem:[#allocation3 + $0xa0] sm:$0xff]
      %v1634 = vld [vmem:[#allocation3 + $0xa8] sm:$0xff]
      %v1635 = vld [vmem:[#allocation3 + $0xb0] sm:$0xff]
      %v1636 = vld [vmem:[#allocation3 + $0xb8] sm:$0xff]
      %v1637 = vld [vmem:[#allocation3 + $0xc0] sm:$0xff]
      %v1638 = vld [vmem:[#allocation3 + $0xc8] sm:$0xff]
      %v1639 = vld [vmem:[#allocation3 + $0xd0] sm:$0xff]
      %v1640 = vld [vmem:[#allocation3 + $0xd8] sm:$0xff]
      %v1641 = vld [vmem:[#allocation3 + $0xe0] sm:$0xff]
      %v1642 = vld [vmem:[#allocation3 + $0xe8] sm:$0xff]
      %v1643 = vld [vmem:[#allocation3 + $0xf0] sm:$0xff]
      %v1644 = vld [vmem:[#allocation3 + $0xf8] sm:$0xff]
      %v1645 = vld [vmem:[#allocation3 + $0x100] sm:$0xff]
      %v1646 = vld [vmem:[#allocation3 + $0x108] sm:$0xff]
      %v1647 = vld [vmem:[#allocation3 + $0x110] sm:$0xff]
      %v1648 = vld [vmem:[#allocation3 + $0x118] sm:$0xff]
      %s1649 = scalar_lea.vmem %s1, 6
      %v1650 = vld [vmem:[%s1649] sm:$0x3]
      %v1652 = vsel %vm286, %v1595, 0
      %v1655 = vsel %vm286, %v1596, 0
      %v1658 = vsel %vm286, %v1597, 0
      %v1661 = vsel %vm286, %v1598, 0
      %v1664 = vsel %vm286, %v1599, 0
      %v1667 = vsel %vm286, %v1600, 0
      %v1670 = vsel %vm286, %v1601, 0
      %v1673 = vsel %vm286, %v1602, 0
      %v1676 = vsel %vm286, %v1603, 0
      %v1679 = vsel %vm286, %v1604, 0
      %v1682 = vsel %vm286, %v1605, 0
      %v1685 = vsel %vm286, %v1606, 0
      %v1688 = vsel %vm286, %v1607, 0
      %v1691 = vsel %vm286, %v1608, 0
      %v1694 = vsel %vm286, %v1609, 0
      %v1697 = vsel %vm286, %v1610, 0
      %v1700 = vsel %vm286, %v1611, 0
      %v1703 = vsel %vm286, %v1612, 0
      %v1706 = vsel %vm510, %v1650, 0
      %1708 = vmatprep.subr.bf16.mxu0 0
      %1709 = vmatpush1.bf16.msra.mxu0 0
      %1710 = vmatprep.subr.bf16.mxu0 0
      %1711 = vmatpush1.bf16.msra.mxu0 0
      %1712 = vmatprep.subr.bf16.mxu0 0
      %1713 = vmatpush1.bf16.msra.mxu0 0
      %1714 = vmatprep.subr.bf16.mxu0 0
      %1715 = vmatpush1.bf16.msra.mxu0 0
      %1716 = vmatprep.subr.bf16.mxu0 0
      %1717 = vmatpush1.bf16.msra.mxu0 0
      %1718 = vmatprep.subr.bf16.mxu0 0
      %1719 = vmatpush1.bf16.msra.mxu0 0
      %1720 = vmatprep.subr.bf16.mxu0 0
      %1721 = vmatpush1.bf16.msra.mxu0 0
      %1722 = vmatprep.subr.bf16.mxu0 0
      %1723 = vmatpush1.bf16.msra.mxu0 %v1706
      %1724 = vmatprep.subr.bf16.mxu0 0
      %1725 = vmatpush2.bf16.msra.mxu0 0
      %1726 = vmatprep.subr.bf16.mxu0 0
      %1727 = vmatpush2.bf16.msra.mxu0 0
      %1728 = vmatprep.subr.bf16.mxu0 0
      %1729 = vmatpush2.bf16.msra.mxu0 0
      %1730 = vmatprep.subr.bf16.mxu0 0
      %1731 = vmatpush2.bf16.msra.mxu0 0
      %1732 = vmatprep.subr.bf16.mxu0 0
      %1733 = vmatpush2.bf16.msra.mxu0 0
      %1734 = vmatprep.subr.bf16.mxu0 0
      %1735 = vmatpush2.bf16.msra.mxu0 0
      %1736 = vmatprep.subr.bf16.mxu0 0
      %1737 = vmatpush2.bf16.msra.mxu0 0
      %1738 = vmatprep.subr.bf16.mxu0 0
      %1739 = vmatpush2.bf16.msra.mxu0 0
      %1740 = vmatprep.mubr.bf16.mxu0 0
      %1741 = vmatmul.mubr.bf16.gmra.mxu0 %v1652
      %v1742 = vpop.f32.mrf.mxu0
      %v1743 = vadd.f32 0.0, %v1742
      %v1744 = vpop.f32.mrf.mxu0
      %v1745 = vpop.f32.mrf.mxu0
      %v1746 = vadd.f32 0.0, %v1745
      %v1747 = vpop.f32.mrf.mxu0
      %1748 = vmatprep.mubr.bf16.mxu0 0
      %1749 = vmatmul.mubr.bf16.gmra.mxu0 %v1655
      %v1750 = vpop.f32.mrf.mxu0
      %v1751 = vadd.f32 0.0, %v1750
      %v1752 = vpop.f32.mrf.mxu0
      %v1753 = vpop.f32.mrf.mxu0
      %v1754 = vadd.f32 0.0, %v1753
      %v1755 = vpop.f32.mrf.mxu0
      %1756 = vmatprep.mubr.bf16.mxu0 0
      %1757 = vmatmul.mubr.bf16.gmra.mxu0 %v1658
      %v1758 = vpop.f32.mrf.mxu0
      %v1759 = vadd.f32 0.0, %v1758
      %v1760 = vpop.f32.mrf.mxu0
      %v1761 = vpop.f32.mrf.mxu0
      %v1762 = vadd.f32 0.0, %v1761
      %v1763 = vpop.f32.mrf.mxu0
      %1764 = vmatprep.mubr.bf16.mxu0 0
      %1765 = vmatmul.mubr.bf16.gmra.mxu0 %v1661
      %v1766 = vpop.f32.mrf.mxu0
      %v1767 = vadd.f32 0.0, %v1766
      %v1768 = vpop.f32.mrf.mxu0
      %v1769 = vpop.f32.mrf.mxu0
      %v1770 = vadd.f32 0.0, %v1769
      %v1771 = vpop.f32.mrf.mxu0
      %1772 = vmatprep.mubr.bf16.mxu0 0
      %1773 = vmatmul.mubr.bf16.gmra.mxu0 %v1664
      %v1774 = vpop.f32.mrf.mxu0
      %v1775 = vadd.f32 0.0, %v1774
      %v1776 = vpop.f32.mrf.mxu0
      %v1777 = vpop.f32.mrf.mxu0
      %v1778 = vadd.f32 0.0, %v1777
      %v1779 = vpop.f32.mrf.mxu0
      %1780 = vmatprep.mubr.bf16.mxu0 0
      %1781 = vmatmul.mubr.bf16.gmra.mxu0 %v1667
      %v1782 = vpop.f32.mrf.mxu0
      %v1783 = vadd.f32 0.0, %v1782
      %v1784 = vpop.f32.mrf.mxu0
      %v1785 = vpop.f32.mrf.mxu0
      %v1786 = vadd.f32 0.0, %v1785
      %v1787 = vpop.f32.mrf.mxu0
      %1788 = vmatprep.mubr.bf16.mxu0 0
      %1789 = vmatmul.mubr.bf16.gmra.mxu0 %v1670
      %v1790 = vpop.f32.mrf.mxu0
      %v1791 = vadd.f32 0.0, %v1790
      %v1792 = vpop.f32.mrf.mxu0
      %v1793 = vpop.f32.mrf.mxu0
      %v1794 = vadd.f32 0.0, %v1793
      %v1795 = vpop.f32.mrf.mxu0
      %1796 = vmatprep.mubr.bf16.mxu0 0
      %1797 = vmatmul.mubr.bf16.gmra.mxu0 %v1673
      %v1798 = vpop.f32.mrf.mxu0
      %v1799 = vadd.f32 0.0, %v1798
      %v1800 = vpop.f32.mrf.mxu0
      %v1801 = vpop.f32.mrf.mxu0
      %v1802 = vadd.f32 0.0, %v1801
      %v1803 = vpop.f32.mrf.mxu0
      %1804 = vmatprep.mubr.bf16.mxu0 0
      %1805 = vmatmul.mubr.bf16.gmra.mxu0 %v1676
      %v1806 = vpop.f32.mrf.mxu0
      %v1807 = vadd.f32 0.0, %v1806
      %v1808 = vpop.f32.mrf.mxu0
      %v1809 = vpop.f32.mrf.mxu0
      %v1810 = vadd.f32 0.0, %v1809
      %v1811 = vpop.f32.mrf.mxu0
      %1812 = vmatprep.mubr.bf16.mxu0 0
      %1813 = vmatmul.mubr.bf16.gmra.mxu0 %v1679
      %v1814 = vpop.f32.mrf.mxu0
      %v1815 = vadd.f32 0.0, %v1814
      %v1816 = vpop.f32.mrf.mxu0
      %v1817 = vpop.f32.mrf.mxu0
      %v1818 = vadd.f32 0.0, %v1817
      %v1819 = vpop.f32.mrf.mxu0
      %1820 = vmatprep.mubr.bf16.mxu0 0
      %1821 = vmatmul.mubr.bf16.gmra.mxu0 %v1682
      %v1822 = vpop.f32.mrf.mxu0
      %v1823 = vadd.f32 0.0, %v1822
      %v1824 = vpop.f32.mrf.mxu0
      %v1825 = vpop.f32.mrf.mxu0
      %v1826 = vadd.f32 0.0, %v1825
      %v1827 = vpop.f32.mrf.mxu0
      %1828 = vmatprep.mubr.bf16.mxu0 0
      %1829 = vmatmul.mubr.bf16.gmra.mxu0 %v1685
      %v1830 = vpop.f32.mrf.mxu0
      %v1831 = vadd.f32 0.0, %v1830
      %v1832 = vpop.f32.mrf.mxu0
      %v1833 = vpop.f32.mrf.mxu0
      %v1834 = vadd.f32 0.0, %v1833
      %v1835 = vpop.f32.mrf.mxu0
      %1836 = vmatprep.mubr.bf16.mxu0 0
      %1837 = vmatmul.mubr.bf16.gmra.mxu0 %v1688
      %v1838 = vpop.f32.mrf.mxu0
      %v1839 = vadd.f32 0.0, %v1838
      %v1840 = vpop.f32.mrf.mxu0
      %v1841 = vpop.f32.mrf.mxu0
      %v1842 = vadd.f32 0.0, %v1841
      %v1843 = vpop.f32.mrf.mxu0
      %1844 = vmatprep.mubr.bf16.mxu0 0
      %1845 = vmatmul.mubr.bf16.gmra.mxu0 %v1691
      %v1846 = vpop.f32.mrf.mxu0
      %v1847 = vadd.f32 0.0, %v1846
      %v1848 = vpop.f32.mrf.mxu0
      %v1849 = vpop.f32.mrf.mxu0
      %v1850 = vadd.f32 0.0, %v1849
      %v1851 = vpop.f32.mrf.mxu0
      %1852 = vmatprep.mubr.bf16.mxu0 0
      %1853 = vmatmul.mubr.bf16.gmra.mxu0 %v1694
      %v1854 = vpop.f32.mrf.mxu0
      %v1855 = vadd.f32 0.0, %v1854
      %v1856 = vpop.f32.mrf.mxu0
      %v1857 = vpop.f32.mrf.mxu0
      %v1858 = vadd.f32 0.0, %v1857
      %v1859 = vpop.f32.mrf.mxu0
      %1860 = vmatprep.mubr.bf16.mxu0 0
      %1861 = vmatmul.mubr.bf16.gmra.mxu0 %v1697
      %v1862 = vpop.f32.mrf.mxu0
      %v1863 = vadd.f32 0.0, %v1862
      %v1864 = vpop.f32.mrf.mxu0
      %v1865 = vpop.f32.mrf.mxu0
      %v1866 = vadd.f32 0.0, %v1865
      %v1867 = vpop.f32.mrf.mxu0
      %1868 = vmatprep.mubr.bf16.mxu0 0
      %1869 = vmatmul.mubr.bf16.gmra.mxu0 %v1700
      %v1870 = vpop.f32.mrf.mxu0
      %v1871 = vadd.f32 0.0, %v1870
      %v1872 = vpop.f32.mrf.mxu0
      %v1873 = vpop.f32.mrf.mxu0
      %v1874 = vadd.f32 0.0, %v1873
      %v1875 = vpop.f32.mrf.mxu0
      %1876 = vmatprep.mubr.bf16.mxu0 0
      %1877 = vmatmul.mubr.bf16.gmra.mxu0 %v1703
      %v1878 = vpop.f32.mrf.mxu0
      %v1879 = vadd.f32 0.0, %v1878
      %v1880 = vpop.f32.mrf.mxu0
      %v1881 = vpop.f32.mrf.mxu0
      %v1882 = vadd.f32 0.0, %v1881
      %v1883 = vpop.f32.mrf.mxu0
      %1884 = vdwg.mxu0
      %v1885 = vadd.f32 %v1613, %v1743
      %v1886 = vadd.f32 %v1614, %v1746
      %v1887 = vadd.f32 %v1615, %v1751
      %v1888 = vadd.f32 %v1616, %v1754
      %v1889 = vadd.f32 %v1617, %v1759
      %v1890 = vadd.f32 %v1618, %v1762
      %v1891 = vadd.f32 %v1619, %v1767
      %v1892 = vadd.f32 %v1620, %v1770
      %v1893 = vadd.f32 %v1621, %v1775
      %v1894 = vadd.f32 %v1622, %v1778
      %v1895 = vadd.f32 %v1623, %v1783
      %v1896 = vadd.f32 %v1624, %v1786
      %v1897 = vadd.f32 %v1625, %v1791
      %v1898 = vadd.f32 %v1626, %v1794
      %v1899 = vadd.f32 %v1627, %v1799
      %v1900 = vadd.f32 %v1628, %v1802
      %v1901 = vadd.f32 %v1629, %v1807
      %v1902 = vadd.f32 %v1630, %v1810
      %v1903 = vadd.f32 %v1631, %v1815
      %v1904 = vadd.f32 %v1632, %v1818
      %v1905 = vadd.f32 %v1633, %v1823
      %v1906 = vadd.f32 %v1634, %v1826
      %v1907 = vadd.f32 %v1635, %v1831
      %v1908 = vadd.f32 %v1636, %v1834
      %v1909 = vadd.f32 %v1637, %v1839
      %v1910 = vadd.f32 %v1638, %v1842
      %v1911 = vadd.f32 %v1639, %v1847
      %v1912 = vadd.f32 %v1640, %v1850
      %v1913 = vadd.f32 %v1641, %v1855
      %v1914 = vadd.f32 %v1642, %v1858
      %v1915 = vadd.f32 %v1643, %v1863
      %v1916 = vadd.f32 %v1644, %v1866
      %v1917 = vadd.f32 %v1645, %v1871
      %v1918 = vadd.f32 %v1646, %v1874
      %v1919 = vadd.f32 %v1647, %v1879
      %v1920 = vadd.f32 %v1648, %v1882
      %1921 = vst.msk [vmem:[#allocation3] sm:$0xff] %vm328, %v1885
      %1922 = vst.msk [vmem:[#allocation3 + $0x8] sm:$0xff] %vm328, %v1886
      %1923 = vst.msk [vmem:[#allocation3 + $0x10] sm:$0xff] %vm328, %v1887
      %1924 = vst.msk [vmem:[#allocation3 + $0x18] sm:$0xff] %vm328, %v1888
      %1925 = vst.msk [vmem:[#allocation3 + $0x20] sm:$0xff] %vm328, %v1889
      %1926 = vst.msk [vmem:[#allocation3 + $0x28] sm:$0xff] %vm328, %v1890
      %1927 = vst.msk [vmem:[#allocation3 + $0x30] sm:$0xff] %vm328, %v1891
      %1928 = vst.msk [vmem:[#allocation3 + $0x38] sm:$0xff] %vm328, %v1892
      %1929 = vst.msk [vmem:[#allocation3 + $0x40] sm:$0xff] %vm328, %v1893
      %1930 = vst.msk [vmem:[#allocation3 + $0x48] sm:$0xff] %vm328, %v1894
      %1931 = vst.msk [vmem:[#allocation3 + $0x50] sm:$0xff] %vm328, %v1895
      %1932 = vst.msk [vmem:[#allocation3 + $0x58] sm:$0xff] %vm328, %v1896
      %1933 = vst.msk [vmem:[#allocation3 + $0x60] sm:$0xff] %vm328, %v1897
      %1934 = vst.msk [vmem:[#allocation3 + $0x68] sm:$0xff] %vm328, %v1898
      %1935 = vst.msk [vmem:[#allocation3 + $0x70] sm:$0xff] %vm328, %v1899
      %1936 = vst.msk [vmem:[#allocation3 + $0x78] sm:$0xff] %vm328, %v1900
      %1937 = vst.msk [vmem:[#allocation3 + $0x80] sm:$0xff] %vm328, %v1901
      %1938 = vst.msk [vmem:[#allocation3 + $0x88] sm:$0xff] %vm328, %v1902
      %1939 = vst.msk [vmem:[#allocation3 + $0x90] sm:$0xff] %vm328, %v1903
      %1940 = vst.msk [vmem:[#allocation3 + $0x98] sm:$0xff] %vm328, %v1904
      %1941 = vst.msk [vmem:[#allocation3 + $0xa0] sm:$0xff] %vm328, %v1905
      %1942 = vst.msk [vmem:[#allocation3 + $0xa8] sm:$0xff] %vm328, %v1906
      %1943 = vst.msk [vmem:[#allocation3 + $0xb0] sm:$0xff] %vm328, %v1907
      %1944 = vst.msk [vmem:[#allocation3 + $0xb8] sm:$0xff] %vm328, %v1908
      %1945 = vst.msk [vmem:[#allocation3 + $0xc0] sm:$0xff] %vm328, %v1909
      %1946 = vst.msk [vmem:[#allocation3 + $0xc8] sm:$0xff] %vm328, %v1910
      %1947 = vst.msk [vmem:[#allocation3 + $0xd0] sm:$0xff] %vm328, %v1911
      %1948 = vst.msk [vmem:[#allocation3 + $0xd8] sm:$0xff] %vm328, %v1912
      %1949 = vst.msk [vmem:[#allocation3 + $0xe0] sm:$0xff] %vm328, %v1913
      %1950 = vst.msk [vmem:[#allocation3 + $0xe8] sm:$0xff] %vm328, %v1914
      %1951 = vst.msk [vmem:[#allocation3 + $0xf0] sm:$0xff] %vm328, %v1915
      %1952 = vst.msk [vmem:[#allocation3 + $0xf8] sm:$0xff] %vm328, %v1916
      %1953 = vst.msk [vmem:[#allocation3 + $0x100] sm:$0xff] %vm328, %v1917
      %1954 = vst.msk [vmem:[#allocation3 + $0x108] sm:$0xff] %vm328, %v1918
      %1955 = vst.msk [vmem:[#allocation3 + $0x110] sm:$0xff] %vm328, %v1919
      %1956 = vst.msk [vmem:[#allocation3 + $0x118] sm:$0xff] %vm328, %v1920
      %v1957 = vld [vmem:[#allocation2 + $0x13] sm:$0xff]
      %v1958 = vld [vmem:[#allocation2 + $0x1b] sm:$0xff]
      %v1959 = vld [vmem:[#allocation2 + $0x23] sm:$0xff]
      %v1960 = vld [vmem:[#allocation2 + $0x2b] sm:$0xff]
      %v1961 = vld [vmem:[#allocation2 + $0x33] sm:$0xff]
      %v1962 = vld [vmem:[#allocation2 + $0x3b] sm:$0xff]
      %v1963 = vld [vmem:[#allocation2 + $0x43] sm:$0xff]
      %v1964 = vld [vmem:[#allocation2 + $0x4b] sm:$0xff]
      %v1965 = vld [vmem:[#allocation2 + $0x53] sm:$0xff]
      %v1966 = vld [vmem:[#allocation2 + $0x5b] sm:$0xff]
      %v1967 = vld [vmem:[#allocation2 + $0x63] sm:$0xff]
      %v1968 = vld [vmem:[#allocation2 + $0x6b] sm:$0xff]
      %v1969 = vld [vmem:[#allocation2 + $0x73] sm:$0xff]
      %v1970 = vld [vmem:[#allocation2 + $0x7b] sm:$0xff]
      %v1971 = vld [vmem:[#allocation2 + $0x83] sm:$0xff]
      %v1972 = vld [vmem:[#allocation2 + $0x8b] sm:$0xff]
      %v1973 = vld [vmem:[#allocation2 + $0x93] sm:$0xff]
      %v1974 = vld [vmem:[#allocation2 + $0x9b] sm:$0xff]
      %v1975 = vld [vmem:[#allocation2 + $0xa3] sm:$0xff]
      %v1976 = vld [vmem:[#allocation2 + $0xab] sm:$0xff]
      %v1977 = vld [vmem:[#allocation2 + $0xb3] sm:$0xff]
      %v1978 = vld [vmem:[#allocation2 + $0xbb] sm:$0xff]
      %v1979 = vld [vmem:[#allocation2 + $0xc3] sm:$0xff]
      %v1980 = vld [vmem:[#allocation2 + $0xcb] sm:$0xff]
      %v1981 = vld [vmem:[#allocation2 + $0xd3] sm:$0xff]
      %v1982 = vld [vmem:[#allocation2 + $0xdb] sm:$0xff]
      %v1983 = vld [vmem:[#allocation2 + $0xe3] sm:$0xff]
      %v1984 = vld [vmem:[#allocation2 + $0xeb] sm:$0xff]
      %v1985 = vld [vmem:[#allocation2 + $0xf3] sm:$0xff]
      %v1986 = vld [vmem:[#allocation2 + $0xfb] sm:$0xff]
      %v1987 = vld [vmem:[#allocation2 + $0x103] sm:$0xff]
      %v1988 = vld [vmem:[#allocation2 + $0x10b] sm:$0xff]
      %v1989 = vld [vmem:[#allocation2 + $0x113] sm:$0xff]
      %v1990 = vld [vmem:[#allocation2 + $0x11b] sm:$0xff]
      %v1991 = vld [vmem:[#allocation2 + $0x123] sm:$0xff]
      %v1992 = vld [vmem:[#allocation2 + $0x12b] sm:$0xff]
      %v1993 = vpack.c.bf16 %v1958, %v1957
      %v1994 = vpack.c.bf16 %v1960, %v1959
      %v1995 = vpack.c.bf16 %v1962, %v1961
      %v1996 = vpack.c.bf16 %v1964, %v1963
      %v1997 = vpack.c.bf16 %v1966, %v1965
      %v1998 = vpack.c.bf16 %v1968, %v1967
      %v1999 = vpack.c.bf16 %v1970, %v1969
      %v2000 = vpack.c.bf16 %v1972, %v1971
      %v2001 = vpack.c.bf16 %v1974, %v1973
      %v2002 = vpack.c.bf16 %v1976, %v1975
      %v2003 = vpack.c.bf16 %v1978, %v1977
      %v2004 = vpack.c.bf16 %v1980, %v1979
      %v2005 = vpack.c.bf16 %v1982, %v1981
      %v2006 = vpack.c.bf16 %v1984, %v1983
      %v2007 = vpack.c.bf16 %v1986, %v1985
      %v2008 = vpack.c.bf16 %v1988, %v1987
      %v2009 = vpack.c.bf16 %v1990, %v1989
      %v2010 = vpack.c.bf16 %v1992, %v1991
      %v2011 = vld [vmem:[#allocation3] sm:$0xff]
      %v2012 = vld [vmem:[#allocation3 + $0x8] sm:$0xff]
      %v2013 = vld [vmem:[#allocation3 + $0x10] sm:$0xff]
      %v2014 = vld [vmem:[#allocation3 + $0x18] sm:$0xff]
      %v2015 = vld [vmem:[#allocation3 + $0x20] sm:$0xff]
      %v2016 = vld [vmem:[#allocation3 + $0x28] sm:$0xff]
      %v2017 = vld [vmem:[#allocation3 + $0x30] sm:$0xff]
      %v2018 = vld [vmem:[#allocation3 + $0x38] sm:$0xff]
      %v2019 = vld [vmem:[#allocation3 + $0x40] sm:$0xff]
      %v2020 = vld [vmem:[#allocation3 + $0x48] sm:$0xff]
      %v2021 = vld [vmem:[#allocation3 + $0x50] sm:$0xff]
      %v2022 = vld [vmem:[#allocation3 + $0x58] sm:$0xff]
      %v2023 = vld [vmem:[#allocation3 + $0x60] sm:$0xff]
      %v2024 = vld [vmem:[#allocation3 + $0x68] sm:$0xff]
      %v2025 = vld [vmem:[#allocation3 + $0x70] sm:$0xff]
      %v2026 = vld [vmem:[#allocation3 + $0x78] sm:$0xff]
      %v2027 = vld [vmem:[#allocation3 + $0x80] sm:$0xff]
      %v2028 = vld [vmem:[#allocation3 + $0x88] sm:$0xff]
      %v2029 = vld [vmem:[#allocation3 + $0x90] sm:$0xff]
      %v2030 = vld [vmem:[#allocation3 + $0x98] sm:$0xff]
      %v2031 = vld [vmem:[#allocation3 + $0xa0] sm:$0xff]
      %v2032 = vld [vmem:[#allocation3 + $0xa8] sm:$0xff]
      %v2033 = vld [vmem:[#allocation3 + $0xb0] sm:$0xff]
      %v2034 = vld [vmem:[#allocation3 + $0xb8] sm:$0xff]
      %v2035 = vld [vmem:[#allocation3 + $0xc0] sm:$0xff]
      %v2036 = vld [vmem:[#allocation3 + $0xc8] sm:$0xff]
      %v2037 = vld [vmem:[#allocation3 + $0xd0] sm:$0xff]
      %v2038 = vld [vmem:[#allocation3 + $0xd8] sm:$0xff]
      %v2039 = vld [vmem:[#allocation3 + $0xe0] sm:$0xff]
      %v2040 = vld [vmem:[#allocation3 + $0xe8] sm:$0xff]
      %v2041 = vld [vmem:[#allocation3 + $0xf0] sm:$0xff]
      %v2042 = vld [vmem:[#allocation3 + $0xf8] sm:$0xff]
      %v2043 = vld [vmem:[#allocation3 + $0x100] sm:$0xff]
      %v2044 = vld [vmem:[#allocation3 + $0x108] sm:$0xff]
      %v2045 = vld [vmem:[#allocation3 + $0x110] sm:$0xff]
      %v2046 = vld [vmem:[#allocation3 + $0x118] sm:$0xff]
      %s2047 = scalar_lea.vmem %s1, 8
      %v2048 = vld [vmem:[%s2047] sm:$0x3]
      %v2050 = vsel %vm286, %v1993, 0
      %v2053 = vsel %vm286, %v1994, 0
      %v2056 = vsel %vm286, %v1995, 0
      %v2059 = vsel %vm286, %v1996, 0
      %v2062 = vsel %vm286, %v1997, 0
      %v2065 = vsel %vm286, %v1998, 0
      %v2068 = vsel %vm286, %v1999, 0
      %v2071 = vsel %vm286, %v2000, 0
      %v2074 = vsel %vm286, %v2001, 0
      %v2077 = vsel %vm286, %v2002, 0
      %v2080 = vsel %vm286, %v2003, 0
      %v2083 = vsel %vm286, %v2004, 0
      %v2086 = vsel %vm286, %v2005, 0
      %v2089 = vsel %vm286, %v2006, 0
      %v2092 = vsel %vm286, %v2007, 0
      %v2095 = vsel %vm286, %v2008, 0
      %v2098 = vsel %vm286, %v2009, 0
      %v2101 = vsel %vm286, %v2010, 0
      %v2104 = vsel %vm510, %v2048, 0
      %2106 = vmatprep.subr.bf16.mxu0 0
      %2107 = vmatpush1.bf16.msra.mxu0 0
      %2108 = vmatprep.subr.bf16.mxu0 0
      %2109 = vmatpush1.bf16.msra.mxu0 0
      %2110 = vmatprep.subr.bf16.mxu0 0
      %2111 = vmatpush1.bf16.msra.mxu0 0
      %2112 = vmatprep.subr.bf16.mxu0 0
      %2113 = vmatpush1.bf16.msra.mxu0 0
      %2114 = vmatprep.subr.bf16.mxu0 0
      %2115 = vmatpush1.bf16.msra.mxu0 0
      %2116 = vmatprep.subr.bf16.mxu0 0
      %2117 = vmatpush1.bf16.msra.mxu0 0
      %2118 = vmatprep.subr.bf16.mxu0 0
      %2119 = vmatpush1.bf16.msra.mxu0 0
      %2120 = vmatprep.subr.bf16.mxu0 0
      %2121 = vmatpush1.bf16.msra.mxu0 %v2104
      %2122 = vmatprep.subr.bf16.mxu0 0
      %2123 = vmatpush2.bf16.msra.mxu0 0
      %2124 = vmatprep.subr.bf16.mxu0 0
      %2125 = vmatpush2.bf16.msra.mxu0 0
      %2126 = vmatprep.subr.bf16.mxu0 0
      %2127 = vmatpush2.bf16.msra.mxu0 0
      %2128 = vmatprep.subr.bf16.mxu0 0
      %2129 = vmatpush2.bf16.msra.mxu0 0
      %2130 = vmatprep.subr.bf16.mxu0 0
      %2131 = vmatpush2.bf16.msra.mxu0 0
      %2132 = vmatprep.subr.bf16.mxu0 0
      %2133 = vmatpush2.bf16.msra.mxu0 0
      %2134 = vmatprep.subr.bf16.mxu0 0
      %2135 = vmatpush2.bf16.msra.mxu0 0
      %2136 = vmatprep.subr.bf16.mxu0 0
      %2137 = vmatpush2.bf16.msra.mxu0 0
      %2138 = vmatprep.mubr.bf16.mxu0 0
      %2139 = vmatmul.mubr.bf16.gmra.mxu0 %v2050
      %v2140 = vpop.f32.mrf.mxu0
      %v2141 = vadd.f32 0.0, %v2140
      %v2142 = vpop.f32.mrf.mxu0
      %v2143 = vpop.f32.mrf.mxu0
      %v2144 = vadd.f32 0.0, %v2143
      %v2145 = vpop.f32.mrf.mxu0
      %2146 = vmatprep.mubr.bf16.mxu0 0
      %2147 = vmatmul.mubr.bf16.gmra.mxu0 %v2053
      %v2148 = vpop.f32.mrf.mxu0
      %v2149 = vadd.f32 0.0, %v2148
      %v2150 = vpop.f32.mrf.mxu0
      %v2151 = vpop.f32.mrf.mxu0
      %v2152 = vadd.f32 0.0, %v2151
      %v2153 = vpop.f32.mrf.mxu0
      %2154 = vmatprep.mubr.bf16.mxu0 0
      %2155 = vmatmul.mubr.bf16.gmra.mxu0 %v2056
      %v2156 = vpop.f32.mrf.mxu0
      %v2157 = vadd.f32 0.0, %v2156
      %v2158 = vpop.f32.mrf.mxu0
      %v2159 = vpop.f32.mrf.mxu0
      %v2160 = vadd.f32 0.0, %v2159
      %v2161 = vpop.f32.mrf.mxu0
      %2162 = vmatprep.mubr.bf16.mxu0 0
      %2163 = vmatmul.mubr.bf16.gmra.mxu0 %v2059
      %v2164 = vpop.f32.mrf.mxu0
      %v2165 = vadd.f32 0.0, %v2164
      %v2166 = vpop.f32.mrf.mxu0
      %v2167 = vpop.f32.mrf.mxu0
      %v2168 = vadd.f32 0.0, %v2167
      %v2169 = vpop.f32.mrf.mxu0
      %2170 = vmatprep.mubr.bf16.mxu0 0
      %2171 = vmatmul.mubr.bf16.gmra.mxu0 %v2062
      %v2172 = vpop.f32.mrf.mxu0
      %v2173 = vadd.f32 0.0, %v2172
      %v2174 = vpop.f32.mrf.mxu0
      %v2175 = vpop.f32.mrf.mxu0
      %v2176 = vadd.f32 0.0, %v2175
      %v2177 = vpop.f32.mrf.mxu0
      %2178 = vmatprep.mubr.bf16.mxu0 0
      %2179 = vmatmul.mubr.bf16.gmra.mxu0 %v2065
      %v2180 = vpop.f32.mrf.mxu0
      %v2181 = vadd.f32 0.0, %v2180
      %v2182 = vpop.f32.mrf.mxu0
      %v2183 = vpop.f32.mrf.mxu0
      %v2184 = vadd.f32 0.0, %v2183
      %v2185 = vpop.f32.mrf.mxu0
      %2186 = vmatprep.mubr.bf16.mxu0 0
      %2187 = vmatmul.mubr.bf16.gmra.mxu0 %v2068
      %v2188 = vpop.f32.mrf.mxu0
      %v2189 = vadd.f32 0.0, %v2188
      %v2190 = vpop.f32.mrf.mxu0
      %v2191 = vpop.f32.mrf.mxu0
      %v2192 = vadd.f32 0.0, %v2191
      %v2193 = vpop.f32.mrf.mxu0
      %2194 = vmatprep.mubr.bf16.mxu0 0
      %2195 = vmatmul.mubr.bf16.gmra.mxu0 %v2071
      %v2196 = vpop.f32.mrf.mxu0
      %v2197 = vadd.f32 0.0, %v2196
      %v2198 = vpop.f32.mrf.mxu0
      %v2199 = vpop.f32.mrf.mxu0
      %v2200 = vadd.f32 0.0, %v2199
      %v2201 = vpop.f32.mrf.mxu0
      %2202 = vmatprep.mubr.bf16.mxu0 0
      %2203 = vmatmul.mubr.bf16.gmra.mxu0 %v2074
      %v2204 = vpop.f32.mrf.mxu0
      %v2205 = vadd.f32 0.0, %v2204
      %v2206 = vpop.f32.mrf.mxu0
      %v2207 = vpop.f32.mrf.mxu0
      %v2208 = vadd.f32 0.0, %v2207
      %v2209 = vpop.f32.mrf.mxu0
      %2210 = vmatprep.mubr.bf16.mxu0 0
      %2211 = vmatmul.mubr.bf16.gmra.mxu0 %v2077
      %v2212 = vpop.f32.mrf.mxu0
      %v2213 = vadd.f32 0.0, %v2212
      %v2214 = vpop.f32.mrf.mxu0
      %v2215 = vpop.f32.mrf.mxu0
      %v2216 = vadd.f32 0.0, %v2215
      %v2217 = vpop.f32.mrf.mxu0
      %2218 = vmatprep.mubr.bf16.mxu0 0
      %2219 = vmatmul.mubr.bf16.gmra.mxu0 %v2080
      %v2220 = vpop.f32.mrf.mxu0
      %v2221 = vadd.f32 0.0, %v2220
      %v2222 = vpop.f32.mrf.mxu0
      %v2223 = vpop.f32.mrf.mxu0
      %v2224 = vadd.f32 0.0, %v2223
      %v2225 = vpop.f32.mrf.mxu0
      %2226 = vmatprep.mubr.bf16.mxu0 0
      %2227 = vmatmul.mubr.bf16.gmra.mxu0 %v2083
      %v2228 = vpop.f32.mrf.mxu0
      %v2229 = vadd.f32 0.0, %v2228
      %v2230 = vpop.f32.mrf.mxu0
      %v2231 = vpop.f32.mrf.mxu0
      %v2232 = vadd.f32 0.0, %v2231
      %v2233 = vpop.f32.mrf.mxu0
      %2234 = vmatprep.mubr.bf16.mxu0 0
      %2235 = vmatmul.mubr.bf16.gmra.mxu0 %v2086
      %v2236 = vpop.f32.mrf.mxu0
      %v2237 = vadd.f32 0.0, %v2236
      %v2238 = vpop.f32.mrf.mxu0
      %v2239 = vpop.f32.mrf.mxu0
      %v2240 = vadd.f32 0.0, %v2239
      %v2241 = vpop.f32.mrf.mxu0
      %2242 = vmatprep.mubr.bf16.mxu0 0
      %2243 = vmatmul.mubr.bf16.gmra.mxu0 %v2089
      %v2244 = vpop.f32.mrf.mxu0
      %v2245 = vadd.f32 0.0, %v2244
      %v2246 = vpop.f32.mrf.mxu0
      %v2247 = vpop.f32.mrf.mxu0
      %v2248 = vadd.f32 0.0, %v2247
      %v2249 = vpop.f32.mrf.mxu0
      %2250 = vmatprep.mubr.bf16.mxu0 0
      %2251 = vmatmul.mubr.bf16.gmra.mxu0 %v2092
      %v2252 = vpop.f32.mrf.mxu0
      %v2253 = vadd.f32 0.0, %v2252
      %v2254 = vpop.f32.mrf.mxu0
      %v2255 = vpop.f32.mrf.mxu0
      %v2256 = vadd.f32 0.0, %v2255
      %v2257 = vpop.f32.mrf.mxu0
      %2258 = vmatprep.mubr.bf16.mxu0 0
      %2259 = vmatmul.mubr.bf16.gmra.mxu0 %v2095
      %v2260 = vpop.f32.mrf.mxu0
      %v2261 = vadd.f32 0.0, %v2260
      %v2262 = vpop.f32.mrf.mxu0
      %v2263 = vpop.f32.mrf.mxu0
      %v2264 = vadd.f32 0.0, %v2263
      %v2265 = vpop.f32.mrf.mxu0
      %2266 = vmatprep.mubr.bf16.mxu0 0
      %2267 = vmatmul.mubr.bf16.gmra.mxu0 %v2098
      %v2268 = vpop.f32.mrf.mxu0
      %v2269 = vadd.f32 0.0, %v2268
      %v2270 = vpop.f32.mrf.mxu0
      %v2271 = vpop.f32.mrf.mxu0
      %v2272 = vadd.f32 0.0, %v2271
      %v2273 = vpop.f32.mrf.mxu0
      %2274 = vmatprep.mubr.bf16.mxu0 0
      %2275 = vmatmul.mubr.bf16.gmra.mxu0 %v2101
      %v2276 = vpop.f32.mrf.mxu0
      %v2277 = vadd.f32 0.0, %v2276
      %v2278 = vpop.f32.mrf.mxu0
      %v2279 = vpop.f32.mrf.mxu0
      %v2280 = vadd.f32 0.0, %v2279
      %v2281 = vpop.f32.mrf.mxu0
      %2282 = vdwg.mxu0
      %v2283 = vadd.f32 %v2011, %v2141
      %v2284 = vadd.f32 %v2012, %v2144
      %v2285 = vadd.f32 %v2013, %v2149
      %v2286 = vadd.f32 %v2014, %v2152
      %v2287 = vadd.f32 %v2015, %v2157
      %v2288 = vadd.f32 %v2016, %v2160
      %v2289 = vadd.f32 %v2017, %v2165
      %v2290 = vadd.f32 %v2018, %v2168
      %v2291 = vadd.f32 %v2019, %v2173
      %v2292 = vadd.f32 %v2020, %v2176
      %v2293 = vadd.f32 %v2021, %v2181
      %v2294 = vadd.f32 %v2022, %v2184
      %v2295 = vadd.f32 %v2023, %v2189
      %v2296 = vadd.f32 %v2024, %v2192
      %v2297 = vadd.f32 %v2025, %v2197
      %v2298 = vadd.f32 %v2026, %v2200
      %v2299 = vadd.f32 %v2027, %v2205
      %v2300 = vadd.f32 %v2028, %v2208
      %v2301 = vadd.f32 %v2029, %v2213
      %v2302 = vadd.f32 %v2030, %v2216
      %v2303 = vadd.f32 %v2031, %v2221
      %v2304 = vadd.f32 %v2032, %v2224
      %v2305 = vadd.f32 %v2033, %v2229
      %v2306 = vadd.f32 %v2034, %v2232
      %v2307 = vadd.f32 %v2035, %v2237
      %v2308 = vadd.f32 %v2036, %v2240
      %v2309 = vadd.f32 %v2037, %v2245
      %v2310 = vadd.f32 %v2038, %v2248
      %v2311 = vadd.f32 %v2039, %v2253
      %v2312 = vadd.f32 %v2040, %v2256
      %v2313 = vadd.f32 %v2041, %v2261
      %v2314 = vadd.f32 %v2042, %v2264
      %v2315 = vadd.f32 %v2043, %v2269
      %v2316 = vadd.f32 %v2044, %v2272
      %v2317 = vadd.f32 %v2045, %v2277
      %v2318 = vadd.f32 %v2046, %v2280
      %2319 = vst.msk [vmem:[#allocation3] sm:$0xff] %vm328, %v2283
      %2320 = vst.msk [vmem:[#allocation3 + $0x8] sm:$0xff] %vm328, %v2284
      %2321 = vst.msk [vmem:[#allocation3 + $0x10] sm:$0xff] %vm328, %v2285
      %2322 = vst.msk [vmem:[#allocation3 + $0x18] sm:$0xff] %vm328, %v2286
      %2323 = vst.msk [vmem:[#allocation3 + $0x20] sm:$0xff] %vm328, %v2287
      %2324 = vst.msk [vmem:[#allocation3 + $0x28] sm:$0xff] %vm328, %v2288
      %2325 = vst.msk [vmem:[#allocation3 + $0x30] sm:$0xff] %vm328, %v2289
      %2326 = vst.msk [vmem:[#allocation3 + $0x38] sm:$0xff] %vm328, %v2290
      %2327 = vst.msk [vmem:[#allocation3 + $0x40] sm:$0xff] %vm328, %v2291
      %2328 = vst.msk [vmem:[#allocation3 + $0x48] sm:$0xff] %vm328, %v2292
      %2329 = vst.msk [vmem:[#allocation3 + $0x50] sm:$0xff] %vm328, %v2293
      %2330 = vst.msk [vmem:[#allocation3 + $0x58] sm:$0xff] %vm328, %v2294
      %2331 = vst.msk [vmem:[#allocation3 + $0x60] sm:$0xff] %vm328, %v2295
      %2332 = vst.msk [vmem:[#allocation3 + $0x68] sm:$0xff] %vm328, %v2296
      %2333 = vst.msk [vmem:[#allocation3 + $0x70] sm:$0xff] %vm328, %v2297
      %2334 = vst.msk [vmem:[#allocation3 + $0x78] sm:$0xff] %vm328, %v2298
      %2335 = vst.msk [vmem:[#allocation3 + $0x80] sm:$0xff] %vm328, %v2299
      %2336 = vst.msk [vmem:[#allocation3 + $0x88] sm:$0xff] %vm328, %v2300
      %2337 = vst.msk [vmem:[#allocation3 + $0x90] sm:$0xff] %vm328, %v2301
      %2338 = vst.msk [vmem:[#allocation3 + $0x98] sm:$0xff] %vm328, %v2302
      %2339 = vst.msk [vmem:[#allocation3 + $0xa0] sm:$0xff] %vm328, %v2303
      %2340 = vst.msk [vmem:[#allocation3 + $0xa8] sm:$0xff] %vm328, %v2304
      %2341 = vst.msk [vmem:[#allocation3 + $0xb0] sm:$0xff] %vm328, %v2305
      %2342 = vst.msk [vmem:[#allocation3 + $0xb8] sm:$0xff] %vm328, %v2306
      %2343 = vst.msk [vmem:[#allocation3 + $0xc0] sm:$0xff] %vm328, %v2307
      %2344 = vst.msk [vmem:[#allocation3 + $0xc8] sm:$0xff] %vm328, %v2308
      %2345 = vst.msk [vmem:[#allocation3 + $0xd0] sm:$0xff] %vm328, %v2309
      %2346 = vst.msk [vmem:[#allocation3 + $0xd8] sm:$0xff] %vm328, %v2310
      %2347 = vst.msk [vmem:[#allocation3 + $0xe0] sm:$0xff] %vm328, %v2311
      %2348 = vst.msk [vmem:[#allocation3 + $0xe8] sm:$0xff] %vm328, %v2312
      %2349 = vst.msk [vmem:[#allocation3 + $0xf0] sm:$0xff] %vm328, %v2313
      %2350 = vst.msk [vmem:[#allocation3 + $0xf8] sm:$0xff] %vm328, %v2314
      %2351 = vst.msk [vmem:[#allocation3 + $0x100] sm:$0xff] %vm328, %v2315
      %2352 = vst.msk [vmem:[#allocation3 + $0x108] sm:$0xff] %vm328, %v2316
      %2353 = vst.msk [vmem:[#allocation3 + $0x110] sm:$0xff] %vm328, %v2317
      %2354 = vst.msk [vmem:[#allocation3 + $0x118] sm:$0xff] %vm328, %v2318
      %v2355 = vld [vmem:[#allocation2 + $0x14] sm:$0xff]
      %v2356 = vld [vmem:[#allocation2 + $0x1c] sm:$0xff]
      %v2357 = vld [vmem:[#allocation2 + $0x24] sm:$0xff]
      %v2358 = vld [vmem:[#allocation2 + $0x2c] sm:$0xff]
      %v2359 = vld [vmem:[#allocation2 + $0x34] sm:$0xff]
      %v2360 = vld [vmem:[#allocation2 + $0x3c] sm:$0xff]
      %v2361 = vld [vmem:[#allocation2 + $0x44] sm:$0xff]
      %v2362 = vld [vmem:[#allocation2 + $0x4c] sm:$0xff]
      %v2363 = vld [vmem:[#allocation2 + $0x54] sm:$0xff]
      %v2364 = vld [vmem:[#allocation2 + $0x5c] sm:$0xff]
      %v2365 = vld [vmem:[#allocation2 + $0x64] sm:$0xff]
      %v2366 = vld [vmem:[#allocation2 + $0x6c] sm:$0xff]
      %v2367 = vld [vmem:[#allocation2 + $0x74] sm:$0xff]
      %v2368 = vld [vmem:[#allocation2 + $0x7c] sm:$0xff]
      %v2369 = vld [vmem:[#allocation2 + $0x84] sm:$0xff]
      %v2370 = vld [vmem:[#allocation2 + $0x8c] sm:$0xff]
      %v2371 = vld [vmem:[#allocation2 + $0x94] sm:$0xff]
      %v2372 = vld [vmem:[#allocation2 + $0x9c] sm:$0xff]
      %v2373 = vld [vmem:[#allocation2 + $0xa4] sm:$0xff]
      %v2374 = vld [vmem:[#allocation2 + $0xac] sm:$0xff]
      %v2375 = vld [vmem:[#allocation2 + $0xb4] sm:$0xff]
      %v2376 = vld [vmem:[#allocation2 + $0xbc] sm:$0xff]
      %v2377 = vld [vmem:[#allocation2 + $0xc4] sm:$0xff]
      %v2378 = vld [vmem:[#allocation2 + $0xcc] sm:$0xff]
      %v2379 = vld [vmem:[#allocation2 + $0xd4] sm:$0xff]
      %v2380 = vld [vmem:[#allocation2 + $0xdc] sm:$0xff]
      %v2381 = vld [vmem:[#allocation2 + $0xe4] sm:$0xff]
      %v2382 = vld [vmem:[#allocation2 + $0xec] sm:$0xff]
      %v2383 = vld [vmem:[#allocation2 + $0xf4] sm:$0xff]
      %v2384 = vld [vmem:[#allocation2 + $0xfc] sm:$0xff]
      %v2385 = vld [vmem:[#allocation2 + $0x104] sm:$0xff]
      %v2386 = vld [vmem:[#allocation2 + $0x10c] sm:$0xff]
      %v2387 = vld [vmem:[#allocation2 + $0x114] sm:$0xff]
      %v2388 = vld [vmem:[#allocation2 + $0x11c] sm:$0xff]
      %v2389 = vld [vmem:[#allocation2 + $0x124] sm:$0xff]
      %v2390 = vld [vmem:[#allocation2 + $0x12c] sm:$0xff]
      %v2391 = vpack.c.bf16 %v2356, %v2355
      %v2392 = vpack.c.bf16 %v2358, %v2357
      %v2393 = vpack.c.bf16 %v2360, %v2359
      %v2394 = vpack.c.bf16 %v2362, %v2361
      %v2395 = vpack.c.bf16 %v2364, %v2363
      %v2396 = vpack.c.bf16 %v2366, %v2365
      %v2397 = vpack.c.bf16 %v2368, %v2367
      %v2398 = vpack.c.bf16 %v2370, %v2369
      %v2399 = vpack.c.bf16 %v2372, %v2371
      %v2400 = vpack.c.bf16 %v2374, %v2373
      %v2401 = vpack.c.bf16 %v2376, %v2375
      %v2402 = vpack.c.bf16 %v2378, %v2377
      %v2403 = vpack.c.bf16 %v2380, %v2379
      %v2404 = vpack.c.bf16 %v2382, %v2381
      %v2405 = vpack.c.bf16 %v2384, %v2383
      %v2406 = vpack.c.bf16 %v2386, %v2385
      %v2407 = vpack.c.bf16 %v2388, %v2387
      %v2408 = vpack.c.bf16 %v2390, %v2389
      %v2409 = vld [vmem:[#allocation3] sm:$0xff]
      %v2410 = vld [vmem:[#allocation3 + $0x8] sm:$0xff]
      %v2411 = vld [vmem:[#allocation3 + $0x10] sm:$0xff]
      %v2412 = vld [vmem:[#allocation3 + $0x18] sm:$0xff]
      %v2413 = vld [vmem:[#allocation3 + $0x20] sm:$0xff]
      %v2414 = vld [vmem:[#allocation3 + $0x28] sm:$0xff]
      %v2415 = vld [vmem:[#allocation3 + $0x30] sm:$0xff]
      %v2416 = vld [vmem:[#allocation3 + $0x38] sm:$0xff]
      %v2417 = vld [vmem:[#allocation3 + $0x40] sm:$0xff]
      %v2418 = vld [vmem:[#allocation3 + $0x48] sm:$0xff]
      %v2419 = vld [vmem:[#allocation3 + $0x50] sm:$0xff]
      %v2420 = vld [vmem:[#allocation3 + $0x58] sm:$0xff]
      %v2421 = vld [vmem:[#allocation3 + $0x60] sm:$0xff]
      %v2422 = vld [vmem:[#allocation3 + $0x68] sm:$0xff]
      %v2423 = vld [vmem:[#allocation3 + $0x70] sm:$0xff]
      %v2424 = vld [vmem:[#allocation3 + $0x78] sm:$0xff]
      %v2425 = vld [vmem:[#allocation3 + $0x80] sm:$0xff]
      %v2426 = vld [vmem:[#allocation3 + $0x88] sm:$0xff]
      %v2427 = vld [vmem:[#allocation3 + $0x90] sm:$0xff]
      %v2428 = vld [vmem:[#allocation3 + $0x98] sm:$0xff]
      %v2429 = vld [vmem:[#allocation3 + $0xa0] sm:$0xff]
      %v2430 = vld [vmem:[#allocation3 + $0xa8] sm:$0xff]
      %v2431 = vld [vmem:[#allocation3 + $0xb0] sm:$0xff]
      %v2432 = vld [vmem:[#allocation3 + $0xb8] sm:$0xff]
      %v2433 = vld [vmem:[#allocation3 + $0xc0] sm:$0xff]
      %v2434 = vld [vmem:[#allocation3 + $0xc8] sm:$0xff]
      %v2435 = vld [vmem:[#allocation3 + $0xd0] sm:$0xff]
      %v2436 = vld [vmem:[#allocation3 + $0xd8] sm:$0xff]
      %v2437 = vld [vmem:[#allocation3 + $0xe0] sm:$0xff]
      %v2438 = vld [vmem:[#allocation3 + $0xe8] sm:$0xff]
      %v2439 = vld [vmem:[#allocation3 + $0xf0] sm:$0xff]
      %v2440 = vld [vmem:[#allocation3 + $0xf8] sm:$0xff]
      %v2441 = vld [vmem:[#allocation3 + $0x100] sm:$0xff]
      %v2442 = vld [vmem:[#allocation3 + $0x108] sm:$0xff]
      %v2443 = vld [vmem:[#allocation3 + $0x110] sm:$0xff]
      %v2444 = vld [vmem:[#allocation3 + $0x118] sm:$0xff]
      %s2445 = scalar_lea.vmem %s1, 10
      %v2446 = vld [vmem:[%s2445] sm:$0x3]
      %v2448 = vsel %vm286, %v2391, 0
      %v2451 = vsel %vm286, %v2392, 0
      %v2454 = vsel %vm286, %v2393, 0
      %v2457 = vsel %vm286, %v2394, 0
      %v2460 = vsel %vm286, %v2395, 0
      %v2463 = vsel %vm286, %v2396, 0
      %v2466 = vsel %vm286, %v2397, 0
      %v2469 = vsel %vm286, %v2398, 0
      %v2472 = vsel %vm286, %v2399, 0
      %v2475 = vsel %vm286, %v2400, 0
      %v2478 = vsel %vm286, %v2401, 0
      %v2481 = vsel %vm286, %v2402, 0
      %v2484 = vsel %vm286, %v2403, 0
      %v2487 = vsel %vm286, %v2404, 0
      %v2490 = vsel %vm286, %v2405, 0
      %v2493 = vsel %vm286, %v2406, 0
      %v2496 = vsel %vm286, %v2407, 0
      %v2499 = vsel %vm286, %v2408, 0
      %v2502 = vsel %vm510, %v2446, 0
      %2504 = vmatprep.subr.bf16.mxu0 0
      %2505 = vmatpush1.bf16.msra.mxu0 0
      %2506 = vmatprep.subr.bf16.mxu0 0
      %2507 = vmatpush1.bf16.msra.mxu0 0
      %2508 = vmatprep.subr.bf16.mxu0 0
      %2509 = vmatpush1.bf16.msra.mxu0 0
      %2510 = vmatprep.subr.bf16.mxu0 0
      %2511 = vmatpush1.bf16.msra.mxu0 0
      %2512 = vmatprep.subr.bf16.mxu0 0
      %2513 = vmatpush1.bf16.msra.mxu0 0
      %2514 = vmatprep.subr.bf16.mxu0 0
      %2515 = vmatpush1.bf16.msra.mxu0 0
      %2516 = vmatprep.subr.bf16.mxu0 0
      %2517 = vmatpush1.bf16.msra.mxu0 0
      %2518 = vmatprep.subr.bf16.mxu0 0
      %2519 = vmatpush1.bf16.msra.mxu0 %v2502
      %2520 = vmatprep.subr.bf16.mxu0 0
      %2521 = vmatpush2.bf16.msra.mxu0 0
      %2522 = vmatprep.subr.bf16.mxu0 0
      %2523 = vmatpush2.bf16.msra.mxu0 0
      %2524 = vmatprep.subr.bf16.mxu0 0
      %2525 = vmatpush2.bf16.msra.mxu0 0
      %2526 = vmatprep.subr.bf16.mxu0 0
      %2527 = vmatpush2.bf16.msra.mxu0 0
      %2528 = vmatprep.subr.bf16.mxu0 0
      %2529 = vmatpush2.bf16.msra.mxu0 0
      %2530 = vmatprep.subr.bf16.mxu0 0
      %2531 = vmatpush2.bf16.msra.mxu0 0
      %2532 = vmatprep.subr.bf16.mxu0 0
      %2533 = vmatpush2.bf16.msra.mxu0 0
      %2534 = vmatprep.subr.bf16.mxu0 0
      %2535 = vmatpush2.bf16.msra.mxu0 0
      %2536 = vmatprep.mubr.bf16.mxu0 0
      %2537 = vmatmul.mubr.bf16.gmra.mxu0 %v2448
      %v2538 = vpop.f32.mrf.mxu0
      %v2539 = vadd.f32 0.0, %v2538
      %v2540 = vpop.f32.mrf.mxu0
      %v2541 = vpop.f32.mrf.mxu0
      %v2542 = vadd.f32 0.0, %v2541
      %v2543 = vpop.f32.mrf.mxu0
      %2544 = vmatprep.mubr.bf16.mxu0 0
      %2545 = vmatmul.mubr.bf16.gmra.mxu0 %v2451
      %v2546 = vpop.f32.mrf.mxu0
      %v2547 = vadd.f32 0.0, %v2546
      %v2548 = vpop.f32.mrf.mxu0
      %v2549 = vpop.f32.mrf.mxu0
      %v2550 = vadd.f32 0.0, %v2549
      %v2551 = vpop.f32.mrf.mxu0
      %2552 = vmatprep.mubr.bf16.mxu0 0
      %2553 = vmatmul.mubr.bf16.gmra.mxu0 %v2454
      %v2554 = vpop.f32.mrf.mxu0
      %v2555 = vadd.f32 0.0, %v2554
      %v2556 = vpop.f32.mrf.mxu0
      %v2557 = vpop.f32.mrf.mxu0
      %v2558 = vadd.f32 0.0, %v2557
      %v2559 = vpop.f32.mrf.mxu0
      %2560 = vmatprep.mubr.bf16.mxu0 0
      %2561 = vmatmul.mubr.bf16.gmra.mxu0 %v2457
      %v2562 = vpop.f32.mrf.mxu0
      %v2563 = vadd.f32 0.0, %v2562
      %v2564 = vpop.f32.mrf.mxu0
      %v2565 = vpop.f32.mrf.mxu0
      %v2566 = vadd.f32 0.0, %v2565
      %v2567 = vpop.f32.mrf.mxu0
      %2568 = vmatprep.mubr.bf16.mxu0 0
      %2569 = vmatmul.mubr.bf16.gmra.mxu0 %v2460
      %v2570 = vpop.f32.mrf.mxu0
      %v2571 = vadd.f32 0.0, %v2570
      %v2572 = vpop.f32.mrf.mxu0
      %v2573 = vpop.f32.mrf.mxu0
      %v2574 = vadd.f32 0.0, %v2573
      %v2575 = vpop.f32.mrf.mxu0
      %2576 = vmatprep.mubr.bf16.mxu0 0
      %2577 = vmatmul.mubr.bf16.gmra.mxu0 %v2463
      %v2578 = vpop.f32.mrf.mxu0
      %v2579 = vadd.f32 0.0, %v2578
      %v2580 = vpop.f32.mrf.mxu0
      %v2581 = vpop.f32.mrf.mxu0
      %v2582 = vadd.f32 0.0, %v2581
      %v2583 = vpop.f32.mrf.mxu0
      %2584 = vmatprep.mubr.bf16.mxu0 0
      %2585 = vmatmul.mubr.bf16.gmra.mxu0 %v2466
      %v2586 = vpop.f32.mrf.mxu0
      %v2587 = vadd.f32 0.0, %v2586
      %v2588 = vpop.f32.mrf.mxu0
      %v2589 = vpop.f32.mrf.mxu0
      %v2590 = vadd.f32 0.0, %v2589
      %v2591 = vpop.f32.mrf.mxu0
      %2592 = vmatprep.mubr.bf16.mxu0 0
      %2593 = vmatmul.mubr.bf16.gmra.mxu0 %v2469
      %v2594 = vpop.f32.mrf.mxu0
      %v2595 = vadd.f32 0.0, %v2594
      %v2596 = vpop.f32.mrf.mxu0
      %v2597 = vpop.f32.mrf.mxu0
      %v2598 = vadd.f32 0.0, %v2597
      %v2599 = vpop.f32.mrf.mxu0
      %2600 = vmatprep.mubr.bf16.mxu0 0
      %2601 = vmatmul.mubr.bf16.gmra.mxu0 %v2472
      %v2602 = vpop.f32.mrf.mxu0
      %v2603 = vadd.f32 0.0, %v2602
      %v2604 = vpop.f32.mrf.mxu0
      %v2605 = vpop.f32.mrf.mxu0
      %v2606 = vadd.f32 0.0, %v2605
      %v2607 = vpop.f32.mrf.mxu0
      %2608 = vmatprep.mubr.bf16.mxu0 0
      %2609 = vmatmul.mubr.bf16.gmra.mxu0 %v2475
      %v2610 = vpop.f32.mrf.mxu0
      %v2611 = vadd.f32 0.0, %v2610
      %v2612 = vpop.f32.mrf.mxu0
      %v2613 = vpop.f32.mrf.mxu0
      %v2614 = vadd.f32 0.0, %v2613
      %v2615 = vpop.f32.mrf.mxu0
      %2616 = vmatprep.mubr.bf16.mxu0 0
      %2617 = vmatmul.mubr.bf16.gmra.mxu0 %v2478
      %v2618 = vpop.f32.mrf.mxu0
      %v2619 = vadd.f32 0.0, %v2618
      %v2620 = vpop.f32.mrf.mxu0
      %v2621 = vpop.f32.mrf.mxu0
      %v2622 = vadd.f32 0.0, %v2621
      %v2623 = vpop.f32.mrf.mxu0
      %2624 = vmatprep.mubr.bf16.mxu0 0
      %2625 = vmatmul.mubr.bf16.gmra.mxu0 %v2481
      %v2626 = vpop.f32.mrf.mxu0
      %v2627 = vadd.f32 0.0, %v2626
      %v2628 = vpop.f32.mrf.mxu0
      %v2629 = vpop.f32.mrf.mxu0
      %v2630 = vadd.f32 0.0, %v2629
      %v2631 = vpop.f32.mrf.mxu0
      %2632 = vmatprep.mubr.bf16.mxu0 0
      %2633 = vmatmul.mubr.bf16.gmra.mxu0 %v2484
      %v2634 = vpop.f32.mrf.mxu0
      %v2635 = vadd.f32 0.0, %v2634
      %v2636 = vpop.f32.mrf.mxu0
      %v2637 = vpop.f32.mrf.mxu0
      %v2638 = vadd.f32 0.0, %v2637
      %v2639 = vpop.f32.mrf.mxu0
      %2640 = vmatprep.mubr.bf16.mxu0 0
      %2641 = vmatmul.mubr.bf16.gmra.mxu0 %v2487
      %v2642 = vpop.f32.mrf.mxu0
      %v2643 = vadd.f32 0.0, %v2642
      %v2644 = vpop.f32.mrf.mxu0
      %v2645 = vpop.f32.mrf.mxu0
      %v2646 = vadd.f32 0.0, %v2645
      %v2647 = vpop.f32.mrf.mxu0
      %2648 = vmatprep.mubr.bf16.mxu0 0
      %2649 = vmatmul.mubr.bf16.gmra.mxu0 %v2490
      %v2650 = vpop.f32.mrf.mxu0
      %v2651 = vadd.f32 0.0, %v2650
      %v2652 = vpop.f32.mrf.mxu0
      %v2653 = vpop.f32.mrf.mxu0
      %v2654 = vadd.f32 0.0, %v2653
      %v2655 = vpop.f32.mrf.mxu0
      %2656 = vmatprep.mubr.bf16.mxu0 0
      %2657 = vmatmul.mubr.bf16.gmra.mxu0 %v2493
      %v2658 = vpop.f32.mrf.mxu0
      %v2659 = vadd.f32 0.0, %v2658
      %v2660 = vpop.f32.mrf.mxu0
      %v2661 = vpop.f32.mrf.mxu0
      %v2662 = vadd.f32 0.0, %v2661
      %v2663 = vpop.f32.mrf.mxu0
      %2664 = vmatprep.mubr.bf16.mxu0 0
      %2665 = vmatmul.mubr.bf16.gmra.mxu0 %v2496
      %v2666 = vpop.f32.mrf.mxu0
      %v2667 = vadd.f32 0.0, %v2666
      %v2668 = vpop.f32.mrf.mxu0
      %v2669 = vpop.f32.mrf.mxu0
      %v2670 = vadd.f32 0.0, %v2669
      %v2671 = vpop.f32.mrf.mxu0
      %2672 = vmatprep.mubr.bf16.mxu0 0
      %2673 = vmatmul.mubr.bf16.gmra.mxu0 %v2499
      %v2674 = vpop.f32.mrf.mxu0
      %v2675 = vadd.f32 0.0, %v2674
      %v2676 = vpop.f32.mrf.mxu0
      %v2677 = vpop.f32.mrf.mxu0
      %v2678 = vadd.f32 0.0, %v2677
      %v2679 = vpop.f32.mrf.mxu0
      %2680 = vdwg.mxu0
      %v2681 = vadd.f32 %v2409, %v2539
      %v2682 = vadd.f32 %v2410, %v2542
      %v2683 = vadd.f32 %v2411, %v2547
      %v2684 = vadd.f32 %v2412, %v2550
      %v2685 = vadd.f32 %v2413, %v2555
      %v2686 = vadd.f32 %v2414, %v2558
      %v2687 = vadd.f32 %v2415, %v2563
      %v2688 = vadd.f32 %v2416, %v2566
      %v2689 = vadd.f32 %v2417, %v2571
      %v2690 = vadd.f32 %v2418, %v2574
      %v2691 = vadd.f32 %v2419, %v2579
      %v2692 = vadd.f32 %v2420, %v2582
      %v2693 = vadd.f32 %v2421, %v2587
      %v2694 = vadd.f32 %v2422, %v2590
      %v2695 = vadd.f32 %v2423, %v2595
      %v2696 = vadd.f32 %v2424, %v2598
      %v2697 = vadd.f32 %v2425, %v2603
      %v2698 = vadd.f32 %v2426, %v2606
      %v2699 = vadd.f32 %v2427, %v2611
      %v2700 = vadd.f32 %v2428, %v2614
      %v2701 = vadd.f32 %v2429, %v2619
      %v2702 = vadd.f32 %v2430, %v2622
      %v2703 = vadd.f32 %v2431, %v2627
      %v2704 = vadd.f32 %v2432, %v2630
      %v2705 = vadd.f32 %v2433, %v2635
      %v2706 = vadd.f32 %v2434, %v2638
      %v2707 = vadd.f32 %v2435, %v2643
      %v2708 = vadd.f32 %v2436, %v2646
      %v2709 = vadd.f32 %v2437, %v2651
      %v2710 = vadd.f32 %v2438, %v2654
      %v2711 = vadd.f32 %v2439, %v2659
      %v2712 = vadd.f32 %v2440, %v2662
      %v2713 = vadd.f32 %v2441, %v2667
      %v2714 = vadd.f32 %v2442, %v2670
      %v2715 = vadd.f32 %v2443, %v2675
      %v2716 = vadd.f32 %v2444, %v2678
      %2717 = vst.msk [vmem:[#allocation3] sm:$0xff] %vm328, %v2681
      %2718 = vst.msk [vmem:[#allocation3 + $0x8] sm:$0xff] %vm328, %v2682
      %2719 = vst.msk [vmem:[#allocation3 + $0x10] sm:$0xff] %vm328, %v2683
      %2720 = vst.msk [vmem:[#allocation3 + $0x18] sm:$0xff] %vm328, %v2684
      %2721 = vst.msk [vmem:[#allocation3 + $0x20] sm:$0xff] %vm328, %v2685
      %2722 = vst.msk [vmem:[#allocation3 + $0x28] sm:$0xff] %vm328, %v2686
      %2723 = vst.msk [vmem:[#allocation3 + $0x30] sm:$0xff] %vm328, %v2687
      %2724 = vst.msk [vmem:[#allocation3 + $0x38] sm:$0xff] %vm328, %v2688
      %2725 = vst.msk [vmem:[#allocation3 + $0x40] sm:$0xff] %vm328, %v2689
      %2726 = vst.msk [vmem:[#allocation3 + $0x48] sm:$0xff] %vm328, %v2690
      %2727 = vst.msk [vmem:[#allocation3 + $0x50] sm:$0xff] %vm328, %v2691
      %2728 = vst.msk [vmem:[#allocation3 + $0x58] sm:$0xff] %vm328, %v2692
      %2729 = vst.msk [vmem:[#allocation3 + $0x60] sm:$0xff] %vm328, %v2693
      %2730 = vst.msk [vmem:[#allocation3 + $0x68] sm:$0xff] %vm328, %v2694
      %2731 = vst.msk [vmem:[#allocation3 + $0x70] sm:$0xff] %vm328, %v2695
      %2732 = vst.msk [vmem:[#allocation3 + $0x78] sm:$0xff] %vm328, %v2696
      %2733 = vst.msk [vmem:[#allocation3 + $0x80] sm:$0xff] %vm328, %v2697
      %2734 = vst.msk [vmem:[#allocation3 + $0x88] sm:$0xff] %vm328, %v2698
      %2735 = vst.msk [vmem:[#allocation3 + $0x90] sm:$0xff] %vm328, %v2699
      %2736 = vst.msk [vmem:[#allocation3 + $0x98] sm:$0xff] %vm328, %v2700
      %2737 = vst.msk [vmem:[#allocation3 + $0xa0] sm:$0xff] %vm328, %v2701
      %2738 = vst.msk [vmem:[#allocation3 + $0xa8] sm:$0xff] %vm328, %v2702
      %2739 = vst.msk [vmem:[#allocation3 + $0xb0] sm:$0xff] %vm328, %v2703
      %2740 = vst.msk [vmem:[#allocation3 + $0xb8] sm:$0xff] %vm328, %v2704
      %2741 = vst.msk [vmem:[#allocation3 + $0xc0] sm:$0xff] %vm328, %v2705
      %2742 = vst.msk [vmem:[#allocation3 + $0xc8] sm:$0xff] %vm328, %v2706
      %2743 = vst.msk [vmem:[#allocation3 + $0xd0] sm:$0xff] %vm328, %v2707
      %2744 = vst.msk [vmem:[#allocation3 + $0xd8] sm:$0xff] %vm328, %v2708
      %2745 = vst.msk [vmem:[#allocation3 + $0xe0] sm:$0xff] %vm328, %v2709
      %2746 = vst.msk [vmem:[#allocation3 + $0xe8] sm:$0xff] %vm328, %v2710
      %2747 = vst.msk [vmem:[#allocation3 + $0xf0] sm:$0xff] %vm328, %v2711
      %2748 = vst.msk [vmem:[#allocation3 + $0xf8] sm:$0xff] %vm328, %v2712
      %2749 = vst.msk [vmem:[#allocation3 + $0x100] sm:$0xff] %vm328, %v2713
      %2750 = vst.msk [vmem:[#allocation3 + $0x108] sm:$0xff] %vm328, %v2714
      %2751 = vst.msk [vmem:[#allocation3 + $0x110] sm:$0xff] %vm328, %v2715
      %2752 = vst.msk [vmem:[#allocation3 + $0x118] sm:$0xff] %vm328, %v2716
      %v2753 = vld [vmem:[#allocation2 + $0x24] sm:$0xff]
      %v2754 = vld [vmem:[#allocation2 + $0x2c] sm:$0xff]
      %v2755 = vld [vmem:[#allocation2 + $0x34] sm:$0xff]
      %v2756 = vld [vmem:[#allocation2 + $0x3c] sm:$0xff]
      %v2757 = vld [vmem:[#allocation2 + $0x44] sm:$0xff]
      %v2758 = vld [vmem:[#allocation2 + $0x4c] sm:$0xff]
      %v2759 = vld [vmem:[#allocation2 + $0x54] sm:$0xff]
      %v2760 = vld [vmem:[#allocation2 + $0x5c] sm:$0xff]
      %v2761 = vld [vmem:[#allocation2 + $0x64] sm:$0xff]
      %v2762 = vld [vmem:[#allocation2 + $0x6c] sm:$0xff]
      %v2763 = vld [vmem:[#allocation2 + $0x74] sm:$0xff]
      %v2764 = vld [vmem:[#allocation2 + $0x7c] sm:$0xff]
      %v2765 = vld [vmem:[#allocation2 + $0x84] sm:$0xff]
      %v2766 = vld [vmem:[#allocation2 + $0x8c] sm:$0xff]
      %v2767 = vld [vmem:[#allocation2 + $0x94] sm:$0xff]
      %v2768 = vld [vmem:[#allocation2 + $0x9c] sm:$0xff]
      %v2769 = vld [vmem:[#allocation2 + $0xa4] sm:$0xff]
      %v2770 = vld [vmem:[#allocation2 + $0xac] sm:$0xff]
      %v2771 = vld [vmem:[#allocation2 + $0xb4] sm:$0xff]
      %v2772 = vld [vmem:[#allocation2 + $0xbc] sm:$0xff]
      %v2773 = vld [vmem:[#allocation2 + $0xc4] sm:$0xff]
      %v2774 = vld [vmem:[#allocation2 + $0xcc] sm:$0xff]
      %v2775 = vld [vmem:[#allocation2 + $0xd4] sm:$0xff]
      %v2776 = vld [vmem:[#allocation2 + $0xdc] sm:$0xff]
      %v2777 = vld [vmem:[#allocation2 + $0xe4] sm:$0xff]
      %v2778 = vld [vmem:[#allocation2 + $0xec] sm:$0xff]
      %v2779 = vld [vmem:[#allocation2 + $0xf4] sm:$0xff]
      %v2780 = vld [vmem:[#allocation2 + $0xfc] sm:$0xff]
      %v2781 = vld [vmem:[#allocation2 + $0x104] sm:$0xff]
      %v2782 = vld [vmem:[#allocation2 + $0x10c] sm:$0xff]
      %v2783 = vld [vmem:[#allocation2 + $0x114] sm:$0xff]
      %v2784 = vld [vmem:[#allocation2 + $0x11c] sm:$0xff]
      %v2785 = vld [vmem:[#allocation2 + $0x124] sm:$0xff]
      %v2786 = vld [vmem:[#allocation2 + $0x12c] sm:$0xff]
      %v2787 = vld [vmem:[#allocation2 + $0x134] sm:$0xff]
      %v2788 = vld [vmem:[#allocation2 + $0x13c] sm:$0xff]
      %v2789 = vpack.c.bf16 %v2754, %v2753
      %v2790 = vpack.c.bf16 %v2756, %v2755
      %v2791 = vpack.c.bf16 %v2758, %v2757
      %v2792 = vpack.c.bf16 %v2760, %v2759
      %v2793 = vpack.c.bf16 %v2762, %v2761
      %v2794 = vpack.c.bf16 %v2764, %v2763
      %v2795 = vpack.c.bf16 %v2766, %v2765
      %v2796 = vpack.c.bf16 %v2768, %v2767
      %v2797 = vpack.c.bf16 %v2770, %v2769
      %v2798 = vpack.c.bf16 %v2772, %v2771
      %v2799 = vpack.c.bf16 %v2774, %v2773
      %v2800 = vpack.c.bf16 %v2776, %v2775
      %v2801 = vpack.c.bf16 %v2778, %v2777
      %v2802 = vpack.c.bf16 %v2780, %v2779
      %v2803 = vpack.c.bf16 %v2782, %v2781
      %v2804 = vpack.c.bf16 %v2784, %v2783
      %v2805 = vpack.c.bf16 %v2786, %v2785
      %v2806 = vpack.c.bf16 %v2788, %v2787
      %v2807 = vld [vmem:[#allocation3] sm:$0xff]
      %v2808 = vld [vmem:[#allocation3 + $0x8] sm:$0xff]
      %v2809 = vld [vmem:[#allocation3 + $0x10] sm:$0xff]
      %v2810 = vld [vmem:[#allocation3 + $0x18] sm:$0xff]
      %v2811 = vld [vmem:[#allocation3 + $0x20] sm:$0xff]
      %v2812 = vld [vmem:[#allocation3 + $0x28] sm:$0xff]
      %v2813 = vld [vmem:[#allocation3 + $0x30] sm:$0xff]
      %v2814 = vld [vmem:[#allocation3 + $0x38] sm:$0xff]
      %v2815 = vld [vmem:[#allocation3 + $0x40] sm:$0xff]
      %v2816 = vld [vmem:[#allocation3 + $0x48] sm:$0xff]
      %v2817 = vld [vmem:[#allocation3 + $0x50] sm:$0xff]
      %v2818 = vld [vmem:[#allocation3 + $0x58] sm:$0xff]
      %v2819 = vld [vmem:[#allocation3 + $0x60] sm:$0xff]
      %v2820 = vld [vmem:[#allocation3 + $0x68] sm:$0xff]
      %v2821 = vld [vmem:[#allocation3 + $0x70] sm:$0xff]
      %v2822 = vld [vmem:[#allocation3 + $0x78] sm:$0xff]
      %v2823 = vld [vmem:[#allocation3 + $0x80] sm:$0xff]
      %v2824 = vld [vmem:[#allocation3 + $0x88] sm:$0xff]
      %v2825 = vld [vmem:[#allocation3 + $0x90] sm:$0xff]
      %v2826 = vld [vmem:[#allocation3 + $0x98] sm:$0xff]
      %v2827 = vld [vmem:[#allocation3 + $0xa0] sm:$0xff]
      %v2828 = vld [vmem:[#allocation3 + $0xa8] sm:$0xff]
      %v2829 = vld [vmem:[#allocation3 + $0xb0] sm:$0xff]
      %v2830 = vld [vmem:[#allocation3 + $0xb8] sm:$0xff]
      %v2831 = vld [vmem:[#allocation3 + $0xc0] sm:$0xff]
      %v2832 = vld [vmem:[#allocation3 + $0xc8] sm:$0xff]
      %v2833 = vld [vmem:[#allocation3 + $0xd0] sm:$0xff]
      %v2834 = vld [vmem:[#allocation3 + $0xd8] sm:$0xff]
      %v2835 = vld [vmem:[#allocation3 + $0xe0] sm:$0xff]
      %v2836 = vld [vmem:[#allocation3 + $0xe8] sm:$0xff]
      %v2837 = vld [vmem:[#allocation3 + $0xf0] sm:$0xff]
      %v2838 = vld [vmem:[#allocation3 + $0xf8] sm:$0xff]
      %v2839 = vld [vmem:[#allocation3 + $0x100] sm:$0xff]
      %v2840 = vld [vmem:[#allocation3 + $0x108] sm:$0xff]
      %v2841 = vld [vmem:[#allocation3 + $0x110] sm:$0xff]
      %v2842 = vld [vmem:[#allocation3 + $0x118] sm:$0xff]
      %s2843 = scalar_lea.vmem %s1, 12
      %v2844 = vld [vmem:[%s2843] sm:$0x3]
      %v2846 = vsel %vm286, %v2789, 0
      %v2849 = vsel %vm286, %v2790, 0
      %v2852 = vsel %vm286, %v2791, 0
      %v2855 = vsel %vm286, %v2792, 0
      %v2858 = vsel %vm286, %v2793, 0
      %v2861 = vsel %vm286, %v2794, 0
      %v2864 = vsel %vm286, %v2795, 0
      %v2867 = vsel %vm286, %v2796, 0
      %v2870 = vsel %vm286, %v2797, 0
      %v2873 = vsel %vm286, %v2798, 0
      %v2876 = vsel %vm286, %v2799, 0
      %v2879 = vsel %vm286, %v2800, 0
      %v2882 = vsel %vm286, %v2801, 0
      %v2885 = vsel %vm286, %v2802, 0
      %v2888 = vsel %vm286, %v2803, 0
      %v2891 = vsel %vm286, %v2804, 0
      %v2894 = vsel %vm286, %v2805, 0
      %v2897 = vsel %vm286, %v2806, 0
      %v2900 = vsel %vm510, %v2844, 0
      %2902 = vmatprep.subr.bf16.mxu0 0
      %2903 = vmatpush1.bf16.msra.mxu0 0
      %2904 = vmatprep.subr.bf16.mxu0 0
      %2905 = vmatpush1.bf16.msra.mxu0 0
      %2906 = vmatprep.subr.bf16.mxu0 0
      %2907 = vmatpush1.bf16.msra.mxu0 0
      %2908 = vmatprep.subr.bf16.mxu0 0
      %2909 = vmatpush1.bf16.msra.mxu0 0
      %2910 = vmatprep.subr.bf16.mxu0 0
      %2911 = vmatpush1.bf16.msra.mxu0 0
      %2912 = vmatprep.subr.bf16.mxu0 0
      %2913 = vmatpush1.bf16.msra.mxu0 0
      %2914 = vmatprep.subr.bf16.mxu0 0
      %2915 = vmatpush1.bf16.msra.mxu0 0
      %2916 = vmatprep.subr.bf16.mxu0 0
      %2917 = vmatpush1.bf16.msra.mxu0 %v2900
      %2918 = vmatprep.subr.bf16.mxu0 0
      %2919 = vmatpush2.bf16.msra.mxu0 0
      %2920 = vmatprep.subr.bf16.mxu0 0
      %2921 = vmatpush2.bf16.msra.mxu0 0
      %2922 = vmatprep.subr.bf16.mxu0 0
      %2923 = vmatpush2.bf16.msra.mxu0 0
      %2924 = vmatprep.subr.bf16.mxu0 0
      %2925 = vmatpush2.bf16.msra.mxu0 0
      %2926 = vmatprep.subr.bf16.mxu0 0
      %2927 = vmatpush2.bf16.msra.mxu0 0
      %2928 = vmatprep.subr.bf16.mxu0 0
      %2929 = vmatpush2.bf16.msra.mxu0 0
      %2930 = vmatprep.subr.bf16.mxu0 0
      %2931 = vmatpush2.bf16.msra.mxu0 0
      %2932 = vmatprep.subr.bf16.mxu0 0
      %2933 = vmatpush2.bf16.msra.mxu0 0
      %2934 = vmatprep.mubr.bf16.mxu0 0
      %2935 = vmatmul.mubr.bf16.gmra.mxu0 %v2846
      %v2936 = vpop.f32.mrf.mxu0
      %v2937 = vadd.f32 0.0, %v2936
      %v2938 = vpop.f32.mrf.mxu0
      %v2939 = vpop.f32.mrf.mxu0
      %v2940 = vadd.f32 0.0, %v2939
      %v2941 = vpop.f32.mrf.mxu0
      %2942 = vmatprep.mubr.bf16.mxu0 0
      %2943 = vmatmul.mubr.bf16.gmra.mxu0 %v2849
      %v2944 = vpop.f32.mrf.mxu0
      %v2945 = vadd.f32 0.0, %v2944
      %v2946 = vpop.f32.mrf.mxu0
      %v2947 = vpop.f32.mrf.mxu0
      %v2948 = vadd.f32 0.0, %v2947
      %v2949 = vpop.f32.mrf.mxu0
      %2950 = vmatprep.mubr.bf16.mxu0 0
      %2951 = vmatmul.mubr.bf16.gmra.mxu0 %v2852
      %v2952 = vpop.f32.mrf.mxu0
      %v2953 = vadd.f32 0.0, %v2952
      %v2954 = vpop.f32.mrf.mxu0
      %v2955 = vpop.f32.mrf.mxu0
      %v2956 = vadd.f32 0.0, %v2955
      %v2957 = vpop.f32.mrf.mxu0
      %2958 = vmatprep.mubr.bf16.mxu0 0
      %2959 = vmatmul.mubr.bf16.gmra.mxu0 %v2855
      %v2960 = vpop.f32.mrf.mxu0
      %v2961 = vadd.f32 0.0, %v2960
      %v2962 = vpop.f32.mrf.mxu0
      %v2963 = vpop.f32.mrf.mxu0
      %v2964 = vadd.f32 0.0, %v2963
      %v2965 = vpop.f32.mrf.mxu0
      %2966 = vmatprep.mubr.bf16.mxu0 0
      %2967 = vmatmul.mubr.bf16.gmra.mxu0 %v2858
      %v2968 = vpop.f32.mrf.mxu0
      %v2969 = vadd.f32 0.0, %v2968
      %v2970 = vpop.f32.mrf.mxu0
      %v2971 = vpop.f32.mrf.mxu0
      %v2972 = vadd.f32 0.0, %v2971
      %v2973 = vpop.f32.mrf.mxu0
      %2974 = vmatprep.mubr.bf16.mxu0 0
      %2975 = vmatmul.mubr.bf16.gmra.mxu0 %v2861
      %v2976 = vpop.f32.mrf.mxu0
      %v2977 = vadd.f32 0.0, %v2976
      %v2978 = vpop.f32.mrf.mxu0
      %v2979 = vpop.f32.mrf.mxu0
      %v2980 = vadd.f32 0.0, %v2979
      %v2981 = vpop.f32.mrf.mxu0
      %2982 = vmatprep.mubr.bf16.mxu0 0
      %2983 = vmatmul.mubr.bf16.gmra.mxu0 %v2864
      %v2984 = vpop.f32.mrf.mxu0
      %v2985 = vadd.f32 0.0, %v2984
      %v2986 = vpop.f32.mrf.mxu0
      %v2987 = vpop.f32.mrf.mxu0
      %v2988 = vadd.f32 0.0, %v2987
      %v2989 = vpop.f32.mrf.mxu0
      %2990 = vmatprep.mubr.bf16.mxu0 0
      %2991 = vmatmul.mubr.bf16.gmra.mxu0 %v2867
      %v2992 = vpop.f32.mrf.mxu0
      %v2993 = vadd.f32 0.0, %v2992
      %v2994 = vpop.f32.mrf.mxu0
      %v2995 = vpop.f32.mrf.mxu0
      %v2996 = vadd.f32 0.0, %v2995
      %v2997 = vpop.f32.mrf.mxu0
      %2998 = vmatprep.mubr.bf16.mxu0 0
      %2999 = vmatmul.mubr.bf16.gmra.mxu0 %v2870
      %v3000 = vpop.f32.mrf.mxu0
      %v3001 = vadd.f32 0.0, %v3000
      %v3002 = vpop.f32.mrf.mxu0
      %v3003 = vpop.f32.mrf.mxu0
      %v3004 = vadd.f32 0.0, %v3003
      %v3005 = vpop.f32.mrf.mxu0
      %3006 = vmatprep.mubr.bf16.mxu0 0
      %3007 = vmatmul.mubr.bf16.gmra.mxu0 %v2873
      %v3008 = vpop.f32.mrf.mxu0
      %v3009 = vadd.f32 0.0, %v3008
      %v3010 = vpop.f32.mrf.mxu0
      %v3011 = vpop.f32.mrf.mxu0
      %v3012 = vadd.f32 0.0, %v3011
      %v3013 = vpop.f32.mrf.mxu0
      %3014 = vmatprep.mubr.bf16.mxu0 0
      %3015 = vmatmul.mubr.bf16.gmra.mxu0 %v2876
      %v3016 = vpop.f32.mrf.mxu0
      %v3017 = vadd.f32 0.0, %v3016
      %v3018 = vpop.f32.mrf.mxu0
      %v3019 = vpop.f32.mrf.mxu0
      %v3020 = vadd.f32 0.0, %v3019
      %v3021 = vpop.f32.mrf.mxu0
      %3022 = vmatprep.mubr.bf16.mxu0 0
      %3023 = vmatmul.mubr.bf16.gmra.mxu0 %v2879
      %v3024 = vpop.f32.mrf.mxu0
      %v3025 = vadd.f32 0.0, %v3024
      %v3026 = vpop.f32.mrf.mxu0
      %v3027 = vpop.f32.mrf.mxu0
      %v3028 = vadd.f32 0.0, %v3027
      %v3029 = vpop.f32.mrf.mxu0
      %3030 = vmatprep.mubr.bf16.mxu0 0
      %3031 = vmatmul.mubr.bf16.gmra.mxu0 %v2882
      %v3032 = vpop.f32.mrf.mxu0
      %v3033 = vadd.f32 0.0, %v3032
      %v3034 = vpop.f32.mrf.mxu0
      %v3035 = vpop.f32.mrf.mxu0
      %v3036 = vadd.f32 0.0, %v3035
      %v3037 = vpop.f32.mrf.mxu0
      %3038 = vmatprep.mubr.bf16.mxu0 0
      %3039 = vmatmul.mubr.bf16.gmra.mxu0 %v2885
      %v3040 = vpop.f32.mrf.mxu0
      %v3041 = vadd.f32 0.0, %v3040
      %v3042 = vpop.f32.mrf.mxu0
      %v3043 = vpop.f32.mrf.mxu0
      %v3044 = vadd.f32 0.0, %v3043
      %v3045 = vpop.f32.mrf.mxu0
      %3046 = vmatprep.mubr.bf16.mxu0 0
      %3047 = vmatmul.mubr.bf16.gmra.mxu0 %v2888
      %v3048 = vpop.f32.mrf.mxu0
      %v3049 = vadd.f32 0.0, %v3048
      %v3050 = vpop.f32.mrf.mxu0
      %v3051 = vpop.f32.mrf.mxu0
      %v3052 = vadd.f32 0.0, %v3051
      %v3053 = vpop.f32.mrf.mxu0
      %3054 = vmatprep.mubr.bf16.mxu0 0
      %3055 = vmatmul.mubr.bf16.gmra.mxu0 %v2891
      %v3056 = vpop.f32.mrf.mxu0
      %v3057 = vadd.f32 0.0, %v3056
      %v3058 = vpop.f32.mrf.mxu0
      %v3059 = vpop.f32.mrf.mxu0
      %v3060 = vadd.f32 0.0, %v3059
      %v3061 = vpop.f32.mrf.mxu0
      %3062 = vmatprep.mubr.bf16.mxu0 0
      %3063 = vmatmul.mubr.bf16.gmra.mxu0 %v2894
      %v3064 = vpop.f32.mrf.mxu0
      %v3065 = vadd.f32 0.0, %v3064
      %v3066 = vpop.f32.mrf.mxu0
      %v3067 = vpop.f32.mrf.mxu0
      %v3068 = vadd.f32 0.0, %v3067
      %v3069 = vpop.f32.mrf.mxu0
      %3070 = vmatprep.mubr.bf16.mxu0 0
      %3071 = vmatmul.mubr.bf16.gmra.mxu0 %v2897
      %v3072 = vpop.f32.mrf.mxu0
      %v3073 = vadd.f32 0.0, %v3072
      %v3074 = vpop.f32.mrf.mxu0
      %v3075 = vpop.f32.mrf.mxu0
      %v3076 = vadd.f32 0.0, %v3075
      %v3077 = vpop.f32.mrf.mxu0
      %3078 = vdwg.mxu0
      %v3079 = vadd.f32 %v2807, %v2937
      %v3080 = vadd.f32 %v2808, %v2940
      %v3081 = vadd.f32 %v2809, %v2945
      %v3082 = vadd.f32 %v2810, %v2948
      %v3083 = vadd.f32 %v2811, %v2953
      %v3084 = vadd.f32 %v2812, %v2956
      %v3085 = vadd.f32 %v2813, %v2961
      %v3086 = vadd.f32 %v2814, %v2964
      %v3087 = vadd.f32 %v2815, %v2969
      %v3088 = vadd.f32 %v2816, %v2972
      %v3089 = vadd.f32 %v2817, %v2977
      %v3090 = vadd.f32 %v2818, %v2980
      %v3091 = vadd.f32 %v2819, %v2985
      %v3092 = vadd.f32 %v2820, %v2988
      %v3093 = vadd.f32 %v2821, %v2993
      %v3094 = vadd.f32 %v2822, %v2996
      %v3095 = vadd.f32 %v2823, %v3001
      %v3096 = vadd.f32 %v2824, %v3004
      %v3097 = vadd.f32 %v2825, %v3009
      %v3098 = vadd.f32 %v2826, %v3012
      %v3099 = vadd.f32 %v2827, %v3017
      %v3100 = vadd.f32 %v2828, %v3020
      %v3101 = vadd.f32 %v2829, %v3025
      %v3102 = vadd.f32 %v2830, %v3028
      %v3103 = vadd.f32 %v2831, %v3033
      %v3104 = vadd.f32 %v2832, %v3036
      %v3105 = vadd.f32 %v2833, %v3041
      %v3106 = vadd.f32 %v2834, %v3044
      %v3107 = vadd.f32 %v2835, %v3049
      %v3108 = vadd.f32 %v2836, %v3052
      %v3109 = vadd.f32 %v2837, %v3057
      %v3110 = vadd.f32 %v2838, %v3060
      %v3111 = vadd.f32 %v2839, %v3065
      %v3112 = vadd.f32 %v2840, %v3068
      %v3113 = vadd.f32 %v2841, %v3073
      %v3114 = vadd.f32 %v2842, %v3076
      %3115 = vst.msk [vmem:[#allocation3] sm:$0xff] %vm328, %v3079
      %3116 = vst.msk [vmem:[#allocation3 + $0x8] sm:$0xff] %vm328, %v3080
      %3117 = vst.msk [vmem:[#allocation3 + $0x10] sm:$0xff] %vm328, %v3081
      %3118 = vst.msk [vmem:[#allocation3 + $0x18] sm:$0xff] %vm328, %v3082
      %3119 = vst.msk [vmem:[#allocation3 + $0x20] sm:$0xff] %vm328, %v3083
      %3120 = vst.msk [vmem:[#allocation3 + $0x28] sm:$0xff] %vm328, %v3084
      %3121 = vst.msk [vmem:[#allocation3 + $0x30] sm:$0xff] %vm328, %v3085
      %3122 = vst.msk [vmem:[#allocation3 + $0x38] sm:$0xff] %vm328, %v3086
      %3123 = vst.msk [vmem:[#allocation3 + $0x40] sm:$0xff] %vm328, %v3087
      %3124 = vst.msk [vmem:[#allocation3 + $0x48] sm:$0xff] %vm328, %v3088
      %3125 = vst.msk [vmem:[#allocation3 + $0x50] sm:$0xff] %vm328, %v3089
      %3126 = vst.msk [vmem:[#allocation3 + $0x58] sm:$0xff] %vm328, %v3090
      %3127 = vst.msk [vmem:[#allocation3 + $0x60] sm:$0xff] %vm328, %v3091
      %3128 = vst.msk [vmem:[#allocation3 + $0x68] sm:$0xff] %vm328, %v3092
      %3129 = vst.msk [vmem:[#allocation3 + $0x70] sm:$0xff] %vm328, %v3093
      %3130 = vst.msk [vmem:[#allocation3 + $0x78] sm:$0xff] %vm328, %v3094
      %3131 = vst.msk [vmem:[#allocation3 + $0x80] sm:$0xff] %vm328, %v3095
      %3132 = vst.msk [vmem:[#allocation3 + $0x88] sm:$0xff] %vm328, %v3096
      %3133 = vst.msk [vmem:[#allocation3 + $0x90] sm:$0xff] %vm328, %v3097
      %3134 = vst.msk [vmem:[#allocation3 + $0x98] sm:$0xff] %vm328, %v3098
      %3135 = vst.msk [vmem:[#allocation3 + $0xa0] sm:$0xff] %vm328, %v3099
      %3136 = vst.msk [vmem:[#allocation3 + $0xa8] sm:$0xff] %vm328, %v3100
      %3137 = vst.msk [vmem:[#allocation3 + $0xb0] sm:$0xff] %vm328, %v3101
      %3138 = vst.msk [vmem:[#allocation3 + $0xb8] sm:$0xff] %vm328, %v3102
      %3139 = vst.msk [vmem:[#allocation3 + $0xc0] sm:$0xff] %vm328, %v3103
      %3140 = vst.msk [vmem:[#allocation3 + $0xc8] sm:$0xff] %vm328, %v3104
      %3141 = vst.msk [vmem:[#allocation3 + $0xd0] sm:$0xff] %vm328, %v3105
      %3142 = vst.msk [vmem:[#allocation3 + $0xd8] sm:$0xff] %vm328, %v3106
      %3143 = vst.msk [vmem:[#allocation3 + $0xe0] sm:$0xff] %vm328, %v3107
      %3144 = vst.msk [vmem:[#allocation3 + $0xe8] sm:$0xff] %vm328, %v3108
      %3145 = vst.msk [vmem:[#allocation3 + $0xf0] sm:$0xff] %vm328, %v3109
      %3146 = vst.msk [vmem:[#allocation3 + $0xf8] sm:$0xff] %vm328, %v3110
      %3147 = vst.msk [vmem:[#allocation3 + $0x100] sm:$0xff] %vm328, %v3111
      %3148 = vst.msk [vmem:[#allocation3 + $0x108] sm:$0xff] %vm328, %v3112
      %3149 = vst.msk [vmem:[#allocation3 + $0x110] sm:$0xff] %vm328, %v3113
      %3150 = vst.msk [vmem:[#allocation3 + $0x118] sm:$0xff] %vm328, %v3114
      %v3151 = vld [vmem:[#allocation2 + $0x25] sm:$0xff]
      %v3152 = vld [vmem:[#allocation2 + $0x2d] sm:$0xff]
      %v3153 = vld [vmem:[#allocation2 + $0x35] sm:$0xff]
      %v3154 = vld [vmem:[#allocation2 + $0x3d] sm:$0xff]
      %v3155 = vld [vmem:[#allocation2 + $0x45] sm:$0xff]
      %v3156 = vld [vmem:[#allocation2 + $0x4d] sm:$0xff]
      %v3157 = vld [vmem:[#allocation2 + $0x55] sm:$0xff]
      %v3158 = vld [vmem:[#allocation2 + $0x5d] sm:$0xff]
      %v3159 = vld [vmem:[#allocation2 + $0x65] sm:$0xff]
      %v3160 = vld [vmem:[#allocation2 + $0x6d] sm:$0xff]
      %v3161 = vld [vmem:[#allocation2 + $0x75] sm:$0xff]
      %v3162 = vld [vmem:[#allocation2 + $0x7d] sm:$0xff]
      %v3163 = vld [vmem:[#allocation2 + $0x85] sm:$0xff]
      %v3164 = vld [vmem:[#allocation2 + $0x8d] sm:$0xff]
      %v3165 = vld [vmem:[#allocation2 + $0x95] sm:$0xff]
      %v3166 = vld [vmem:[#allocation2 + $0x9d] sm:$0xff]
      %v3167 = vld [vmem:[#allocation2 + $0xa5] sm:$0xff]
      %v3168 = vld [vmem:[#allocation2 + $0xad] sm:$0xff]
      %v3169 = vld [vmem:[#allocation2 + $0xb5] sm:$0xff]
      %v3170 = vld [vmem:[#allocation2 + $0xbd] sm:$0xff]
      %v3171 = vld [vmem:[#allocation2 + $0xc5] sm:$0xff]
      %v3172 = vld [vmem:[#allocation2 + $0xcd] sm:$0xff]
      %v3173 = vld [vmem:[#allocation2 + $0xd5] sm:$0xff]
      %v3174 = vld [vmem:[#allocation2 + $0xdd] sm:$0xff]
      %v3175 = vld [vmem:[#allocation2 + $0xe5] sm:$0xff]
      %v3176 = vld [vmem:[#allocation2 + $0xed] sm:$0xff]
      %v3177 = vld [vmem:[#allocation2 + $0xf5] sm:$0xff]
      %v3178 = vld [vmem:[#allocation2 + $0xfd] sm:$0xff]
      %v3179 = vld [vmem:[#allocation2 + $0x105] sm:$0xff]
      %v3180 = vld [vmem:[#allocation2 + $0x10d] sm:$0xff]
      %v3181 = vld [vmem:[#allocation2 + $0x115] sm:$0xff]
      %v3182 = vld [vmem:[#allocation2 + $0x11d] sm:$0xff]
      %v3183 = vld [vmem:[#allocation2 + $0x125] sm:$0xff]
      %v3184 = vld [vmem:[#allocation2 + $0x12d] sm:$0xff]
      %v3185 = vld [vmem:[#allocation2 + $0x135] sm:$0xff]
      %v3186 = vld [vmem:[#allocation2 + $0x13d] sm:$0xff]
      %v3187 = vpack.c.bf16 %v3152, %v3151
      %v3188 = vpack.c.bf16 %v3154, %v3153
      %v3189 = vpack.c.bf16 %v3156, %v3155
      %v3190 = vpack.c.bf16 %v3158, %v3157
      %v3191 = vpack.c.bf16 %v3160, %v3159
      %v3192 = vpack.c.bf16 %v3162, %v3161
      %v3193 = vpack.c.bf16 %v3164, %v3163
      %v3194 = vpack.c.bf16 %v3166, %v3165
      %v3195 = vpack.c.bf16 %v3168, %v3167
      %v3196 = vpack.c.bf16 %v3170, %v3169
      %v3197 = vpack.c.bf16 %v3172, %v3171
      %v3198 = vpack.c.bf16 %v3174, %v3173
      %v3199 = vpack.c.bf16 %v3176, %v3175
      %v3200 = vpack.c.bf16 %v3178, %v3177
      %v3201 = vpack.c.bf16 %v3180, %v3179
      %v3202 = vpack.c.bf16 %v3182, %v3181
      %v3203 = vpack.c.bf16 %v3184, %v3183
      %v3204 = vpack.c.bf16 %v3186, %v3185
      %v3205 = vld [vmem:[#allocation3] sm:$0xff]
      %v3206 = vld [vmem:[#allocation3 + $0x8] sm:$0xff]
      %v3207 = vld [vmem:[#allocation3 + $0x10] sm:$0xff]
      %v3208 = vld [vmem:[#allocation3 + $0x18] sm:$0xff]
      %v3209 = vld [vmem:[#allocation3 + $0x20] sm:$0xff]
      %v3210 = vld [vmem:[#allocation3 + $0x28] sm:$0xff]
      %v3211 = vld [vmem:[#allocation3 + $0x30] sm:$0xff]
      %v3212 = vld [vmem:[#allocation3 + $0x38] sm:$0xff]
      %v3213 = vld [vmem:[#allocation3 + $0x40] sm:$0xff]
      %v3214 = vld [vmem:[#allocation3 + $0x48] sm:$0xff]
      %v3215 = vld [vmem:[#allocation3 + $0x50] sm:$0xff]
      %v3216 = vld [vmem:[#allocation3 + $0x58] sm:$0xff]
      %v3217 = vld [vmem:[#allocation3 + $0x60] sm:$0xff]
      %v3218 = vld [vmem:[#allocation3 + $0x68] sm:$0xff]
      %v3219 = vld [vmem:[#allocation3 + $0x70] sm:$0xff]
      %v3220 = vld [vmem:[#allocation3 + $0x78] sm:$0xff]
      %v3221 = vld [vmem:[#allocation3 + $0x80] sm:$0xff]
      %v3222 = vld [vmem:[#allocation3 + $0x88] sm:$0xff]
      %v3223 = vld [vmem:[#allocation3 + $0x90] sm:$0xff]
      %v3224 = vld [vmem:[#allocation3 + $0x98] sm:$0xff]
      %v3225 = vld [vmem:[#allocation3 + $0xa0] sm:$0xff]
      %v3226 = vld [vmem:[#allocation3 + $0xa8] sm:$0xff]
      %v3227 = vld [vmem:[#allocation3 + $0xb0] sm:$0xff]
      %v3228 = vld [vmem:[#allocation3 + $0xb8] sm:$0xff]
      %v3229 = vld [vmem:[#allocation3 + $0xc0] sm:$0xff]
      %v3230 = vld [vmem:[#allocation3 + $0xc8] sm:$0xff]
      %v3231 = vld [vmem:[#allocation3 + $0xd0] sm:$0xff]
      %v3232 = vld [vmem:[#allocation3 + $0xd8] sm:$0xff]
      %v3233 = vld [vmem:[#allocation3 + $0xe0] sm:$0xff]
      %v3234 = vld [vmem:[#allocation3 + $0xe8] sm:$0xff]
      %v3235 = vld [vmem:[#allocation3 + $0xf0] sm:$0xff]
      %v3236 = vld [vmem:[#allocation3 + $0xf8] sm:$0xff]
      %v3237 = vld [vmem:[#allocation3 + $0x100] sm:$0xff]
      %v3238 = vld [vmem:[#allocation3 + $0x108] sm:$0xff]
      %v3239 = vld [vmem:[#allocation3 + $0x110] sm:$0xff]
      %v3240 = vld [vmem:[#allocation3 + $0x118] sm:$0xff]
      %s3241 = scalar_lea.vmem %s1, 14
      %v3242 = vld [vmem:[%s3241] sm:$0x3]
      %v3244 = vsel %vm286, %v3187, 0
      %v3247 = vsel %vm286, %v3188, 0
      %v3250 = vsel %vm286, %v3189, 0
      %v3253 = vsel %vm286, %v3190, 0
      %v3256 = vsel %vm286, %v3191, 0
      %v3259 = vsel %vm286, %v3192, 0
      %v3262 = vsel %vm286, %v3193, 0
      %v3265 = vsel %vm286, %v3194, 0
      %v3268 = vsel %vm286, %v3195, 0
      %v3271 = vsel %vm286, %v3196, 0
      %v3274 = vsel %vm286, %v3197, 0
      %v3277 = vsel %vm286, %v3198, 0
      %v3280 = vsel %vm286, %v3199, 0
      %v3283 = vsel %vm286, %v3200, 0
      %v3286 = vsel %vm286, %v3201, 0
      %v3289 = vsel %vm286, %v3202, 0
      %v3292 = vsel %vm286, %v3203, 0
      %v3295 = vsel %vm286, %v3204, 0
      %v3298 = vsel %vm510, %v3242, 0
      %3300 = vmatprep.subr.bf16.mxu0 0
      %3301 = vmatpush1.bf16.msra.mxu0 0
      %3302 = vmatprep.subr.bf16.mxu0 0
      %3303 = vmatpush1.bf16.msra.mxu0 0
      %3304 = vmatprep.subr.bf16.mxu0 0
      %3305 = vmatpush1.bf16.msra.mxu0 0
      %3306 = vmatprep.subr.bf16.mxu0 0
      %3307 = vmatpush1.bf16.msra.mxu0 0
      %3308 = vmatprep.subr.bf16.mxu0 0
      %3309 = vmatpush1.bf16.msra.mxu0 0
      %3310 = vmatprep.subr.bf16.mxu0 0
      %3311 = vmatpush1.bf16.msra.mxu0 0
      %3312 = vmatprep.subr.bf16.mxu0 0
      %3313 = vmatpush1.bf16.msra.mxu0 0
      %3314 = vmatprep.subr.bf16.mxu0 0
      %3315 = vmatpush1.bf16.msra.mxu0 %v3298
      %3316 = vmatprep.subr.bf16.mxu0 0
      %3317 = vmatpush2.bf16.msra.mxu0 0
      %3318 = vmatprep.subr.bf16.mxu0 0
      %3319 = vmatpush2.bf16.msra.mxu0 0
      %3320 = vmatprep.subr.bf16.mxu0 0
      %3321 = vmatpush2.bf16.msra.mxu0 0
      %3322 = vmatprep.subr.bf16.mxu0 0
      %3323 = vmatpush2.bf16.msra.mxu0 0
      %3324 = vmatprep.subr.bf16.mxu0 0
      %3325 = vmatpush2.bf16.msra.mxu0 0
      %3326 = vmatprep.subr.bf16.mxu0 0
      %3327 = vmatpush2.bf16.msra.mxu0 0
      %3328 = vmatprep.subr.bf16.mxu0 0
      %3329 = vmatpush2.bf16.msra.mxu0 0
      %3330 = vmatprep.subr.bf16.mxu0 0
      %3331 = vmatpush2.bf16.msra.mxu0 0
      %3332 = vmatprep.mubr.bf16.mxu0 0
      %3333 = vmatmul.mubr.bf16.gmra.mxu0 %v3244
      %v3334 = vpop.f32.mrf.mxu0
      %v3335 = vadd.f32 0.0, %v3334
      %v3336 = vpop.f32.mrf.mxu0
      %v3337 = vpop.f32.mrf.mxu0
      %v3338 = vadd.f32 0.0, %v3337
      %v3339 = vpop.f32.mrf.mxu0
      %3340 = vmatprep.mubr.bf16.mxu0 0
      %3341 = vmatmul.mubr.bf16.gmra.mxu0 %v3247
      %v3342 = vpop.f32.mrf.mxu0
      %v3343 = vadd.f32 0.0, %v3342
      %v3344 = vpop.f32.mrf.mxu0
      %v3345 = vpop.f32.mrf.mxu0
      %v3346 = vadd.f32 0.0, %v3345
      %v3347 = vpop.f32.mrf.mxu0
      %3348 = vmatprep.mubr.bf16.mxu0 0
      %3349 = vmatmul.mubr.bf16.gmra.mxu0 %v3250
      %v3350 = vpop.f32.mrf.mxu0
      %v3351 = vadd.f32 0.0, %v3350
      %v3352 = vpop.f32.mrf.mxu0
      %v3353 = vpop.f32.mrf.mxu0
      %v3354 = vadd.f32 0.0, %v3353
      %v3355 = vpop.f32.mrf.mxu0
      %3356 = vmatprep.mubr.bf16.mxu0 0
      %3357 = vmatmul.mubr.bf16.gmra.mxu0 %v3253
      %v3358 = vpop.f32.mrf.mxu0
      %v3359 = vadd.f32 0.0, %v3358
      %v3360 = vpop.f32.mrf.mxu0
      %v3361 = vpop.f32.mrf.mxu0
      %v3362 = vadd.f32 0.0, %v3361
      %v3363 = vpop.f32.mrf.mxu0
      %3364 = vmatprep.mubr.bf16.mxu0 0
      %3365 = vmatmul.mubr.bf16.gmra.mxu0 %v3256
      %v3366 = vpop.f32.mrf.mxu0
      %v3367 = vadd.f32 0.0, %v3366
      %v3368 = vpop.f32.mrf.mxu0
      %v3369 = vpop.f32.mrf.mxu0
      %v3370 = vadd.f32 0.0, %v3369
      %v3371 = vpop.f32.mrf.mxu0
      %3372 = vmatprep.mubr.bf16.mxu0 0
      %3373 = vmatmul.mubr.bf16.gmra.mxu0 %v3259
      %v3374 = vpop.f32.mrf.mxu0
      %v3375 = vadd.f32 0.0, %v3374
      %v3376 = vpop.f32.mrf.mxu0
      %v3377 = vpop.f32.mrf.mxu0
      %v3378 = vadd.f32 0.0, %v3377
      %v3379 = vpop.f32.mrf.mxu0
      %3380 = vmatprep.mubr.bf16.mxu0 0
      %3381 = vmatmul.mubr.bf16.gmra.mxu0 %v3262
      %v3382 = vpop.f32.mrf.mxu0
      %v3383 = vadd.f32 0.0, %v3382
      %v3384 = vpop.f32.mrf.mxu0
      %v3385 = vpop.f32.mrf.mxu0
      %v3386 = vadd.f32 0.0, %v3385
      %v3387 = vpop.f32.mrf.mxu0
      %3388 = vmatprep.mubr.bf16.mxu0 0
      %3389 = vmatmul.mubr.bf16.gmra.mxu0 %v3265
      %v3390 = vpop.f32.mrf.mxu0
      %v3391 = vadd.f32 0.0, %v3390
      %v3392 = vpop.f32.mrf.mxu0
      %v3393 = vpop.f32.mrf.mxu0
      %v3394 = vadd.f32 0.0, %v3393
      %v3395 = vpop.f32.mrf.mxu0
      %3396 = vmatprep.mubr.bf16.mxu0 0
      %3397 = vmatmul.mubr.bf16.gmra.mxu0 %v3268
      %v3398 = vpop.f32.mrf.mxu0
      %v3399 = vadd.f32 0.0, %v3398
      %v3400 = vpop.f32.mrf.mxu0
      %v3401 = vpop.f32.mrf.mxu0
      %v3402 = vadd.f32 0.0, %v3401
      %v3403 = vpop.f32.mrf.mxu0
      %3404 = vmatprep.mubr.bf16.mxu0 0
      %3405 = vmatmul.mubr.bf16.gmra.mxu0 %v3271
      %v3406 = vpop.f32.mrf.mxu0
      %v3407 = vadd.f32 0.0, %v3406
      %v3408 = vpop.f32.mrf.mxu0
      %v3409 = vpop.f32.mrf.mxu0
      %v3410 = vadd.f32 0.0, %v3409
      %v3411 = vpop.f32.mrf.mxu0
      %3412 = vmatprep.mubr.bf16.mxu0 0
      %3413 = vmatmul.mubr.bf16.gmra.mxu0 %v3274
      %v3414 = vpop.f32.mrf.mxu0
      %v3415 = vadd.f32 0.0, %v3414
      %v3416 = vpop.f32.mrf.mxu0
      %v3417 = vpop.f32.mrf.mxu0
      %v3418 = vadd.f32 0.0, %v3417
      %v3419 = vpop.f32.mrf.mxu0
      %3420 = vmatprep.mubr.bf16.mxu0 0
      %3421 = vmatmul.mubr.bf16.gmra.mxu0 %v3277
      %v3422 = vpop.f32.mrf.mxu0
      %v3423 = vadd.f32 0.0, %v3422
      %v3424 = vpop.f32.mrf.mxu0
      %v3425 = vpop.f32.mrf.mxu0
      %v3426 = vadd.f32 0.0, %v3425
      %v3427 = vpop.f32.mrf.mxu0
      %3428 = vmatprep.mubr.bf16.mxu0 0
      %3429 = vmatmul.mubr.bf16.gmra.mxu0 %v3280
      %v3430 = vpop.f32.mrf.mxu0
      %v3431 = vadd.f32 0.0, %v3430
      %v3432 = vpop.f32.mrf.mxu0
      %v3433 = vpop.f32.mrf.mxu0
      %v3434 = vadd.f32 0.0, %v3433
      %v3435 = vpop.f32.mrf.mxu0
      %3436 = vmatprep.mubr.bf16.mxu0 0
      %3437 = vmatmul.mubr.bf16.gmra.mxu0 %v3283
      %v3438 = vpop.f32.mrf.mxu0
      %v3439 = vadd.f32 0.0, %v3438
      %v3440 = vpop.f32.mrf.mxu0
      %v3441 = vpop.f32.mrf.mxu0
      %v3442 = vadd.f32 0.0, %v3441
      %v3443 = vpop.f32.mrf.mxu0
      %3444 = vmatprep.mubr.bf16.mxu0 0
      %3445 = vmatmul.mubr.bf16.gmra.mxu0 %v3286
      %v3446 = vpop.f32.mrf.mxu0
      %v3447 = vadd.f32 0.0, %v3446
      %v3448 = vpop.f32.mrf.mxu0
      %v3449 = vpop.f32.mrf.mxu0
      %v3450 = vadd.f32 0.0, %v3449
      %v3451 = vpop.f32.mrf.mxu0
      %3452 = vmatprep.mubr.bf16.mxu0 0
      %3453 = vmatmul.mubr.bf16.gmra.mxu0 %v3289
      %v3454 = vpop.f32.mrf.mxu0
      %v3455 = vadd.f32 0.0, %v3454
      %v3456 = vpop.f32.mrf.mxu0
      %v3457 = vpop.f32.mrf.mxu0
      %v3458 = vadd.f32 0.0, %v3457
      %v3459 = vpop.f32.mrf.mxu0
      %3460 = vmatprep.mubr.bf16.mxu0 0
      %3461 = vmatmul.mubr.bf16.gmra.mxu0 %v3292
      %v3462 = vpop.f32.mrf.mxu0
      %v3463 = vadd.f32 0.0, %v3462
      %v3464 = vpop.f32.mrf.mxu0
      %v3465 = vpop.f32.mrf.mxu0
      %v3466 = vadd.f32 0.0, %v3465
      %v3467 = vpop.f32.mrf.mxu0
      %3468 = vmatprep.mubr.bf16.mxu0 0
      %3469 = vmatmul.mubr.bf16.gmra.mxu0 %v3295
      %v3470 = vpop.f32.mrf.mxu0
      %v3471 = vadd.f32 0.0, %v3470
      %v3472 = vpop.f32.mrf.mxu0
      %v3473 = vpop.f32.mrf.mxu0
      %v3474 = vadd.f32 0.0, %v3473
      %v3475 = vpop.f32.mrf.mxu0
      %3476 = vdwg.mxu0
      %v3477 = vadd.f32 %v3205, %v3335
      %v3478 = vadd.f32 %v3206, %v3338
      %v3479 = vadd.f32 %v3207, %v3343
      %v3480 = vadd.f32 %v3208, %v3346
      %v3481 = vadd.f32 %v3209, %v3351
      %v3482 = vadd.f32 %v3210, %v3354
      %v3483 = vadd.f32 %v3211, %v3359
      %v3484 = vadd.f32 %v3212, %v3362
      %v3485 = vadd.f32 %v3213, %v3367
      %v3486 = vadd.f32 %v3214, %v3370
      %v3487 = vadd.f32 %v3215, %v3375
      %v3488 = vadd.f32 %v3216, %v3378
      %v3489 = vadd.f32 %v3217, %v3383
      %v3490 = vadd.f32 %v3218, %v3386
      %v3491 = vadd.f32 %v3219, %v3391
      %v3492 = vadd.f32 %v3220, %v3394
      %v3493 = vadd.f32 %v3221, %v3399
      %v3494 = vadd.f32 %v3222, %v3402
      %v3495 = vadd.f32 %v3223, %v3407
      %v3496 = vadd.f32 %v3224, %v3410
      %v3497 = vadd.f32 %v3225, %v3415
      %v3498 = vadd.f32 %v3226, %v3418
      %v3499 = vadd.f32 %v3227, %v3423
      %v3500 = vadd.f32 %v3228, %v3426
      %v3501 = vadd.f32 %v3229, %v3431
      %v3502 = vadd.f32 %v3230, %v3434
      %v3503 = vadd.f32 %v3231, %v3439
      %v3504 = vadd.f32 %v3232, %v3442
      %v3505 = vadd.f32 %v3233, %v3447
      %v3506 = vadd.f32 %v3234, %v3450
      %v3507 = vadd.f32 %v3235, %v3455
      %v3508 = vadd.f32 %v3236, %v3458
      %v3509 = vadd.f32 %v3237, %v3463
      %v3510 = vadd.f32 %v3238, %v3466
      %v3511 = vadd.f32 %v3239, %v3471
      %v3512 = vadd.f32 %v3240, %v3474
      %3513 = vst.msk [vmem:[#allocation3] sm:$0xff] %vm328, %v3477
      %3514 = vst.msk [vmem:[#allocation3 + $0x8] sm:$0xff] %vm328, %v3478
      %3515 = vst.msk [vmem:[#allocation3 + $0x10] sm:$0xff] %vm328, %v3479
      %3516 = vst.msk [vmem:[#allocation3 + $0x18] sm:$0xff] %vm328, %v3480
      %3517 = vst.msk [vmem:[#allocation3 + $0x20] sm:$0xff] %vm328, %v3481
      %3518 = vst.msk [vmem:[#allocation3 + $0x28] sm:$0xff] %vm328, %v3482
      %3519 = vst.msk [vmem:[#allocation3 + $0x30] sm:$0xff] %vm328, %v3483
      %3520 = vst.msk [vmem:[#allocation3 + $0x38] sm:$0xff] %vm328, %v3484
      %3521 = vst.msk [vmem:[#allocation3 + $0x40] sm:$0xff] %vm328, %v3485
      %3522 = vst.msk [vmem:[#allocation3 + $0x48] sm:$0xff] %vm328, %v3486
      %3523 = vst.msk [vmem:[#allocation3 + $0x50] sm:$0xff] %vm328, %v3487
      %3524 = vst.msk [vmem:[#allocation3 + $0x58] sm:$0xff] %vm328, %v3488
      %3525 = vst.msk [vmem:[#allocation3 + $0x60] sm:$0xff] %vm328, %v3489
      %3526 = vst.msk [vmem:[#allocation3 + $0x68] sm:$0xff] %vm328, %v3490
      %3527 = vst.msk [vmem:[#allocation3 + $0x70] sm:$0xff] %vm328, %v3491
      %3528 = vst.msk [vmem:[#allocation3 + $0x78] sm:$0xff] %vm328, %v3492
      %3529 = vst.msk [vmem:[#allocation3 + $0x80] sm:$0xff] %vm328, %v3493
      %3530 = vst.msk [vmem:[#allocation3 + $0x88] sm:$0xff] %vm328, %v3494
      %3531 = vst.msk [vmem:[#allocation3 + $0x90] sm:$0xff] %vm328, %v3495
      %3532 = vst.msk [vmem:[#allocation3 + $0x98] sm:$0xff] %vm328, %v3496
      %3533 = vst.msk [vmem:[#allocation3 + $0xa0] sm:$0xff] %vm328, %v3497
      %3534 = vst.msk [vmem:[#allocation3 + $0xa8] sm:$0xff] %vm328, %v3498
      %3535 = vst.msk [vmem:[#allocation3 + $0xb0] sm:$0xff] %vm328, %v3499
      %3536 = vst.msk [vmem:[#allocation3 + $0xb8] sm:$0xff] %vm328, %v3500
      %3537 = vst.msk [vmem:[#allocation3 + $0xc0] sm:$0xff] %vm328, %v3501
      %3538 = vst.msk [vmem:[#allocation3 + $0xc8] sm:$0xff] %vm328, %v3502
      %3539 = vst.msk [vmem:[#allocation3 + $0xd0] sm:$0xff] %vm328, %v3503
      %3540 = vst.msk [vmem:[#allocation3 + $0xd8] sm:$0xff] %vm328, %v3504
      %3541 = vst.msk [vmem:[#allocation3 + $0xe0] sm:$0xff] %vm328, %v3505
      %3542 = vst.msk [vmem:[#allocation3 + $0xe8] sm:$0xff] %vm328, %v3506
      %3543 = vst.msk [vmem:[#allocation3 + $0xf0] sm:$0xff] %vm328, %v3507
      %3544 = vst.msk [vmem:[#allocation3 + $0xf8] sm:$0xff] %vm328, %v3508
      %3545 = vst.msk [vmem:[#allocation3 + $0x100] sm:$0xff] %vm328, %v3509
      %3546 = vst.msk [vmem:[#allocation3 + $0x108] sm:$0xff] %vm328, %v3510
      %3547 = vst.msk [vmem:[#allocation3 + $0x110] sm:$0xff] %vm328, %v3511
      %3548 = vst.msk [vmem:[#allocation3 + $0x118] sm:$0xff] %vm328, %v3512
      %v3549 = vld [vmem:[#allocation2 + $0x26] sm:$0xff]
      %v3550 = vld [vmem:[#allocation2 + $0x2e] sm:$0xff]
      %v3551 = vld [vmem:[#allocation2 + $0x36] sm:$0xff]
      %v3552 = vld [vmem:[#allocation2 + $0x3e] sm:$0xff]
      %v3553 = vld [vmem:[#allocation2 + $0x46] sm:$0xff]
      %v3554 = vld [vmem:[#allocation2 + $0x4e] sm:$0xff]
      %v3555 = vld [vmem:[#allocation2 + $0x56] sm:$0xff]
      %v3556 = vld [vmem:[#allocation2 + $0x5e] sm:$0xff]
      %v3557 = vld [vmem:[#allocation2 + $0x66] sm:$0xff]
      %v3558 = vld [vmem:[#allocation2 + $0x6e] sm:$0xff]
      %v3559 = vld [vmem:[#allocation2 + $0x76] sm:$0xff]
      %v3560 = vld [vmem:[#allocation2 + $0x7e] sm:$0xff]
      %v3561 = vld [vmem:[#allocation2 + $0x86] sm:$0xff]
      %v3562 = vld [vmem:[#allocation2 + $0x8e] sm:$0xff]
      %v3563 = vld [vmem:[#allocation2 + $0x96] sm:$0xff]
      %v3564 = vld [vmem:[#allocation2 + $0x9e] sm:$0xff]
      %v3565 = vld [vmem:[#allocation2 + $0xa6] sm:$0xff]
      %v3566 = vld [vmem:[#allocation2 + $0xae] sm:$0xff]
      %v3567 = vld [vmem:[#allocation2 + $0xb6] sm:$0xff]
      %v3568 = vld [vmem:[#allocation2 + $0xbe] sm:$0xff]
      %v3569 = vld [vmem:[#allocation2 + $0xc6] sm:$0xff]
      %v3570 = vld [vmem:[#allocation2 + $0xce] sm:$0xff]
      %v3571 = vld [vmem:[#allocation2 + $0xd6] sm:$0xff]
      %v3572 = vld [vmem:[#allocation2 + $0xde] sm:$0xff]
      %v3573 = vld [vmem:[#allocation2 + $0xe6] sm:$0xff]
      %v3574 = vld [vmem:[#allocation2 + $0xee] sm:$0xff]
      %v3575 = vld [vmem:[#allocation2 + $0xf6] sm:$0xff]
      %v3576 = vld [vmem:[#allocation2 + $0xfe] sm:$0xff]
      %v3577 = vld [vmem:[#allocation2 + $0x106] sm:$0xff]
      %v3578 = vld [vmem:[#allocation2 + $0x10e] sm:$0xff]
      %v3579 = vld [vmem:[#allocation2 + $0x116] sm:$0xff]
      %v3580 = vld [vmem:[#allocation2 + $0x11e] sm:$0xff]
      %v3581 = vld [vmem:[#allocation2 + $0x126] sm:$0xff]
      %v3582 = vld [vmem:[#allocation2 + $0x12e] sm:$0xff]
      %v3583 = vld [vmem:[#allocation2 + $0x136] sm:$0xff]
      %v3584 = vld [vmem:[#allocation2 + $0x13e] sm:$0xff]
      %v3585 = vpack.c.bf16 %v3550, %v3549
      %v3586 = vpack.c.bf16 %v3552, %v3551
      %v3587 = vpack.c.bf16 %v3554, %v3553
      %v3588 = vpack.c.bf16 %v3556, %v3555
      %v3589 = vpack.c.bf16 %v3558, %v3557
      %v3590 = vpack.c.bf16 %v3560, %v3559
      %v3591 = vpack.c.bf16 %v3562, %v3561
      %v3592 = vpack.c.bf16 %v3564, %v3563
      %v3593 = vpack.c.bf16 %v3566, %v3565
      %v3594 = vpack.c.bf16 %v3568, %v3567
      %v3595 = vpack.c.bf16 %v3570, %v3569
      %v3596 = vpack.c.bf16 %v3572, %v3571
      %v3597 = vpack.c.bf16 %v3574, %v3573
      %v3598 = vpack.c.bf16 %v3576, %v3575
      %v3599 = vpack.c.bf16 %v3578, %v3577
      %v3600 = vpack.c.bf16 %v3580, %v3579
      %v3601 = vpack.c.bf16 %v3582, %v3581
      %v3602 = vpack.c.bf16 %v3584, %v3583
      %v3603 = vld [vmem:[#allocation3] sm:$0xff]
      %v3604 = vld [vmem:[#allocation3 + $0x8] sm:$0xff]
      %v3605 = vld [vmem:[#allocation3 + $0x10] sm:$0xff]
      %v3606 = vld [vmem:[#allocation3 + $0x18] sm:$0xff]
      %v3607 = vld [vmem:[#allocation3 + $0x20] sm:$0xff]
      %v3608 = vld [vmem:[#allocation3 + $0x28] sm:$0xff]
      %v3609 = vld [vmem:[#allocation3 + $0x30] sm:$0xff]
      %v3610 = vld [vmem:[#allocation3 + $0x38] sm:$0xff]
      %v3611 = vld [vmem:[#allocation3 + $0x40] sm:$0xff]
      %v3612 = vld [vmem:[#allocation3 + $0x48] sm:$0xff]
      %v3613 = vld [vmem:[#allocation3 + $0x50] sm:$0xff]
      %v3614 = vld [vmem:[#allocation3 + $0x58] sm:$0xff]
      %v3615 = vld [vmem:[#allocation3 + $0x60] sm:$0xff]
      %v3616 = vld [vmem:[#allocation3 + $0x68] sm:$0xff]
      %v3617 = vld [vmem:[#allocation3 + $0x70] sm:$0xff]
      %v3618 = vld [vmem:[#allocation3 + $0x78] sm:$0xff]
      %v3619 = vld [vmem:[#allocation3 + $0x80] sm:$0xff]
      %v3620 = vld [vmem:[#allocation3 + $0x88] sm:$0xff]
      %v3621 = vld [vmem:[#allocation3 + $0x90] sm:$0xff]
      %v3622 = vld [vmem:[#allocation3 + $0x98] sm:$0xff]
      %v3623 = vld [vmem:[#allocation3 + $0xa0] sm:$0xff]
      %v3624 = vld [vmem:[#allocation3 + $0xa8] sm:$0xff]
      %v3625 = vld [vmem:[#allocation3 + $0xb0] sm:$0xff]
      %v3626 = vld [vmem:[#allocation3 + $0xb8] sm:$0xff]
      %v3627 = vld [vmem:[#allocation3 + $0xc0] sm:$0xff]
      %v3628 = vld [vmem:[#allocation3 + $0xc8] sm:$0xff]
      %v3629 = vld [vmem:[#allocation3 + $0xd0] sm:$0xff]
      %v3630 = vld [vmem:[#allocation3 + $0xd8] sm:$0xff]
      %v3631 = vld [vmem:[#allocation3 + $0xe0] sm:$0xff]
      %v3632 = vld [vmem:[#allocation3 + $0xe8] sm:$0xff]
      %v3633 = vld [vmem:[#allocation3 + $0xf0] sm:$0xff]
      %v3634 = vld [vmem:[#allocation3 + $0xf8] sm:$0xff]
      %v3635 = vld [vmem:[#allocation3 + $0x100] sm:$0xff]
      %v3636 = vld [vmem:[#allocation3 + $0x108] sm:$0xff]
      %v3637 = vld [vmem:[#allocation3 + $0x110] sm:$0xff]
      %v3638 = vld [vmem:[#allocation3 + $0x118] sm:$0xff]
      %s3639 = scalar_lea.vmem %s1, 16
      %v3640 = vld [vmem:[%s3639] sm:$0x3]
      %v3642 = vsel %vm286, %v3585, 0
      %v3645 = vsel %vm286, %v3586, 0
      %v3648 = vsel %vm286, %v3587, 0
      %v3651 = vsel %vm286, %v3588, 0
      %v3654 = vsel %vm286, %v3589, 0
      %v3657 = vsel %vm286, %v3590, 0
      %v3660 = vsel %vm286, %v3591, 0
      %v3663 = vsel %vm286, %v3592, 0
      %v3666 = vsel %vm286, %v3593, 0
      %v3669 = vsel %vm286, %v3594, 0
      %v3672 = vsel %vm286, %v3595, 0
      %v3675 = vsel %vm286, %v3596, 0
      %v3678 = vsel %vm286, %v3597, 0
      %v3681 = vsel %vm286, %v3598, 0
      %v3684 = vsel %vm286, %v3599, 0
      %v3687 = vsel %vm286, %v3600, 0
      %v3690 = vsel %vm286, %v3601, 0
      %v3693 = vsel %vm286, %v3602, 0
      %v3696 = vsel %vm510, %v3640, 0
      %3698 = vmatprep.subr.bf16.mxu0 0
      %3699 = vmatpush1.bf16.msra.mxu0 0
      %3700 = vmatprep.subr.bf16.mxu0 0
      %3701 = vmatpush1.bf16.msra.mxu0 0
      %3702 = vmatprep.subr.bf16.mxu0 0
      %3703 = vmatpush1.bf16.msra.mxu0 0
      %3704 = vmatprep.subr.bf16.mxu0 0
      %3705 = vmatpush1.bf16.msra.mxu0 0
      %3706 = vmatprep.subr.bf16.mxu0 0
      %3707 = vmatpush1.bf16.msra.mxu0 0
      %3708 = vmatprep.subr.bf16.mxu0 0
      %3709 = vmatpush1.bf16.msra.mxu0 0
      %3710 = vmatprep.subr.bf16.mxu0 0
      %3711 = vmatpush1.bf16.msra.mxu0 0
      %3712 = vmatprep.subr.bf16.mxu0 0
      %3713 = vmatpush1.bf16.msra.mxu0 %v3696
      %3714 = vmatprep.subr.bf16.mxu0 0
      %3715 = vmatpush2.bf16.msra.mxu0 0
      %3716 = vmatprep.subr.bf16.mxu0 0
      %3717 = vmatpush2.bf16.msra.mxu0 0
      %3718 = vmatprep.subr.bf16.mxu0 0
      %3719 = vmatpush2.bf16.msra.mxu0 0
      %3720 = vmatprep.subr.bf16.mxu0 0
      %3721 = vmatpush2.bf16.msra.mxu0 0
      %3722 = vmatprep.subr.bf16.mxu0 0
      %3723 = vmatpush2.bf16.msra.mxu0 0
      %3724 = vmatprep.subr.bf16.mxu0 0
      %3725 = vmatpush2.bf16.msra.mxu0 0
      %3726 = vmatprep.subr.bf16.mxu0 0
      %3727 = vmatpush2.bf16.msra.mxu0 0
      %3728 = vmatprep.subr.bf16.mxu0 0
      %3729 = vmatpush2.bf16.msra.mxu0 0
      %3730 = vmatprep.mubr.bf16.mxu0 0
      %3731 = vmatmul.mubr.bf16.gmra.mxu0 %v3642
      %v3732 = vpop.f32.mrf.mxu0
      %v3733 = vadd.f32 0.0, %v3732
      %v3734 = vpop.f32.mrf.mxu0
      %v3735 = vpop.f32.mrf.mxu0
      %v3736 = vadd.f32 0.0, %v3735
      %v3737 = vpop.f32.mrf.mxu0
      %3738 = vmatprep.mubr.bf16.mxu0 0
      %3739 = vmatmul.mubr.bf16.gmra.mxu0 %v3645
      %v3740 = vpop.f32.mrf.mxu0
      %v3741 = vadd.f32 0.0, %v3740
      %v3742 = vpop.f32.mrf.mxu0
      %v3743 = vpop.f32.mrf.mxu0
      %v3744 = vadd.f32 0.0, %v3743
      %v3745 = vpop.f32.mrf.mxu0
      %3746 = vmatprep.mubr.bf16.mxu0 0
      %3747 = vmatmul.mubr.bf16.gmra.mxu0 %v3648
      %v3748 = vpop.f32.mrf.mxu0
      %v3749 = vadd.f32 0.0, %v3748
      %v3750 = vpop.f32.mrf.mxu0
      %v3751 = vpop.f32.mrf.mxu0
      %v3752 = vadd.f32 0.0, %v3751
      %v3753 = vpop.f32.mrf.mxu0
      %3754 = vmatprep.mubr.bf16.mxu0 0
      %3755 = vmatmul.mubr.bf16.gmra.mxu0 %v3651
      %v3756 = vpop.f32.mrf.mxu0
      %v3757 = vadd.f32 0.0, %v3756
      %v3758 = vpop.f32.mrf.mxu0
      %v3759 = vpop.f32.mrf.mxu0
      %v3760 = vadd.f32 0.0, %v3759
      %v3761 = vpop.f32.mrf.mxu0
      %3762 = vmatprep.mubr.bf16.mxu0 0
      %3763 = vmatmul.mubr.bf16.gmra.mxu0 %v3654
      %v3764 = vpop.f32.mrf.mxu0
      %v3765 = vadd.f32 0.0, %v3764
      %v3766 = vpop.f32.mrf.mxu0
      %v3767 = vpop.f32.mrf.mxu0
      %v3768 = vadd.f32 0.0, %v3767
      %v3769 = vpop.f32.mrf.mxu0
      %3770 = vmatprep.mubr.bf16.mxu0 0
      %3771 = vmatmul.mubr.bf16.gmra.mxu0 %v3657
      %v3772 = vpop.f32.mrf.mxu0
      %v3773 = vadd.f32 0.0, %v3772
      %v3774 = vpop.f32.mrf.mxu0
      %v3775 = vpop.f32.mrf.mxu0
      %v3776 = vadd.f32 0.0, %v3775
      %v3777 = vpop.f32.mrf.mxu0
      %3778 = vmatprep.mubr.bf16.mxu0 0
      %3779 = vmatmul.mubr.bf16.gmra.mxu0 %v3660
      %v3780 = vpop.f32.mrf.mxu0
      %v3781 = vadd.f32 0.0, %v3780
      %v3782 = vpop.f32.mrf.mxu0
      %v3783 = vpop.f32.mrf.mxu0
      %v3784 = vadd.f32 0.0, %v3783
      %v3785 = vpop.f32.mrf.mxu0
      %3786 = vmatprep.mubr.bf16.mxu0 0
      %3787 = vmatmul.mubr.bf16.gmra.mxu0 %v3663
      %v3788 = vpop.f32.mrf.mxu0
      %v3789 = vadd.f32 0.0, %v3788
      %v3790 = vpop.f32.mrf.mxu0
      %v3791 = vpop.f32.mrf.mxu0
      %v3792 = vadd.f32 0.0, %v3791
      %v3793 = vpop.f32.mrf.mxu0
      %3794 = vmatprep.mubr.bf16.mxu0 0
      %3795 = vmatmul.mubr.bf16.gmra.mxu0 %v3666
      %v3796 = vpop.f32.mrf.mxu0
      %v3797 = vadd.f32 0.0, %v3796
      %v3798 = vpop.f32.mrf.mxu0
      %v3799 = vpop.f32.mrf.mxu0
      %v3800 = vadd.f32 0.0, %v3799
      %v3801 = vpop.f32.mrf.mxu0
      %3802 = vmatprep.mubr.bf16.mxu0 0
      %3803 = vmatmul.mubr.bf16.gmra.mxu0 %v3669
      %v3804 = vpop.f32.mrf.mxu0
      %v3805 = vadd.f32 0.0, %v3804
      %v3806 = vpop.f32.mrf.mxu0
      %v3807 = vpop.f32.mrf.mxu0
      %v3808 = vadd.f32 0.0, %v3807
      %v3809 = vpop.f32.mrf.mxu0
      %3810 = vmatprep.mubr.bf16.mxu0 0
      %3811 = vmatmul.mubr.bf16.gmra.mxu0 %v3672
      %v3812 = vpop.f32.mrf.mxu0
      %v3813 = vadd.f32 0.0, %v3812
      %v3814 = vpop.f32.mrf.mxu0
      %v3815 = vpop.f32.mrf.mxu0
      %v3816 = vadd.f32 0.0, %v3815
      %v3817 = vpop.f32.mrf.mxu0
      %3818 = vmatprep.mubr.bf16.mxu0 0
      %3819 = vmatmul.mubr.bf16.gmra.mxu0 %v3675
      %v3820 = vpop.f32.mrf.mxu0
      %v3821 = vadd.f32 0.0, %v3820
      %v3822 = vpop.f32.mrf.mxu0
      %v3823 = vpop.f32.mrf.mxu0
      %v3824 = vadd.f32 0.0, %v3823
      %v3825 = vpop.f32.mrf.mxu0
      %3826 = vmatprep.mubr.bf16.mxu0 0
      %3827 = vmatmul.mubr.bf16.gmra.mxu0 %v3678
      %v3828 = vpop.f32.mrf.mxu0
      %v3829 = vadd.f32 0.0, %v3828
      %v3830 = vpop.f32.mrf.mxu0
      %v3831 = vpop.f32.mrf.mxu0
      %v3832 = vadd.f32 0.0, %v3831
      %v3833 = vpop.f32.mrf.mxu0
      %3834 = vmatprep.mubr.bf16.mxu0 0
      %3835 = vmatmul.mubr.bf16.gmra.mxu0 %v3681
      %v3836 = vpop.f32.mrf.mxu0
      %v3837 = vadd.f32 0.0, %v3836
      %v3838 = vpop.f32.mrf.mxu0
      %v3839 = vpop.f32.mrf.mxu0
      %v3840 = vadd.f32 0.0, %v3839
      %v3841 = vpop.f32.mrf.mxu0
      %3842 = vmatprep.mubr.bf16.mxu0 0
      %3843 = vmatmul.mubr.bf16.gmra.mxu0 %v3684
      %v3844 = vpop.f32.mrf.mxu0
      %v3845 = vadd.f32 0.0, %v3844
      %v3846 = vpop.f32.mrf.mxu0
      %v3847 = vpop.f32.mrf.mxu0
      %v3848 = vadd.f32 0.0, %v3847
      %v3849 = vpop.f32.mrf.mxu0
      %3850 = vmatprep.mubr.bf16.mxu0 0
      %3851 = vmatmul.mubr.bf16.gmra.mxu0 %v3687
      %v3852 = vpop.f32.mrf.mxu0
      %v3853 = vadd.f32 0.0, %v3852
      %v3854 = vpop.f32.mrf.mxu0
      %v3855 = vpop.f32.mrf.mxu0
      %v3856 = vadd.f32 0.0, %v3855
      %v3857 = vpop.f32.mrf.mxu0
      %3858 = vmatprep.mubr.bf16.mxu0 0
      %3859 = vmatmul.mubr.bf16.gmra.mxu0 %v3690
      %v3860 = vpop.f32.mrf.mxu0
      %v3861 = vadd.f32 0.0, %v3860
      %v3862 = vpop.f32.mrf.mxu0
      %v3863 = vpop.f32.mrf.mxu0
      %v3864 = vadd.f32 0.0, %v3863
      %v3865 = vpop.f32.mrf.mxu0
      %3866 = vmatprep.mubr.bf16.mxu0 0
      %3867 = vmatmul.mubr.bf16.gmra.mxu0 %v3693
      %v3868 = vpop.f32.mrf.mxu0
      %v3869 = vadd.f32 0.0, %v3868
      %v3870 = vpop.f32.mrf.mxu0
      %v3871 = vpop.f32.mrf.mxu0
      %v3872 = vadd.f32 0.0, %v3871
      %v3873 = vpop.f32.mrf.mxu0
      %3874 = vdwg.mxu0
      %v3875 = vadd.f32 %v3603, %v3733
      %v3876 = vadd.f32 %v3604, %v3736
      %v3877 = vadd.f32 %v3605, %v3741
      %v3878 = vadd.f32 %v3606, %v3744
      %v3879 = vadd.f32 %v3607, %v3749
      %v3880 = vadd.f32 %v3608, %v3752
      %v3881 = vadd.f32 %v3609, %v3757
      %v3882 = vadd.f32 %v3610, %v3760
      %v3883 = vadd.f32 %v3611, %v3765
      %v3884 = vadd.f32 %v3612, %v3768
      %v3885 = vadd.f32 %v3613, %v3773
      %v3886 = vadd.f32 %v3614, %v3776
      %v3887 = vadd.f32 %v3615, %v3781
      %v3888 = vadd.f32 %v3616, %v3784
      %v3889 = vadd.f32 %v3617, %v3789
      %v3890 = vadd.f32 %v3618, %v3792
      %v3891 = vadd.f32 %v3619, %v3797
      %v3892 = vadd.f32 %v3620, %v3800
      %v3893 = vadd.f32 %v3621, %v3805
      %v3894 = vadd.f32 %v3622, %v3808
      %v3895 = vadd.f32 %v3623, %v3813
      %v3896 = vadd.f32 %v3624, %v3816
      %v3897 = vadd.f32 %v3625, %v3821
      %v3898 = vadd.f32 %v3626, %v3824
      %v3899 = vadd.f32 %v3627, %v3829
      %v3900 = vadd.f32 %v3628, %v3832
      %v3901 = vadd.f32 %v3629, %v3837
      %v3902 = vadd.f32 %v3630, %v3840
      %v3903 = vadd.f32 %v3631, %v3845
      %v3904 = vadd.f32 %v3632, %v3848
      %v3905 = vadd.f32 %v3633, %v3853
      %v3906 = vadd.f32 %v3634, %v3856
      %v3907 = vadd.f32 %v3635, %v3861
      %v3908 = vadd.f32 %v3636, %v3864
      %v3909 = vadd.f32 %v3637, %v3869
      %v3910 = vadd.f32 %v3638, %v3872
      %3911 = vst.msk [vmem:[#allocation3] sm:$0xff] %vm328, %v3875
      %3912 = vst.msk [vmem:[#allocation3 + $0x8] sm:$0xff] %vm328, %v3876
      %3913 = vst.msk [vmem:[#allocation3 + $0x10] sm:$0xff] %vm328, %v3877
      %3914 = vst.msk [vmem:[#allocation3 + $0x18] sm:$0xff] %vm328, %v3878
      %3915 = vst.msk [vmem:[#allocation3 + $0x20] sm:$0xff] %vm328, %v3879
      %3916 = vst.msk [vmem:[#allocation3 + $0x28] sm:$0xff] %vm328, %v3880
      %3917 = vst.msk [vmem:[#allocation3 + $0x30] sm:$0xff] %vm328, %v3881
      %3918 = vst.msk [vmem:[#allocation3 + $0x38] sm:$0xff] %vm328, %v3882
      %3919 = vst.msk [vmem:[#allocation3 + $0x40] sm:$0xff] %vm328, %v3883
      %3920 = vst.msk [vmem:[#allocation3 + $0x48] sm:$0xff] %vm328, %v3884
      %3921 = vst.msk [vmem:[#allocation3 + $0x50] sm:$0xff] %vm328, %v3885
      %3922 = vst.msk [vmem:[#allocation3 + $0x58] sm:$0xff] %vm328, %v3886
      %3923 = vst.msk [vmem:[#allocation3 + $0x60] sm:$0xff] %vm328, %v3887
      %3924 = vst.msk [vmem:[#allocation3 + $0x68] sm:$0xff] %vm328, %v3888
      %3925 = vst.msk [vmem:[#allocation3 + $0x70] sm:$0xff] %vm328, %v3889
      %3926 = vst.msk [vmem:[#allocation3 + $0x78] sm:$0xff] %vm328, %v3890
      %3927 = vst.msk [vmem:[#allocation3 + $0x80] sm:$0xff] %vm328, %v3891
      %3928 = vst.msk [vmem:[#allocation3 + $0x88] sm:$0xff] %vm328, %v3892
      %3929 = vst.msk [vmem:[#allocation3 + $0x90] sm:$0xff] %vm328, %v3893
      %3930 = vst.msk [vmem:[#allocation3 + $0x98] sm:$0xff] %vm328, %v3894
      %3931 = vst.msk [vmem:[#allocation3 + $0xa0] sm:$0xff] %vm328, %v3895
      %3932 = vst.msk [vmem:[#allocation3 + $0xa8] sm:$0xff] %vm328, %v3896
      %3933 = vst.msk [vmem:[#allocation3 + $0xb0] sm:$0xff] %vm328, %v3897
      %3934 = vst.msk [vmem:[#allocation3 + $0xb8] sm:$0xff] %vm328, %v3898
      %3935 = vst.msk [vmem:[#allocation3 + $0xc0] sm:$0xff] %vm328, %v3899
      %3936 = vst.msk [vmem:[#allocation3 + $0xc8] sm:$0xff] %vm328, %v3900
      %3937 = vst.msk [vmem:[#allocation3 + $0xd0] sm:$0xff] %vm328, %v3901
      %3938 = vst.msk [vmem:[#allocation3 + $0xd8] sm:$0xff] %vm328, %v3902
      %3939 = vst.msk [vmem:[#allocation3 + $0xe0] sm:$0xff] %vm328, %v3903
      %3940 = vst.msk [vmem:[#allocation3 + $0xe8] sm:$0xff] %vm328, %v3904
      %3941 = vst.msk [vmem:[#allocation3 + $0xf0] sm:$0xff] %vm328, %v3905
      %3942 = vst.msk [vmem:[#allocation3 + $0xf8] sm:$0xff] %vm328, %v3906
      %3943 = vst.msk [vmem:[#allocation3 + $0x100] sm:$0xff] %vm328, %v3907
      %3944 = vst.msk [vmem:[#allocation3 + $0x108] sm:$0xff] %vm328, %v3908
      %3945 = vst.msk [vmem:[#allocation3 + $0x110] sm:$0xff] %vm328, %v3909
      %3946 = vst.msk [vmem:[#allocation3 + $0x118] sm:$0xff] %vm328, %v3910
      %v3947 = vld [vmem:[#allocation3] sm:$0xff]
      %v3948 = vld [vmem:[#allocation3 + $0x8] sm:$0xff]
      %v3949 = vld [vmem:[#allocation3 + $0x10] sm:$0xff]
      %v3950 = vld [vmem:[#allocation3 + $0x18] sm:$0xff]
      %v3951 = vld [vmem:[#allocation3 + $0x20] sm:$0xff]
      %v3952 = vld [vmem:[#allocation3 + $0x28] sm:$0xff]
      %v3953 = vld [vmem:[#allocation3 + $0x30] sm:$0xff]
      %v3954 = vld [vmem:[#allocation3 + $0x38] sm:$0xff]
      %v3955 = vld [vmem:[#allocation3 + $0x40] sm:$0xff]
      %v3956 = vld [vmem:[#allocation3 + $0x48] sm:$0xff]
      %v3957 = vld [vmem:[#allocation3 + $0x50] sm:$0xff]
      %v3958 = vld [vmem:[#allocation3 + $0x58] sm:$0xff]
      %v3959 = vld [vmem:[#allocation3 + $0x60] sm:$0xff]
      %v3960 = vld [vmem:[#allocation3 + $0x68] sm:$0xff]
      %v3961 = vld [vmem:[#allocation3 + $0x70] sm:$0xff]
      %v3962 = vld [vmem:[#allocation3 + $0x78] sm:$0xff]
      %v3963 = vld [vmem:[#allocation3 + $0x80] sm:$0xff]
      %v3964 = vld [vmem:[#allocation3 + $0x88] sm:$0xff]
      %v3965 = vld [vmem:[#allocation3 + $0x90] sm:$0xff]
      %v3966 = vld [vmem:[#allocation3 + $0x98] sm:$0xff]
      %v3967 = vld [vmem:[#allocation3 + $0xa0] sm:$0xff]
      %v3968 = vld [vmem:[#allocation3 + $0xa8] sm:$0xff]
      %v3969 = vld [vmem:[#allocation3 + $0xb0] sm:$0xff]
      %v3970 = vld [vmem:[#allocation3 + $0xb8] sm:$0xff]
      %v3971 = vld [vmem:[#allocation3 + $0xc0] sm:$0xff]
      %v3972 = vld [vmem:[#allocation3 + $0xc8] sm:$0xff]
      %v3973 = vld [vmem:[#allocation3 + $0xd0] sm:$0xff]
      %v3974 = vld [vmem:[#allocation3 + $0xd8] sm:$0xff]
      %v3975 = vld [vmem:[#allocation3 + $0xe0] sm:$0xff]
      %v3976 = vld [vmem:[#allocation3 + $0xe8] sm:$0xff]
      %v3977 = vld [vmem:[#allocation3 + $0xf0] sm:$0xff]
      %v3978 = vld [vmem:[#allocation3 + $0xf8] sm:$0xff]
      %v3979 = vld [vmem:[#allocation3 + $0x100] sm:$0xff]
      %v3980 = vld [vmem:[#allocation3 + $0x108] sm:$0xff]
      %v3981 = vld [vmem:[#allocation3 + $0x110] sm:$0xff]
      %v3982 = vld [vmem:[#allocation3 + $0x118] sm:$0xff]
      %v3983 = vld [vmem:[%s2] sm:$0xff]
      %v3984 = vld [vmem:[%s2 + $0x8] sm:$0xff]
      %v3985 = vld [vmem:[%s2 + $0x10] sm:$0xff]
      %v3986 = vld [vmem:[%s2 + $0x18] sm:$0xff]
      %v3987 = vld [vmem:[%s2 + $0x20] sm:$0xff]
      %v3988 = vld [vmem:[%s2 + $0x28] sm:$0xff]
      %v3989 = vld [vmem:[%s2 + $0x30] sm:$0xff]
      %v3990 = vld [vmem:[%s2 + $0x38] sm:$0xff]
      %v3991 = vld [vmem:[%s2 + $0x40] sm:$0xff]
      %v3992 = vld [vmem:[%s2 + $0x48] sm:$0xff]
      %v3993 = vld [vmem:[%s2 + $0x50] sm:$0xff]
      %v3994 = vld [vmem:[%s2 + $0x58] sm:$0xff]
      %v3995 = vld [vmem:[%s2 + $0x60] sm:$0xff]
      %v3996 = vld [vmem:[%s2 + $0x68] sm:$0xff]
      %v3997 = vld [vmem:[%s2 + $0x70] sm:$0xff]
      %v3998 = vld [vmem:[%s2 + $0x78] sm:$0xff]
      %v3999 = vld [vmem:[%s2 + $0x80] sm:$0xff]
      %v4000 = vld [vmem:[%s2 + $0x88] sm:$0xff]
      %v4001 = vld [vmem:[%s2 + $0x90] sm:$0xff]
      %v4002 = vld [vmem:[%s2 + $0x98] sm:$0xff]
      %v4003 = vld [vmem:[%s2 + $0xa0] sm:$0xff]
      %v4004 = vld [vmem:[%s2 + $0xa8] sm:$0xff]
      %v4005 = vld [vmem:[%s2 + $0xb0] sm:$0xff]
      %v4006 = vld [vmem:[%s2 + $0xb8] sm:$0xff]
      %v4007 = vld [vmem:[%s2 + $0xc0] sm:$0xff]
      %v4008 = vld [vmem:[%s2 + $0xc8] sm:$0xff]
      %v4009 = vld [vmem:[%s2 + $0xd0] sm:$0xff]
      %v4010 = vld [vmem:[%s2 + $0xd8] sm:$0xff]
      %v4011 = vld [vmem:[%s2 + $0xe0] sm:$0xff]
      %v4012 = vld [vmem:[%s2 + $0xe8] sm:$0xff]
      %v4013 = vld [vmem:[%s2 + $0xf0] sm:$0xff]
      %v4014 = vld [vmem:[%s2 + $0xf8] sm:$0xff]
      %v4015 = vld [vmem:[%s2 + $0x100] sm:$0xff]
      %v4016 = vld [vmem:[%s2 + $0x108] sm:$0xff]
      %v4017 = vld [vmem:[%s2 + $0x110] sm:$0xff]
      %v4018 = vld [vmem:[%s2 + $0x118] sm:$0xff]
      %4020 = vset.pattern.permute.xlu0 0
      %4021 = vperm.xlu0 %4020, %v3983
      %v4022 = vpop.permute.xlu0 %4021
      %4025 = vset.pattern.permute.xlu0 0
      %4026 = vperm.xlu0 %4025, %v3984
      %v4027 = vpop.permute.xlu0 %4026
      %4030 = vset.pattern.permute.xlu0 0
      %4031 = vperm.xlu0 %4030, %v3985
      %v4032 = vpop.permute.xlu0 %4031
      %4035 = vset.pattern.permute.xlu0 0
      %4036 = vperm.xlu0 %4035, %v3986
      %v4037 = vpop.permute.xlu0 %4036
      %4040 = vset.pattern.permute.xlu0 0
      %4041 = vperm.xlu0 %4040, %v3987
      %v4042 = vpop.permute.xlu0 %4041
      %4045 = vset.pattern.permute.xlu0 0
      %4046 = vperm.xlu0 %4045, %v3988
      %v4047 = vpop.permute.xlu0 %4046
      %4050 = vset.pattern.permute.xlu0 0
      %4051 = vperm.xlu0 %4050, %v3989
      %v4052 = vpop.permute.xlu0 %4051
      %4055 = vset.pattern.permute.xlu0 0
      %4056 = vperm.xlu0 %4055, %v3990
      %v4057 = vpop.permute.xlu0 %4056
      %4060 = vset.pattern.permute.xlu0 0
      %4061 = vperm.xlu0 %4060, %v3991
      %v4062 = vpop.permute.xlu0 %4061
      %4065 = vset.pattern.permute.xlu0 0
      %4066 = vperm.xlu0 %4065, %v3992
      %v4067 = vpop.permute.xlu0 %4066
      %4070 = vset.pattern.permute.xlu0 0
      %4071 = vperm.xlu0 %4070, %v3993
      %v4072 = vpop.permute.xlu0 %4071
      %4075 = vset.pattern.permute.xlu0 0
      %4076 = vperm.xlu0 %4075, %v3994
      %v4077 = vpop.permute.xlu0 %4076
      %4080 = vset.pattern.permute.xlu0 0
      %4081 = vperm.xlu0 %4080, %v3995
      %v4082 = vpop.permute.xlu0 %4081
      %4085 = vset.pattern.permute.xlu0 0
      %4086 = vperm.xlu0 %4085, %v3996
      %v4087 = vpop.permute.xlu0 %4086
      %4090 = vset.pattern.permute.xlu0 0
      %4091 = vperm.xlu0 %4090, %v3997
      %v4092 = vpop.permute.xlu0 %4091
      %4095 = vset.pattern.permute.xlu0 0
      %4096 = vperm.xlu0 %4095, %v3998
      %v4097 = vpop.permute.xlu0 %4096
      %4100 = vset.pattern.permute.xlu0 0
      %4101 = vperm.xlu0 %4100, %v3999
      %v4102 = vpop.permute.xlu0 %4101
      %4105 = vset.pattern.permute.xlu0 0
      %4106 = vperm.xlu0 %4105, %v4000
      %v4107 = vpop.permute.xlu0 %4106
      %4110 = vset.pattern.permute.xlu0 0
      %4111 = vperm.xlu0 %4110, %v4001
      %v4112 = vpop.permute.xlu0 %4111
      %4115 = vset.pattern.permute.xlu0 0
      %4116 = vperm.xlu0 %4115, %v4002
      %v4117 = vpop.permute.xlu0 %4116
      %4120 = vset.pattern.permute.xlu0 0
      %4121 = vperm.xlu0 %4120, %v4003
      %v4122 = vpop.permute.xlu0 %4121
      %4125 = vset.pattern.permute.xlu0 0
      %4126 = vperm.xlu0 %4125, %v4004
      %v4127 = vpop.permute.xlu0 %4126
      %4130 = vset.pattern.permute.xlu0 0
      %4131 = vperm.xlu0 %4130, %v4005
      %v4132 = vpop.permute.xlu0 %4131
      %4135 = vset.pattern.permute.xlu0 0
      %4136 = vperm.xlu0 %4135, %v4006
      %v4137 = vpop.permute.xlu0 %4136
      %4140 = vset.pattern.permute.xlu0 0
      %4141 = vperm.xlu0 %4140, %v4007
      %v4142 = vpop.permute.xlu0 %4141
      %4145 = vset.pattern.permute.xlu0 0
      %4146 = vperm.xlu0 %4145, %v4008
      %v4147 = vpop.permute.xlu0 %4146
      %4150 = vset.pattern.permute.xlu0 0
      %4151 = vperm.xlu0 %4150, %v4009
      %v4152 = vpop.permute.xlu0 %4151
      %4155 = vset.pattern.permute.xlu0 0
      %4156 = vperm.xlu0 %4155, %v4010
      %v4157 = vpop.permute.xlu0 %4156
      %4160 = vset.pattern.permute.xlu0 0
      %4161 = vperm.xlu0 %4160, %v4011
      %v4162 = vpop.permute.xlu0 %4161
      %4165 = vset.pattern.permute.xlu0 0
      %4166 = vperm.xlu0 %4165, %v4012
      %v4167 = vpop.permute.xlu0 %4166
      %4170 = vset.pattern.permute.xlu0 0
      %4171 = vperm.xlu0 %4170, %v4013
      %v4172 = vpop.permute.xlu0 %4171
      %4175 = vset.pattern.permute.xlu0 0
      %4176 = vperm.xlu0 %4175, %v4014
      %v4177 = vpop.permute.xlu0 %4176
      %4180 = vset.pattern.permute.xlu0 0
      %4181 = vperm.xlu0 %4180, %v4015
      %v4182 = vpop.permute.xlu0 %4181
      %4185 = vset.pattern.permute.xlu0 0
      %4186 = vperm.xlu0 %4185, %v4016
      %v4187 = vpop.permute.xlu0 %4186
      %4190 = vset.pattern.permute.xlu0 0
      %4191 = vperm.xlu0 %4190, %v4017
      %v4192 = vpop.permute.xlu0 %4191
      %4195 = vset.pattern.permute.xlu0 0
      %4196 = vperm.xlu0 %4195, %v4018
      %v4197 = vpop.permute.xlu0 %4196
      %v4199 = vmul.f32 %v3947, %v4022
      %v4200 = vmul.f32 %v3948, %v4027
      %v4201 = vmul.f32 %v3949, %v4032
      %v4202 = vmul.f32 %v3950, %v4037
      %v4203 = vmul.f32 %v3951, %v4042
      %v4204 = vmul.f32 %v3952, %v4047
      %v4205 = vmul.f32 %v3953, %v4052
      %v4206 = vmul.f32 %v3954, %v4057
      %v4207 = vmul.f32 %v3955, %v4062
      %v4208 = vmul.f32 %v3956, %v4067
      %v4209 = vmul.f32 %v3957, %v4072
      %v4210 = vmul.f32 %v3958, %v4077
      %v4211 = vmul.f32 %v3959, %v4082
      %v4212 = vmul.f32 %v3960, %v4087
      %v4213 = vmul.f32 %v3961, %v4092
      %v4214 = vmul.f32 %v3962, %v4097
      %v4215 = vmul.f32 %v3963, %v4102
      %v4216 = vmul.f32 %v3964, %v4107
      %v4217 = vmul.f32 %v3965, %v4112
      %v4218 = vmul.f32 %v3966, %v4117
      %v4219 = vmul.f32 %v3967, %v4122
      %v4220 = vmul.f32 %v3968, %v4127
      %v4221 = vmul.f32 %v3969, %v4132
      %v4222 = vmul.f32 %v3970, %v4137
      %v4223 = vmul.f32 %v3971, %v4142
      %v4224 = vmul.f32 %v3972, %v4147
      %v4225 = vmul.f32 %v3973, %v4152
      %v4226 = vmul.f32 %v3974, %v4157
      %v4227 = vmul.f32 %v3975, %v4162
      %v4228 = vmul.f32 %v3976, %v4167
      %v4229 = vmul.f32 %v3977, %v4172
      %v4230 = vmul.f32 %v3978, %v4177
      %v4231 = vmul.f32 %v3979, %v4182
      %v4232 = vmul.f32 %v3980, %v4187
      %v4233 = vmul.f32 %v3981, %v4192
      %v4234 = vmul.f32 %v3982, %v4197
      %v4235 = vsel %vm328, %v4199, 0.0
      %v4236 = vsel %vm328, %v4200, 0.0
      %v4237 = vadd.f32 %v4235, %v4236
      %v4238 = vsel %vm328, %v4201, 0.0
      %v4239 = vadd.f32 %v4237, %v4238
      %v4240 = vsel %vm328, %v4202, 0.0
      %v4241 = vadd.f32 %v4239, %v4240
      %v4242 = vsel %vm328, %v4203, 0.0
      %v4243 = vadd.f32 %v4241, %v4242
      %v4244 = vsel %vm328, %v4204, 0.0
      %v4245 = vadd.f32 %v4243, %v4244
      %v4246 = vsel %vm328, %v4205, 0.0
      %v4247 = vadd.f32 %v4245, %v4246
      %v4248 = vsel %vm328, %v4206, 0.0
      %v4249 = vadd.f32 %v4247, %v4248
      %v4250 = vsel %vm328, %v4207, 0.0
      %v4251 = vadd.f32 %v4249, %v4250
      %v4252 = vsel %vm328, %v4208, 0.0
      %v4253 = vadd.f32 %v4251, %v4252
      %v4254 = vsel %vm328, %v4209, 0.0
      %v4255 = vadd.f32 %v4253, %v4254
      %v4256 = vsel %vm328, %v4210, 0.0
      %v4257 = vadd.f32 %v4255, %v4256
      %v4258 = vsel %vm328, %v4211, 0.0
      %v4259 = vadd.f32 %v4257, %v4258
      %v4260 = vsel %vm328, %v4212, 0.0
      %v4261 = vadd.f32 %v4259, %v4260
      %v4262 = vsel %vm328, %v4213, 0.0
      %v4263 = vadd.f32 %v4261, %v4262
      %v4264 = vsel %vm328, %v4214, 0.0
      %v4265 = vadd.f32 %v4263, %v4264
      %v4266 = vsel %vm328, %v4215, 0.0
      %v4267 = vadd.f32 %v4265, %v4266
      %v4268 = vsel %vm328, %v4216, 0.0
      %v4269 = vadd.f32 %v4267, %v4268
      %v4270 = vsel %vm328, %v4217, 0.0
      %v4271 = vadd.f32 %v4269, %v4270
      %v4272 = vsel %vm328, %v4218, 0.0
      %v4273 = vadd.f32 %v4271, %v4272
      %v4274 = vsel %vm328, %v4219, 0.0
      %v4275 = vadd.f32 %v4273, %v4274
      %v4276 = vsel %vm328, %v4220, 0.0
      %v4277 = vadd.f32 %v4275, %v4276
      %v4278 = vsel %vm328, %v4221, 0.0
      %v4279 = vadd.f32 %v4277, %v4278
      %v4280 = vsel %vm328, %v4222, 0.0
      %v4281 = vadd.f32 %v4279, %v4280
      %v4282 = vsel %vm328, %v4223, 0.0
      %v4283 = vadd.f32 %v4281, %v4282
      %v4284 = vsel %vm328, %v4224, 0.0
      %v4285 = vadd.f32 %v4283, %v4284
      %v4286 = vsel %vm328, %v4225, 0.0
      %v4287 = vadd.f32 %v4285, %v4286
      %v4288 = vsel %vm328, %v4226, 0.0
      %v4289 = vadd.f32 %v4287, %v4288
      %v4290 = vsel %vm328, %v4227, 0.0
      %v4291 = vadd.f32 %v4289, %v4290
      %v4292 = vsel %vm328, %v4228, 0.0
      %v4293 = vadd.f32 %v4291, %v4292
      %v4294 = vsel %vm328, %v4229, 0.0
      %v4295 = vadd.f32 %v4293, %v4294
      %v4296 = vsel %vm328, %v4230, 0.0
      %v4297 = vadd.f32 %v4295, %v4296
      %v4298 = vsel %vm328, %v4231, 0.0
      %v4299 = vadd.f32 %v4297, %v4298
      %v4300 = vsel %vm328, %v4232, 0.0
      %v4301 = vadd.f32 %v4299, %v4300
      %v4302 = vsel %vm328, %v4233, 0.0
      %v4303 = vadd.f32 %v4301, %v4302
      %v4304 = vsel %vm328, %v4234, 0.0
      %v4305 = vadd.f32 %v4303, %v4304
      %v4306 = vrot.slane %v4305, 4
      %v4307 = vadd.f32 %v4305, %v4306
      %v4308 = vrot.slane %v4307, 2
      %v4309 = vadd.f32 %v4307, %v4308
      %v4310 = vrot.slane %v4309, 1
      %v4311 = vadd.f32 %v4309, %v4310
      %vm4312 = vcmask 57344
      %4313 = vst.msk [vmem:[%s199] sm:$0x1] %vm4312, %v4311
      %v4314 = vmul.f32 %v4199, %v4199
      %v4315 = vmul.f32 %v4200, %v4200
      %v4316 = vmul.f32 %v4201, %v4201
      %v4317 = vmul.f32 %v4202, %v4202
      %v4318 = vmul.f32 %v4203, %v4203
      %v4319 = vmul.f32 %v4204, %v4204
      %v4320 = vmul.f32 %v4205, %v4205
      %v4321 = vmul.f32 %v4206, %v4206
      %v4322 = vmul.f32 %v4207, %v4207
      %v4323 = vmul.f32 %v4208, %v4208
      %v4324 = vmul.f32 %v4209, %v4209
      %v4325 = vmul.f32 %v4210, %v4210
      %v4326 = vmul.f32 %v4211, %v4211
      %v4327 = vmul.f32 %v4212, %v4212
      %v4328 = vmul.f32 %v4213, %v4213
      %v4329 = vmul.f32 %v4214, %v4214
      %v4330 = vmul.f32 %v4215, %v4215
      %v4331 = vmul.f32 %v4216, %v4216
      %v4332 = vmul.f32 %v4217, %v4217
      %v4333 = vmul.f32 %v4218, %v4218
      %v4334 = vmul.f32 %v4219, %v4219
      %v4335 = vmul.f32 %v4220, %v4220
      %v4336 = vmul.f32 %v4221, %v4221
      %v4337 = vmul.f32 %v4222, %v4222
      %v4338 = vmul.f32 %v4223, %v4223
      %v4339 = vmul.f32 %v4224, %v4224
      %v4340 = vmul.f32 %v4225, %v4225
      %v4341 = vmul.f32 %v4226, %v4226
      %v4342 = vmul.f32 %v4227, %v4227
      %v4343 = vmul.f32 %v4228, %v4228
      %v4344 = vmul.f32 %v4229, %v4229
      %v4345 = vmul.f32 %v4230, %v4230
      %v4346 = vmul.f32 %v4231, %v4231
      %v4347 = vmul.f32 %v4232, %v4232
      %v4348 = vmul.f32 %v4233, %v4233
      %v4349 = vmul.f32 %v4234, %v4234
      %v4350 = vsel %vm328, %v4314, 0.0
      %v4351 = vsel %vm328, %v4315, 0.0
      %v4352 = vadd.f32 %v4350, %v4351
      %v4353 = vsel %vm328, %v4316, 0.0
      %v4354 = vadd.f32 %v4352, %v4353
      %v4355 = vsel %vm328, %v4317, 0.0
      %v4356 = vadd.f32 %v4354, %v4355
      %v4357 = vsel %vm328, %v4318, 0.0
      %v4358 = vadd.f32 %v4356, %v4357
      %v4359 = vsel %vm328, %v4319, 0.0
      %v4360 = vadd.f32 %v4358, %v4359
      %v4361 = vsel %vm328, %v4320, 0.0
      %v4362 = vadd.f32 %v4360, %v4361
      %v4363 = vsel %vm328, %v4321, 0.0
      %v4364 = vadd.f32 %v4362, %v4363
      %v4365 = vsel %vm328, %v4322, 0.0
      %v4366 = vadd.f32 %v4364, %v4365
      %v4367 = vsel %vm328, %v4323, 0.0
      %v4368 = vadd.f32 %v4366, %v4367
      %v4369 = vsel %vm328, %v4324, 0.0
      %v4370 = vadd.f32 %v4368, %v4369
      %v4371 = vsel %vm328, %v4325, 0.0
      %v4372 = vadd.f32 %v4370, %v4371
      %v4373 = vsel %vm328, %v4326, 0.0
      %v4374 = vadd.f32 %v4372, %v4373
      %v4375 = vsel %vm328, %v4327, 0.0
      %v4376 = vadd.f32 %v4374, %v4375
      %v4377 = vsel %vm328, %v4328, 0.0
      %v4378 = vadd.f32 %v4376, %v4377
      %v4379 = vsel %vm328, %v4329, 0.0
      %v4380 = vadd.f32 %v4378, %v4379
      %v4381 = vsel %vm328, %v4330, 0.0
      %v4382 = vadd.f32 %v4380, %v4381
      %v4383 = vsel %vm328, %v4331, 0.0
      %v4384 = vadd.f32 %v4382, %v4383
      %v4385 = vsel %vm328, %v4332, 0.0
      %v4386 = vadd.f32 %v4384, %v4385
      %v4387 = vsel %vm328, %v4333, 0.0
      %v4388 = vadd.f32 %v4386, %v4387
      %v4389 = vsel %vm328, %v4334, 0.0
      %v4390 = vadd.f32 %v4388, %v4389
      %v4391 = vsel %vm328, %v4335, 0.0
      %v4392 = vadd.f32 %v4390, %v4391
      %v4393 = vsel %vm328, %v4336, 0.0
      %v4394 = vadd.f32 %v4392, %v4393
      %v4395 = vsel %vm328, %v4337, 0.0
      %v4396 = vadd.f32 %v4394, %v4395
      %v4397 = vsel %vm328, %v4338, 0.0
      %v4398 = vadd.f32 %v4396, %v4397
      %v4399 = vsel %vm328, %v4339, 0.0
      %v4400 = vadd.f32 %v4398, %v4399
      %v4401 = vsel %vm328, %v4340, 0.0
      %v4402 = vadd.f32 %v4400, %v4401
      %v4403 = vsel %vm328, %v4341, 0.0
      %v4404 = vadd.f32 %v4402, %v4403
      %v4405 = vsel %vm328, %v4342, 0.0
      %v4406 = vadd.f32 %v4404, %v4405
      %v4407 = vsel %vm328, %v4343, 0.0
      %v4408 = vadd.f32 %v4406, %v4407
      %v4409 = vsel %vm328, %v4344, 0.0
      %v4410 = vadd.f32 %v4408, %v4409
      %v4411 = vsel %vm328, %v4345, 0.0
      %v4412 = vadd.f32 %v4410, %v4411
      %v4413 = vsel %vm328, %v4346, 0.0
      %v4414 = vadd.f32 %v4412, %v4413
      %v4415 = vsel %vm328, %v4347, 0.0
      %v4416 = vadd.f32 %v4414, %v4415
      %v4417 = vsel %vm328, %v4348, 0.0
      %v4418 = vadd.f32 %v4416, %v4417
      %v4419 = vsel %vm328, %v4349, 0.0
      %v4420 = vadd.f32 %v4418, %v4419
      %v4421 = vrot.slane %v4420, 4
      %v4422 = vadd.f32 %v4420, %v4421
      %v4423 = vrot.slane %v4422, 2
      %v4424 = vadd.f32 %v4422, %v4423
      %v4425 = vrot.slane %v4424, 1
      %v4426 = vadd.f32 %v4424, %v4425
      %4427 = vst.msk [vmem:[%s202] sm:$0x1] %vm4312, %v4426
      %p4428 = scmp.lt.s32.totalorder %s16, 1
      %s4429 = scalar_select %p4428, %s16, 1
      %s4430 = scalar_lea.vmem %s3, %s4429
      %p4431 = scmp.lt.s32.totalorder %s16, 1
      %s4432 = scalar_select %p4431, %s16, 1
      %s4433 = scalar_lea.vmem %s4, %s4432
      // Predicated region
      $region33: #{base_conv.2} parent=31 // pred_check
        %p4434 = pneg %p102
      $region34: #{base_conv.2} parent=31 // pred_check_branch
        %4436 = sbr.rel (%p4434) target = $region36
      $region35: #{base_conv.2} parent=31 // pred_region
        _
      $region36: #{base_conv.2} parent=31 // pred_fallthru
        _
      // Predicated region
      $region37: #{base_conv.2} parent=31 // pred_check
        %p4437 = pneg %p128
      $region38: #{base_conv.2} parent=31 // pred_check_branch
        %4439 = sbr.rel (%p4437) target = $region40
      $region39: #{base_conv.2} parent=31 // pred_region
        _
      $region40: #{base_conv.2} parent=31 // pred_fallthru
        _
    $region32: #{base_conv.2} parent=5 // pred_fallthru
      _
    %p4440 = scmp.le.s32.totalorder 2, %s11
    // Predicated region
    $region41: #{base_conv.2} parent=5 // pred_check
      %p4441 = pneg %p4440
    $region42: #{base_conv.2} parent=5 // pred_check_branch
      %4443 = sbr.rel (%p4441) target = $region44
    $region43: #{base_conv.2} parent=5 // pred_region
      %s4444 = ssub.s32 %s11, 2
      // Predicated region
      $region45: #{base_conv.2} parent=43 // pred_check
        %p4445 = pneg %p108
      $region46: #{base_conv.2} parent=43 // pred_check_branch
        %4447 = sbr.rel (%p4445) target = $region48
      $region47: #{base_conv.2} parent=43 // pred_region
        %p4448 = scmp.lt.s32.totalorder %s17, 1
        %s4449 = scalar_select %p4448, %s17, 1
        %s4450 = scalar_lea.vmem %s3, %s4449
      $region48: #{base_conv.2} parent=43 // pred_fallthru
        _
      // Predicated region
      $region49: #{base_conv.2} parent=43 // pred_check
        %p4451 = pneg %p134
      $region50: #{base_conv.2} parent=43 // pred_check_branch
        %4453 = sbr.rel (%p4451) target = $region52
      $region51: #{base_conv.2} parent=43 // pred_region
        %p4454 = scmp.lt.s32.totalorder %s17, 1
        %s4455 = scalar_select %p4454, %s17, 1
        %s4456 = scalar_lea.vmem %s4, %s4455
      $region52: #{base_conv.2} parent=43 // pred_fallthru
        _
    $region44: #{base_conv.2} parent=5 // pred_fallthru
      _
  $region6: #{base_conv.2} parent=0 // loop_footer
    %s15 = sadd.s32 1, %s11
  $region7: #{base_conv.2} parent=0 // loop_footer_branch
    %10 = sbr.rel target = $region3
  $region8: #{base_conv.2} parent=0 // loop_exit
    _

// kernel: base_conv.3
$region0: #{base_conv.3}
  #allocation0 [shape = 'u32[]', space=smem, size = 0x4, offset = 0x4, fixed_abs, tag = 'smem constant byte address 0x4 - core index']
  #allocation1 [shape = 'u32[144,128]{1,0:T(1,128)}', space=vmem, size = 0x12000, scoped, tag = 'internal scratch']
  #allocation2 [shape = 'f32[328,4]{1,0:T(8,128)}', space=vmem, size = 0x29000, scoped, tag = 'scratch operand']
  #allocation3 [shape = 'f32[288,8]{1,0:T(8,128)}', space=vmem, size = 0x24000, scoped, tag = 'scratch operand']
  %s0 = inlined_call_operand.vmem [shape: bf16[2,328,4], index: 0, kind: input, shape index: {}]
  %s1 = inlined_call_operand.vmem [shape: bf16[9,4,8], index: 1, kind: input, shape index: {}]
  %s2 = inlined_call_operand.vmem [shape: f32[1,8], index: 2, kind: input, shape index: {}]
  %s3 = inlined_call_operand.vmem [shape: f32[1,8], index: 3, kind: input, shape index: {}]
  %s4 = inlined_call_operand.vmem [shape: bf16[2,288,8], index: 4, kind: output, shape index: {}]
  %s5 = sld [smem:[#allocation0]]
  $region49: #{base_conv.3} parent=0
    _
  %s7 = ssub.s32 1, %s5
  %s8 = scalar_select 0, %s7, %s5
  loop: start=0, step=1, limit=4
  $region2: #{base_conv.3} parent=0 // loop_pre_header
    _
  $region3: #{base_conv.3} parent=0 // loop_header
    %s10 = sphi 0, %s14
    %p11 = scmp.ge.s32.totalorder %s10, 4
    %s20 = sphi 0, %s22
    %s23 = sphi 0, %s20
    %s24 = sphi 0, %s23
    %s40 = sphi 0, %s24
    %s44 = sphi 0, %s44
    %s46 = sphi 0, %s44
    %s47 = sphi 0, %s46
    %s61 = sphi 0, %s47
    %s65 = sphi 0, %s65
    %s67 = sphi 0, %s65
    %s68 = sphi 0, %s67
    %s82 = sphi 0, %s68
    %s86 = sphi 0, %s86
    %s88 = sphi 0, %s86
    %s89 = sphi 0, %s88
    %s103 = sphi 0, %s89
    %s109 = sphi 0, %s111
    %s112 = sphi 0, %s109
    %s113 = sphi 0, %s112
    %s129 = sphi 0, %s113
  $region4: #{base_conv.3} parent=0 // loop_header_branch
    %13 = sbr.rel (%p11) target = $region8
  $region5: #{base_conv.3} parent=0 // loop_body
    %s15 = ssub.s32 %s10, 1
    %s16 = ssub.s32 %s10, 2
    %s17 = sadd.s32 %s10, 1
    %s18 = ssub.s32 %s10, %s17
    %p19 = scmp.eq.s32.totalorder %s18, 0
    %s21 = sadd.s32 %s20, 1
    %s22 = scalar_select %p19, %s20, %s21
    %p25 = pneg %p19
    %p26 = scmp.eq.s32.totalorder %s10, 1
    %p27 = por %p25, %p26
    %p28 = scmp.ne.s32.totalorder %s20, %s23
    %p29 = scmp.eq.s32.totalorder %s10, 0
    %p30 = por %p28, %p29
    %p31 = scmp.ne.s32.totalorder %s20, %s23
    %p32 = scmp.eq.s32.totalorder %s15, 1
    %p33 = por %p31, %p32
    %p34 = scmp.ne.s32.totalorder %s23, %s24
    %p35 = scmp.eq.s32.totalorder %s15, 0
    %p36 = por %p34, %p35
    %p37 = scmp.ne.s32.totalorder %s23, %s24
    %p38 = scmp.eq.s32.totalorder %s16, 1
    %p39 = por %p37, %p38
    %p41 = scmp.ne.s32.totalorder %s24, %s40
    %p42 = scmp.eq.s32.totalorder %s16, 0
    %p43 = por %p41, %p42
    %s45 = sadd.s32 %s44, 1
    %p48 = scmp.eq.s32.totalorder %s10, 1
    %p49 = scmp.ne.s32.totalorder %s44, %s46
    %p50 = scmp.eq.s32.totalorder %s10, 0
    %p51 = por %p49, %p50
    %p52 = scmp.ne.s32.totalorder %s44, %s46
    %p53 = scmp.eq.s32.totalorder %s15, 1
    %p54 = por %p52, %p53
    %p55 = scmp.ne.s32.totalorder %s46, %s47
    %p56 = scmp.eq.s32.totalorder %s15, 0
    %p57 = por %p55, %p56
    %p58 = scmp.ne.s32.totalorder %s46, %s47
    %p59 = scmp.eq.s32.totalorder %s16, 1
    %p60 = por %p58, %p59
    %p62 = scmp.ne.s32.totalorder %s47, %s61
    %p63 = scmp.eq.s32.totalorder %s16, 0
    %p64 = por %p62, %p63
    %s66 = sadd.s32 %s65, 1
    %p69 = scmp.eq.s32.totalorder %s10, 1
    %p70 = scmp.ne.s32.totalorder %s65, %s67
    %p71 = scmp.eq.s32.totalorder %s10, 0
    %p72 = por %p70, %p71
    %p73 = scmp.ne.s32.totalorder %s65, %s67
    %p74 = scmp.eq.s32.totalorder %s15, 1
    %p75 = por %p73, %p74
    %p76 = scmp.ne.s32.totalorder %s67, %s68
    %p77 = scmp.eq.s32.totalorder %s15, 0
    %p78 = por %p76, %p77
    %p79 = scmp.ne.s32.totalorder %s67, %s68
    %p80 = scmp.eq.s32.totalorder %s16, 1
    %p81 = por %p79, %p80
    %p83 = scmp.ne.s32.totalorder %s68, %s82
    %p84 = scmp.eq.s32.totalorder %s16, 0
    %p85 = por %p83, %p84
    %s87 = sadd.s32 %s86, 1
    %p90 = scmp.eq.s32.totalorder %s10, 1
    %p91 = scmp.ne.s32.totalorder %s86, %s88
    %p92 = scmp.eq.s32.totalorder %s10, 0
    %p93 = por %p91, %p92
    %p94 = scmp.ne.s32.totalorder %s86, %s88
    %p95 = scmp.eq.s32.totalorder %s15, 1
    %p96 = por %p94, %p95
    %p97 = scmp.ne.s32.totalorder %s88, %s89
    %p98 = scmp.eq.s32.totalorder %s15, 0
    %p99 = por %p97, %p98
    %p100 = scmp.ne.s32.totalorder %s88, %s89
    %p101 = scmp.eq.s32.totalorder %s16, 1
    %p102 = por %p100, %p101
    %p104 = scmp.ne.s32.totalorder %s89, %s103
    %p105 = scmp.eq.s32.totalorder %s16, 0
    %p106 = por %p104, %p105
    %s107 = ssub.s32 %s10, %s17
    %p108 = scmp.eq.s32.totalorder %s107, 0
    %s110 = sadd.s32 %s109, 1
    %s111 = scalar_select %p108, %s109, %s110
    %p114 = pneg %p108
    %p115 = scmp.eq.s32.totalorder %s10, 1
    %p116 = por %p114, %p115
    %p117 = scmp.ne.s32.totalorder %s109, %s112
    %p118 = scmp.eq.s32.totalorder %s10, 0
    %p119 = por %p117, %p118
    %p120 = scmp.ne.s32.totalorder %s109, %s112
    %p121 = scmp.eq.s32.totalorder %s15, 1
    %p122 = por %p120, %p121
    %p123 = scmp.ne.s32.totalorder %s112, %s113
    %p124 = scmp.eq.s32.totalorder %s15, 0
    %p125 = por %p123, %p124
    %p126 = scmp.ne.s32.totalorder %s112, %s113
    %p127 = scmp.eq.s32.totalorder %s16, 1
    %p128 = por %p126, %p127
    %p130 = scmp.ne.s32.totalorder %s113, %s129
    %p131 = scmp.eq.s32.totalorder %s16, 0
    %p132 = por %p130, %p131
    %p133 = scmp.le.s32.totalorder 1, %s10
    %p134 = scmp.lt.s32.totalorder %s10, 3
    %p135 = pnand %p133, %p134
    %p136 = pneg %p135
    // Predicated region
    $region9: #{base_conv.3} parent=5 // pred_check
      _
    $region10: #{base_conv.3} parent=5 // pred_check_branch
      %138 = sbr.rel (%p135) target = $region12
    $region11: #{base_conv.3} parent=5 // pred_region
      %s139 = ssub.s32 %s10, 1
      // Predicated region
      $region13: #{base_conv.3} parent=11 // pred_check
        %p140 = pneg %p57
      $region14: #{base_conv.3} parent=11 // pred_check_branch
        %142 = sbr.rel (%p140) target = $region16
      $region15: #{base_conv.3} parent=11 // pred_region
        _
      $region16: #{base_conv.3} parent=11 // pred_fallthru
        _
      // Predicated region
      $region17: #{base_conv.3} parent=11 // pred_check
        %p143 = pneg %p78
      $region18: #{base_conv.3} parent=11 // pred_check_branch
        %145 = sbr.rel (%p143) target = $region20
      $region19: #{base_conv.3} parent=11 // pred_region
        _
      $region20: #{base_conv.3} parent=11 // pred_fallthru
        _
      // Predicated region
      $region21: #{base_conv.3} parent=11 // pred_check
        %p146 = pneg %p99
      $region22: #{base_conv.3} parent=11 // pred_check_branch
        %148 = sbr.rel (%p146) target = $region24
      $region23: #{base_conv.3} parent=11 // pred_region
        _
      $region24: #{base_conv.3} parent=11 // pred_fallthru
        _
    $region12: #{base_conv.3} parent=5 // pred_fallthru
      _
    %p149 = scmp.lt.s32.totalorder %s10, 2
    // Predicated region
    $region25: #{base_conv.3} parent=5 // pred_check
      %p150 = pneg %p149
    $region26: #{base_conv.3} parent=5 // pred_check_branch
      %152 = sbr.rel (%p150) target = $region28
    $region27: #{base_conv.3} parent=5 // pred_region
      // Predicated region
      $region29: #{base_conv.3} parent=27 // pred_check
        %p153 = pneg %p30
      $region30: #{base_conv.3} parent=27 // pred_check_branch
        %155 = sbr.rel (%p153) target = $region32
      $region31: #{base_conv.3} parent=27 // pred_region
        %p156 = scmp.lt.s32.totalorder %s10, 1
        %s157 = scalar_select %p156, %s10, 1
        %s158 = smul.addr %s157, 41
        %s159 = smul.addr %s158, 4
        %s160 = scalar_lea.vmem %s0, %s159
      $region32: #{base_conv.3} parent=27 // pred_fallthru
        _
    $region28: #{base_conv.3} parent=5 // pred_fallthru
      _
    %p161 = scmp.le.s32.totalorder 1, %s10
    %p162 = scmp.lt.s32.totalorder %s10, 3
    %p163 = pnand %p161, %p162
    %p164 = pneg %p163
    // Predicated region
    $region33: #{base_conv.3} parent=5 // pred_check
      _
    $region34: #{base_conv.3} parent=5 // pred_check_branch
      %166 = sbr.rel (%p163) target = $region36
    $region35: #{base_conv.3} parent=5 // pred_region
      %s167 = ssub.s32 %s10, 1
      %p168 = scmp.lt.s32.totalorder %s15, 1
      %s169 = scalar_select %p168, %s15, 1
      %s170 = smul.addr %s169, 41
      %s171 = smul.addr %s170, 4
      %s172 = scalar_lea.vmem %s0, %s171
      %p173 = pneg %p36
      %p174 = pneg %p33
      %p175 = pneg %p57
      %p176 = pneg %p54
      %p177 = pneg %p78
      %p178 = pneg %p75
      %p179 = pneg %p99
      %p180 = pneg %p96
      %p181 = pneg %p125
      %p182 = pneg %p122
      %p183 = scmp.lt.s32.totalorder %s15, 1
      %s184 = scalar_select %p183, %s15, 1
      %s185 = smul.addr %s184, 36
      %s186 = smul.addr %s185, 4
      %s187 = scalar_lea.vmem %s4, %s186
      %p188 = scmp.lt.s32.totalorder %s15, 1
      %s189 = scalar_select %p188, %s15, 1
      %s190 = smul.addr %s189, 41
      %s191 = smul.addr %s190, 4
      %s192 = scalar_lea.vmem %s0, %s191
      %p193 = scmp.lt.s32.totalorder %s15, 1
      %s194 = scalar_select %p193, %s15, 1
      %s195 = smul.addr %s194, 36
      %s196 = smul.addr %s195, 4
      %s197 = scalar_lea.vmem %s4, %s196
      %v199 = vld [vmem:[%s192] sm:$0xf]
      %v200 = vld [vmem:[%s192 + $0x4] sm:$0xf]
      %v201 = vld [vmem:[%s192 + $0x8] sm:$0xf]
      %v202 = vld [vmem:[%s192 + $0xc] sm:$0xf]
      %v203 = vld [vmem:[%s192 + $0x10] sm:$0xf]
      %v204 = vld [vmem:[%s192 + $0x14] sm:$0xf]
      %v205 = vld [vmem:[%s192 + $0x18] sm:$0xf]
      %v206 = vld [vmem:[%s192 + $0x1c] sm:$0xf]
      %v207 = vld [vmem:[%s192 + $0x20] sm:$0xf]
      %v208 = vld [vmem:[%s192 + $0x24] sm:$0xf]
      %v209 = vld [vmem:[%s192 + $0x28] sm:$0xf]
      %v210 = vld [vmem:[%s192 + $0x2c] sm:$0xf]
      %v211 = vld [vmem:[%s192 + $0x30] sm:$0xf]
      %v212 = vld [vmem:[%s192 + $0x34] sm:$0xf]
      %v213 = vld [vmem:[%s192 + $0x38] sm:$0xf]
      %v214 = vld [vmem:[%s192 + $0x3c] sm:$0xf]
      %v215 = vld [vmem:[%s192 + $0x40] sm:$0xf]
      %v216 = vld [vmem:[%s192 + $0x44] sm:$0xf]
      %v217 = vld [vmem:[%s192 + $0x48] sm:$0xf]
      %v218 = vld [vmem:[%s192 + $0x4c] sm:$0xf]
      %v219 = vld [vmem:[%s192 + $0x50] sm:$0xf]
      %v220 = vld [vmem:[%s192 + $0x54] sm:$0xf]
      %v221 = vld [vmem:[%s192 + $0x58] sm:$0xf]
      %v222 = vld [vmem:[%s192 + $0x5c] sm:$0xf]
      %v223 = vld [vmem:[%s192 + $0x60] sm:$0xf]
      %v224 = vld [vmem:[%s192 + $0x64] sm:$0xf]
      %v225 = vld [vmem:[%s192 + $0x68] sm:$0xf]
      %v226 = vld [vmem:[%s192 + $0x6c] sm:$0xf]
      %v227 = vld [vmem:[%s192 + $0x70] sm:$0xf]
      %v228 = vld [vmem:[%s192 + $0x74] sm:$0xf]
      %v229 = vld [vmem:[%s192 + $0x78] sm:$0xf]
      %v230 = vld [vmem:[%s192 + $0x7c] sm:$0xf]
      %v231 = vld [vmem:[%s192 + $0x80] sm:$0xf]
      %v232 = vld [vmem:[%s192 + $0x84] sm:$0xf]
      %v233 = vld [vmem:[%s192 + $0x88] sm:$0xf]
      %v234 = vld [vmem:[%s192 + $0x8c] sm:$0xf]
      %v235 = vld [vmem:[%s192 + $0x90] sm:$0xf]
      %v236 = vld [vmem:[%s192 + $0x94] sm:$0xf]
      %v237 = vld [vmem:[%s192 + $0x98] sm:$0xf]
      %v238 = vld [vmem:[%s192 + $0x9c] sm:$0xf]
      %v239 = vld [vmem:[%s192 + $0xa0] sm:$0xf]
      %v240 = vunpack.c.l.bf16 %v199
      %v241 = vunpack.c.l.bf16 %v200
      %v242 = vunpack.c.l.bf16 %v201
      %v243 = vunpack.c.l.bf16 %v202
      %v244 = vunpack.c.l.bf16 %v203
      %v245 = vunpack.c.l.bf16 %v204
      %v246 = vunpack.c.l.bf16 %v205
      %v247 = vunpack.c.l.bf16 %v206
      %v248 = vunpack.c.l.bf16 %v207
      %v249 = vunpack.c.l.bf16 %v208
      %v250 = vunpack.c.l.bf16 %v209
      %v251 = vunpack.c.l.bf16 %v210
      %v252 = vunpack.c.l.bf16 %v211
      %v253 = vunpack.c.l.bf16 %v212
      %v254 = vunpack.c.l.bf16 %v213
      %v255 = vunpack.c.l.bf16 %v214
      %v256 = vunpack.c.l.bf16 %v215
      %v257 = vunpack.c.l.bf16 %v216
      %v258 = vunpack.c.l.bf16 %v217
      %v259 = vunpack.c.l.bf16 %v218
      %v260 = vunpack.c.l.bf16 %v219
      %v261 = vunpack.c.l.bf16 %v220
      %v262 = vunpack.c.l.bf16 %v221
      %v263 = vunpack.c.l.bf16 %v222
      %v264 = vunpack.c.l.bf16 %v223
      %v265 = vunpack.c.l.bf16 %v224
      %v266 = vunpack.c.l.bf16 %v225
      %v267 = vunpack.c.l.bf16 %v226
      %v268 = vunpack.c.l.bf16 %v227
      %v269 = vunpack.c.l.bf16 %v228
      %v270 = vunpack.c.l.bf16 %v229
      %v271 = vunpack.c.l.bf16 %v230
      %v272 = vunpack.c.l.bf16 %v231
      %v273 = vunpack.c.l.bf16 %v232
      %v274 = vunpack.c.l.bf16 %v233
      %v275 = vunpack.c.l.bf16 %v234
      %v276 = vunpack.c.l.bf16 %v235
      %v277 = vunpack.c.l.bf16 %v236
      %v278 = vunpack.c.l.bf16 %v237
      %v279 = vunpack.c.l.bf16 %v238
      %v280 = vunpack.c.l.bf16 %v239
      %vm281 = vcmask 31744
      %282 = vst.msk [vmem:[#allocation2] sm:$0xff] %vm281, %v240
      %283 = vst.msk [vmem:[#allocation2 + $0x8] sm:$0xff] %vm281, %v241
      %284 = vst.msk [vmem:[#allocation2 + $0x10] sm:$0xff] %vm281, %v242
      %285 = vst.msk [vmem:[#allocation2 + $0x18] sm:$0xff] %vm281, %v243
      %286 = vst.msk [vmem:[#allocation2 + $0x20] sm:$0xff] %vm281, %v244
      %287 = vst.msk [vmem:[#allocation2 + $0x28] sm:$0xff] %vm281, %v245
      %288 = vst.msk [vmem:[#allocation2 + $0x30] sm:$0xff] %vm281, %v246
      %289 = vst.msk [vmem:[#allocation2 + $0x38] sm:$0xff] %vm281, %v247
      %290 = vst.msk [vmem:[#allocation2 + $0x40] sm:$0xff] %vm281, %v248
      %291 = vst.msk [vmem:[#allocation2 + $0x48] sm:$0xff] %vm281, %v249
      %292 = vst.msk [vmem:[#allocation2 + $0x50] sm:$0xff] %vm281, %v250
      %293 = vst.msk [vmem:[#allocation2 + $0x58] sm:$0xff] %vm281, %v251
      %294 = vst.msk [vmem:[#allocation2 + $0x60] sm:$0xff] %vm281, %v252
      %295 = vst.msk [vmem:[#allocation2 + $0x68] sm:$0xff] %vm281, %v253
      %296 = vst.msk [vmem:[#allocation2 + $0x70] sm:$0xff] %vm281, %v254
      %297 = vst.msk [vmem:[#allocation2 + $0x78] sm:$0xff] %vm281, %v255
      %298 = vst.msk [vmem:[#allocation2 + $0x80] sm:$0xff] %vm281, %v256
      %299 = vst.msk [vmem:[#allocation2 + $0x88] sm:$0xff] %vm281, %v257
      %300 = vst.msk [vmem:[#allocation2 + $0x90] sm:$0xff] %vm281, %v258
      %301 = vst.msk [vmem:[#allocation2 + $0x98] sm:$0xff] %vm281, %v259
      %302 = vst.msk [vmem:[#allocation2 + $0xa0] sm:$0xff] %vm281, %v260
      %303 = vst.msk [vmem:[#allocation2 + $0xa8] sm:$0xff] %vm281, %v261
      %304 = vst.msk [vmem:[#allocation2 + $0xb0] sm:$0xff] %vm281, %v262
      %305 = vst.msk [vmem:[#allocation2 + $0xb8] sm:$0xff] %vm281, %v263
      %306 = vst.msk [vmem:[#allocation2 + $0xc0] sm:$0xff] %vm281, %v264
      %307 = vst.msk [vmem:[#allocation2 + $0xc8] sm:$0xff] %vm281, %v265
      %308 = vst.msk [vmem:[#allocation2 + $0xd0] sm:$0xff] %vm281, %v266
      %309 = vst.msk [vmem:[#allocation2 + $0xd8] sm:$0xff] %vm281, %v267
      %310 = vst.msk [vmem:[#allocation2 + $0xe0] sm:$0xff] %vm281, %v268
      %311 = vst.msk [vmem:[#allocation2 + $0xe8] sm:$0xff] %vm281, %v269
      %312 = vst.msk [vmem:[#allocation2 + $0xf0] sm:$0xff] %vm281, %v270
      %313 = vst.msk [vmem:[#allocation2 + $0xf8] sm:$0xff] %vm281, %v271
      %314 = vst.msk [vmem:[#allocation2 + $0x100] sm:$0xff] %vm281, %v272
      %315 = vst.msk [vmem:[#allocation2 + $0x108] sm:$0xff] %vm281, %v273
      %316 = vst.msk [vmem:[#allocation2 + $0x110] sm:$0xff] %vm281, %v274
      %317 = vst.msk [vmem:[#allocation2 + $0x118] sm:$0xff] %vm281, %v275
      %318 = vst.msk [vmem:[#allocation2 + $0x120] sm:$0xff] %vm281, %v276
      %319 = vst.msk [vmem:[#allocation2 + $0x128] sm:$0xff] %vm281, %v277
      %320 = vst.msk [vmem:[#allocation2 + $0x130] sm:$0xff] %vm281, %v278
      %321 = vst.msk [vmem:[#allocation2 + $0x138] sm:$0xff] %vm281, %v279
      %322 = vst.msk [vmem:[#allocation2 + $0x140] sm:$0xff] %vm281, %v280
      %vm323 = vcmask 64512
      %324 = vst.msk [vmem:[#allocation3] sm:$0xff] %vm323, 0.0
      %325 = vst.msk [vmem:[#allocation3 + $0x8] sm:$0xff] %vm323, 0.0
      %326 = vst.msk [vmem:[#allocation3 + $0x10] sm:$0xff] %vm323, 0.0
      %327 = vst.msk [vmem:[#allocation3 + $0x18] sm:$0xff] %vm323, 0.0
      %328 = vst.msk [vmem:[#allocation3 + $0x20] sm:$0xff] %vm323, 0.0
      %329 = vst.msk [vmem:[#allocation3 + $0x28] sm:$0xff] %vm323, 0.0
      %330 = vst.msk [vmem:[#allocation3 + $0x30] sm:$0xff] %vm323, 0.0
      %331 = vst.msk [vmem:[#allocation3 + $0x38] sm:$0xff] %vm323, 0.0
      %332 = vst.msk [vmem:[#allocation3 + $0x40] sm:$0xff] %vm323, 0.0
      %333 = vst.msk [vmem:[#allocation3 + $0x48] sm:$0xff] %vm323, 0.0
      %334 = vst.msk [vmem:[#allocation3 + $0x50] sm:$0xff] %vm323, 0.0
      %335 = vst.msk [vmem:[#allocation3 + $0x58] sm:$0xff] %vm323, 0.0
      %336 = vst.msk [vmem:[#allocation3 + $0x60] sm:$0xff] %vm323, 0.0
      %337 = vst.msk [vmem:[#allocation3 + $0x68] sm:$0xff] %vm323, 0.0
      %338 = vst.msk [vmem:[#allocation3 + $0x70] sm:$0xff] %vm323, 0.0
      %339 = vst.msk [vmem:[#allocation3 + $0x78] sm:$0xff] %vm323, 0.0
      %340 = vst.msk [vmem:[#allocation3 + $0x80] sm:$0xff] %vm323, 0.0
      %341 = vst.msk [vmem:[#allocation3 + $0x88] sm:$0xff] %vm323, 0.0
      %342 = vst.msk [vmem:[#allocation3 + $0x90] sm:$0xff] %vm323, 0.0
      %343 = vst.msk [vmem:[#allocation3 + $0x98] sm:$0xff] %vm323, 0.0
      %344 = vst.msk [vmem:[#allocation3 + $0xa0] sm:$0xff] %vm323, 0.0
      %345 = vst.msk [vmem:[#allocation3 + $0xa8] sm:$0xff] %vm323, 0.0
      %346 = vst.msk [vmem:[#allocation3 + $0xb0] sm:$0xff] %vm323, 0.0
      %347 = vst.msk [vmem:[#allocation3 + $0xb8] sm:$0xff] %vm323, 0.0
      %348 = vst.msk [vmem:[#allocation3 + $0xc0] sm:$0xff] %vm323, 0.0
      %349 = vst.msk [vmem:[#allocation3 + $0xc8] sm:$0xff] %vm323, 0.0
      %350 = vst.msk [vmem:[#allocation3 + $0xd0] sm:$0xff] %vm323, 0.0
      %351 = vst.msk [vmem:[#allocation3 + $0xd8] sm:$0xff] %vm323, 0.0
      %352 = vst.msk [vmem:[#allocation3 + $0xe0] sm:$0xff] %vm323, 0.0
      %353 = vst.msk [vmem:[#allocation3 + $0xe8] sm:$0xff] %vm323, 0.0
      %354 = vst.msk [vmem:[#allocation3 + $0xf0] sm:$0xff] %vm323, 0.0
      %355 = vst.msk [vmem:[#allocation3 + $0xf8] sm:$0xff] %vm323, 0.0
      %356 = vst.msk [vmem:[#allocation3 + $0x100] sm:$0xff] %vm323, 0.0
      %357 = vst.msk [vmem:[#allocation3 + $0x108] sm:$0xff] %vm323, 0.0
      %358 = vst.msk [vmem:[#allocation3 + $0x110] sm:$0xff] %vm323, 0.0
      %359 = vst.msk [vmem:[#allocation3 + $0x118] sm:$0xff] %vm323, 0.0
      %v360 = vld [vmem:[#allocation2] sm:$0xff]
      %v361 = vld [vmem:[#allocation2 + $0x8] sm:$0xff]
      %v362 = vld [vmem:[#allocation2 + $0x10] sm:$0xff]
      %v363 = vld [vmem:[#allocation2 + $0x18] sm:$0xff]
      %v364 = vld [vmem:[#allocation2 + $0x20] sm:$0xff]
      %v365 = vld [vmem:[#allocation2 + $0x28] sm:$0xff]
      %v366 = vld [vmem:[#allocation2 + $0x30] sm:$0xff]
      %v367 = vld [vmem:[#allocation2 + $0x38] sm:$0xff]
      %v368 = vld [vmem:[#allocation2 + $0x40] sm:$0xff]
      %v369 = vld [vmem:[#allocation2 + $0x48] sm:$0xff]
      %v370 = vld [vmem:[#allocation2 + $0x50] sm:$0xff]
      %v371 = vld [vmem:[#allocation2 + $0x58] sm:$0xff]
      %v372 = vld [vmem:[#allocation2 + $0x60] sm:$0xff]
      %v373 = vld [vmem:[#allocation2 + $0x68] sm:$0xff]
      %v374 = vld [vmem:[#allocation2 + $0x70] sm:$0xff]
      %v375 = vld [vmem:[#allocation2 + $0x78] sm:$0xff]
      %v376 = vld [vmem:[#allocation2 + $0x80] sm:$0xff]
      %v377 = vld [vmem:[#allocation2 + $0x88] sm:$0xff]
      %v378 = vld [vmem:[#allocation2 + $0x90] sm:$0xff]
      %v379 = vld [vmem:[#allocation2 + $0x98] sm:$0xff]
      %v380 = vld [vmem:[#allocation2 + $0xa0] sm:$0xff]
      %v381 = vld [vmem:[#allocation2 + $0xa8] sm:$0xff]
      %v382 = vld [vmem:[#allocation2 + $0xb0] sm:$0xff]
      %v383 = vld [vmem:[#allocation2 + $0xb8] sm:$0xff]
      %v384 = vld [vmem:[#allocation2 + $0xc0] sm:$0xff]
      %v385 = vld [vmem:[#allocation2 + $0xc8] sm:$0xff]
      %v386 = vld [vmem:[#allocation2 + $0xd0] sm:$0xff]
      %v387 = vld [vmem:[#allocation2 + $0xd8] sm:$0xff]
      %v388 = vld [vmem:[#allocation2 + $0xe0] sm:$0xff]
      %v389 = vld [vmem:[#allocation2 + $0xe8] sm:$0xff]
      %v390 = vld [vmem:[#allocation2 + $0xf0] sm:$0xff]
      %v391 = vld [vmem:[#allocation2 + $0xf8] sm:$0xff]
      %v392 = vld [vmem:[#allocation2 + $0x100] sm:$0xff]
      %v393 = vld [vmem:[#allocation2 + $0x108] sm:$0xff]
      %v394 = vld [vmem:[#allocation2 + $0x110] sm:$0xff]
      %v395 = vld [vmem:[#allocation2 + $0x118] sm:$0xff]
      %v396 = vpack.c.bf16 %v361, %v360
      %v397 = vpack.c.bf16 %v363, %v362
      %v398 = vpack.c.bf16 %v365, %v364
      %v399 = vpack.c.bf16 %v367, %v366
      %v400 = vpack.c.bf16 %v369, %v368
      %v401 = vpack.c.bf16 %v371, %v370
      %v402 = vpack.c.bf16 %v373, %v372
      %v403 = vpack.c.bf16 %v375, %v374
      %v404 = vpack.c.bf16 %v377, %v376
      %v405 = vpack.c.bf16 %v379, %v378
      %v406 = vpack.c.bf16 %v381, %v380
      %v407 = vpack.c.bf16 %v383, %v382
      %v408 = vpack.c.bf16 %v385, %v384
      %v409 = vpack.c.bf16 %v387, %v386
      %v410 = vpack.c.bf16 %v389, %v388
      %v411 = vpack.c.bf16 %v391, %v390
      %v412 = vpack.c.bf16 %v393, %v392
      %v413 = vpack.c.bf16 %v395, %v394
      %v414 = vld [vmem:[#allocation3] sm:$0xff]
      %v415 = vld [vmem:[#allocation3 + $0x8] sm:$0xff]
      %v416 = vld [vmem:[#allocation3 + $0x10] sm:$0xff]
      %v417 = vld [vmem:[#allocation3 + $0x18] sm:$0xff]
      %v418 = vld [vmem:[#allocation3 + $0x20] sm:$0xff]
      %v419 = vld [vmem:[#allocation3 + $0x28] sm:$0xff]
      %v420 = vld [vmem:[#allocation3 + $0x30] sm:$0xff]
      %v421 = vld [vmem:[#allocation3 + $0x38] sm:$0xff]
      %v422 = vld [vmem:[#allocation3 + $0x40] sm:$0xff]
      %v423 = vld [vmem:[#allocation3 + $0x48] sm:$0xff]
      %v424 = vld [vmem:[#allocation3 + $0x50] sm:$0xff]
      %v425 = vld [vmem:[#allocation3 + $0x58] sm:$0xff]
      %v426 = vld [vmem:[#allocation3 + $0x60] sm:$0xff]
      %v427 = vld [vmem:[#allocation3 + $0x68] sm:$0xff]
      %v428 = vld [vmem:[#allocation3 + $0x70] sm:$0xff]
      %v429 = vld [vmem:[#allocation3 + $0x78] sm:$0xff]
      %v430 = vld [vmem:[#allocation3 + $0x80] sm:$0xff]
      %v431 = vld [vmem:[#allocation3 + $0x88] sm:$0xff]
      %v432 = vld [vmem:[#allocation3 + $0x90] sm:$0xff]
      %v433 = vld [vmem:[#allocation3 + $0x98] sm:$0xff]
      %v434 = vld [vmem:[#allocation3 + $0xa0] sm:$0xff]
      %v435 = vld [vmem:[#allocation3 + $0xa8] sm:$0xff]
      %v436 = vld [vmem:[#allocation3 + $0xb0] sm:$0xff]
      %v437 = vld [vmem:[#allocation3 + $0xb8] sm:$0xff]
      %v438 = vld [vmem:[#allocation3 + $0xc0] sm:$0xff]
      %v439 = vld [vmem:[#allocation3 + $0xc8] sm:$0xff]
      %v440 = vld [vmem:[#allocation3 + $0xd0] sm:$0xff]
      %v441 = vld [vmem:[#allocation3 + $0xd8] sm:$0xff]
      %v442 = vld [vmem:[#allocation3 + $0xe0] sm:$0xff]
      %v443 = vld [vmem:[#allocation3 + $0xe8] sm:$0xff]
      %v444 = vld [vmem:[#allocation3 + $0xf0] sm:$0xff]
      %v445 = vld [vmem:[#allocation3 + $0xf8] sm:$0xff]
      %v446 = vld [vmem:[#allocation3 + $0x100] sm:$0xff]
      %v447 = vld [vmem:[#allocation3 + $0x108] sm:$0xff]
      %v448 = vld [vmem:[#allocation3 + $0x110] sm:$0xff]
      %v449 = vld [vmem:[#allocation3 + $0x118] sm:$0xff]
      %v450 = vld [vmem:[%s1] sm:$0x3]
      %v452 = vsel %vm281, %v396, 0
      %v455 = vsel %vm281, %v397, 0
      %v458 = vsel %vm281, %v398, 0
      %v461 = vsel %vm281, %v399, 0
      %v464 = vsel %vm281, %v400, 0
      %v467 = vsel %vm281, %v401, 0
      %v470 = vsel %vm281, %v402, 0
      %v473 = vsel %vm281, %v403, 0
      %v476 = vsel %vm281, %v404, 0
      %v479 = vsel %vm281, %v405, 0
      %v482 = vsel %vm281, %v406, 0
      %v485 = vsel %vm281, %v407, 0
      %v488 = vsel %vm281, %v408, 0
      %v491 = vsel %vm281, %v409, 0
      %v494 = vsel %vm281, %v410, 0
      %v497 = vsel %vm281, %v411, 0
      %v500 = vsel %vm281, %v412, 0
      %v503 = vsel %vm281, %v413, 0
      %vm505 = vcmask 1041408
      %v507 = vsel %vm505, %v450, 0
      %509 = vmatprep.subr.bf16.mxu0 0
      %510 = vmatpush1.bf16.msra.mxu0 0
      %511 = vmatprep.subr.bf16.mxu0 0
      %512 = vmatpush1.bf16.msra.mxu0 0
      %513 = vmatprep.subr.bf16.mxu0 0
      %514 = vmatpush1.bf16.msra.mxu0 0
      %515 = vmatprep.subr.bf16.mxu0 0
      %516 = vmatpush1.bf16.msra.mxu0 0
      %517 = vmatprep.subr.bf16.mxu0 0
      %518 = vmatpush1.bf16.msra.mxu0 0
      %519 = vmatprep.subr.bf16.mxu0 0
      %520 = vmatpush1.bf16.msra.mxu0 0
      %521 = vmatprep.subr.bf16.mxu0 0
      %522 = vmatpush1.bf16.msra.mxu0 0
      %523 = vmatprep.subr.bf16.mxu0 0
      %524 = vmatpush1.bf16.msra.mxu0 %v507
      %525 = vmatprep.subr.bf16.mxu0 0
      %526 = vmatpush2.bf16.msra.mxu0 0
      %527 = vmatprep.subr.bf16.mxu0 0
      %528 = vmatpush2.bf16.msra.mxu0 0
      %529 = vmatprep.subr.bf16.mxu0 0
      %530 = vmatpush2.bf16.msra.mxu0 0
      %531 = vmatprep.subr.bf16.mxu0 0
      %532 = vmatpush2.bf16.msra.mxu0 0
      %533 = vmatprep.subr.bf16.mxu0 0
      %534 = vmatpush2.bf16.msra.mxu0 0
      %535 = vmatprep.subr.bf16.mxu0 0
      %536 = vmatpush2.bf16.msra.mxu0 0
      %537 = vmatprep.subr.bf16.mxu0 0
      %538 = vmatpush2.bf16.msra.mxu0 0
      %539 = vmatprep.subr.bf16.mxu0 0
      %540 = vmatpush2.bf16.msra.mxu0 0
      %541 = vmatprep.mubr.bf16.mxu0 0
      %542 = vmatmul.mubr.bf16.gmra.mxu0 %v452
      %v543 = vpop.f32.mrf.mxu0
      %v544 = vadd.f32 0.0, %v543
      %v545 = vpop.f32.mrf.mxu0
      %v546 = vpop.f32.mrf.mxu0
      %v547 = vadd.f32 0.0, %v546
      %v548 = vpop.f32.mrf.mxu0
      %549 = vmatprep.mubr.bf16.mxu0 0
      %550 = vmatmul.mubr.bf16.gmra.mxu0 %v455
      %v551 = vpop.f32.mrf.mxu0
      %v552 = vadd.f32 0.0, %v551
      %v553 = vpop.f32.mrf.mxu0
      %v554 = vpop.f32.mrf.mxu0
      %v555 = vadd.f32 0.0, %v554
      %v556 = vpop.f32.mrf.mxu0
      %557 = vmatprep.mubr.bf16.mxu0 0
      %558 = vmatmul.mubr.bf16.gmra.mxu0 %v458
      %v559 = vpop.f32.mrf.mxu0
      %v560 = vadd.f32 0.0, %v559
      %v561 = vpop.f32.mrf.mxu0
      %v562 = vpop.f32.mrf.mxu0
      %v563 = vadd.f32 0.0, %v562
      %v564 = vpop.f32.mrf.mxu0
      %565 = vmatprep.mubr.bf16.mxu0 0
      %566 = vmatmul.mubr.bf16.gmra.mxu0 %v461
      %v567 = vpop.f32.mrf.mxu0
      %v568 = vadd.f32 0.0, %v567
      %v569 = vpop.f32.mrf.mxu0
      %v570 = vpop.f32.mrf.mxu0
      %v571 = vadd.f32 0.0, %v570
      %v572 = vpop.f32.mrf.mxu0
      %573 = vmatprep.mubr.bf16.mxu0 0
      %574 = vmatmul.mubr.bf16.gmra.mxu0 %v464
      %v575 = vpop.f32.mrf.mxu0
      %v576 = vadd.f32 0.0, %v575
      %v577 = vpop.f32.mrf.mxu0
      %v578 = vpop.f32.mrf.mxu0
      %v579 = vadd.f32 0.0, %v578
      %v580 = vpop.f32.mrf.mxu0
      %581 = vmatprep.mubr.bf16.mxu0 0
      %582 = vmatmul.mubr.bf16.gmra.mxu0 %v467
      %v583 = vpop.f32.mrf.mxu0
      %v584 = vadd.f32 0.0, %v583
      %v585 = vpop.f32.mrf.mxu0
      %v586 = vpop.f32.mrf.mxu0
      %v587 = vadd.f32 0.0, %v586
      %v588 = vpop.f32.mrf.mxu0
      %589 = vmatprep.mubr.bf16.mxu0 0
      %590 = vmatmul.mubr.bf16.gmra.mxu0 %v470
      %v591 = vpop.f32.mrf.mxu0
      %v592 = vadd.f32 0.0, %v591
      %v593 = vpop.f32.mrf.mxu0
      %v594 = vpop.f32.mrf.mxu0
      %v595 = vadd.f32 0.0, %v594
      %v596 = vpop.f32.mrf.mxu0
      %597 = vmatprep.mubr.bf16.mxu0 0
      %598 = vmatmul.mubr.bf16.gmra.mxu0 %v473
      %v599 = vpop.f32.mrf.mxu0
      %v600 = vadd.f32 0.0, %v599
      %v601 = vpop.f32.mrf.mxu0
      %v602 = vpop.f32.mrf.mxu0
      %v603 = vadd.f32 0.0, %v602
      %v604 = vpop.f32.mrf.mxu0
      %605 = vmatprep.mubr.bf16.mxu0 0
      %606 = vmatmul.mubr.bf16.gmra.mxu0 %v476
      %v607 = vpop.f32.mrf.mxu0
      %v608 = vadd.f32 0.0, %v607
      %v609 = vpop.f32.mrf.mxu0
      %v610 = vpop.f32.mrf.mxu0
      %v611 = vadd.f32 0.0, %v610
      %v612 = vpop.f32.mrf.mxu0
      %613 = vmatprep.mubr.bf16.mxu0 0
      %614 = vmatmul.mubr.bf16.gmra.mxu0 %v479
      %v615 = vpop.f32.mrf.mxu0
      %v616 = vadd.f32 0.0, %v615
      %v617 = vpop.f32.mrf.mxu0
      %v618 = vpop.f32.mrf.mxu0
      %v619 = vadd.f32 0.0, %v618
      %v620 = vpop.f32.mrf.mxu0
      %621 = vmatprep.mubr.bf16.mxu0 0
      %622 = vmatmul.mubr.bf16.gmra.mxu0 %v482
      %v623 = vpop.f32.mrf.mxu0
      %v624 = vadd.f32 0.0, %v623
      %v625 = vpop.f32.mrf.mxu0
      %v626 = vpop.f32.mrf.mxu0
      %v627 = vadd.f32 0.0, %v626
      %v628 = vpop.f32.mrf.mxu0
      %629 = vmatprep.mubr.bf16.mxu0 0
      %630 = vmatmul.mubr.bf16.gmra.mxu0 %v485
      %v631 = vpop.f32.mrf.mxu0
      %v632 = vadd.f32 0.0, %v631
      %v633 = vpop.f32.mrf.mxu0
      %v634 = vpop.f32.mrf.mxu0
      %v635 = vadd.f32 0.0, %v634
      %v636 = vpop.f32.mrf.mxu0
      %637 = vmatprep.mubr.bf16.mxu0 0
      %638 = vmatmul.mubr.bf16.gmra.mxu0 %v488
      %v639 = vpop.f32.mrf.mxu0
      %v640 = vadd.f32 0.0, %v639
      %v641 = vpop.f32.mrf.mxu0
      %v642 = vpop.f32.mrf.mxu0
      %v643 = vadd.f32 0.0, %v642
      %v644 = vpop.f32.mrf.mxu0
      %645 = vmatprep.mubr.bf16.mxu0 0
      %646 = vmatmul.mubr.bf16.gmra.mxu0 %v491
      %v647 = vpop.f32.mrf.mxu0
      %v648 = vadd.f32 0.0, %v647
      %v649 = vpop.f32.mrf.mxu0
      %v650 = vpop.f32.mrf.mxu0
      %v651 = vadd.f32 0.0, %v650
      %v652 = vpop.f32.mrf.mxu0
      %653 = vmatprep.mubr.bf16.mxu0 0
      %654 = vmatmul.mubr.bf16.gmra.mxu0 %v494
      %v655 = vpop.f32.mrf.mxu0
      %v656 = vadd.f32 0.0, %v655
      %v657 = vpop.f32.mrf.mxu0
      %v658 = vpop.f32.mrf.mxu0
      %v659 = vadd.f32 0.0, %v658
      %v660 = vpop.f32.mrf.mxu0
      %661 = vmatprep.mubr.bf16.mxu0 0
      %662 = vmatmul.mubr.bf16.gmra.mxu0 %v497
      %v663 = vpop.f32.mrf.mxu0
      %v664 = vadd.f32 0.0, %v663
      %v665 = vpop.f32.mrf.mxu0
      %v666 = vpop.f32.mrf.mxu0
      %v667 = vadd.f32 0.0, %v666
      %v668 = vpop.f32.mrf.mxu0
      %669 = vmatprep.mubr.bf16.mxu0 0
      %670 = vmatmul.mubr.bf16.gmra.mxu0 %v500
      %v671 = vpop.f32.mrf.mxu0
      %v672 = vadd.f32 0.0, %v671
      %v673 = vpop.f32.mrf.mxu0
      %v674 = vpop.f32.mrf.mxu0
      %v675 = vadd.f32 0.0, %v674
      %v676 = vpop.f32.mrf.mxu0
      %677 = vmatprep.mubr.bf16.mxu0 0
      %678 = vmatmul.mubr.bf16.gmra.mxu0 %v503
      %v679 = vpop.f32.mrf.mxu0
      %v680 = vadd.f32 0.0, %v679
      %v681 = vpop.f32.mrf.mxu0
      %v682 = vpop.f32.mrf.mxu0
      %v683 = vadd.f32 0.0, %v682
      %v684 = vpop.f32.mrf.mxu0
      %685 = vdwg.mxu0
      %v686 = vadd.f32 %v414, %v544
      %v687 = vadd.f32 %v415, %v547
      %v688 = vadd.f32 %v416, %v552
      %v689 = vadd.f32 %v417, %v555
      %v690 = vadd.f32 %v418, %v560
      %v691 = vadd.f32 %v419, %v563
      %v692 = vadd.f32 %v420, %v568
      %v693 = vadd.f32 %v421, %v571
      %v694 = vadd.f32 %v422, %v576
      %v695 = vadd.f32 %v423, %v579
      %v696 = vadd.f32 %v424, %v584
      %v697 = vadd.f32 %v425, %v587
      %v698 = vadd.f32 %v426, %v592
      %v699 = vadd.f32 %v427, %v595
      %v700 = vadd.f32 %v428, %v600
      %v701 = vadd.f32 %v429, %v603
      %v702 = vadd.f32 %v430, %v608
      %v703 = vadd.f32 %v431, %v611
      %v704 = vadd.f32 %v432, %v616
      %v705 = vadd.f32 %v433, %v619
      %v706 = vadd.f32 %v434, %v624
      %v707 = vadd.f32 %v435, %v627
      %v708 = vadd.f32 %v436, %v632
      %v709 = vadd.f32 %v437, %v635
      %v710 = vadd.f32 %v438, %v640
      %v711 = vadd.f32 %v439, %v643
      %v712 = vadd.f32 %v440, %v648
      %v713 = vadd.f32 %v441, %v651
      %v714 = vadd.f32 %v442, %v656
      %v715 = vadd.f32 %v443, %v659
      %v716 = vadd.f32 %v444, %v664
      %v717 = vadd.f32 %v445, %v667
      %v718 = vadd.f32 %v446, %v672
      %v719 = vadd.f32 %v447, %v675
      %v720 = vadd.f32 %v448, %v680
      %v721 = vadd.f32 %v449, %v683
      %722 = vst.msk [vmem:[#allocation3] sm:$0xff] %vm323, %v686
      %723 = vst.msk [vmem:[#allocation3 + $0x8] sm:$0xff] %vm323, %v687
      %724 = vst.msk [vmem:[#allocation3 + $0x10] sm:$0xff] %vm323, %v688
      %725 = vst.msk [vmem:[#allocation3 + $0x18] sm:$0xff] %vm323, %v689
      %726 = vst.msk [vmem:[#allocation3 + $0x20] sm:$0xff] %vm323, %v690
      %727 = vst.msk [vmem:[#allocation3 + $0x28] sm:$0xff] %vm323, %v691
      %728 = vst.msk [vmem:[#allocation3 + $0x30] sm:$0xff] %vm323, %v692
      %729 = vst.msk [vmem:[#allocation3 + $0x38] sm:$0xff] %vm323, %v693
      %730 = vst.msk [vmem:[#allocation3 + $0x40] sm:$0xff] %vm323, %v694
      %731 = vst.msk [vmem:[#allocation3 + $0x48] sm:$0xff] %vm323, %v695
      %732 = vst.msk [vmem:[#allocation3 + $0x50] sm:$0xff] %vm323, %v696
      %733 = vst.msk [vmem:[#allocation3 + $0x58] sm:$0xff] %vm323, %v697
      %734 = vst.msk [vmem:[#allocation3 + $0x60] sm:$0xff] %vm323, %v698
      %735 = vst.msk [vmem:[#allocation3 + $0x68] sm:$0xff] %vm323, %v699
      %736 = vst.msk [vmem:[#allocation3 + $0x70] sm:$0xff] %vm323, %v700
      %737 = vst.msk [vmem:[#allocation3 + $0x78] sm:$0xff] %vm323, %v701
      %738 = vst.msk [vmem:[#allocation3 + $0x80] sm:$0xff] %vm323, %v702
      %739 = vst.msk [vmem:[#allocation3 + $0x88] sm:$0xff] %vm323, %v703
      %740 = vst.msk [vmem:[#allocation3 + $0x90] sm:$0xff] %vm323, %v704
      %741 = vst.msk [vmem:[#allocation3 + $0x98] sm:$0xff] %vm323, %v705
      %742 = vst.msk [vmem:[#allocation3 + $0xa0] sm:$0xff] %vm323, %v706
      %743 = vst.msk [vmem:[#allocation3 + $0xa8] sm:$0xff] %vm323, %v707
      %744 = vst.msk [vmem:[#allocation3 + $0xb0] sm:$0xff] %vm323, %v708
      %745 = vst.msk [vmem:[#allocation3 + $0xb8] sm:$0xff] %vm323, %v709
      %746 = vst.msk [vmem:[#allocation3 + $0xc0] sm:$0xff] %vm323, %v710
      %747 = vst.msk [vmem:[#allocation3 + $0xc8] sm:$0xff] %vm323, %v711
      %748 = vst.msk [vmem:[#allocation3 + $0xd0] sm:$0xff] %vm323, %v712
      %749 = vst.msk [vmem:[#allocation3 + $0xd8] sm:$0xff] %vm323, %v713
      %750 = vst.msk [vmem:[#allocation3 + $0xe0] sm:$0xff] %vm323, %v714
      %751 = vst.msk [vmem:[#allocation3 + $0xe8] sm:$0xff] %vm323, %v715
      %752 = vst.msk [vmem:[#allocation3 + $0xf0] sm:$0xff] %vm323, %v716
      %753 = vst.msk [vmem:[#allocation3 + $0xf8] sm:$0xff] %vm323, %v717
      %754 = vst.msk [vmem:[#allocation3 + $0x100] sm:$0xff] %vm323, %v718
      %755 = vst.msk [vmem:[#allocation3 + $0x108] sm:$0xff] %vm323, %v719
      %756 = vst.msk [vmem:[#allocation3 + $0x110] sm:$0xff] %vm323, %v720
      %757 = vst.msk [vmem:[#allocation3 + $0x118] sm:$0xff] %vm323, %v721
      %v758 = vld [vmem:[#allocation2 + $0x1] sm:$0xff]
      %v759 = vld [vmem:[#allocation2 + $0x9] sm:$0xff]
      %v760 = vld [vmem:[#allocation2 + $0x11] sm:$0xff]
      %v761 = vld [vmem:[#allocation2 + $0x19] sm:$0xff]
      %v762 = vld [vmem:[#allocation2 + $0x21] sm:$0xff]
      %v763 = vld [vmem:[#allocation2 + $0x29] sm:$0xff]
      %v764 = vld [vmem:[#allocation2 + $0x31] sm:$0xff]
      %v765 = vld [vmem:[#allocation2 + $0x39] sm:$0xff]
      %v766 = vld [vmem:[#allocation2 + $0x41] sm:$0xff]
      %v767 = vld [vmem:[#allocation2 + $0x49] sm:$0xff]
      %v768 = vld [vmem:[#allocation2 + $0x51] sm:$0xff]
      %v769 = vld [vmem:[#allocation2 + $0x59] sm:$0xff]
      %v770 = vld [vmem:[#allocation2 + $0x61] sm:$0xff]
      %v771 = vld [vmem:[#allocation2 + $0x69] sm:$0xff]
      %v772 = vld [vmem:[#allocation2 + $0x71] sm:$0xff]
      %v773 = vld [vmem:[#allocation2 + $0x79] sm:$0xff]
      %v774 = vld [vmem:[#allocation2 + $0x81] sm:$0xff]
      %v775 = vld [vmem:[#allocation2 + $0x89] sm:$0xff]
      %v776 = vld [vmem:[#allocation2 + $0x91] sm:$0xff]
      %v777 = vld [vmem:[#allocation2 + $0x99] sm:$0xff]
      %v778 = vld [vmem:[#allocation2 + $0xa1] sm:$0xff]
      %v779 = vld [vmem:[#allocation2 + $0xa9] sm:$0xff]
      %v780 = vld [vmem:[#allocation2 + $0xb1] sm:$0xff]
      %v781 = vld [vmem:[#allocation2 + $0xb9] sm:$0xff]
      %v782 = vld [vmem:[#allocation2 + $0xc1] sm:$0xff]
      %v783 = vld [vmem:[#allocation2 + $0xc9] sm:$0xff]
      %v784 = vld [vmem:[#allocation2 + $0xd1] sm:$0xff]
      %v785 = vld [vmem:[#allocation2 + $0xd9] sm:$0xff]
      %v786 = vld [vmem:[#allocation2 + $0xe1] sm:$0xff]
      %v787 = vld [vmem:[#allocation2 + $0xe9] sm:$0xff]
      %v788 = vld [vmem:[#allocation2 + $0xf1] sm:$0xff]
      %v789 = vld [vmem:[#allocation2 + $0xf9] sm:$0xff]
      %v790 = vld [vmem:[#allocation2 + $0x101] sm:$0xff]
      %v791 = vld [vmem:[#allocation2 + $0x109] sm:$0xff]
      %v792 = vld [vmem:[#allocation2 + $0x111] sm:$0xff]
      %v793 = vld [vmem:[#allocation2 + $0x119] sm:$0xff]
      %v794 = vpack.c.bf16 %v759, %v758
      %v795 = vpack.c.bf16 %v761, %v760
      %v796 = vpack.c.bf16 %v763, %v762
      %v797 = vpack.c.bf16 %v765, %v764
      %v798 = vpack.c.bf16 %v767, %v766
      %v799 = vpack.c.bf16 %v769, %v768
      %v800 = vpack.c.bf16 %v771, %v770
      %v801 = vpack.c.bf16 %v773, %v772
      %v802 = vpack.c.bf16 %v775, %v774
      %v803 = vpack.c.bf16 %v777, %v776
      %v804 = vpack.c.bf16 %v779, %v778
      %v805 = vpack.c.bf16 %v781, %v780
      %v806 = vpack.c.bf16 %v783, %v782
      %v807 = vpack.c.bf16 %v785, %v784
      %v808 = vpack.c.bf16 %v787, %v786
      %v809 = vpack.c.bf16 %v789, %v788
      %v810 = vpack.c.bf16 %v791, %v790
      %v811 = vpack.c.bf16 %v793, %v792
      %v812 = vld [vmem:[#allocation3] sm:$0xff]
      %v813 = vld [vmem:[#allocation3 + $0x8] sm:$0xff]
      %v814 = vld [vmem:[#allocation3 + $0x10] sm:$0xff]
      %v815 = vld [vmem:[#allocation3 + $0x18] sm:$0xff]
      %v816 = vld [vmem:[#allocation3 + $0x20] sm:$0xff]
      %v817 = vld [vmem:[#allocation3 + $0x28] sm:$0xff]
      %v818 = vld [vmem:[#allocation3 + $0x30] sm:$0xff]
      %v819 = vld [vmem:[#allocation3 + $0x38] sm:$0xff]
      %v820 = vld [vmem:[#allocation3 + $0x40] sm:$0xff]
      %v821 = vld [vmem:[#allocation3 + $0x48] sm:$0xff]
      %v822 = vld [vmem:[#allocation3 + $0x50] sm:$0xff]
      %v823 = vld [vmem:[#allocation3 + $0x58] sm:$0xff]
      %v824 = vld [vmem:[#allocation3 + $0x60] sm:$0xff]
      %v825 = vld [vmem:[#allocation3 + $0x68] sm:$0xff]
      %v826 = vld [vmem:[#allocation3 + $0x70] sm:$0xff]
      %v827 = vld [vmem:[#allocation3 + $0x78] sm:$0xff]
      %v828 = vld [vmem:[#allocation3 + $0x80] sm:$0xff]
      %v829 = vld [vmem:[#allocation3 + $0x88] sm:$0xff]
      %v830 = vld [vmem:[#allocation3 + $0x90] sm:$0xff]
      %v831 = vld [vmem:[#allocation3 + $0x98] sm:$0xff]
      %v832 = vld [vmem:[#allocation3 + $0xa0] sm:$0xff]
      %v833 = vld [vmem:[#allocation3 + $0xa8] sm:$0xff]
      %v834 = vld [vmem:[#allocation3 + $0xb0] sm:$0xff]
      %v835 = vld [vmem:[#allocation3 + $0xb8] sm:$0xff]
      %v836 = vld [vmem:[#allocation3 + $0xc0] sm:$0xff]
      %v837 = vld [vmem:[#allocation3 + $0xc8] sm:$0xff]
      %v838 = vld [vmem:[#allocation3 + $0xd0] sm:$0xff]
      %v839 = vld [vmem:[#allocation3 + $0xd8] sm:$0xff]
      %v840 = vld [vmem:[#allocation3 + $0xe0] sm:$0xff]
      %v841 = vld [vmem:[#allocation3 + $0xe8] sm:$0xff]
      %v842 = vld [vmem:[#allocation3 + $0xf0] sm:$0xff]
      %v843 = vld [vmem:[#allocation3 + $0xf8] sm:$0xff]
      %v844 = vld [vmem:[#allocation3 + $0x100] sm:$0xff]
      %v845 = vld [vmem:[#allocation3 + $0x108] sm:$0xff]
      %v846 = vld [vmem:[#allocation3 + $0x110] sm:$0xff]
      %v847 = vld [vmem:[#allocation3 + $0x118] sm:$0xff]
      %s848 = scalar_lea.vmem %s1, 2
      %v849 = vld [vmem:[%s848] sm:$0x3]
      %v851 = vsel %vm281, %v794, 0
      %v854 = vsel %vm281, %v795, 0
      %v857 = vsel %vm281, %v796, 0
      %v860 = vsel %vm281, %v797, 0
      %v863 = vsel %vm281, %v798, 0
      %v866 = vsel %vm281, %v799, 0
      %v869 = vsel %vm281, %v800, 0
      %v872 = vsel %vm281, %v801, 0
      %v875 = vsel %vm281, %v802, 0
      %v878 = vsel %vm281, %v803, 0
      %v881 = vsel %vm281, %v804, 0
      %v884 = vsel %vm281, %v805, 0
      %v887 = vsel %vm281, %v806, 0
      %v890 = vsel %vm281, %v807, 0
      %v893 = vsel %vm281, %v808, 0
      %v896 = vsel %vm281, %v809, 0
      %v899 = vsel %vm281, %v810, 0
      %v902 = vsel %vm281, %v811, 0
      %v905 = vsel %vm505, %v849, 0
      %907 = vmatprep.subr.bf16.mxu0 0
      %908 = vmatpush1.bf16.msra.mxu0 0
      %909 = vmatprep.subr.bf16.mxu0 0
      %910 = vmatpush1.bf16.msra.mxu0 0
      %911 = vmatprep.subr.bf16.mxu0 0
      %912 = vmatpush1.bf16.msra.mxu0 0
      %913 = vmatprep.subr.bf16.mxu0 0
      %914 = vmatpush1.bf16.msra.mxu0 0
      %915 = vmatprep.subr.bf16.mxu0 0
      %916 = vmatpush1.bf16.msra.mxu0 0
      %917 = vmatprep.subr.bf16.mxu0 0
      %918 = vmatpush1.bf16.msra.mxu0 0
      %919 = vmatprep.subr.bf16.mxu0 0
      %920 = vmatpush1.bf16.msra.mxu0 0
      %921 = vmatprep.subr.bf16.mxu0 0
      %922 = vmatpush1.bf16.msra.mxu0 %v905
      %923 = vmatprep.subr.bf16.mxu0 0
      %924 = vmatpush2.bf16.msra.mxu0 0
      %925 = vmatprep.subr.bf16.mxu0 0
      %926 = vmatpush2.bf16.msra.mxu0 0
      %927 = vmatprep.subr.bf16.mxu0 0
      %928 = vmatpush2.bf16.msra.mxu0 0
      %929 = vmatprep.subr.bf16.mxu0 0
      %930 = vmatpush2.bf16.msra.mxu0 0
      %931 = vmatprep.subr.bf16.mxu0 0
      %932 = vmatpush2.bf16.msra.mxu0 0
      %933 = vmatprep.subr.bf16.mxu0 0
      %934 = vmatpush2.bf16.msra.mxu0 0
      %935 = vmatprep.subr.bf16.mxu0 0
      %936 = vmatpush2.bf16.msra.mxu0 0
      %937 = vmatprep.subr.bf16.mxu0 0
      %938 = vmatpush2.bf16.msra.mxu0 0
      %939 = vmatprep.mubr.bf16.mxu0 0
      %940 = vmatmul.mubr.bf16.gmra.mxu0 %v851
      %v941 = vpop.f32.mrf.mxu0
      %v942 = vadd.f32 0.0, %v941
      %v943 = vpop.f32.mrf.mxu0
      %v944 = vpop.f32.mrf.mxu0
      %v945 = vadd.f32 0.0, %v944
      %v946 = vpop.f32.mrf.mxu0
      %947 = vmatprep.mubr.bf16.mxu0 0
      %948 = vmatmul.mubr.bf16.gmra.mxu0 %v854
      %v949 = vpop.f32.mrf.mxu0
      %v950 = vadd.f32 0.0, %v949
      %v951 = vpop.f32.mrf.mxu0
      %v952 = vpop.f32.mrf.mxu0
      %v953 = vadd.f32 0.0, %v952
      %v954 = vpop.f32.mrf.mxu0
      %955 = vmatprep.mubr.bf16.mxu0 0
      %956 = vmatmul.mubr.bf16.gmra.mxu0 %v857
      %v957 = vpop.f32.mrf.mxu0
      %v958 = vadd.f32 0.0, %v957
      %v959 = vpop.f32.mrf.mxu0
      %v960 = vpop.f32.mrf.mxu0
      %v961 = vadd.f32 0.0, %v960
      %v962 = vpop.f32.mrf.mxu0
      %963 = vmatprep.mubr.bf16.mxu0 0
      %964 = vmatmul.mubr.bf16.gmra.mxu0 %v860
      %v965 = vpop.f32.mrf.mxu0
      %v966 = vadd.f32 0.0, %v965
      %v967 = vpop.f32.mrf.mxu0
      %v968 = vpop.f32.mrf.mxu0
      %v969 = vadd.f32 0.0, %v968
      %v970 = vpop.f32.mrf.mxu0
      %971 = vmatprep.mubr.bf16.mxu0 0
      %972 = vmatmul.mubr.bf16.gmra.mxu0 %v863
      %v973 = vpop.f32.mrf.mxu0
      %v974 = vadd.f32 0.0, %v973
      %v975 = vpop.f32.mrf.mxu0
      %v976 = vpop.f32.mrf.mxu0
      %v977 = vadd.f32 0.0, %v976
      %v978 = vpop.f32.mrf.mxu0
      %979 = vmatprep.mubr.bf16.mxu0 0
      %980 = vmatmul.mubr.bf16.gmra.mxu0 %v866
      %v981 = vpop.f32.mrf.mxu0
      %v982 = vadd.f32 0.0, %v981
      %v983 = vpop.f32.mrf.mxu0
      %v984 = vpop.f32.mrf.mxu0
      %v985 = vadd.f32 0.0, %v984
      %v986 = vpop.f32.mrf.mxu0
      %987 = vmatprep.mubr.bf16.mxu0 0
      %988 = vmatmul.mubr.bf16.gmra.mxu0 %v869
      %v989 = vpop.f32.mrf.mxu0
      %v990 = vadd.f32 0.0, %v989
      %v991 = vpop.f32.mrf.mxu0
      %v992 = vpop.f32.mrf.mxu0
      %v993 = vadd.f32 0.0, %v992
      %v994 = vpop.f32.mrf.mxu0
      %995 = vmatprep.mubr.bf16.mxu0 0
      %996 = vmatmul.mubr.bf16.gmra.mxu0 %v872
      %v997 = vpop.f32.mrf.mxu0
      %v998 = vadd.f32 0.0, %v997
      %v999 = vpop.f32.mrf.mxu0
      %v1000 = vpop.f32.mrf.mxu0
      %v1001 = vadd.f32 0.0, %v1000
      %v1002 = vpop.f32.mrf.mxu0
      %1003 = vmatprep.mubr.bf16.mxu0 0
      %1004 = vmatmul.mubr.bf16.gmra.mxu0 %v875
      %v1005 = vpop.f32.mrf.mxu0
      %v1006 = vadd.f32 0.0, %v1005
      %v1007 = vpop.f32.mrf.mxu0
      %v1008 = vpop.f32.mrf.mxu0
      %v1009 = vadd.f32 0.0, %v1008
      %v1010 = vpop.f32.mrf.mxu0
      %1011 = vmatprep.mubr.bf16.mxu0 0
      %1012 = vmatmul.mubr.bf16.gmra.mxu0 %v878
      %v1013 = vpop.f32.mrf.mxu0
      %v1014 = vadd.f32 0.0, %v1013
      %v1015 = vpop.f32.mrf.mxu0
      %v1016 = vpop.f32.mrf.mxu0
      %v1017 = vadd.f32 0.0, %v1016
      %v1018 = vpop.f32.mrf.mxu0
      %1019 = vmatprep.mubr.bf16.mxu0 0
      %1020 = vmatmul.mubr.bf16.gmra.mxu0 %v881
      %v1021 = vpop.f32.mrf.mxu0
      %v1022 = vadd.f32 0.0, %v1021
      %v1023 = vpop.f32.mrf.mxu0
      %v1024 = vpop.f32.mrf.mxu0
      %v1025 = vadd.f32 0.0, %v1024
      %v1026 = vpop.f32.mrf.mxu0
      %1027 = vmatprep.mubr.bf16.mxu0 0
      %1028 = vmatmul.mubr.bf16.gmra.mxu0 %v884
      %v1029 = vpop.f32.mrf.mxu0
      %v1030 = vadd.f32 0.0, %v1029
      %v1031 = vpop.f32.mrf.mxu0
      %v1032 = vpop.f32.mrf.mxu0
      %v1033 = vadd.f32 0.0, %v1032
      %v1034 = vpop.f32.mrf.mxu0
      %1035 = vmatprep.mubr.bf16.mxu0 0
      %1036 = vmatmul.mubr.bf16.gmra.mxu0 %v887
      %v1037 = vpop.f32.mrf.mxu0
      %v1038 = vadd.f32 0.0, %v1037
      %v1039 = vpop.f32.mrf.mxu0
      %v1040 = vpop.f32.mrf.mxu0
      %v1041 = vadd.f32 0.0, %v1040
      %v1042 = vpop.f32.mrf.mxu0
      %1043 = vmatprep.mubr.bf16.mxu0 0
      %1044 = vmatmul.mubr.bf16.gmra.mxu0 %v890
      %v1045 = vpop.f32.mrf.mxu0
      %v1046 = vadd.f32 0.0, %v1045
      %v1047 = vpop.f32.mrf.mxu0
      %v1048 = vpop.f32.mrf.mxu0
      %v1049 = vadd.f32 0.0, %v1048
      %v1050 = vpop.f32.mrf.mxu0
      %1051 = vmatprep.mubr.bf16.mxu0 0
      %1052 = vmatmul.mubr.bf16.gmra.mxu0 %v893
      %v1053 = vpop.f32.mrf.mxu0
      %v1054 = vadd.f32 0.0, %v1053
      %v1055 = vpop.f32.mrf.mxu0
      %v1056 = vpop.f32.mrf.mxu0
      %v1057 = vadd.f32 0.0, %v1056
      %v1058 = vpop.f32.mrf.mxu0
      %1059 = vmatprep.mubr.bf16.mxu0 0
      %1060 = vmatmul.mubr.bf16.gmra.mxu0 %v896
      %v1061 = vpop.f32.mrf.mxu0
      %v1062 = vadd.f32 0.0, %v1061
      %v1063 = vpop.f32.mrf.mxu0
      %v1064 = vpop.f32.mrf.mxu0
      %v1065 = vadd.f32 0.0, %v1064
      %v1066 = vpop.f32.mrf.mxu0
      %1067 = vmatprep.mubr.bf16.mxu0 0
      %1068 = vmatmul.mubr.bf16.gmra.mxu0 %v899
      %v1069 = vpop.f32.mrf.mxu0
      %v1070 = vadd.f32 0.0, %v1069
      %v1071 = vpop.f32.mrf.mxu0
      %v1072 = vpop.f32.mrf.mxu0
      %v1073 = vadd.f32 0.0, %v1072
      %v1074 = vpop.f32.mrf.mxu0
      %1075 = vmatprep.mubr.bf16.mxu0 0
      %1076 = vmatmul.mubr.bf16.gmra.mxu0 %v902
      %v1077 = vpop.f32.mrf.mxu0
      %v1078 = vadd.f32 0.0, %v1077
      %v1079 = vpop.f32.mrf.mxu0
      %v1080 = vpop.f32.mrf.mxu0
      %v1081 = vadd.f32 0.0, %v1080
      %v1082 = vpop.f32.mrf.mxu0
      %1083 = vdwg.mxu0
      %v1084 = vadd.f32 %v812, %v942
      %v1085 = vadd.f32 %v813, %v945
      %v1086 = vadd.f32 %v814, %v950
      %v1087 = vadd.f32 %v815, %v953
      %v1088 = vadd.f32 %v816, %v958
      %v1089 = vadd.f32 %v817, %v961
      %v1090 = vadd.f32 %v818, %v966
      %v1091 = vadd.f32 %v819, %v969
      %v1092 = vadd.f32 %v820, %v974
      %v1093 = vadd.f32 %v821, %v977
      %v1094 = vadd.f32 %v822, %v982
      %v1095 = vadd.f32 %v823, %v985
      %v1096 = vadd.f32 %v824, %v990
      %v1097 = vadd.f32 %v825, %v993
      %v1098 = vadd.f32 %v826, %v998
      %v1099 = vadd.f32 %v827, %v1001
      %v1100 = vadd.f32 %v828, %v1006
      %v1101 = vadd.f32 %v829, %v1009
      %v1102 = vadd.f32 %v830, %v1014
      %v1103 = vadd.f32 %v831, %v1017
      %v1104 = vadd.f32 %v832, %v1022
      %v1105 = vadd.f32 %v833, %v1025
      %v1106 = vadd.f32 %v834, %v1030
      %v1107 = vadd.f32 %v835, %v1033
      %v1108 = vadd.f32 %v836, %v1038
      %v1109 = vadd.f32 %v837, %v1041
      %v1110 = vadd.f32 %v838, %v1046
      %v1111 = vadd.f32 %v839, %v1049
      %v1112 = vadd.f32 %v840, %v1054
      %v1113 = vadd.f32 %v841, %v1057
      %v1114 = vadd.f32 %v842, %v1062
      %v1115 = vadd.f32 %v843, %v1065
      %v1116 = vadd.f32 %v844, %v1070
      %v1117 = vadd.f32 %v845, %v1073
      %v1118 = vadd.f32 %v846, %v1078
      %v1119 = vadd.f32 %v847, %v1081
      %1120 = vst.msk [vmem:[#allocation3] sm:$0xff] %vm323, %v1084
      %1121 = vst.msk [vmem:[#allocation3 + $0x8] sm:$0xff] %vm323, %v1085
      %1122 = vst.msk [vmem:[#allocation3 + $0x10] sm:$0xff] %vm323, %v1086
      %1123 = vst.msk [vmem:[#allocation3 + $0x18] sm:$0xff] %vm323, %v1087
      %1124 = vst.msk [vmem:[#allocation3 + $0x20] sm:$0xff] %vm323, %v1088
      %1125 = vst.msk [vmem:[#allocation3 + $0x28] sm:$0xff] %vm323, %v1089
      %1126 = vst.msk [vmem:[#allocation3 + $0x30] sm:$0xff] %vm323, %v1090
      %1127 = vst.msk [vmem:[#allocation3 + $0x38] sm:$0xff] %vm323, %v1091
      %1128 = vst.msk [vmem:[#allocation3 + $0x40] sm:$0xff] %vm323, %v1092
      %1129 = vst.msk [vmem:[#allocation3 + $0x48] sm:$0xff] %vm323, %v1093
      %1130 = vst.msk [vmem:[#allocation3 + $0x50] sm:$0xff] %vm323, %v1094
      %1131 = vst.msk [vmem:[#allocation3 + $0x58] sm:$0xff] %vm323, %v1095
      %1132 = vst.msk [vmem:[#allocation3 + $0x60] sm:$0xff] %vm323, %v1096
      %1133 = vst.msk [vmem:[#allocation3 + $0x68] sm:$0xff] %vm323, %v1097
      %1134 = vst.msk [vmem:[#allocation3 + $0x70] sm:$0xff] %vm323, %v1098
      %1135 = vst.msk [vmem:[#allocation3 + $0x78] sm:$0xff] %vm323, %v1099
      %1136 = vst.msk [vmem:[#allocation3 + $0x80] sm:$0xff] %vm323, %v1100
      %1137 = vst.msk [vmem:[#allocation3 + $0x88] sm:$0xff] %vm323, %v1101
      %1138 = vst.msk [vmem:[#allocation3 + $0x90] sm:$0xff] %vm323, %v1102
      %1139 = vst.msk [vmem:[#allocation3 + $0x98] sm:$0xff] %vm323, %v1103
      %1140 = vst.msk [vmem:[#allocation3 + $0xa0] sm:$0xff] %vm323, %v1104
      %1141 = vst.msk [vmem:[#allocation3 + $0xa8] sm:$0xff] %vm323, %v1105
      %1142 = vst.msk [vmem:[#allocation3 + $0xb0] sm:$0xff] %vm323, %v1106
      %1143 = vst.msk [vmem:[#allocation3 + $0xb8] sm:$0xff] %vm323, %v1107
      %1144 = vst.msk [vmem:[#allocation3 + $0xc0] sm:$0xff] %vm323, %v1108
      %1145 = vst.msk [vmem:[#allocation3 + $0xc8] sm:$0xff] %vm323, %v1109
      %1146 = vst.msk [vmem:[#allocation3 + $0xd0] sm:$0xff] %vm323, %v1110
      %1147 = vst.msk [vmem:[#allocation3 + $0xd8] sm:$0xff] %vm323, %v1111
      %1148 = vst.msk [vmem:[#allocation3 + $0xe0] sm:$0xff] %vm323, %v1112
      %1149 = vst.msk [vmem:[#allocation3 + $0xe8] sm:$0xff] %vm323, %v1113
      %1150 = vst.msk [vmem:[#allocation3 + $0xf0] sm:$0xff] %vm323, %v1114
      %1151 = vst.msk [vmem:[#allocation3 + $0xf8] sm:$0xff] %vm323, %v1115
      %1152 = vst.msk [vmem:[#allocation3 + $0x100] sm:$0xff] %vm323, %v1116
      %1153 = vst.msk [vmem:[#allocation3 + $0x108] sm:$0xff] %vm323, %v1117
      %1154 = vst.msk [vmem:[#allocation3 + $0x110] sm:$0xff] %vm323, %v1118
      %1155 = vst.msk [vmem:[#allocation3 + $0x118] sm:$0xff] %vm323, %v1119
      %v1156 = vld [vmem:[#allocation2 + $0x2] sm:$0xff]
      %v1157 = vld [vmem:[#allocation2 + $0xa] sm:$0xff]
      %v1158 = vld [vmem:[#allocation2 + $0x12] sm:$0xff]
      %v1159 = vld [vmem:[#allocation2 + $0x1a] sm:$0xff]
      %v1160 = vld [vmem:[#allocation2 + $0x22] sm:$0xff]
      %v1161 = vld [vmem:[#allocation2 + $0x2a] sm:$0xff]
      %v1162 = vld [vmem:[#allocation2 + $0x32] sm:$0xff]
      %v1163 = vld [vmem:[#allocation2 + $0x3a] sm:$0xff]
      %v1164 = vld [vmem:[#allocation2 + $0x42] sm:$0xff]
      %v1165 = vld [vmem:[#allocation2 + $0x4a] sm:$0xff]
      %v1166 = vld [vmem:[#allocation2 + $0x52] sm:$0xff]
      %v1167 = vld [vmem:[#allocation2 + $0x5a] sm:$0xff]
      %v1168 = vld [vmem:[#allocation2 + $0x62] sm:$0xff]
      %v1169 = vld [vmem:[#allocation2 + $0x6a] sm:$0xff]
      %v1170 = vld [vmem:[#allocation2 + $0x72] sm:$0xff]
      %v1171 = vld [vmem:[#allocation2 + $0x7a] sm:$0xff]
      %v1172 = vld [vmem:[#allocation2 + $0x82] sm:$0xff]
      %v1173 = vld [vmem:[#allocation2 + $0x8a] sm:$0xff]
      %v1174 = vld [vmem:[#allocation2 + $0x92] sm:$0xff]
      %v1175 = vld [vmem:[#allocation2 + $0x9a] sm:$0xff]
      %v1176 = vld [vmem:[#allocation2 + $0xa2] sm:$0xff]
      %v1177 = vld [vmem:[#allocation2 + $0xaa] sm:$0xff]
      %v1178 = vld [vmem:[#allocation2 + $0xb2] sm:$0xff]
      %v1179 = vld [vmem:[#allocation2 + $0xba] sm:$0xff]
      %v1180 = vld [vmem:[#allocation2 + $0xc2] sm:$0xff]
      %v1181 = vld [vmem:[#allocation2 + $0xca] sm:$0xff]
      %v1182 = vld [vmem:[#allocation2 + $0xd2] sm:$0xff]
      %v1183 = vld [vmem:[#allocation2 + $0xda] sm:$0xff]
      %v1184 = vld [vmem:[#allocation2 + $0xe2] sm:$0xff]
      %v1185 = vld [vmem:[#allocation2 + $0xea] sm:$0xff]
      %v1186 = vld [vmem:[#allocation2 + $0xf2] sm:$0xff]
      %v1187 = vld [vmem:[#allocation2 + $0xfa] sm:$0xff]
      %v1188 = vld [vmem:[#allocation2 + $0x102] sm:$0xff]
      %v1189 = vld [vmem:[#allocation2 + $0x10a] sm:$0xff]
      %v1190 = vld [vmem:[#allocation2 + $0x112] sm:$0xff]
      %v1191 = vld [vmem:[#allocation2 + $0x11a] sm:$0xff]
      %v1192 = vpack.c.bf16 %v1157, %v1156
      %v1193 = vpack.c.bf16 %v1159, %v1158
      %v1194 = vpack.c.bf16 %v1161, %v1160
      %v1195 = vpack.c.bf16 %v1163, %v1162
      %v1196 = vpack.c.bf16 %v1165, %v1164
      %v1197 = vpack.c.bf16 %v1167, %v1166
      %v1198 = vpack.c.bf16 %v1169, %v1168
      %v1199 = vpack.c.bf16 %v1171, %v1170
      %v1200 = vpack.c.bf16 %v1173, %v1172
      %v1201 = vpack.c.bf16 %v1175, %v1174
      %v1202 = vpack.c.bf16 %v1177, %v1176
      %v1203 = vpack.c.bf16 %v1179, %v1178
      %v1204 = vpack.c.bf16 %v1181, %v1180
      %v1205 = vpack.c.bf16 %v1183, %v1182
      %v1206 = vpack.c.bf16 %v1185, %v1184
      %v1207 = vpack.c.bf16 %v1187, %v1186
      %v1208 = vpack.c.bf16 %v1189, %v1188
      %v1209 = vpack.c.bf16 %v1191, %v1190
      %v1210 = vld [vmem:[#allocation3] sm:$0xff]
      %v1211 = vld [vmem:[#allocation3 + $0x8] sm:$0xff]
      %v1212 = vld [vmem:[#allocation3 + $0x10] sm:$0xff]
      %v1213 = vld [vmem:[#allocation3 + $0x18] sm:$0xff]
      %v1214 = vld [vmem:[#allocation3 + $0x20] sm:$0xff]
      %v1215 = vld [vmem:[#allocation3 + $0x28] sm:$0xff]
      %v1216 = vld [vmem:[#allocation3 + $0x30] sm:$0xff]
      %v1217 = vld [vmem:[#allocation3 + $0x38] sm:$0xff]
      %v1218 = vld [vmem:[#allocation3 + $0x40] sm:$0xff]
      %v1219 = vld [vmem:[#allocation3 + $0x48] sm:$0xff]
      %v1220 = vld [vmem:[#allocation3 + $0x50] sm:$0xff]
      %v1221 = vld [vmem:[#allocation3 + $0x58] sm:$0xff]
      %v1222 = vld [vmem:[#allocation3 + $0x60] sm:$0xff]
      %v1223 = vld [vmem:[#allocation3 + $0x68] sm:$0xff]
      %v1224 = vld [vmem:[#allocation3 + $0x70] sm:$0xff]
      %v1225 = vld [vmem:[#allocation3 + $0x78] sm:$0xff]
      %v1226 = vld [vmem:[#allocation3 + $0x80] sm:$0xff]
      %v1227 = vld [vmem:[#allocation3 + $0x88] sm:$0xff]
      %v1228 = vld [vmem:[#allocation3 + $0x90] sm:$0xff]
      %v1229 = vld [vmem:[#allocation3 + $0x98] sm:$0xff]
      %v1230 = vld [vmem:[#allocation3 + $0xa0] sm:$0xff]
      %v1231 = vld [vmem:[#allocation3 + $0xa8] sm:$0xff]
      %v1232 = vld [vmem:[#allocation3 + $0xb0] sm:$0xff]
      %v1233 = vld [vmem:[#allocation3 + $0xb8] sm:$0xff]
      %v1234 = vld [vmem:[#allocation3 + $0xc0] sm:$0xff]
      %v1235 = vld [vmem:[#allocation3 + $0xc8] sm:$0xff]
      %v1236 = vld [vmem:[#allocation3 + $0xd0] sm:$0xff]
      %v1237 = vld [vmem:[#allocation3 + $0xd8] sm:$0xff]
      %v1238 = vld [vmem:[#allocation3 + $0xe0] sm:$0xff]
      %v1239 = vld [vmem:[#allocation3 + $0xe8] sm:$0xff]
      %v1240 = vld [vmem:[#allocation3 + $0xf0] sm:$0xff]
      %v1241 = vld [vmem:[#allocation3 + $0xf8] sm:$0xff]
      %v1242 = vld [vmem:[#allocation3 + $0x100] sm:$0xff]
      %v1243 = vld [vmem:[#allocation3 + $0x108] sm:$0xff]
      %v1244 = vld [vmem:[#allocation3 + $0x110] sm:$0xff]
      %v1245 = vld [vmem:[#allocation3 + $0x118] sm:$0xff]
      %s1246 = scalar_lea.vmem %s1, 4
      %v1247 = vld [vmem:[%s1246] sm:$0x3]
      %v1249 = vsel %vm281, %v1192, 0
      %v1252 = vsel %vm281, %v1193, 0
      %v1255 = vsel %vm281, %v1194, 0
      %v1258 = vsel %vm281, %v1195, 0
      %v1261 = vsel %vm281, %v1196, 0
      %v1264 = vsel %vm281, %v1197, 0
      %v1267 = vsel %vm281, %v1198, 0
      %v1270 = vsel %vm281, %v1199, 0
      %v1273 = vsel %vm281, %v1200, 0
      %v1276 = vsel %vm281, %v1201, 0
      %v1279 = vsel %vm281, %v1202, 0
      %v1282 = vsel %vm281, %v1203, 0
      %v1285 = vsel %vm281, %v1204, 0
      %v1288 = vsel %vm281, %v1205, 0
      %v1291 = vsel %vm281, %v1206, 0
      %v1294 = vsel %vm281, %v1207, 0
      %v1297 = vsel %vm281, %v1208, 0
      %v1300 = vsel %vm281, %v1209, 0
      %v1303 = vsel %vm505, %v1247, 0
      %1305 = vmatprep.subr.bf16.mxu0 0
      %1306 = vmatpush1.bf16.msra.mxu0 0
      %1307 = vmatprep.subr.bf16.mxu0 0
      %1308 = vmatpush1.bf16.msra.mxu0 0
      %1309 = vmatprep.subr.bf16.mxu0 0
      %1310 = vmatpush1.bf16.msra.mxu0 0
      %1311 = vmatprep.subr.bf16.mxu0 0
      %1312 = vmatpush1.bf16.msra.mxu0 0
      %1313 = vmatprep.subr.bf16.mxu0 0
      %1314 = vmatpush1.bf16.msra.mxu0 0
      %1315 = vmatprep.subr.bf16.mxu0 0
      %1316 = vmatpush1.bf16.msra.mxu0 0
      %1317 = vmatprep.subr.bf16.mxu0 0
      %1318 = vmatpush1.bf16.msra.mxu0 0
      %1319 = vmatprep.subr.bf16.mxu0 0
      %1320 = vmatpush1.bf16.msra.mxu0 %v1303
      %1321 = vmatprep.subr.bf16.mxu0 0
      %1322 = vmatpush2.bf16.msra.mxu0 0
      %1323 = vmatprep.subr.bf16.mxu0 0
      %1324 = vmatpush2.bf16.msra.mxu0 0
      %1325 = vmatprep.subr.bf16.mxu0 0
      %1326 = vmatpush2.bf16.msra.mxu0 0
      %1327 = vmatprep.subr.bf16.mxu0 0
      %1328 = vmatpush2.bf16.msra.mxu0 0
      %1329 = vmatprep.subr.bf16.mxu0 0
      %1330 = vmatpush2.bf16.msra.mxu0 0
      %1331 = vmatprep.subr.bf16.mxu0 0
      %1332 = vmatpush2.bf16.msra.mxu0 0
      %1333 = vmatprep.subr.bf16.mxu0 0
      %1334 = vmatpush2.bf16.msra.mxu0 0
      %1335 = vmatprep.subr.bf16.mxu0 0
      %1336 = vmatpush2.bf16.msra.mxu0 0
      %1337 = vmatprep.mubr.bf16.mxu0 0
      %1338 = vmatmul.mubr.bf16.gmra.mxu0 %v1249
      %v1339 = vpop.f32.mrf.mxu0
      %v1340 = vadd.f32 0.0, %v1339
      %v1341 = vpop.f32.mrf.mxu0
      %v1342 = vpop.f32.mrf.mxu0
      %v1343 = vadd.f32 0.0, %v1342
      %v1344 = vpop.f32.mrf.mxu0
      %1345 = vmatprep.mubr.bf16.mxu0 0
      %1346 = vmatmul.mubr.bf16.gmra.mxu0 %v1252
      %v1347 = vpop.f32.mrf.mxu0
      %v1348 = vadd.f32 0.0, %v1347
      %v1349 = vpop.f32.mrf.mxu0
      %v1350 = vpop.f32.mrf.mxu0
      %v1351 = vadd.f32 0.0, %v1350
      %v1352 = vpop.f32.mrf.mxu0
      %1353 = vmatprep.mubr.bf16.mxu0 0
      %1354 = vmatmul.mubr.bf16.gmra.mxu0 %v1255
      %v1355 = vpop.f32.mrf.mxu0
      %v1356 = vadd.f32 0.0, %v1355
      %v1357 = vpop.f32.mrf.mxu0
      %v1358 = vpop.f32.mrf.mxu0
      %v1359 = vadd.f32 0.0, %v1358
      %v1360 = vpop.f32.mrf.mxu0
      %1361 = vmatprep.mubr.bf16.mxu0 0
      %1362 = vmatmul.mubr.bf16.gmra.mxu0 %v1258
      %v1363 = vpop.f32.mrf.mxu0
      %v1364 = vadd.f32 0.0, %v1363
      %v1365 = vpop.f32.mrf.mxu0
      %v1366 = vpop.f32.mrf.mxu0
      %v1367 = vadd.f32 0.0, %v1366
      %v1368 = vpop.f32.mrf.mxu0
      %1369 = vmatprep.mubr.bf16.mxu0 0
      %1370 = vmatmul.mubr.bf16.gmra.mxu0 %v1261
      %v1371 = vpop.f32.mrf.mxu0
      %v1372 = vadd.f32 0.0, %v1371
      %v1373 = vpop.f32.mrf.mxu0
      %v1374 = vpop.f32.mrf.mxu0
      %v1375 = vadd.f32 0.0, %v1374
      %v1376 = vpop.f32.mrf.mxu0
      %1377 = vmatprep.mubr.bf16.mxu0 0
      %1378 = vmatmul.mubr.bf16.gmra.mxu0 %v1264
      %v1379 = vpop.f32.mrf.mxu0
      %v1380 = vadd.f32 0.0, %v1379
      %v1381 = vpop.f32.mrf.mxu0
      %v1382 = vpop.f32.mrf.mxu0
      %v1383 = vadd.f32 0.0, %v1382
      %v1384 = vpop.f32.mrf.mxu0
      %1385 = vmatprep.mubr.bf16.mxu0 0
      %1386 = vmatmul.mubr.bf16.gmra.mxu0 %v1267
      %v1387 = vpop.f32.mrf.mxu0
      %v1388 = vadd.f32 0.0, %v1387
      %v1389 = vpop.f32.mrf.mxu0
      %v1390 = vpop.f32.mrf.mxu0
      %v1391 = vadd.f32 0.0, %v1390
      %v1392 = vpop.f32.mrf.mxu0
      %1393 = vmatprep.mubr.bf16.mxu0 0
      %1394 = vmatmul.mubr.bf16.gmra.mxu0 %v1270
      %v1395 = vpop.f32.mrf.mxu0
      %v1396 = vadd.f32 0.0, %v1395
      %v1397 = vpop.f32.mrf.mxu0
      %v1398 = vpop.f32.mrf.mxu0
      %v1399 = vadd.f32 0.0, %v1398
      %v1400 = vpop.f32.mrf.mxu0
      %1401 = vmatprep.mubr.bf16.mxu0 0
      %1402 = vmatmul.mubr.bf16.gmra.mxu0 %v1273
      %v1403 = vpop.f32.mrf.mxu0
      %v1404 = vadd.f32 0.0, %v1403
      %v1405 = vpop.f32.mrf.mxu0
      %v1406 = vpop.f32.mrf.mxu0
      %v1407 = vadd.f32 0.0, %v1406
      %v1408 = vpop.f32.mrf.mxu0
      %1409 = vmatprep.mubr.bf16.mxu0 0
      %1410 = vmatmul.mubr.bf16.gmra.mxu0 %v1276
      %v1411 = vpop.f32.mrf.mxu0
      %v1412 = vadd.f32 0.0, %v1411
      %v1413 = vpop.f32.mrf.mxu0
      %v1414 = vpop.f32.mrf.mxu0
      %v1415 = vadd.f32 0.0, %v1414
      %v1416 = vpop.f32.mrf.mxu0
      %1417 = vmatprep.mubr.bf16.mxu0 0
      %1418 = vmatmul.mubr.bf16.gmra.mxu0 %v1279
      %v1419 = vpop.f32.mrf.mxu0
      %v1420 = vadd.f32 0.0, %v1419
      %v1421 = vpop.f32.mrf.mxu0
      %v1422 = vpop.f32.mrf.mxu0
      %v1423 = vadd.f32 0.0, %v1422
      %v1424 = vpop.f32.mrf.mxu0
      %1425 = vmatprep.mubr.bf16.mxu0 0
      %1426 = vmatmul.mubr.bf16.gmra.mxu0 %v1282
      %v1427 = vpop.f32.mrf.mxu0
      %v1428 = vadd.f32 0.0, %v1427
      %v1429 = vpop.f32.mrf.mxu0
      %v1430 = vpop.f32.mrf.mxu0
      %v1431 = vadd.f32 0.0, %v1430
      %v1432 = vpop.f32.mrf.mxu0
      %1433 = vmatprep.mubr.bf16.mxu0 0
      %1434 = vmatmul.mubr.bf16.gmra.mxu0 %v1285
      %v1435 = vpop.f32.mrf.mxu0
      %v1436 = vadd.f32 0.0, %v1435
      %v1437 = vpop.f32.mrf.mxu0
      %v1438 = vpop.f32.mrf.mxu0
      %v1439 = vadd.f32 0.0, %v1438
      %v1440 = vpop.f32.mrf.mxu0
      %1441 = vmatprep.mubr.bf16.mxu0 0
      %1442 = vmatmul.mubr.bf16.gmra.mxu0 %v1288
      %v1443 = vpop.f32.mrf.mxu0
      %v1444 = vadd.f32 0.0, %v1443
      %v1445 = vpop.f32.mrf.mxu0
      %v1446 = vpop.f32.mrf.mxu0
      %v1447 = vadd.f32 0.0, %v1446
      %v1448 = vpop.f32.mrf.mxu0
      %1449 = vmatprep.mubr.bf16.mxu0 0
      %1450 = vmatmul.mubr.bf16.gmra.mxu0 %v1291
      %v1451 = vpop.f32.mrf.mxu0
      %v1452 = vadd.f32 0.0, %v1451
      %v1453 = vpop.f32.mrf.mxu0
      %v1454 = vpop.f32.mrf.mxu0
      %v1455 = vadd.f32 0.0, %v1454
      %v1456 = vpop.f32.mrf.mxu0
      %1457 = vmatprep.mubr.bf16.mxu0 0
      %1458 = vmatmul.mubr.bf16.gmra.mxu0 %v1294
      %v1459 = vpop.f32.mrf.mxu0
      %v1460 = vadd.f32 0.0, %v1459
      %v1461 = vpop.f32.mrf.mxu0
      %v1462 = vpop.f32.mrf.mxu0
      %v1463 = vadd.f32 0.0, %v1462
      %v1464 = vpop.f32.mrf.mxu0
      %1465 = vmatprep.mubr.bf16.mxu0 0
      %1466 = vmatmul.mubr.bf16.gmra.mxu0 %v1297
      %v1467 = vpop.f32.mrf.mxu0
      %v1468 = vadd.f32 0.0, %v1467
      %v1469 = vpop.f32.mrf.mxu0
      %v1470 = vpop.f32.mrf.mxu0
      %v1471 = vadd.f32 0.0, %v1470
      %v1472 = vpop.f32.mrf.mxu0
      %1473 = vmatprep.mubr.bf16.mxu0 0
      %1474 = vmatmul.mubr.bf16.gmra.mxu0 %v1300
      %v1475 = vpop.f32.mrf.mxu0
      %v1476 = vadd.f32 0.0, %v1475
      %v1477 = vpop.f32.mrf.mxu0
      %v1478 = vpop.f32.mrf.mxu0
      %v1479 = vadd.f32 0.0, %v1478
      %v1480 = vpop.f32.mrf.mxu0
      %1481 = vdwg.mxu0
      %v1482 = vadd.f32 %v1210, %v1340
      %v1483 = vadd.f32 %v1211, %v1343
      %v1484 = vadd.f32 %v1212, %v1348
      %v1485 = vadd.f32 %v1213, %v1351
      %v1486 = vadd.f32 %v1214, %v1356
      %v1487 = vadd.f32 %v1215, %v1359
      %v1488 = vadd.f32 %v1216, %v1364
      %v1489 = vadd.f32 %v1217, %v1367
      %v1490 = vadd.f32 %v1218, %v1372
      %v1491 = vadd.f32 %v1219, %v1375
      %v1492 = vadd.f32 %v1220, %v1380
      %v1493 = vadd.f32 %v1221, %v1383
      %v1494 = vadd.f32 %v1222, %v1388
      %v1495 = vadd.f32 %v1223, %v1391
      %v1496 = vadd.f32 %v1224, %v1396
      %v1497 = vadd.f32 %v1225, %v1399
      %v1498 = vadd.f32 %v1226, %v1404
      %v1499 = vadd.f32 %v1227, %v1407
      %v1500 = vadd.f32 %v1228, %v1412
      %v1501 = vadd.f32 %v1229, %v1415
      %v1502 = vadd.f32 %v1230, %v1420
      %v1503 = vadd.f32 %v1231, %v1423
      %v1504 = vadd.f32 %v1232, %v1428
      %v1505 = vadd.f32 %v1233, %v1431
      %v1506 = vadd.f32 %v1234, %v1436
      %v1507 = vadd.f32 %v1235, %v1439
      %v1508 = vadd.f32 %v1236, %v1444
      %v1509 = vadd.f32 %v1237, %v1447
      %v1510 = vadd.f32 %v1238, %v1452
      %v1511 = vadd.f32 %v1239, %v1455
      %v1512 = vadd.f32 %v1240, %v1460
      %v1513 = vadd.f32 %v1241, %v1463
      %v1514 = vadd.f32 %v1242, %v1468
      %v1515 = vadd.f32 %v1243, %v1471
      %v1516 = vadd.f32 %v1244, %v1476
      %v1517 = vadd.f32 %v1245, %v1479
      %1518 = vst.msk [vmem:[#allocation3] sm:$0xff] %vm323, %v1482
      %1519 = vst.msk [vmem:[#allocation3 + $0x8] sm:$0xff] %vm323, %v1483
      %1520 = vst.msk [vmem:[#allocation3 + $0x10] sm:$0xff] %vm323, %v1484
      %1521 = vst.msk [vmem:[#allocation3 + $0x18] sm:$0xff] %vm323, %v1485
      %1522 = vst.msk [vmem:[#allocation3 + $0x20] sm:$0xff] %vm323, %v1486
      %1523 = vst.msk [vmem:[#allocation3 + $0x28] sm:$0xff] %vm323, %v1487
      %1524 = vst.msk [vmem:[#allocation3 + $0x30] sm:$0xff] %vm323, %v1488
      %1525 = vst.msk [vmem:[#allocation3 + $0x38] sm:$0xff] %vm323, %v1489
      %1526 = vst.msk [vmem:[#allocation3 + $0x40] sm:$0xff] %vm323, %v1490
      %1527 = vst.msk [vmem:[#allocation3 + $0x48] sm:$0xff] %vm323, %v1491
      %1528 = vst.msk [vmem:[#allocation3 + $0x50] sm:$0xff] %vm323, %v1492
      %1529 = vst.msk [vmem:[#allocation3 + $0x58] sm:$0xff] %vm323, %v1493
      %1530 = vst.msk [vmem:[#allocation3 + $0x60] sm:$0xff] %vm323, %v1494
      %1531 = vst.msk [vmem:[#allocation3 + $0x68] sm:$0xff] %vm323, %v1495
      %1532 = vst.msk [vmem:[#allocation3 + $0x70] sm:$0xff] %vm323, %v1496
      %1533 = vst.msk [vmem:[#allocation3 + $0x78] sm:$0xff] %vm323, %v1497
      %1534 = vst.msk [vmem:[#allocation3 + $0x80] sm:$0xff] %vm323, %v1498
      %1535 = vst.msk [vmem:[#allocation3 + $0x88] sm:$0xff] %vm323, %v1499
      %1536 = vst.msk [vmem:[#allocation3 + $0x90] sm:$0xff] %vm323, %v1500
      %1537 = vst.msk [vmem:[#allocation3 + $0x98] sm:$0xff] %vm323, %v1501
      %1538 = vst.msk [vmem:[#allocation3 + $0xa0] sm:$0xff] %vm323, %v1502
      %1539 = vst.msk [vmem:[#allocation3 + $0xa8] sm:$0xff] %vm323, %v1503
      %1540 = vst.msk [vmem:[#allocation3 + $0xb0] sm:$0xff] %vm323, %v1504
      %1541 = vst.msk [vmem:[#allocation3 + $0xb8] sm:$0xff] %vm323, %v1505
      %1542 = vst.msk [vmem:[#allocation3 + $0xc0] sm:$0xff] %vm323, %v1506
      %1543 = vst.msk [vmem:[#allocation3 + $0xc8] sm:$0xff] %vm323, %v1507
      %1544 = vst.msk [vmem:[#allocation3 + $0xd0] sm:$0xff] %vm323, %v1508
      %1545 = vst.msk [vmem:[#allocation3 + $0xd8] sm:$0xff] %vm323, %v1509
      %1546 = vst.msk [vmem:[#allocation3 + $0xe0] sm:$0xff] %vm323, %v1510
      %1547 = vst.msk [vmem:[#allocation3 + $0xe8] sm:$0xff] %vm323, %v1511
      %1548 = vst.msk [vmem:[#allocation3 + $0xf0] sm:$0xff] %vm323, %v1512
      %1549 = vst.msk [vmem:[#allocation3 + $0xf8] sm:$0xff] %vm323, %v1513
      %1550 = vst.msk [vmem:[#allocation3 + $0x100] sm:$0xff] %vm323, %v1514
      %1551 = vst.msk [vmem:[#allocation3 + $0x108] sm:$0xff] %vm323, %v1515
      %1552 = vst.msk [vmem:[#allocation3 + $0x110] sm:$0xff] %vm323, %v1516
      %1553 = vst.msk [vmem:[#allocation3 + $0x118] sm:$0xff] %vm323, %v1517
      %v1554 = vld [vmem:[#allocation2 + $0x12] sm:$0xff]
      %v1555 = vld [vmem:[#allocation2 + $0x1a] sm:$0xff]
      %v1556 = vld [vmem:[#allocation2 + $0x22] sm:$0xff]
      %v1557 = vld [vmem:[#allocation2 + $0x2a] sm:$0xff]
      %v1558 = vld [vmem:[#allocation2 + $0x32] sm:$0xff]
      %v1559 = vld [vmem:[#allocation2 + $0x3a] sm:$0xff]
      %v1560 = vld [vmem:[#allocation2 + $0x42] sm:$0xff]
      %v1561 = vld [vmem:[#allocation2 + $0x4a] sm:$0xff]
      %v1562 = vld [vmem:[#allocation2 + $0x52] sm:$0xff]
      %v1563 = vld [vmem:[#allocation2 + $0x5a] sm:$0xff]
      %v1564 = vld [vmem:[#allocation2 + $0x62] sm:$0xff]
      %v1565 = vld [vmem:[#allocation2 + $0x6a] sm:$0xff]
      %v1566 = vld [vmem:[#allocation2 + $0x72] sm:$0xff]
      %v1567 = vld [vmem:[#allocation2 + $0x7a] sm:$0xff]
      %v1568 = vld [vmem:[#allocation2 + $0x82] sm:$0xff]
      %v1569 = vld [vmem:[#allocation2 + $0x8a] sm:$0xff]
      %v1570 = vld [vmem:[#allocation2 + $0x92] sm:$0xff]
      %v1571 = vld [vmem:[#allocation2 + $0x9a] sm:$0xff]
      %v1572 = vld [vmem:[#allocation2 + $0xa2] sm:$0xff]
      %v1573 = vld [vmem:[#allocation2 + $0xaa] sm:$0xff]
      %v1574 = vld [vmem:[#allocation2 + $0xb2] sm:$0xff]
      %v1575 = vld [vmem:[#allocation2 + $0xba] sm:$0xff]
      %v1576 = vld [vmem:[#allocation2 + $0xc2] sm:$0xff]
      %v1577 = vld [vmem:[#allocation2 + $0xca] sm:$0xff]
      %v1578 = vld [vmem:[#allocation2 + $0xd2] sm:$0xff]
      %v1579 = vld [vmem:[#allocation2 + $0xda] sm:$0xff]
      %v1580 = vld [vmem:[#allocation2 + $0xe2] sm:$0xff]
      %v1581 = vld [vmem:[#allocation2 + $0xea] sm:$0xff]
      %v1582 = vld [vmem:[#allocation2 + $0xf2] sm:$0xff]
      %v1583 = vld [vmem:[#allocation2 + $0xfa] sm:$0xff]
      %v1584 = vld [vmem:[#allocation2 + $0x102] sm:$0xff]
      %v1585 = vld [vmem:[#allocation2 + $0x10a] sm:$0xff]
      %v1586 = vld [vmem:[#allocation2 + $0x112] sm:$0xff]
      %v1587 = vld [vmem:[#allocation2 + $0x11a] sm:$0xff]
      %v1588 = vld [vmem:[#allocation2 + $0x122] sm:$0xff]
      %v1589 = vld [vmem:[#allocation2 + $0x12a] sm:$0xff]
      %v1590 = vpack.c.bf16 %v1555, %v1554
      %v1591 = vpack.c.bf16 %v1557, %v1556
      %v1592 = vpack.c.bf16 %v1559, %v1558
      %v1593 = vpack.c.bf16 %v1561, %v1560
      %v1594 = vpack.c.bf16 %v1563, %v1562
      %v1595 = vpack.c.bf16 %v1565, %v1564
      %v1596 = vpack.c.bf16 %v1567, %v1566
      %v1597 = vpack.c.bf16 %v1569, %v1568
      %v1598 = vpack.c.bf16 %v1571, %v1570
      %v1599 = vpack.c.bf16 %v1573, %v1572
      %v1600 = vpack.c.bf16 %v1575, %v1574
      %v1601 = vpack.c.bf16 %v1577, %v1576
      %v1602 = vpack.c.bf16 %v1579, %v1578
      %v1603 = vpack.c.bf16 %v1581, %v1580
      %v1604 = vpack.c.bf16 %v1583, %v1582
      %v1605 = vpack.c.bf16 %v1585, %v1584
      %v1606 = vpack.c.bf16 %v1587, %v1586
      %v1607 = vpack.c.bf16 %v1589, %v1588
      %v1608 = vld [vmem:[#allocation3] sm:$0xff]
      %v1609 = vld [vmem:[#allocation3 + $0x8] sm:$0xff]
      %v1610 = vld [vmem:[#allocation3 + $0x10] sm:$0xff]
      %v1611 = vld [vmem:[#allocation3 + $0x18] sm:$0xff]
      %v1612 = vld [vmem:[#allocation3 + $0x20] sm:$0xff]
      %v1613 = vld [vmem:[#allocation3 + $0x28] sm:$0xff]
      %v1614 = vld [vmem:[#allocation3 + $0x30] sm:$0xff]
      %v1615 = vld [vmem:[#allocation3 + $0x38] sm:$0xff]
      %v1616 = vld [vmem:[#allocation3 + $0x40] sm:$0xff]
      %v1617 = vld [vmem:[#allocation3 + $0x48] sm:$0xff]
      %v1618 = vld [vmem:[#allocation3 + $0x50] sm:$0xff]
      %v1619 = vld [vmem:[#allocation3 + $0x58] sm:$0xff]
      %v1620 = vld [vmem:[#allocation3 + $0x60] sm:$0xff]
      %v1621 = vld [vmem:[#allocation3 + $0x68] sm:$0xff]
      %v1622 = vld [vmem:[#allocation3 + $0x70] sm:$0xff]
      %v1623 = vld [vmem:[#allocation3 + $0x78] sm:$0xff]
      %v1624 = vld [vmem:[#allocation3 + $0x80] sm:$0xff]
      %v1625 = vld [vmem:[#allocation3 + $0x88] sm:$0xff]
      %v1626 = vld [vmem:[#allocation3 + $0x90] sm:$0xff]
      %v1627 = vld [vmem:[#allocation3 + $0x98] sm:$0xff]
      %v1628 = vld [vmem:[#allocation3 + $0xa0] sm:$0xff]
      %v1629 = vld [vmem:[#allocation3 + $0xa8] sm:$0xff]
      %v1630 = vld [vmem:[#allocation3 + $0xb0] sm:$0xff]
      %v1631 = vld [vmem:[#allocation3 + $0xb8] sm:$0xff]
      %v1632 = vld [vmem:[#allocation3 + $0xc0] sm:$0xff]
      %v1633 = vld [vmem:[#allocation3 + $0xc8] sm:$0xff]
      %v1634 = vld [vmem:[#allocation3 + $0xd0] sm:$0xff]
      %v1635 = vld [vmem:[#allocation3 + $0xd8] sm:$0xff]
      %v1636 = vld [vmem:[#allocation3 + $0xe0] sm:$0xff]
      %v1637 = vld [vmem:[#allocation3 + $0xe8] sm:$0xff]
      %v1638 = vld [vmem:[#allocation3 + $0xf0] sm:$0xff]
      %v1639 = vld [vmem:[#allocation3 + $0xf8] sm:$0xff]
      %v1640 = vld [vmem:[#allocation3 + $0x100] sm:$0xff]
      %v1641 = vld [vmem:[#allocation3 + $0x108] sm:$0xff]
      %v1642 = vld [vmem:[#allocation3 + $0x110] sm:$0xff]
      %v1643 = vld [vmem:[#allocation3 + $0x118] sm:$0xff]
      %s1644 = scalar_lea.vmem %s1, 6
      %v1645 = vld [vmem:[%s1644] sm:$0x3]
      %v1647 = vsel %vm281, %v1590, 0
      %v1650 = vsel %vm281, %v1591, 0
      %v1653 = vsel %vm281, %v1592, 0
      %v1656 = vsel %vm281, %v1593, 0
      %v1659 = vsel %vm281, %v1594, 0
      %v1662 = vsel %vm281, %v1595, 0
      %v1665 = vsel %vm281, %v1596, 0
      %v1668 = vsel %vm281, %v1597, 0
      %v1671 = vsel %vm281, %v1598, 0
      %v1674 = vsel %vm281, %v1599, 0
      %v1677 = vsel %vm281, %v1600, 0
      %v1680 = vsel %vm281, %v1601, 0
      %v1683 = vsel %vm281, %v1602, 0
      %v1686 = vsel %vm281, %v1603, 0
      %v1689 = vsel %vm281, %v1604, 0
      %v1692 = vsel %vm281, %v1605, 0
      %v1695 = vsel %vm281, %v1606, 0
      %v1698 = vsel %vm281, %v1607, 0
      %v1701 = vsel %vm505, %v1645, 0
      %1703 = vmatprep.subr.bf16.mxu0 0
      %1704 = vmatpush1.bf16.msra.mxu0 0
      %1705 = vmatprep.subr.bf16.mxu0 0
      %1706 = vmatpush1.bf16.msra.mxu0 0
      %1707 = vmatprep.subr.bf16.mxu0 0
      %1708 = vmatpush1.bf16.msra.mxu0 0
      %1709 = vmatprep.subr.bf16.mxu0 0
      %1710 = vmatpush1.bf16.msra.mxu0 0
      %1711 = vmatprep.subr.bf16.mxu0 0
      %1712 = vmatpush1.bf16.msra.mxu0 0
      %1713 = vmatprep.subr.bf16.mxu0 0
      %1714 = vmatpush1.bf16.msra.mxu0 0
      %1715 = vmatprep.subr.bf16.mxu0 0
      %1716 = vmatpush1.bf16.msra.mxu0 0
      %1717 = vmatprep.subr.bf16.mxu0 0
      %1718 = vmatpush1.bf16.msra.mxu0 %v1701
      %1719 = vmatprep.subr.bf16.mxu0 0
      %1720 = vmatpush2.bf16.msra.mxu0 0
      %1721 = vmatprep.subr.bf16.mxu0 0
      %1722 = vmatpush2.bf16.msra.mxu0 0
      %1723 = vmatprep.subr.bf16.mxu0 0
      %1724 = vmatpush2.bf16.msra.mxu0 0
      %1725 = vmatprep.subr.bf16.mxu0 0
      %1726 = vmatpush2.bf16.msra.mxu0 0
      %1727 = vmatprep.subr.bf16.mxu0 0
      %1728 = vmatpush2.bf16.msra.mxu0 0
      %1729 = vmatprep.subr.bf16.mxu0 0
      %1730 = vmatpush2.bf16.msra.mxu0 0
      %1731 = vmatprep.subr.bf16.mxu0 0
      %1732 = vmatpush2.bf16.msra.mxu0 0
      %1733 = vmatprep.subr.bf16.mxu0 0
      %1734 = vmatpush2.bf16.msra.mxu0 0
      %1735 = vmatprep.mubr.bf16.mxu0 0
      %1736 = vmatmul.mubr.bf16.gmra.mxu0 %v1647
      %v1737 = vpop.f32.mrf.mxu0
      %v1738 = vadd.f32 0.0, %v1737
      %v1739 = vpop.f32.mrf.mxu0
      %v1740 = vpop.f32.mrf.mxu0
      %v1741 = vadd.f32 0.0, %v1740
      %v1742 = vpop.f32.mrf.mxu0
      %1743 = vmatprep.mubr.bf16.mxu0 0
      %1744 = vmatmul.mubr.bf16.gmra.mxu0 %v1650
      %v1745 = vpop.f32.mrf.mxu0
      %v1746 = vadd.f32 0.0, %v1745
      %v1747 = vpop.f32.mrf.mxu0
      %v1748 = vpop.f32.mrf.mxu0
      %v1749 = vadd.f32 0.0, %v1748
      %v1750 = vpop.f32.mrf.mxu0
      %1751 = vmatprep.mubr.bf16.mxu0 0
      %1752 = vmatmul.mubr.bf16.gmra.mxu0 %v1653
      %v1753 = vpop.f32.mrf.mxu0
      %v1754 = vadd.f32 0.0, %v1753
      %v1755 = vpop.f32.mrf.mxu0
      %v1756 = vpop.f32.mrf.mxu0
      %v1757 = vadd.f32 0.0, %v1756
      %v1758 = vpop.f32.mrf.mxu0
      %1759 = vmatprep.mubr.bf16.mxu0 0
      %1760 = vmatmul.mubr.bf16.gmra.mxu0 %v1656
      %v1761 = vpop.f32.mrf.mxu0
      %v1762 = vadd.f32 0.0, %v1761
      %v1763 = vpop.f32.mrf.mxu0
      %v1764 = vpop.f32.mrf.mxu0
      %v1765 = vadd.f32 0.0, %v1764
      %v1766 = vpop.f32.mrf.mxu0
      %1767 = vmatprep.mubr.bf16.mxu0 0
      %1768 = vmatmul.mubr.bf16.gmra.mxu0 %v1659
      %v1769 = vpop.f32.mrf.mxu0
      %v1770 = vadd.f32 0.0, %v1769
      %v1771 = vpop.f32.mrf.mxu0
      %v1772 = vpop.f32.mrf.mxu0
      %v1773 = vadd.f32 0.0, %v1772
      %v1774 = vpop.f32.mrf.mxu0
      %1775 = vmatprep.mubr.bf16.mxu0 0
      %1776 = vmatmul.mubr.bf16.gmra.mxu0 %v1662
      %v1777 = vpop.f32.mrf.mxu0
      %v1778 = vadd.f32 0.0, %v1777
      %v1779 = vpop.f32.mrf.mxu0
      %v1780 = vpop.f32.mrf.mxu0
      %v1781 = vadd.f32 0.0, %v1780
      %v1782 = vpop.f32.mrf.mxu0
      %1783 = vmatprep.mubr.bf16.mxu0 0
      %1784 = vmatmul.mubr.bf16.gmra.mxu0 %v1665
      %v1785 = vpop.f32.mrf.mxu0
      %v1786 = vadd.f32 0.0, %v1785
      %v1787 = vpop.f32.mrf.mxu0
      %v1788 = vpop.f32.mrf.mxu0
      %v1789 = vadd.f32 0.0, %v1788
      %v1790 = vpop.f32.mrf.mxu0
      %1791 = vmatprep.mubr.bf16.mxu0 0
      %1792 = vmatmul.mubr.bf16.gmra.mxu0 %v1668
      %v1793 = vpop.f32.mrf.mxu0
      %v1794 = vadd.f32 0.0, %v1793
      %v1795 = vpop.f32.mrf.mxu0
      %v1796 = vpop.f32.mrf.mxu0
      %v1797 = vadd.f32 0.0, %v1796
      %v1798 = vpop.f32.mrf.mxu0
      %1799 = vmatprep.mubr.bf16.mxu0 0
      %1800 = vmatmul.mubr.bf16.gmra.mxu0 %v1671
      %v1801 = vpop.f32.mrf.mxu0
      %v1802 = vadd.f32 0.0, %v1801
      %v1803 = vpop.f32.mrf.mxu0
      %v1804 = vpop.f32.mrf.mxu0
      %v1805 = vadd.f32 0.0, %v1804
      %v1806 = vpop.f32.mrf.mxu0
      %1807 = vmatprep.mubr.bf16.mxu0 0
      %1808 = vmatmul.mubr.bf16.gmra.mxu0 %v1674
      %v1809 = vpop.f32.mrf.mxu0
      %v1810 = vadd.f32 0.0, %v1809
      %v1811 = vpop.f32.mrf.mxu0
      %v1812 = vpop.f32.mrf.mxu0
      %v1813 = vadd.f32 0.0, %v1812
      %v1814 = vpop.f32.mrf.mxu0
      %1815 = vmatprep.mubr.bf16.mxu0 0
      %1816 = vmatmul.mubr.bf16.gmra.mxu0 %v1677
      %v1817 = vpop.f32.mrf.mxu0
      %v1818 = vadd.f32 0.0, %v1817
      %v1819 = vpop.f32.mrf.mxu0
      %v1820 = vpop.f32.mrf.mxu0
      %v1821 = vadd.f32 0.0, %v1820
      %v1822 = vpop.f32.mrf.mxu0
      %1823 = vmatprep.mubr.bf16.mxu0 0
      %1824 = vmatmul.mubr.bf16.gmra.mxu0 %v1680
      %v1825 = vpop.f32.mrf.mxu0
      %v1826 = vadd.f32 0.0, %v1825
      %v1827 = vpop.f32.mrf.mxu0
      %v1828 = vpop.f32.mrf.mxu0
      %v1829 = vadd.f32 0.0, %v1828
      %v1830 = vpop.f32.mrf.mxu0
      %1831 = vmatprep.mubr.bf16.mxu0 0
      %1832 = vmatmul.mubr.bf16.gmra.mxu0 %v1683
      %v1833 = vpop.f32.mrf.mxu0
      %v1834 = vadd.f32 0.0, %v1833
      %v1835 = vpop.f32.mrf.mxu0
      %v1836 = vpop.f32.mrf.mxu0
      %v1837 = vadd.f32 0.0, %v1836
      %v1838 = vpop.f32.mrf.mxu0
      %1839 = vmatprep.mubr.bf16.mxu0 0
      %1840 = vmatmul.mubr.bf16.gmra.mxu0 %v1686
      %v1841 = vpop.f32.mrf.mxu0
      %v1842 = vadd.f32 0.0, %v1841
      %v1843 = vpop.f32.mrf.mxu0
      %v1844 = vpop.f32.mrf.mxu0
      %v1845 = vadd.f32 0.0, %v1844
      %v1846 = vpop.f32.mrf.mxu0
      %1847 = vmatprep.mubr.bf16.mxu0 0
      %1848 = vmatmul.mubr.bf16.gmra.mxu0 %v1689
      %v1849 = vpop.f32.mrf.mxu0
      %v1850 = vadd.f32 0.0, %v1849
      %v1851 = vpop.f32.mrf.mxu0
      %v1852 = vpop.f32.mrf.mxu0
      %v1853 = vadd.f32 0.0, %v1852
      %v1854 = vpop.f32.mrf.mxu0
      %1855 = vmatprep.mubr.bf16.mxu0 0
      %1856 = vmatmul.mubr.bf16.gmra.mxu0 %v1692
      %v1857 = vpop.f32.mrf.mxu0
      %v1858 = vadd.f32 0.0, %v1857
      %v1859 = vpop.f32.mrf.mxu0
      %v1860 = vpop.f32.mrf.mxu0
      %v1861 = vadd.f32 0.0, %v1860
      %v1862 = vpop.f32.mrf.mxu0
      %1863 = vmatprep.mubr.bf16.mxu0 0
      %1864 = vmatmul.mubr.bf16.gmra.mxu0 %v1695
      %v1865 = vpop.f32.mrf.mxu0
      %v1866 = vadd.f32 0.0, %v1865
      %v1867 = vpop.f32.mrf.mxu0
      %v1868 = vpop.f32.mrf.mxu0
      %v1869 = vadd.f32 0.0, %v1868
      %v1870 = vpop.f32.mrf.mxu0
      %1871 = vmatprep.mubr.bf16.mxu0 0
      %1872 = vmatmul.mubr.bf16.gmra.mxu0 %v1698
      %v1873 = vpop.f32.mrf.mxu0
      %v1874 = vadd.f32 0.0, %v1873
      %v1875 = vpop.f32.mrf.mxu0
      %v1876 = vpop.f32.mrf.mxu0
      %v1877 = vadd.f32 0.0, %v1876
      %v1878 = vpop.f32.mrf.mxu0
      %1879 = vdwg.mxu0
      %v1880 = vadd.f32 %v1608, %v1738
      %v1881 = vadd.f32 %v1609, %v1741
      %v1882 = vadd.f32 %v1610, %v1746
      %v1883 = vadd.f32 %v1611, %v1749
      %v1884 = vadd.f32 %v1612, %v1754
      %v1885 = vadd.f32 %v1613, %v1757
      %v1886 = vadd.f32 %v1614, %v1762
      %v1887 = vadd.f32 %v1615, %v1765
      %v1888 = vadd.f32 %v1616, %v1770
      %v1889 = vadd.f32 %v1617, %v1773
      %v1890 = vadd.f32 %v1618, %v1778
      %v1891 = vadd.f32 %v1619, %v1781
      %v1892 = vadd.f32 %v1620, %v1786
      %v1893 = vadd.f32 %v1621, %v1789
      %v1894 = vadd.f32 %v1622, %v1794
      %v1895 = vadd.f32 %v1623, %v1797
      %v1896 = vadd.f32 %v1624, %v1802
      %v1897 = vadd.f32 %v1625, %v1805
      %v1898 = vadd.f32 %v1626, %v1810
      %v1899 = vadd.f32 %v1627, %v1813
      %v1900 = vadd.f32 %v1628, %v1818
      %v1901 = vadd.f32 %v1629, %v1821
      %v1902 = vadd.f32 %v1630, %v1826
      %v1903 = vadd.f32 %v1631, %v1829
      %v1904 = vadd.f32 %v1632, %v1834
      %v1905 = vadd.f32 %v1633, %v1837
      %v1906 = vadd.f32 %v1634, %v1842
      %v1907 = vadd.f32 %v1635, %v1845
      %v1908 = vadd.f32 %v1636, %v1850
      %v1909 = vadd.f32 %v1637, %v1853
      %v1910 = vadd.f32 %v1638, %v1858
      %v1911 = vadd.f32 %v1639, %v1861
      %v1912 = vadd.f32 %v1640, %v1866
      %v1913 = vadd.f32 %v1641, %v1869
      %v1914 = vadd.f32 %v1642, %v1874
      %v1915 = vadd.f32 %v1643, %v1877
      %1916 = vst.msk [vmem:[#allocation3] sm:$0xff] %vm323, %v1880
      %1917 = vst.msk [vmem:[#allocation3 + $0x8] sm:$0xff] %vm323, %v1881
      %1918 = vst.msk [vmem:[#allocation3 + $0x10] sm:$0xff] %vm323, %v1882
      %1919 = vst.msk [vmem:[#allocation3 + $0x18] sm:$0xff] %vm323, %v1883
      %1920 = vst.msk [vmem:[#allocation3 + $0x20] sm:$0xff] %vm323, %v1884
      %1921 = vst.msk [vmem:[#allocation3 + $0x28] sm:$0xff] %vm323, %v1885
      %1922 = vst.msk [vmem:[#allocation3 + $0x30] sm:$0xff] %vm323, %v1886
      %1923 = vst.msk [vmem:[#allocation3 + $0x38] sm:$0xff] %vm323, %v1887
      %1924 = vst.msk [vmem:[#allocation3 + $0x40] sm:$0xff] %vm323, %v1888
      %1925 = vst.msk [vmem:[#allocation3 + $0x48] sm:$0xff] %vm323, %v1889
      %1926 = vst.msk [vmem:[#allocation3 + $0x50] sm:$0xff] %vm323, %v1890
      %1927 = vst.msk [vmem:[#allocation3 + $0x58] sm:$0xff] %vm323, %v1891
      %1928 = vst.msk [vmem:[#allocation3 + $0x60] sm:$0xff] %vm323, %v1892
      %1929 = vst.msk [vmem:[#allocation3 + $0x68] sm:$0xff] %vm323, %v1893
      %1930 = vst.msk [vmem:[#allocation3 + $0x70] sm:$0xff] %vm323, %v1894
      %1931 = vst.msk [vmem:[#allocation3 + $0x78] sm:$0xff] %vm323, %v1895
      %1932 = vst.msk [vmem:[#allocation3 + $0x80] sm:$0xff] %vm323, %v1896
      %1933 = vst.msk [vmem:[#allocation3 + $0x88] sm:$0xff] %vm323, %v1897
      %1934 = vst.msk [vmem:[#allocation3 + $0x90] sm:$0xff] %vm323, %v1898
      %1935 = vst.msk [vmem:[#allocation3 + $0x98] sm:$0xff] %vm323, %v1899
      %1936 = vst.msk [vmem:[#allocation3 + $0xa0] sm:$0xff] %vm323, %v1900
      %1937 = vst.msk [vmem:[#allocation3 + $0xa8] sm:$0xff] %vm323, %v1901
      %1938 = vst.msk [vmem:[#allocation3 + $0xb0] sm:$0xff] %vm323, %v1902
      %1939 = vst.msk [vmem:[#allocation3 + $0xb8] sm:$0xff] %vm323, %v1903
      %1940 = vst.msk [vmem:[#allocation3 + $0xc0] sm:$0xff] %vm323, %v1904
      %1941 = vst.msk [vmem:[#allocation3 + $0xc8] sm:$0xff] %vm323, %v1905
      %1942 = vst.msk [vmem:[#allocation3 + $0xd0] sm:$0xff] %vm323, %v1906
      %1943 = vst.msk [vmem:[#allocation3 + $0xd8] sm:$0xff] %vm323, %v1907
      %1944 = vst.msk [vmem:[#allocation3 + $0xe0] sm:$0xff] %vm323, %v1908
      %1945 = vst.msk [vmem:[#allocation3 + $0xe8] sm:$0xff] %vm323, %v1909
      %1946 = vst.msk [vmem:[#allocation3 + $0xf0] sm:$0xff] %vm323, %v1910
      %1947 = vst.msk [vmem:[#allocation3 + $0xf8] sm:$0xff] %vm323, %v1911
      %1948 = vst.msk [vmem:[#allocation3 + $0x100] sm:$0xff] %vm323, %v1912
      %1949 = vst.msk [vmem:[#allocation3 + $0x108] sm:$0xff] %vm323, %v1913
      %1950 = vst.msk [vmem:[#allocation3 + $0x110] sm:$0xff] %vm323, %v1914
      %1951 = vst.msk [vmem:[#allocation3 + $0x118] sm:$0xff] %vm323, %v1915
      %v1952 = vld [vmem:[#allocation2 + $0x13] sm:$0xff]
      %v1953 = vld [vmem:[#allocation2 + $0x1b] sm:$0xff]
      %v1954 = vld [vmem:[#allocation2 + $0x23] sm:$0xff]
      %v1955 = vld [vmem:[#allocation2 + $0x2b] sm:$0xff]
      %v1956 = vld [vmem:[#allocation2 + $0x33] sm:$0xff]
      %v1957 = vld [vmem:[#allocation2 + $0x3b] sm:$0xff]
      %v1958 = vld [vmem:[#allocation2 + $0x43] sm:$0xff]
      %v1959 = vld [vmem:[#allocation2 + $0x4b] sm:$0xff]
      %v1960 = vld [vmem:[#allocation2 + $0x53] sm:$0xff]
      %v1961 = vld [vmem:[#allocation2 + $0x5b] sm:$0xff]
      %v1962 = vld [vmem:[#allocation2 + $0x63] sm:$0xff]
      %v1963 = vld [vmem:[#allocation2 + $0x6b] sm:$0xff]
      %v1964 = vld [vmem:[#allocation2 + $0x73] sm:$0xff]
      %v1965 = vld [vmem:[#allocation2 + $0x7b] sm:$0xff]
      %v1966 = vld [vmem:[#allocation2 + $0x83] sm:$0xff]
      %v1967 = vld [vmem:[#allocation2 + $0x8b] sm:$0xff]
      %v1968 = vld [vmem:[#allocation2 + $0x93] sm:$0xff]
      %v1969 = vld [vmem:[#allocation2 + $0x9b] sm:$0xff]
      %v1970 = vld [vmem:[#allocation2 + $0xa3] sm:$0xff]
      %v1971 = vld [vmem:[#allocation2 + $0xab] sm:$0xff]
      %v1972 = vld [vmem:[#allocation2 + $0xb3] sm:$0xff]
      %v1973 = vld [vmem:[#allocation2 + $0xbb] sm:$0xff]
      %v1974 = vld [vmem:[#allocation2 + $0xc3] sm:$0xff]
      %v1975 = vld [vmem:[#allocation2 + $0xcb] sm:$0xff]
      %v1976 = vld [vmem:[#allocation2 + $0xd3] sm:$0xff]
      %v1977 = vld [vmem:[#allocation2 + $0xdb] sm:$0xff]
      %v1978 = vld [vmem:[#allocation2 + $0xe3] sm:$0xff]
      %v1979 = vld [vmem:[#allocation2 + $0xeb] sm:$0xff]
      %v1980 = vld [vmem:[#allocation2 + $0xf3] sm:$0xff]
      %v1981 = vld [vmem:[#allocation2 + $0xfb] sm:$0xff]
      %v1982 = vld [vmem:[#allocation2 + $0x103] sm:$0xff]
      %v1983 = vld [vmem:[#allocation2 + $0x10b] sm:$0xff]
      %v1984 = vld [vmem:[#allocation2 + $0x113] sm:$0xff]
      %v1985 = vld [vmem:[#allocation2 + $0x11b] sm:$0xff]
      %v1986 = vld [vmem:[#allocation2 + $0x123] sm:$0xff]
      %v1987 = vld [vmem:[#allocation2 + $0x12b] sm:$0xff]
      %v1988 = vpack.c.bf16 %v1953, %v1952
      %v1989 = vpack.c.bf16 %v1955, %v1954
      %v1990 = vpack.c.bf16 %v1957, %v1956
      %v1991 = vpack.c.bf16 %v1959, %v1958
      %v1992 = vpack.c.bf16 %v1961, %v1960
      %v1993 = vpack.c.bf16 %v1963, %v1962
      %v1994 = vpack.c.bf16 %v1965, %v1964
      %v1995 = vpack.c.bf16 %v1967, %v1966
      %v1996 = vpack.c.bf16 %v1969, %v1968
      %v1997 = vpack.c.bf16 %v1971, %v1970
      %v1998 = vpack.c.bf16 %v1973, %v1972
      %v1999 = vpack.c.bf16 %v1975, %v1974
      %v2000 = vpack.c.bf16 %v1977, %v1976
      %v2001 = vpack.c.bf16 %v1979, %v1978
      %v2002 = vpack.c.bf16 %v1981, %v1980
      %v2003 = vpack.c.bf16 %v1983, %v1982
      %v2004 = vpack.c.bf16 %v1985, %v1984
      %v2005 = vpack.c.bf16 %v1987, %v1986
      %v2006 = vld [vmem:[#allocation3] sm:$0xff]
      %v2007 = vld [vmem:[#allocation3 + $0x8] sm:$0xff]
      %v2008 = vld [vmem:[#allocation3 + $0x10] sm:$0xff]
      %v2009 = vld [vmem:[#allocation3 + $0x18] sm:$0xff]
      %v2010 = vld [vmem:[#allocation3 + $0x20] sm:$0xff]
      %v2011 = vld [vmem:[#allocation3 + $0x28] sm:$0xff]
      %v2012 = vld [vmem:[#allocation3 + $0x30] sm:$0xff]
      %v2013 = vld [vmem:[#allocation3 + $0x38] sm:$0xff]
      %v2014 = vld [vmem:[#allocation3 + $0x40] sm:$0xff]
      %v2015 = vld [vmem:[#allocation3 + $0x48] sm:$0xff]
      %v2016 = vld [vmem:[#allocation3 + $0x50] sm:$0xff]
      %v2017 = vld [vmem:[#allocation3 + $0x58] sm:$0xff]
      %v2018 = vld [vmem:[#allocation3 + $0x60] sm:$0xff]
      %v2019 = vld [vmem:[#allocation3 + $0x68] sm:$0xff]
      %v2020 = vld [vmem:[#allocation3 + $0x70] sm:$0xff]
      %v2021 = vld [vmem:[#allocation3 + $0x78] sm:$0xff]
      %v2022 = vld [vmem:[#allocation3 + $0x80] sm:$0xff]
      %v2023 = vld [vmem:[#allocation3 + $0x88] sm:$0xff]
      %v2024 = vld [vmem:[#allocation3 + $0x90] sm:$0xff]
      %v2025 = vld [vmem:[#allocation3 + $0x98] sm:$0xff]
      %v2026 = vld [vmem:[#allocation3 + $0xa0] sm:$0xff]
      %v2027 = vld [vmem:[#allocation3 + $0xa8] sm:$0xff]
      %v2028 = vld [vmem:[#allocation3 + $0xb0] sm:$0xff]
      %v2029 = vld [vmem:[#allocation3 + $0xb8] sm:$0xff]
      %v2030 = vld [vmem:[#allocation3 + $0xc0] sm:$0xff]
      %v2031 = vld [vmem:[#allocation3 + $0xc8] sm:$0xff]
      %v2032 = vld [vmem:[#allocation3 + $0xd0] sm:$0xff]
      %v2033 = vld [vmem:[#allocation3 + $0xd8] sm:$0xff]
      %v2034 = vld [vmem:[#allocation3 + $0xe0] sm:$0xff]
      %v2035 = vld [vmem:[#allocation3 + $0xe8] sm:$0xff]
      %v2036 = vld [vmem:[#allocation3 + $0xf0] sm:$0xff]
      %v2037 = vld [vmem:[#allocation3 + $0xf8] sm:$0xff]
      %v2038 = vld [vmem:[#allocation3 + $0x100] sm:$0xff]
      %v2039 = vld [vmem:[#allocation3 + $0x108] sm:$0xff]
      %v2040 = vld [vmem:[#allocation3 + $0x110] sm:$0xff]
      %v2041 = vld [vmem:[#allocation3 + $0x118] sm:$0xff]
      %s2042 = scalar_lea.vmem %s1, 8
      %v2043 = vld [vmem:[%s2042] sm:$0x3]
      %v2045 = vsel %vm281, %v1988, 0
      %v2048 = vsel %vm281, %v1989, 0
      %v2051 = vsel %vm281, %v1990, 0
      %v2054 = vsel %vm281, %v1991, 0
      %v2057 = vsel %vm281, %v1992, 0
      %v2060 = vsel %vm281, %v1993, 0
      %v2063 = vsel %vm281, %v1994, 0
      %v2066 = vsel %vm281, %v1995, 0
      %v2069 = vsel %vm281, %v1996, 0
      %v2072 = vsel %vm281, %v1997, 0
      %v2075 = vsel %vm281, %v1998, 0
      %v2078 = vsel %vm281, %v1999, 0
      %v2081 = vsel %vm281, %v2000, 0
      %v2084 = vsel %vm281, %v2001, 0
      %v2087 = vsel %vm281, %v2002, 0
      %v2090 = vsel %vm281, %v2003, 0
      %v2093 = vsel %vm281, %v2004, 0
      %v2096 = vsel %vm281, %v2005, 0
      %v2099 = vsel %vm505, %v2043, 0
      %2101 = vmatprep.subr.bf16.mxu0 0
      %2102 = vmatpush1.bf16.msra.mxu0 0
      %2103 = vmatprep.subr.bf16.mxu0 0
      %2104 = vmatpush1.bf16.msra.mxu0 0
      %2105 = vmatprep.subr.bf16.mxu0 0
      %2106 = vmatpush1.bf16.msra.mxu0 0
      %2107 = vmatprep.subr.bf16.mxu0 0
      %2108 = vmatpush1.bf16.msra.mxu0 0
      %2109 = vmatprep.subr.bf16.mxu0 0
      %2110 = vmatpush1.bf16.msra.mxu0 0
      %2111 = vmatprep.subr.bf16.mxu0 0
      %2112 = vmatpush1.bf16.msra.mxu0 0
      %2113 = vmatprep.subr.bf16.mxu0 0
      %2114 = vmatpush1.bf16.msra.mxu0 0
      %2115 = vmatprep.subr.bf16.mxu0 0
      %2116 = vmatpush1.bf16.msra.mxu0 %v2099
      %2117 = vmatprep.subr.bf16.mxu0 0
      %2118 = vmatpush2.bf16.msra.mxu0 0
      %2119 = vmatprep.subr.bf16.mxu0 0
      %2120 = vmatpush2.bf16.msra.mxu0 0
      %2121 = vmatprep.subr.bf16.mxu0 0
      %2122 = vmatpush2.bf16.msra.mxu0 0
      %2123 = vmatprep.subr.bf16.mxu0 0
      %2124 = vmatpush2.bf16.msra.mxu0 0
      %2125 = vmatprep.subr.bf16.mxu0 0
      %2126 = vmatpush2.bf16.msra.mxu0 0
      %2127 = vmatprep.subr.bf16.mxu0 0
      %2128 = vmatpush2.bf16.msra.mxu0 0
      %2129 = vmatprep.subr.bf16.mxu0 0
      %2130 = vmatpush2.bf16.msra.mxu0 0
      %2131 = vmatprep.subr.bf16.mxu0 0
      %2132 = vmatpush2.bf16.msra.mxu0 0
      %2133 = vmatprep.mubr.bf16.mxu0 0
      %2134 = vmatmul.mubr.bf16.gmra.mxu0 %v2045
      %v2135 = vpop.f32.mrf.mxu0
      %v2136 = vadd.f32 0.0, %v2135
      %v2137 = vpop.f32.mrf.mxu0
      %v2138 = vpop.f32.mrf.mxu0
      %v2139 = vadd.f32 0.0, %v2138
      %v2140 = vpop.f32.mrf.mxu0
      %2141 = vmatprep.mubr.bf16.mxu0 0
      %2142 = vmatmul.mubr.bf16.gmra.mxu0 %v2048
      %v2143 = vpop.f32.mrf.mxu0
      %v2144 = vadd.f32 0.0, %v2143
      %v2145 = vpop.f32.mrf.mxu0
      %v2146 = vpop.f32.mrf.mxu0
      %v2147 = vadd.f32 0.0, %v2146
      %v2148 = vpop.f32.mrf.mxu0
      %2149 = vmatprep.mubr.bf16.mxu0 0
      %2150 = vmatmul.mubr.bf16.gmra.mxu0 %v2051
      %v2151 = vpop.f32.mrf.mxu0
      %v2152 = vadd.f32 0.0, %v2151
      %v2153 = vpop.f32.mrf.mxu0
      %v2154 = vpop.f32.mrf.mxu0
      %v2155 = vadd.f32 0.0, %v2154
      %v2156 = vpop.f32.mrf.mxu0
      %2157 = vmatprep.mubr.bf16.mxu0 0
      %2158 = vmatmul.mubr.bf16.gmra.mxu0 %v2054
      %v2159 = vpop.f32.mrf.mxu0
      %v2160 = vadd.f32 0.0, %v2159
      %v2161 = vpop.f32.mrf.mxu0
      %v2162 = vpop.f32.mrf.mxu0
      %v2163 = vadd.f32 0.0, %v2162
      %v2164 = vpop.f32.mrf.mxu0
      %2165 = vmatprep.mubr.bf16.mxu0 0
      %2166 = vmatmul.mubr.bf16.gmra.mxu0 %v2057
      %v2167 = vpop.f32.mrf.mxu0
      %v2168 = vadd.f32 0.0, %v2167
      %v2169 = vpop.f32.mrf.mxu0
      %v2170 = vpop.f32.mrf.mxu0
      %v2171 = vadd.f32 0.0, %v2170
      %v2172 = vpop.f32.mrf.mxu0
      %2173 = vmatprep.mubr.bf16.mxu0 0
      %2174 = vmatmul.mubr.bf16.gmra.mxu0 %v2060
      %v2175 = vpop.f32.mrf.mxu0
      %v2176 = vadd.f32 0.0, %v2175
      %v2177 = vpop.f32.mrf.mxu0
      %v2178 = vpop.f32.mrf.mxu0
      %v2179 = vadd.f32 0.0, %v2178
      %v2180 = vpop.f32.mrf.mxu0
      %2181 = vmatprep.mubr.bf16.mxu0 0
      %2182 = vmatmul.mubr.bf16.gmra.mxu0 %v2063
      %v2183 = vpop.f32.mrf.mxu0
      %v2184 = vadd.f32 0.0, %v2183
      %v2185 = vpop.f32.mrf.mxu0
      %v2186 = vpop.f32.mrf.mxu0
      %v2187 = vadd.f32 0.0, %v2186
      %v2188 = vpop.f32.mrf.mxu0
      %2189 = vmatprep.mubr.bf16.mxu0 0
      %2190 = vmatmul.mubr.bf16.gmra.mxu0 %v2066
      %v2191 = vpop.f32.mrf.mxu0
      %v2192 = vadd.f32 0.0, %v2191
      %v2193 = vpop.f32.mrf.mxu0
      %v2194 = vpop.f32.mrf.mxu0
      %v2195 = vadd.f32 0.0, %v2194
      %v2196 = vpop.f32.mrf.mxu0
      %2197 = vmatprep.mubr.bf16.mxu0 0
      %2198 = vmatmul.mubr.bf16.gmra.mxu0 %v2069
      %v2199 = vpop.f32.mrf.mxu0
      %v2200 = vadd.f32 0.0, %v2199
      %v2201 = vpop.f32.mrf.mxu0
      %v2202 = vpop.f32.mrf.mxu0
      %v2203 = vadd.f32 0.0, %v2202
      %v2204 = vpop.f32.mrf.mxu0
      %2205 = vmatprep.mubr.bf16.mxu0 0
      %2206 = vmatmul.mubr.bf16.gmra.mxu0 %v2072
      %v2207 = vpop.f32.mrf.mxu0
      %v2208 = vadd.f32 0.0, %v2207
      %v2209 = vpop.f32.mrf.mxu0
      %v2210 = vpop.f32.mrf.mxu0
      %v2211 = vadd.f32 0.0, %v2210
      %v2212 = vpop.f32.mrf.mxu0
      %2213 = vmatprep.mubr.bf16.mxu0 0
      %2214 = vmatmul.mubr.bf16.gmra.mxu0 %v2075
      %v2215 = vpop.f32.mrf.mxu0
      %v2216 = vadd.f32 0.0, %v2215
      %v2217 = vpop.f32.mrf.mxu0
      %v2218 = vpop.f32.mrf.mxu0
      %v2219 = vadd.f32 0.0, %v2218
      %v2220 = vpop.f32.mrf.mxu0
      %2221 = vmatprep.mubr.bf16.mxu0 0
      %2222 = vmatmul.mubr.bf16.gmra.mxu0 %v2078
      %v2223 = vpop.f32.mrf.mxu0
      %v2224 = vadd.f32 0.0, %v2223
      %v2225 = vpop.f32.mrf.mxu0
      %v2226 = vpop.f32.mrf.mxu0
      %v2227 = vadd.f32 0.0, %v2226
      %v2228 = vpop.f32.mrf.mxu0
      %2229 = vmatprep.mubr.bf16.mxu0 0
      %2230 = vmatmul.mubr.bf16.gmra.mxu0 %v2081
      %v2231 = vpop.f32.mrf.mxu0
      %v2232 = vadd.f32 0.0, %v2231
      %v2233 = vpop.f32.mrf.mxu0
      %v2234 = vpop.f32.mrf.mxu0
      %v2235 = vadd.f32 0.0, %v2234
      %v2236 = vpop.f32.mrf.mxu0
      %2237 = vmatprep.mubr.bf16.mxu0 0
      %2238 = vmatmul.mubr.bf16.gmra.mxu0 %v2084
      %v2239 = vpop.f32.mrf.mxu0
      %v2240 = vadd.f32 0.0, %v2239
      %v2241 = vpop.f32.mrf.mxu0
      %v2242 = vpop.f32.mrf.mxu0
      %v2243 = vadd.f32 0.0, %v2242
      %v2244 = vpop.f32.mrf.mxu0
      %2245 = vmatprep.mubr.bf16.mxu0 0
      %2246 = vmatmul.mubr.bf16.gmra.mxu0 %v2087
      %v2247 = vpop.f32.mrf.mxu0
      %v2248 = vadd.f32 0.0, %v2247
      %v2249 = vpop.f32.mrf.mxu0
      %v2250 = vpop.f32.mrf.mxu0
      %v2251 = vadd.f32 0.0, %v2250
      %v2252 = vpop.f32.mrf.mxu0
      %2253 = vmatprep.mubr.bf16.mxu0 0
      %2254 = vmatmul.mubr.bf16.gmra.mxu0 %v2090
      %v2255 = vpop.f32.mrf.mxu0
      %v2256 = vadd.f32 0.0, %v2255
      %v2257 = vpop.f32.mrf.mxu0
      %v2258 = vpop.f32.mrf.mxu0
      %v2259 = vadd.f32 0.0, %v2258
      %v2260 = vpop.f32.mrf.mxu0
      %2261 = vmatprep.mubr.bf16.mxu0 0
      %2262 = vmatmul.mubr.bf16.gmra.mxu0 %v2093
      %v2263 = vpop.f32.mrf.mxu0
      %v2264 = vadd.f32 0.0, %v2263
      %v2265 = vpop.f32.mrf.mxu0
      %v2266 = vpop.f32.mrf.mxu0
      %v2267 = vadd.f32 0.0, %v2266
      %v2268 = vpop.f32.mrf.mxu0
      %2269 = vmatprep.mubr.bf16.mxu0 0
      %2270 = vmatmul.mubr.bf16.gmra.mxu0 %v2096
      %v2271 = vpop.f32.mrf.mxu0
      %v2272 = vadd.f32 0.0, %v2271
      %v2273 = vpop.f32.mrf.mxu0
      %v2274 = vpop.f32.mrf.mxu0
      %v2275 = vadd.f32 0.0, %v2274
      %v2276 = vpop.f32.mrf.mxu0
      %2277 = vdwg.mxu0
      %v2278 = vadd.f32 %v2006, %v2136
      %v2279 = vadd.f32 %v2007, %v2139
      %v2280 = vadd.f32 %v2008, %v2144
      %v2281 = vadd.f32 %v2009, %v2147
      %v2282 = vadd.f32 %v2010, %v2152
      %v2283 = vadd.f32 %v2011, %v2155
      %v2284 = vadd.f32 %v2012, %v2160
      %v2285 = vadd.f32 %v2013, %v2163
      %v2286 = vadd.f32 %v2014, %v2168
      %v2287 = vadd.f32 %v2015, %v2171
      %v2288 = vadd.f32 %v2016, %v2176
      %v2289 = vadd.f32 %v2017, %v2179
      %v2290 = vadd.f32 %v2018, %v2184
      %v2291 = vadd.f32 %v2019, %v2187
      %v2292 = vadd.f32 %v2020, %v2192
      %v2293 = vadd.f32 %v2021, %v2195
      %v2294 = vadd.f32 %v2022, %v2200
      %v2295 = vadd.f32 %v2023, %v2203
      %v2296 = vadd.f32 %v2024, %v2208
      %v2297 = vadd.f32 %v2025, %v2211
      %v2298 = vadd.f32 %v2026, %v2216
      %v2299 = vadd.f32 %v2027, %v2219
      %v2300 = vadd.f32 %v2028, %v2224
      %v2301 = vadd.f32 %v2029, %v2227
      %v2302 = vadd.f32 %v2030, %v2232
      %v2303 = vadd.f32 %v2031, %v2235
      %v2304 = vadd.f32 %v2032, %v2240
      %v2305 = vadd.f32 %v2033, %v2243
      %v2306 = vadd.f32 %v2034, %v2248
      %v2307 = vadd.f32 %v2035, %v2251
      %v2308 = vadd.f32 %v2036, %v2256
      %v2309 = vadd.f32 %v2037, %v2259
      %v2310 = vadd.f32 %v2038, %v2264
      %v2311 = vadd.f32 %v2039, %v2267
      %v2312 = vadd.f32 %v2040, %v2272
      %v2313 = vadd.f32 %v2041, %v2275
      %2314 = vst.msk [vmem:[#allocation3] sm:$0xff] %vm323, %v2278
      %2315 = vst.msk [vmem:[#allocation3 + $0x8] sm:$0xff] %vm323, %v2279
      %2316 = vst.msk [vmem:[#allocation3 + $0x10] sm:$0xff] %vm323, %v2280
      %2317 = vst.msk [vmem:[#allocation3 + $0x18] sm:$0xff] %vm323, %v2281
      %2318 = vst.msk [vmem:[#allocation3 + $0x20] sm:$0xff] %vm323, %v2282
      %2319 = vst.msk [vmem:[#allocation3 + $0x28] sm:$0xff] %vm323, %v2283
      %2320 = vst.msk [vmem:[#allocation3 + $0x30] sm:$0xff] %vm323, %v2284
      %2321 = vst.msk [vmem:[#allocation3 + $0x38] sm:$0xff] %vm323, %v2285
      %2322 = vst.msk [vmem:[#allocation3 + $0x40] sm:$0xff] %vm323, %v2286
      %2323 = vst.msk [vmem:[#allocation3 + $0x48] sm:$0xff] %vm323, %v2287
      %2324 = vst.msk [vmem:[#allocation3 + $0x50] sm:$0xff] %vm323, %v2288
      %2325 = vst.msk [vmem:[#allocation3 + $0x58] sm:$0xff] %vm323, %v2289
      %2326 = vst.msk [vmem:[#allocation3 + $0x60] sm:$0xff] %vm323, %v2290
      %2327 = vst.msk [vmem:[#allocation3 + $0x68] sm:$0xff] %vm323, %v2291
      %2328 = vst.msk [vmem:[#allocation3 + $0x70] sm:$0xff] %vm323, %v2292
      %2329 = vst.msk [vmem:[#allocation3 + $0x78] sm:$0xff] %vm323, %v2293
      %2330 = vst.msk [vmem:[#allocation3 + $0x80] sm:$0xff] %vm323, %v2294
      %2331 = vst.msk [vmem:[#allocation3 + $0x88] sm:$0xff] %vm323, %v2295
      %2332 = vst.msk [vmem:[#allocation3 + $0x90] sm:$0xff] %vm323, %v2296
      %2333 = vst.msk [vmem:[#allocation3 + $0x98] sm:$0xff] %vm323, %v2297
      %2334 = vst.msk [vmem:[#allocation3 + $0xa0] sm:$0xff] %vm323, %v2298
      %2335 = vst.msk [vmem:[#allocation3 + $0xa8] sm:$0xff] %vm323, %v2299
      %2336 = vst.msk [vmem:[#allocation3 + $0xb0] sm:$0xff] %vm323, %v2300
      %2337 = vst.msk [vmem:[#allocation3 + $0xb8] sm:$0xff] %vm323, %v2301
      %2338 = vst.msk [vmem:[#allocation3 + $0xc0] sm:$0xff] %vm323, %v2302
      %2339 = vst.msk [vmem:[#allocation3 + $0xc8] sm:$0xff] %vm323, %v2303
      %2340 = vst.msk [vmem:[#allocation3 + $0xd0] sm:$0xff] %vm323, %v2304
      %2341 = vst.msk [vmem:[#allocation3 + $0xd8] sm:$0xff] %vm323, %v2305
      %2342 = vst.msk [vmem:[#allocation3 + $0xe0] sm:$0xff] %vm323, %v2306
      %2343 = vst.msk [vmem:[#allocation3 + $0xe8] sm:$0xff] %vm323, %v2307
      %2344 = vst.msk [vmem:[#allocation3 + $0xf0] sm:$0xff] %vm323, %v2308
      %2345 = vst.msk [vmem:[#allocation3 + $0xf8] sm:$0xff] %vm323, %v2309
      %2346 = vst.msk [vmem:[#allocation3 + $0x100] sm:$0xff] %vm323, %v2310
      %2347 = vst.msk [vmem:[#allocation3 + $0x108] sm:$0xff] %vm323, %v2311
      %2348 = vst.msk [vmem:[#allocation3 + $0x110] sm:$0xff] %vm323, %v2312
      %2349 = vst.msk [vmem:[#allocation3 + $0x118] sm:$0xff] %vm323, %v2313
      %v2350 = vld [vmem:[#allocation2 + $0x14] sm:$0xff]
      %v2351 = vld [vmem:[#allocation2 + $0x1c] sm:$0xff]
      %v2352 = vld [vmem:[#allocation2 + $0x24] sm:$0xff]
      %v2353 = vld [vmem:[#allocation2 + $0x2c] sm:$0xff]
      %v2354 = vld [vmem:[#allocation2 + $0x34] sm:$0xff]
      %v2355 = vld [vmem:[#allocation2 + $0x3c] sm:$0xff]
      %v2356 = vld [vmem:[#allocation2 + $0x44] sm:$0xff]
      %v2357 = vld [vmem:[#allocation2 + $0x4c] sm:$0xff]
      %v2358 = vld [vmem:[#allocation2 + $0x54] sm:$0xff]
      %v2359 = vld [vmem:[#allocation2 + $0x5c] sm:$0xff]
      %v2360 = vld [vmem:[#allocation2 + $0x64] sm:$0xff]
      %v2361 = vld [vmem:[#allocation2 + $0x6c] sm:$0xff]
      %v2362 = vld [vmem:[#allocation2 + $0x74] sm:$0xff]
      %v2363 = vld [vmem:[#allocation2 + $0x7c] sm:$0xff]
      %v2364 = vld [vmem:[#allocation2 + $0x84] sm:$0xff]
      %v2365 = vld [vmem:[#allocation2 + $0x8c] sm:$0xff]
      %v2366 = vld [vmem:[#allocation2 + $0x94] sm:$0xff]
      %v2367 = vld [vmem:[#allocation2 + $0x9c] sm:$0xff]
      %v2368 = vld [vmem:[#allocation2 + $0xa4] sm:$0xff]
      %v2369 = vld [vmem:[#allocation2 + $0xac] sm:$0xff]
      %v2370 = vld [vmem:[#allocation2 + $0xb4] sm:$0xff]
      %v2371 = vld [vmem:[#allocation2 + $0xbc] sm:$0xff]
      %v2372 = vld [vmem:[#allocation2 + $0xc4] sm:$0xff]
      %v2373 = vld [vmem:[#allocation2 + $0xcc] sm:$0xff]
      %v2374 = vld [vmem:[#allocation2 + $0xd4] sm:$0xff]
      %v2375 = vld [vmem:[#allocation2 + $0xdc] sm:$0xff]
      %v2376 = vld [vmem:[#allocation2 + $0xe4] sm:$0xff]
      %v2377 = vld [vmem:[#allocation2 + $0xec] sm:$0xff]
      %v2378 = vld [vmem:[#allocation2 + $0xf4] sm:$0xff]
      %v2379 = vld [vmem:[#allocation2 + $0xfc] sm:$0xff]
      %v2380 = vld [vmem:[#allocation2 + $0x104] sm:$0xff]
      %v2381 = vld [vmem:[#allocation2 + $0x10c] sm:$0xff]
      %v2382 = vld [vmem:[#allocation2 + $0x114] sm:$0xff]
      %v2383 = vld [vmem:[#allocation2 + $0x11c] sm:$0xff]
      %v2384 = vld [vmem:[#allocation2 + $0x124] sm:$0xff]
      %v2385 = vld [vmem:[#allocation2 + $0x12c] sm:$0xff]
      %v2386 = vpack.c.bf16 %v2351, %v2350
      %v2387 = vpack.c.bf16 %v2353, %v2352
      %v2388 = vpack.c.bf16 %v2355, %v2354
      %v2389 = vpack.c.bf16 %v2357, %v2356
      %v2390 = vpack.c.bf16 %v2359, %v2358
      %v2391 = vpack.c.bf16 %v2361, %v2360
      %v2392 = vpack.c.bf16 %v2363, %v2362
      %v2393 = vpack.c.bf16 %v2365, %v2364
      %v2394 = vpack.c.bf16 %v2367, %v2366
      %v2395 = vpack.c.bf16 %v2369, %v2368
      %v2396 = vpack.c.bf16 %v2371, %v2370
      %v2397 = vpack.c.bf16 %v2373, %v2372
      %v2398 = vpack.c.bf16 %v2375, %v2374
      %v2399 = vpack.c.bf16 %v2377, %v2376
      %v2400 = vpack.c.bf16 %v2379, %v2378
      %v2401 = vpack.c.bf16 %v2381, %v2380
      %v2402 = vpack.c.bf16 %v2383, %v2382
      %v2403 = vpack.c.bf16 %v2385, %v2384
      %v2404 = vld [vmem:[#allocation3] sm:$0xff]
      %v2405 = vld [vmem:[#allocation3 + $0x8] sm:$0xff]
      %v2406 = vld [vmem:[#allocation3 + $0x10] sm:$0xff]
      %v2407 = vld [vmem:[#allocation3 + $0x18] sm:$0xff]
      %v2408 = vld [vmem:[#allocation3 + $0x20] sm:$0xff]
      %v2409 = vld [vmem:[#allocation3 + $0x28] sm:$0xff]
      %v2410 = vld [vmem:[#allocation3 + $0x30] sm:$0xff]
      %v2411 = vld [vmem:[#allocation3 + $0x38] sm:$0xff]
      %v2412 = vld [vmem:[#allocation3 + $0x40] sm:$0xff]
      %v2413 = vld [vmem:[#allocation3 + $0x48] sm:$0xff]
      %v2414 = vld [vmem:[#allocation3 + $0x50] sm:$0xff]
      %v2415 = vld [vmem:[#allocation3 + $0x58] sm:$0xff]
      %v2416 = vld [vmem:[#allocation3 + $0x60] sm:$0xff]
      %v2417 = vld [vmem:[#allocation3 + $0x68] sm:$0xff]
      %v2418 = vld [vmem:[#allocation3 + $0x70] sm:$0xff]
      %v2419 = vld [vmem:[#allocation3 + $0x78] sm:$0xff]
      %v2420 = vld [vmem:[#allocation3 + $0x80] sm:$0xff]
      %v2421 = vld [vmem:[#allocation3 + $0x88] sm:$0xff]
      %v2422 = vld [vmem:[#allocation3 + $0x90] sm:$0xff]
      %v2423 = vld [vmem:[#allocation3 + $0x98] sm:$0xff]
      %v2424 = vld [vmem:[#allocation3 + $0xa0] sm:$0xff]
      %v2425 = vld [vmem:[#allocation3 + $0xa8] sm:$0xff]
      %v2426 = vld [vmem:[#allocation3 + $0xb0] sm:$0xff]
      %v2427 = vld [vmem:[#allocation3 + $0xb8] sm:$0xff]
      %v2428 = vld [vmem:[#allocation3 + $0xc0] sm:$0xff]
      %v2429 = vld [vmem:[#allocation3 + $0xc8] sm:$0xff]
      %v2430 = vld [vmem:[#allocation3 + $0xd0] sm:$0xff]
      %v2431 = vld [vmem:[#allocation3 + $0xd8] sm:$0xff]
      %v2432 = vld [vmem:[#allocation3 + $0xe0] sm:$0xff]
      %v2433 = vld [vmem:[#allocation3 + $0xe8] sm:$0xff]
      %v2434 = vld [vmem:[#allocation3 + $0xf0] sm:$0xff]
      %v2435 = vld [vmem:[#allocation3 + $0xf8] sm:$0xff]
      %v2436 = vld [vmem:[#allocation3 + $0x100] sm:$0xff]
      %v2437 = vld [vmem:[#allocation3 + $0x108] sm:$0xff]
      %v2438 = vld [vmem:[#allocation3 + $0x110] sm:$0xff]
      %v2439 = vld [vmem:[#allocation3 + $0x118] sm:$0xff]
      %s2440 = scalar_lea.vmem %s1, 10
      %v2441 = vld [vmem:[%s2440] sm:$0x3]
      %v2443 = vsel %vm281, %v2386, 0
      %v2446 = vsel %vm281, %v2387, 0
      %v2449 = vsel %vm281, %v2388, 0
      %v2452 = vsel %vm281, %v2389, 0
      %v2455 = vsel %vm281, %v2390, 0
      %v2458 = vsel %vm281, %v2391, 0
      %v2461 = vsel %vm281, %v2392, 0
      %v2464 = vsel %vm281, %v2393, 0
      %v2467 = vsel %vm281, %v2394, 0
      %v2470 = vsel %vm281, %v2395, 0
      %v2473 = vsel %vm281, %v2396, 0
      %v2476 = vsel %vm281, %v2397, 0
      %v2479 = vsel %vm281, %v2398, 0
      %v2482 = vsel %vm281, %v2399, 0
      %v2485 = vsel %vm281, %v2400, 0
      %v2488 = vsel %vm281, %v2401, 0
      %v2491 = vsel %vm281, %v2402, 0
      %v2494 = vsel %vm281, %v2403, 0
      %v2497 = vsel %vm505, %v2441, 0
      %2499 = vmatprep.subr.bf16.mxu0 0
      %2500 = vmatpush1.bf16.msra.mxu0 0
      %2501 = vmatprep.subr.bf16.mxu0 0
      %2502 = vmatpush1.bf16.msra.mxu0 0
      %2503 = vmatprep.subr.bf16.mxu0 0
      %2504 = vmatpush1.bf16.msra.mxu0 0
      %2505 = vmatprep.subr.bf16.mxu0 0
      %2506 = vmatpush1.bf16.msra.mxu0 0
      %2507 = vmatprep.subr.bf16.mxu0 0
      %2508 = vmatpush1.bf16.msra.mxu0 0
      %2509 = vmatprep.subr.bf16.mxu0 0
      %2510 = vmatpush1.bf16.msra.mxu0 0
      %2511 = vmatprep.subr.bf16.mxu0 0
      %2512 = vmatpush1.bf16.msra.mxu0 0
      %2513 = vmatprep.subr.bf16.mxu0 0
      %2514 = vmatpush1.bf16.msra.mxu0 %v2497
      %2515 = vmatprep.subr.bf16.mxu0 0
      %2516 = vmatpush2.bf16.msra.mxu0 0
      %2517 = vmatprep.subr.bf16.mxu0 0
      %2518 = vmatpush2.bf16.msra.mxu0 0
      %2519 = vmatprep.subr.bf16.mxu0 0
      %2520 = vmatpush2.bf16.msra.mxu0 0
      %2521 = vmatprep.subr.bf16.mxu0 0
      %2522 = vmatpush2.bf16.msra.mxu0 0
      %2523 = vmatprep.subr.bf16.mxu0 0
      %2524 = vmatpush2.bf16.msra.mxu0 0
      %2525 = vmatprep.subr.bf16.mxu0 0
      %2526 = vmatpush2.bf16.msra.mxu0 0
      %2527 = vmatprep.subr.bf16.mxu0 0
      %2528 = vmatpush2.bf16.msra.mxu0 0
      %2529 = vmatprep.subr.bf16.mxu0 0
      %2530 = vmatpush2.bf16.msra.mxu0 0
      %2531 = vmatprep.mubr.bf16.mxu0 0
      %2532 = vmatmul.mubr.bf16.gmra.mxu0 %v2443
      %v2533 = vpop.f32.mrf.mxu0
      %v2534 = vadd.f32 0.0, %v2533
      %v2535 = vpop.f32.mrf.mxu0
      %v2536 = vpop.f32.mrf.mxu0
      %v2537 = vadd.f32 0.0, %v2536
      %v2538 = vpop.f32.mrf.mxu0
      %2539 = vmatprep.mubr.bf16.mxu0 0
      %2540 = vmatmul.mubr.bf16.gmra.mxu0 %v2446
      %v2541 = vpop.f32.mrf.mxu0
      %v2542 = vadd.f32 0.0, %v2541
      %v2543 = vpop.f32.mrf.mxu0
      %v2544 = vpop.f32.mrf.mxu0
      %v2545 = vadd.f32 0.0, %v2544
      %v2546 = vpop.f32.mrf.mxu0
      %2547 = vmatprep.mubr.bf16.mxu0 0
      %2548 = vmatmul.mubr.bf16.gmra.mxu0 %v2449
      %v2549 = vpop.f32.mrf.mxu0
      %v2550 = vadd.f32 0.0, %v2549
      %v2551 = vpop.f32.mrf.mxu0
      %v2552 = vpop.f32.mrf.mxu0
      %v2553 = vadd.f32 0.0, %v2552
      %v2554 = vpop.f32.mrf.mxu0
      %2555 = vmatprep.mubr.bf16.mxu0 0
      %2556 = vmatmul.mubr.bf16.gmra.mxu0 %v2452
      %v2557 = vpop.f32.mrf.mxu0
      %v2558 = vadd.f32 0.0, %v2557
      %v2559 = vpop.f32.mrf.mxu0
      %v2560 = vpop.f32.mrf.mxu0
      %v2561 = vadd.f32 0.0, %v2560
      %v2562 = vpop.f32.mrf.mxu0
      %2563 = vmatprep.mubr.bf16.mxu0 0
      %2564 = vmatmul.mubr.bf16.gmra.mxu0 %v2455
      %v2565 = vpop.f32.mrf.mxu0
      %v2566 = vadd.f32 0.0, %v2565
      %v2567 = vpop.f32.mrf.mxu0
      %v2568 = vpop.f32.mrf.mxu0
      %v2569 = vadd.f32 0.0, %v2568
      %v2570 = vpop.f32.mrf.mxu0
      %2571 = vmatprep.mubr.bf16.mxu0 0
      %2572 = vmatmul.mubr.bf16.gmra.mxu0 %v2458
      %v2573 = vpop.f32.mrf.mxu0
      %v2574 = vadd.f32 0.0, %v2573
      %v2575 = vpop.f32.mrf.mxu0
      %v2576 = vpop.f32.mrf.mxu0
      %v2577 = vadd.f32 0.0, %v2576
      %v2578 = vpop.f32.mrf.mxu0
      %2579 = vmatprep.mubr.bf16.mxu0 0
      %2580 = vmatmul.mubr.bf16.gmra.mxu0 %v2461
      %v2581 = vpop.f32.mrf.mxu0
      %v2582 = vadd.f32 0.0, %v2581
      %v2583 = vpop.f32.mrf.mxu0
      %v2584 = vpop.f32.mrf.mxu0
      %v2585 = vadd.f32 0.0, %v2584
      %v2586 = vpop.f32.mrf.mxu0
      %2587 = vmatprep.mubr.bf16.mxu0 0
      %2588 = vmatmul.mubr.bf16.gmra.mxu0 %v2464
      %v2589 = vpop.f32.mrf.mxu0
      %v2590 = vadd.f32 0.0, %v2589
      %v2591 = vpop.f32.mrf.mxu0
      %v2592 = vpop.f32.mrf.mxu0
      %v2593 = vadd.f32 0.0, %v2592
      %v2594 = vpop.f32.mrf.mxu0
      %2595 = vmatprep.mubr.bf16.mxu0 0
      %2596 = vmatmul.mubr.bf16.gmra.mxu0 %v2467
      %v2597 = vpop.f32.mrf.mxu0
      %v2598 = vadd.f32 0.0, %v2597
      %v2599 = vpop.f32.mrf.mxu0
      %v2600 = vpop.f32.mrf.mxu0
      %v2601 = vadd.f32 0.0, %v2600
      %v2602 = vpop.f32.mrf.mxu0
      %2603 = vmatprep.mubr.bf16.mxu0 0
      %2604 = vmatmul.mubr.bf16.gmra.mxu0 %v2470
      %v2605 = vpop.f32.mrf.mxu0
      %v2606 = vadd.f32 0.0, %v2605
      %v2607 = vpop.f32.mrf.mxu0
      %v2608 = vpop.f32.mrf.mxu0
      %v2609 = vadd.f32 0.0, %v2608
      %v2610 = vpop.f32.mrf.mxu0
      %2611 = vmatprep.mubr.bf16.mxu0 0
      %2612 = vmatmul.mubr.bf16.gmra.mxu0 %v2473
      %v2613 = vpop.f32.mrf.mxu0
      %v2614 = vadd.f32 0.0, %v2613
      %v2615 = vpop.f32.mrf.mxu0
      %v2616 = vpop.f32.mrf.mxu0
      %v2617 = vadd.f32 0.0, %v2616
      %v2618 = vpop.f32.mrf.mxu0
      %2619 = vmatprep.mubr.bf16.mxu0 0
      %2620 = vmatmul.mubr.bf16.gmra.mxu0 %v2476
      %v2621 = vpop.f32.mrf.mxu0
      %v2622 = vadd.f32 0.0, %v2621
      %v2623 = vpop.f32.mrf.mxu0
      %v2624 = vpop.f32.mrf.mxu0
      %v2625 = vadd.f32 0.0, %v2624
      %v2626 = vpop.f32.mrf.mxu0
      %2627 = vmatprep.mubr.bf16.mxu0 0
      %2628 = vmatmul.mubr.bf16.gmra.mxu0 %v2479
      %v2629 = vpop.f32.mrf.mxu0
      %v2630 = vadd.f32 0.0, %v2629
      %v2631 = vpop.f32.mrf.mxu0
      %v2632 = vpop.f32.mrf.mxu0
      %v2633 = vadd.f32 0.0, %v2632
      %v2634 = vpop.f32.mrf.mxu0
      %2635 = vmatprep.mubr.bf16.mxu0 0
      %2636 = vmatmul.mubr.bf16.gmra.mxu0 %v2482
      %v2637 = vpop.f32.mrf.mxu0
      %v2638 = vadd.f32 0.0, %v2637
      %v2639 = vpop.f32.mrf.mxu0
      %v2640 = vpop.f32.mrf.mxu0
      %v2641 = vadd.f32 0.0, %v2640
      %v2642 = vpop.f32.mrf.mxu0
      %2643 = vmatprep.mubr.bf16.mxu0 0
      %2644 = vmatmul.mubr.bf16.gmra.mxu0 %v2485
      %v2645 = vpop.f32.mrf.mxu0
      %v2646 = vadd.f32 0.0, %v2645
      %v2647 = vpop.f32.mrf.mxu0
      %v2648 = vpop.f32.mrf.mxu0
      %v2649 = vadd.f32 0.0, %v2648
      %v2650 = vpop.f32.mrf.mxu0
      %2651 = vmatprep.mubr.bf16.mxu0 0
      %2652 = vmatmul.mubr.bf16.gmra.mxu0 %v2488
      %v2653 = vpop.f32.mrf.mxu0
      %v2654 = vadd.f32 0.0, %v2653
      %v2655 = vpop.f32.mrf.mxu0
      %v2656 = vpop.f32.mrf.mxu0
      %v2657 = vadd.f32 0.0, %v2656
      %v2658 = vpop.f32.mrf.mxu0
      %2659 = vmatprep.mubr.bf16.mxu0 0
      %2660 = vmatmul.mubr.bf16.gmra.mxu0 %v2491
      %v2661 = vpop.f32.mrf.mxu0
      %v2662 = vadd.f32 0.0, %v2661
      %v2663 = vpop.f32.mrf.mxu0
      %v2664 = vpop.f32.mrf.mxu0
      %v2665 = vadd.f32 0.0, %v2664
      %v2666 = vpop.f32.mrf.mxu0
      %2667 = vmatprep.mubr.bf16.mxu0 0
      %2668 = vmatmul.mubr.bf16.gmra.mxu0 %v2494
      %v2669 = vpop.f32.mrf.mxu0
      %v2670 = vadd.f32 0.0, %v2669
      %v2671 = vpop.f32.mrf.mxu0
      %v2672 = vpop.f32.mrf.mxu0
      %v2673 = vadd.f32 0.0, %v2672
      %v2674 = vpop.f32.mrf.mxu0
      %2675 = vdwg.mxu0
      %v2676 = vadd.f32 %v2404, %v2534
      %v2677 = vadd.f32 %v2405, %v2537
      %v2678 = vadd.f32 %v2406, %v2542
      %v2679 = vadd.f32 %v2407, %v2545
      %v2680 = vadd.f32 %v2408, %v2550
      %v2681 = vadd.f32 %v2409, %v2553
      %v2682 = vadd.f32 %v2410, %v2558
      %v2683 = vadd.f32 %v2411, %v2561
      %v2684 = vadd.f32 %v2412, %v2566
      %v2685 = vadd.f32 %v2413, %v2569
      %v2686 = vadd.f32 %v2414, %v2574
      %v2687 = vadd.f32 %v2415, %v2577
      %v2688 = vadd.f32 %v2416, %v2582
      %v2689 = vadd.f32 %v2417, %v2585
      %v2690 = vadd.f32 %v2418, %v2590
      %v2691 = vadd.f32 %v2419, %v2593
      %v2692 = vadd.f32 %v2420, %v2598
      %v2693 = vadd.f32 %v2421, %v2601
      %v2694 = vadd.f32 %v2422, %v2606
      %v2695 = vadd.f32 %v2423, %v2609
      %v2696 = vadd.f32 %v2424, %v2614
      %v2697 = vadd.f32 %v2425, %v2617
      %v2698 = vadd.f32 %v2426, %v2622
      %v2699 = vadd.f32 %v2427, %v2625
      %v2700 = vadd.f32 %v2428, %v2630
      %v2701 = vadd.f32 %v2429, %v2633
      %v2702 = vadd.f32 %v2430, %v2638
      %v2703 = vadd.f32 %v2431, %v2641
      %v2704 = vadd.f32 %v2432, %v2646
      %v2705 = vadd.f32 %v2433, %v2649
      %v2706 = vadd.f32 %v2434, %v2654
      %v2707 = vadd.f32 %v2435, %v2657
      %v2708 = vadd.f32 %v2436, %v2662
      %v2709 = vadd.f32 %v2437, %v2665
      %v2710 = vadd.f32 %v2438, %v2670
      %v2711 = vadd.f32 %v2439, %v2673
      %2712 = vst.msk [vmem:[#allocation3] sm:$0xff] %vm323, %v2676
      %2713 = vst.msk [vmem:[#allocation3 + $0x8] sm:$0xff] %vm323, %v2677
      %2714 = vst.msk [vmem:[#allocation3 + $0x10] sm:$0xff] %vm323, %v2678
      %2715 = vst.msk [vmem:[#allocation3 + $0x18] sm:$0xff] %vm323, %v2679
      %2716 = vst.msk [vmem:[#allocation3 + $0x20] sm:$0xff] %vm323, %v2680
      %2717 = vst.msk [vmem:[#allocation3 + $0x28] sm:$0xff] %vm323, %v2681
      %2718 = vst.msk [vmem:[#allocation3 + $0x30] sm:$0xff] %vm323, %v2682
      %2719 = vst.msk [vmem:[#allocation3 + $0x38] sm:$0xff] %vm323, %v2683
      %2720 = vst.msk [vmem:[#allocation3 + $0x40] sm:$0xff] %vm323, %v2684
      %2721 = vst.msk [vmem:[#allocation3 + $0x48] sm:$0xff] %vm323, %v2685
      %2722 = vst.msk [vmem:[#allocation3 + $0x50] sm:$0xff] %vm323, %v2686
      %2723 = vst.msk [vmem:[#allocation3 + $0x58] sm:$0xff] %vm323, %v2687
      %2724 = vst.msk [vmem:[#allocation3 + $0x60] sm:$0xff] %vm323, %v2688
      %2725 = vst.msk [vmem:[#allocation3 + $0x68] sm:$0xff] %vm323, %v2689
      %2726 = vst.msk [vmem:[#allocation3 + $0x70] sm:$0xff] %vm323, %v2690
      %2727 = vst.msk [vmem:[#allocation3 + $0x78] sm:$0xff] %vm323, %v2691
      %2728 = vst.msk [vmem:[#allocation3 + $0x80] sm:$0xff] %vm323, %v2692
      %2729 = vst.msk [vmem:[#allocation3 + $0x88] sm:$0xff] %vm323, %v2693
      %2730 = vst.msk [vmem:[#allocation3 + $0x90] sm:$0xff] %vm323, %v2694
      %2731 = vst.msk [vmem:[#allocation3 + $0x98] sm:$0xff] %vm323, %v2695
      %2732 = vst.msk [vmem:[#allocation3 + $0xa0] sm:$0xff] %vm323, %v2696
      %2733 = vst.msk [vmem:[#allocation3 + $0xa8] sm:$0xff] %vm323, %v2697
      %2734 = vst.msk [vmem:[#allocation3 + $0xb0] sm:$0xff] %vm323, %v2698
      %2735 = vst.msk [vmem:[#allocation3 + $0xb8] sm:$0xff] %vm323, %v2699
      %2736 = vst.msk [vmem:[#allocation3 + $0xc0] sm:$0xff] %vm323, %v2700
      %2737 = vst.msk [vmem:[#allocation3 + $0xc8] sm:$0xff] %vm323, %v2701
      %2738 = vst.msk [vmem:[#allocation3 + $0xd0] sm:$0xff] %vm323, %v2702
      %2739 = vst.msk [vmem:[#allocation3 + $0xd8] sm:$0xff] %vm323, %v2703
      %2740 = vst.msk [vmem:[#allocation3 + $0xe0] sm:$0xff] %vm323, %v2704
      %2741 = vst.msk [vmem:[#allocation3 + $0xe8] sm:$0xff] %vm323, %v2705
      %2742 = vst.msk [vmem:[#allocation3 + $0xf0] sm:$0xff] %vm323, %v2706
      %2743 = vst.msk [vmem:[#allocation3 + $0xf8] sm:$0xff] %vm323, %v2707
      %2744 = vst.msk [vmem:[#allocation3 + $0x100] sm:$0xff] %vm323, %v2708
      %2745 = vst.msk [vmem:[#allocation3 + $0x108] sm:$0xff] %vm323, %v2709
      %2746 = vst.msk [vmem:[#allocation3 + $0x110] sm:$0xff] %vm323, %v2710
      %2747 = vst.msk [vmem:[#allocation3 + $0x118] sm:$0xff] %vm323, %v2711
      %v2748 = vld [vmem:[#allocation2 + $0x24] sm:$0xff]
      %v2749 = vld [vmem:[#allocation2 + $0x2c] sm:$0xff]
      %v2750 = vld [vmem:[#allocation2 + $0x34] sm:$0xff]
      %v2751 = vld [vmem:[#allocation2 + $0x3c] sm:$0xff]
      %v2752 = vld [vmem:[#allocation2 + $0x44] sm:$0xff]
      %v2753 = vld [vmem:[#allocation2 + $0x4c] sm:$0xff]
      %v2754 = vld [vmem:[#allocation2 + $0x54] sm:$0xff]
      %v2755 = vld [vmem:[#allocation2 + $0x5c] sm:$0xff]
      %v2756 = vld [vmem:[#allocation2 + $0x64] sm:$0xff]
      %v2757 = vld [vmem:[#allocation2 + $0x6c] sm:$0xff]
      %v2758 = vld [vmem:[#allocation2 + $0x74] sm:$0xff]
      %v2759 = vld [vmem:[#allocation2 + $0x7c] sm:$0xff]
      %v2760 = vld [vmem:[#allocation2 + $0x84] sm:$0xff]
      %v2761 = vld [vmem:[#allocation2 + $0x8c] sm:$0xff]
      %v2762 = vld [vmem:[#allocation2 + $0x94] sm:$0xff]
      %v2763 = vld [vmem:[#allocation2 + $0x9c] sm:$0xff]
      %v2764 = vld [vmem:[#allocation2 + $0xa4] sm:$0xff]
      %v2765 = vld [vmem:[#allocation2 + $0xac] sm:$0xff]
      %v2766 = vld [vmem:[#allocation2 + $0xb4] sm:$0xff]
      %v2767 = vld [vmem:[#allocation2 + $0xbc] sm:$0xff]
      %v2768 = vld [vmem:[#allocation2 + $0xc4] sm:$0xff]
      %v2769 = vld [vmem:[#allocation2 + $0xcc] sm:$0xff]
      %v2770 = vld [vmem:[#allocation2 + $0xd4] sm:$0xff]
      %v2771 = vld [vmem:[#allocation2 + $0xdc] sm:$0xff]
      %v2772 = vld [vmem:[#allocation2 + $0xe4] sm:$0xff]
      %v2773 = vld [vmem:[#allocation2 + $0xec] sm:$0xff]
      %v2774 = vld [vmem:[#allocation2 + $0xf4] sm:$0xff]
      %v2775 = vld [vmem:[#allocation2 + $0xfc] sm:$0xff]
      %v2776 = vld [vmem:[#allocation2 + $0x104] sm:$0xff]
      %v2777 = vld [vmem:[#allocation2 + $0x10c] sm:$0xff]
      %v2778 = vld [vmem:[#allocation2 + $0x114] sm:$0xff]
      %v2779 = vld [vmem:[#allocation2 + $0x11c] sm:$0xff]
      %v2780 = vld [vmem:[#allocation2 + $0x124] sm:$0xff]
      %v2781 = vld [vmem:[#allocation2 + $0x12c] sm:$0xff]
      %v2782 = vld [vmem:[#allocation2 + $0x134] sm:$0xff]
      %v2783 = vld [vmem:[#allocation2 + $0x13c] sm:$0xff]
      %v2784 = vpack.c.bf16 %v2749, %v2748
      %v2785 = vpack.c.bf16 %v2751, %v2750
      %v2786 = vpack.c.bf16 %v2753, %v2752
      %v2787 = vpack.c.bf16 %v2755, %v2754
      %v2788 = vpack.c.bf16 %v2757, %v2756
      %v2789 = vpack.c.bf16 %v2759, %v2758
      %v2790 = vpack.c.bf16 %v2761, %v2760
      %v2791 = vpack.c.bf16 %v2763, %v2762
      %v2792 = vpack.c.bf16 %v2765, %v2764
      %v2793 = vpack.c.bf16 %v2767, %v2766
      %v2794 = vpack.c.bf16 %v2769, %v2768
      %v2795 = vpack.c.bf16 %v2771, %v2770
      %v2796 = vpack.c.bf16 %v2773, %v2772
      %v2797 = vpack.c.bf16 %v2775, %v2774
      %v2798 = vpack.c.bf16 %v2777, %v2776
      %v2799 = vpack.c.bf16 %v2779, %v2778
      %v2800 = vpack.c.bf16 %v2781, %v2780
      %v2801 = vpack.c.bf16 %v2783, %v2782
      %v2802 = vld [vmem:[#allocation3] sm:$0xff]
      %v2803 = vld [vmem:[#allocation3 + $0x8] sm:$0xff]
      %v2804 = vld [vmem:[#allocation3 + $0x10] sm:$0xff]
      %v2805 = vld [vmem:[#allocation3 + $0x18] sm:$0xff]
      %v2806 = vld [vmem:[#allocation3 + $0x20] sm:$0xff]
      %v2807 = vld [vmem:[#allocation3 + $0x28] sm:$0xff]
      %v2808 = vld [vmem:[#allocation3 + $0x30] sm:$0xff]
      %v2809 = vld [vmem:[#allocation3 + $0x38] sm:$0xff]
      %v2810 = vld [vmem:[#allocation3 + $0x40] sm:$0xff]
      %v2811 = vld [vmem:[#allocation3 + $0x48] sm:$0xff]
      %v2812 = vld [vmem:[#allocation3 + $0x50] sm:$0xff]
      %v2813 = vld [vmem:[#allocation3 + $0x58] sm:$0xff]
      %v2814 = vld [vmem:[#allocation3 + $0x60] sm:$0xff]
      %v2815 = vld [vmem:[#allocation3 + $0x68] sm:$0xff]
      %v2816 = vld [vmem:[#allocation3 + $0x70] sm:$0xff]
      %v2817 = vld [vmem:[#allocation3 + $0x78] sm:$0xff]
      %v2818 = vld [vmem:[#allocation3 + $0x80] sm:$0xff]
      %v2819 = vld [vmem:[#allocation3 + $0x88] sm:$0xff]
      %v2820 = vld [vmem:[#allocation3 + $0x90] sm:$0xff]
      %v2821 = vld [vmem:[#allocation3 + $0x98] sm:$0xff]
      %v2822 = vld [vmem:[#allocation3 + $0xa0] sm:$0xff]
      %v2823 = vld [vmem:[#allocation3 + $0xa8] sm:$0xff]
      %v2824 = vld [vmem:[#allocation3 + $0xb0] sm:$0xff]
      %v2825 = vld [vmem:[#allocation3 + $0xb8] sm:$0xff]
      %v2826 = vld [vmem:[#allocation3 + $0xc0] sm:$0xff]
      %v2827 = vld [vmem:[#allocation3 + $0xc8] sm:$0xff]
      %v2828 = vld [vmem:[#allocation3 + $0xd0] sm:$0xff]
      %v2829 = vld [vmem:[#allocation3 + $0xd8] sm:$0xff]
      %v2830 = vld [vmem:[#allocation3 + $0xe0] sm:$0xff]
      %v2831 = vld [vmem:[#allocation3 + $0xe8] sm:$0xff]
      %v2832 = vld [vmem:[#allocation3 + $0xf0] sm:$0xff]
      %v2833 = vld [vmem:[#allocation3 + $0xf8] sm:$0xff]
      %v2834 = vld [vmem:[#allocation3 + $0x100] sm:$0xff]
      %v2835 = vld [vmem:[#allocation3 + $0x108] sm:$0xff]
      %v2836 = vld [vmem:[#allocation3 + $0x110] sm:$0xff]
      %v2837 = vld [vmem:[#allocation3 + $0x118] sm:$0xff]
      %s2838 = scalar_lea.vmem %s1, 12
      %v2839 = vld [vmem:[%s2838] sm:$0x3]
      %v2841 = vsel %vm281, %v2784, 0
      %v2844 = vsel %vm281, %v2785, 0
      %v2847 = vsel %vm281, %v2786, 0
      %v2850 = vsel %vm281, %v2787, 0
      %v2853 = vsel %vm281, %v2788, 0
      %v2856 = vsel %vm281, %v2789, 0
      %v2859 = vsel %vm281, %v2790, 0
      %v2862 = vsel %vm281, %v2791, 0
      %v2865 = vsel %vm281, %v2792, 0
      %v2868 = vsel %vm281, %v2793, 0
      %v2871 = vsel %vm281, %v2794, 0
      %v2874 = vsel %vm281, %v2795, 0
      %v2877 = vsel %vm281, %v2796, 0
      %v2880 = vsel %vm281, %v2797, 0
      %v2883 = vsel %vm281, %v2798, 0
      %v2886 = vsel %vm281, %v2799, 0
      %v2889 = vsel %vm281, %v2800, 0
      %v2892 = vsel %vm281, %v2801, 0
      %v2895 = vsel %vm505, %v2839, 0
      %2897 = vmatprep.subr.bf16.mxu0 0
      %2898 = vmatpush1.bf16.msra.mxu0 0
      %2899 = vmatprep.subr.bf16.mxu0 0
      %2900 = vmatpush1.bf16.msra.mxu0 0
      %2901 = vmatprep.subr.bf16.mxu0 0
      %2902 = vmatpush1.bf16.msra.mxu0 0
      %2903 = vmatprep.subr.bf16.mxu0 0
      %2904 = vmatpush1.bf16.msra.mxu0 0
      %2905 = vmatprep.subr.bf16.mxu0 0
      %2906 = vmatpush1.bf16.msra.mxu0 0
      %2907 = vmatprep.subr.bf16.mxu0 0
      %2908 = vmatpush1.bf16.msra.mxu0 0
      %2909 = vmatprep.subr.bf16.mxu0 0
      %2910 = vmatpush1.bf16.msra.mxu0 0
      %2911 = vmatprep.subr.bf16.mxu0 0
      %2912 = vmatpush1.bf16.msra.mxu0 %v2895
      %2913 = vmatprep.subr.bf16.mxu0 0
      %2914 = vmatpush2.bf16.msra.mxu0 0
      %2915 = vmatprep.subr.bf16.mxu0 0
      %2916 = vmatpush2.bf16.msra.mxu0 0
      %2917 = vmatprep.subr.bf16.mxu0 0
      %2918 = vmatpush2.bf16.msra.mxu0 0
      %2919 = vmatprep.subr.bf16.mxu0 0
      %2920 = vmatpush2.bf16.msra.mxu0 0
      %2921 = vmatprep.subr.bf16.mxu0 0
      %2922 = vmatpush2.bf16.msra.mxu0 0
      %2923 = vmatprep.subr.bf16.mxu0 0
      %2924 = vmatpush2.bf16.msra.mxu0 0
      %2925 = vmatprep.subr.bf16.mxu0 0
      %2926 = vmatpush2.bf16.msra.mxu0 0
      %2927 = vmatprep.subr.bf16.mxu0 0
      %2928 = vmatpush2.bf16.msra.mxu0 0
      %2929 = vmatprep.mubr.bf16.mxu0 0
      %2930 = vmatmul.mubr.bf16.gmra.mxu0 %v2841
      %v2931 = vpop.f32.mrf.mxu0
      %v2932 = vadd.f32 0.0, %v2931
      %v2933 = vpop.f32.mrf.mxu0
      %v2934 = vpop.f32.mrf.mxu0
      %v2935 = vadd.f32 0.0, %v2934
      %v2936 = vpop.f32.mrf.mxu0
      %2937 = vmatprep.mubr.bf16.mxu0 0
      %2938 = vmatmul.mubr.bf16.gmra.mxu0 %v2844
      %v2939 = vpop.f32.mrf.mxu0
      %v2940 = vadd.f32 0.0, %v2939
      %v2941 = vpop.f32.mrf.mxu0
      %v2942 = vpop.f32.mrf.mxu0
      %v2943 = vadd.f32 0.0, %v2942
      %v2944 = vpop.f32.mrf.mxu0
      %2945 = vmatprep.mubr.bf16.mxu0 0
      %2946 = vmatmul.mubr.bf16.gmra.mxu0 %v2847
      %v2947 = vpop.f32.mrf.mxu0
      %v2948 = vadd.f32 0.0, %v2947
      %v2949 = vpop.f32.mrf.mxu0
      %v2950 = vpop.f32.mrf.mxu0
      %v2951 = vadd.f32 0.0, %v2950
      %v2952 = vpop.f32.mrf.mxu0
      %2953 = vmatprep.mubr.bf16.mxu0 0
      %2954 = vmatmul.mubr.bf16.gmra.mxu0 %v2850
      %v2955 = vpop.f32.mrf.mxu0
      %v2956 = vadd.f32 0.0, %v2955
      %v2957 = vpop.f32.mrf.mxu0
      %v2958 = vpop.f32.mrf.mxu0
      %v2959 = vadd.f32 0.0, %v2958
      %v2960 = vpop.f32.mrf.mxu0
      %2961 = vmatprep.mubr.bf16.mxu0 0
      %2962 = vmatmul.mubr.bf16.gmra.mxu0 %v2853
      %v2963 = vpop.f32.mrf.mxu0
      %v2964 = vadd.f32 0.0, %v2963
      %v2965 = vpop.f32.mrf.mxu0
      %v2966 = vpop.f32.mrf.mxu0
      %v2967 = vadd.f32 0.0, %v2966
      %v2968 = vpop.f32.mrf.mxu0
      %2969 = vmatprep.mubr.bf16.mxu0 0
      %2970 = vmatmul.mubr.bf16.gmra.mxu0 %v2856
      %v2971 = vpop.f32.mrf.mxu0
      %v2972 = vadd.f32 0.0, %v2971
      %v2973 = vpop.f32.mrf.mxu0
      %v2974 = vpop.f32.mrf.mxu0
      %v2975 = vadd.f32 0.0, %v2974
      %v2976 = vpop.f32.mrf.mxu0
      %2977 = vmatprep.mubr.bf16.mxu0 0
      %2978 = vmatmul.mubr.bf16.gmra.mxu0 %v2859
      %v2979 = vpop.f32.mrf.mxu0
      %v2980 = vadd.f32 0.0, %v2979
      %v2981 = vpop.f32.mrf.mxu0
      %v2982 = vpop.f32.mrf.mxu0
      %v2983 = vadd.f32 0.0, %v2982
      %v2984 = vpop.f32.mrf.mxu0
      %2985 = vmatprep.mubr.bf16.mxu0 0
      %2986 = vmatmul.mubr.bf16.gmra.mxu0 %v2862
      %v2987 = vpop.f32.mrf.mxu0
      %v2988 = vadd.f32 0.0, %v2987
      %v2989 = vpop.f32.mrf.mxu0
      %v2990 = vpop.f32.mrf.mxu0
      %v2991 = vadd.f32 0.0, %v2990
      %v2992 = vpop.f32.mrf.mxu0
      %2993 = vmatprep.mubr.bf16.mxu0 0
      %2994 = vmatmul.mubr.bf16.gmra.mxu0 %v2865
      %v2995 = vpop.f32.mrf.mxu0
      %v2996 = vadd.f32 0.0, %v2995
      %v2997 = vpop.f32.mrf.mxu0
      %v2998 = vpop.f32.mrf.mxu0
      %v2999 = vadd.f32 0.0, %v2998
      %v3000 = vpop.f32.mrf.mxu0
      %3001 = vmatprep.mubr.bf16.mxu0 0
      %3002 = vmatmul.mubr.bf16.gmra.mxu0 %v2868
      %v3003 = vpop.f32.mrf.mxu0
      %v3004 = vadd.f32 0.0, %v3003
      %v3005 = vpop.f32.mrf.mxu0
      %v3006 = vpop.f32.mrf.mxu0
      %v3007 = vadd.f32 0.0, %v3006
      %v3008 = vpop.f32.mrf.mxu0
      %3009 = vmatprep.mubr.bf16.mxu0 0
      %3010 = vmatmul.mubr.bf16.gmra.mxu0 %v2871
      %v3011 = vpop.f32.mrf.mxu0
      %v3012 = vadd.f32 0.0, %v3011
      %v3013 = vpop.f32.mrf.mxu0
      %v3014 = vpop.f32.mrf.mxu0
      %v3015 = vadd.f32 0.0, %v3014
      %v3016 = vpop.f32.mrf.mxu0
      %3017 = vmatprep.mubr.bf16.mxu0 0
      %3018 = vmatmul.mubr.bf16.gmra.mxu0 %v2874
      %v3019 = vpop.f32.mrf.mxu0
      %v3020 = vadd.f32 0.0, %v3019
      %v3021 = vpop.f32.mrf.mxu0
      %v3022 = vpop.f32.mrf.mxu0
      %v3023 = vadd.f32 0.0, %v3022
      %v3024 = vpop.f32.mrf.mxu0
      %3025 = vmatprep.mubr.bf16.mxu0 0
      %3026 = vmatmul.mubr.bf16.gmra.mxu0 %v2877
      %v3027 = vpop.f32.mrf.mxu0
      %v3028 = vadd.f32 0.0, %v3027
      %v3029 = vpop.f32.mrf.mxu0
      %v3030 = vpop.f32.mrf.mxu0
      %v3031 = vadd.f32 0.0, %v3030
      %v3032 = vpop.f32.mrf.mxu0
      %3033 = vmatprep.mubr.bf16.mxu0 0
      %3034 = vmatmul.mubr.bf16.gmra.mxu0 %v2880
      %v3035 = vpop.f32.mrf.mxu0
      %v3036 = vadd.f32 0.0, %v3035
      %v3037 = vpop.f32.mrf.mxu0
      %v3038 = vpop.f32.mrf.mxu0
      %v3039 = vadd.f32 0.0, %v3038
      %v3040 = vpop.f32.mrf.mxu0
      %3041 = vmatprep.mubr.bf16.mxu0 0
      %3042 = vmatmul.mubr.bf16.gmra.mxu0 %v2883
      %v3043 = vpop.f32.mrf.mxu0
      %v3044 = vadd.f32 0.0, %v3043
      %v3045 = vpop.f32.mrf.mxu0
      %v3046 = vpop.f32.mrf.mxu0
      %v3047 = vadd.f32 0.0, %v3046
      %v3048 = vpop.f32.mrf.mxu0
      %3049 = vmatprep.mubr.bf16.mxu0 0
      %3050 = vmatmul.mubr.bf16.gmra.mxu0 %v2886
      %v3051 = vpop.f32.mrf.mxu0
      %v3052 = vadd.f32 0.0, %v3051
      %v3053 = vpop.f32.mrf.mxu0
      %v3054 = vpop.f32.mrf.mxu0
      %v3055 = vadd.f32 0.0, %v3054
      %v3056 = vpop.f32.mrf.mxu0
      %3057 = vmatprep.mubr.bf16.mxu0 0
      %3058 = vmatmul.mubr.bf16.gmra.mxu0 %v2889
      %v3059 = vpop.f32.mrf.mxu0
      %v3060 = vadd.f32 0.0, %v3059
      %v3061 = vpop.f32.mrf.mxu0
      %v3062 = vpop.f32.mrf.mxu0
      %v3063 = vadd.f32 0.0, %v3062
      %v3064 = vpop.f32.mrf.mxu0
      %3065 = vmatprep.mubr.bf16.mxu0 0
      %3066 = vmatmul.mubr.bf16.gmra.mxu0 %v2892
      %v3067 = vpop.f32.mrf.mxu0
      %v3068 = vadd.f32 0.0, %v3067
      %v3069 = vpop.f32.mrf.mxu0
      %v3070 = vpop.f32.mrf.mxu0
      %v3071 = vadd.f32 0.0, %v3070
      %v3072 = vpop.f32.mrf.mxu0
      %3073 = vdwg.mxu0
      %v3074 = vadd.f32 %v2802, %v2932
      %v3075 = vadd.f32 %v2803, %v2935
      %v3076 = vadd.f32 %v2804, %v2940
      %v3077 = vadd.f32 %v2805, %v2943
      %v3078 = vadd.f32 %v2806, %v2948
      %v3079 = vadd.f32 %v2807, %v2951
      %v3080 = vadd.f32 %v2808, %v2956
      %v3081 = vadd.f32 %v2809, %v2959
      %v3082 = vadd.f32 %v2810, %v2964
      %v3083 = vadd.f32 %v2811, %v2967
      %v3084 = vadd.f32 %v2812, %v2972
      %v3085 = vadd.f32 %v2813, %v2975
      %v3086 = vadd.f32 %v2814, %v2980
      %v3087 = vadd.f32 %v2815, %v2983
      %v3088 = vadd.f32 %v2816, %v2988
      %v3089 = vadd.f32 %v2817, %v2991
      %v3090 = vadd.f32 %v2818, %v2996
      %v3091 = vadd.f32 %v2819, %v2999
      %v3092 = vadd.f32 %v2820, %v3004
      %v3093 = vadd.f32 %v2821, %v3007
      %v3094 = vadd.f32 %v2822, %v3012
      %v3095 = vadd.f32 %v2823, %v3015
      %v3096 = vadd.f32 %v2824, %v3020
      %v3097 = vadd.f32 %v2825, %v3023
      %v3098 = vadd.f32 %v2826, %v3028
      %v3099 = vadd.f32 %v2827, %v3031
      %v3100 = vadd.f32 %v2828, %v3036
      %v3101 = vadd.f32 %v2829, %v3039
      %v3102 = vadd.f32 %v2830, %v3044
      %v3103 = vadd.f32 %v2831, %v3047
      %v3104 = vadd.f32 %v2832, %v3052
      %v3105 = vadd.f32 %v2833, %v3055
      %v3106 = vadd.f32 %v2834, %v3060
      %v3107 = vadd.f32 %v2835, %v3063
      %v3108 = vadd.f32 %v2836, %v3068
      %v3109 = vadd.f32 %v2837, %v3071
      %3110 = vst.msk [vmem:[#allocation3] sm:$0xff] %vm323, %v3074
      %3111 = vst.msk [vmem:[#allocation3 + $0x8] sm:$0xff] %vm323, %v3075
      %3112 = vst.msk [vmem:[#allocation3 + $0x10] sm:$0xff] %vm323, %v3076
      %3113 = vst.msk [vmem:[#allocation3 + $0x18] sm:$0xff] %vm323, %v3077
      %3114 = vst.msk [vmem:[#allocation3 + $0x20] sm:$0xff] %vm323, %v3078
      %3115 = vst.msk [vmem:[#allocation3 + $0x28] sm:$0xff] %vm323, %v3079
      %3116 = vst.msk [vmem:[#allocation3 + $0x30] sm:$0xff] %vm323, %v3080
      %3117 = vst.msk [vmem:[#allocation3 + $0x38] sm:$0xff] %vm323, %v3081
      %3118 = vst.msk [vmem:[#allocation3 + $0x40] sm:$0xff] %vm323, %v3082
      %3119 = vst.msk [vmem:[#allocation3 + $0x48] sm:$0xff] %vm323, %v3083
      %3120 = vst.msk [vmem:[#allocation3 + $0x50] sm:$0xff] %vm323, %v3084
      %3121 = vst.msk [vmem:[#allocation3 + $0x58] sm:$0xff] %vm323, %v3085
      %3122 = vst.msk [vmem:[#allocation3 + $0x60] sm:$0xff] %vm323, %v3086
      %3123 = vst.msk [vmem:[#allocation3 + $0x68] sm:$0xff] %vm323, %v3087
      %3124 = vst.msk [vmem:[#allocation3 + $0x70] sm:$0xff] %vm323, %v3088
      %3125 = vst.msk [vmem:[#allocation3 + $0x78] sm:$0xff] %vm323, %v3089
      %3126 = vst.msk [vmem:[#allocation3 + $0x80] sm:$0xff] %vm323, %v3090
      %3127 = vst.msk [vmem:[#allocation3 + $0x88] sm:$0xff] %vm323, %v3091
      %3128 = vst.msk [vmem:[#allocation3 + $0x90] sm:$0xff] %vm323, %v3092
      %3129 = vst.msk [vmem:[#allocation3 + $0x98] sm:$0xff] %vm323, %v3093
      %3130 = vst.msk [vmem:[#allocation3 + $0xa0] sm:$0xff] %vm323, %v3094
      %3131 = vst.msk [vmem:[#allocation3 + $0xa8] sm:$0xff] %vm323, %v3095
      %3132 = vst.msk [vmem:[#allocation3 + $0xb0] sm:$0xff] %vm323, %v3096
      %3133 = vst.msk [vmem:[#allocation3 + $0xb8] sm:$0xff] %vm323, %v3097
      %3134 = vst.msk [vmem:[#allocation3 + $0xc0] sm:$0xff] %vm323, %v3098
      %3135 = vst.msk [vmem:[#allocation3 + $0xc8] sm:$0xff] %vm323, %v3099
      %3136 = vst.msk [vmem:[#allocation3 + $0xd0] sm:$0xff] %vm323, %v3100
      %3137 = vst.msk [vmem:[#allocation3 + $0xd8] sm:$0xff] %vm323, %v3101
      %3138 = vst.msk [vmem:[#allocation3 + $0xe0] sm:$0xff] %vm323, %v3102
      %3139 = vst.msk [vmem:[#allocation3 + $0xe8] sm:$0xff] %vm323, %v3103
      %3140 = vst.msk [vmem:[#allocation3 + $0xf0] sm:$0xff] %vm323, %v3104
      %3141 = vst.msk [vmem:[#allocation3 + $0xf8] sm:$0xff] %vm323, %v3105
      %3142 = vst.msk [vmem:[#allocation3 + $0x100] sm:$0xff] %vm323, %v3106
      %3143 = vst.msk [vmem:[#allocation3 + $0x108] sm:$0xff] %vm323, %v3107
      %3144 = vst.msk [vmem:[#allocation3 + $0x110] sm:$0xff] %vm323, %v3108
      %3145 = vst.msk [vmem:[#allocation3 + $0x118] sm:$0xff] %vm323, %v3109
      %v3146 = vld [vmem:[#allocation2 + $0x25] sm:$0xff]
      %v3147 = vld [vmem:[#allocation2 + $0x2d] sm:$0xff]
      %v3148 = vld [vmem:[#allocation2 + $0x35] sm:$0xff]
      %v3149 = vld [vmem:[#allocation2 + $0x3d] sm:$0xff]
      %v3150 = vld [vmem:[#allocation2 + $0x45] sm:$0xff]
      %v3151 = vld [vmem:[#allocation2 + $0x4d] sm:$0xff]
      %v3152 = vld [vmem:[#allocation2 + $0x55] sm:$0xff]
      %v3153 = vld [vmem:[#allocation2 + $0x5d] sm:$0xff]
      %v3154 = vld [vmem:[#allocation2 + $0x65] sm:$0xff]
      %v3155 = vld [vmem:[#allocation2 + $0x6d] sm:$0xff]
      %v3156 = vld [vmem:[#allocation2 + $0x75] sm:$0xff]
      %v3157 = vld [vmem:[#allocation2 + $0x7d] sm:$0xff]
      %v3158 = vld [vmem:[#allocation2 + $0x85] sm:$0xff]
      %v3159 = vld [vmem:[#allocation2 + $0x8d] sm:$0xff]
      %v3160 = vld [vmem:[#allocation2 + $0x95] sm:$0xff]
      %v3161 = vld [vmem:[#allocation2 + $0x9d] sm:$0xff]
      %v3162 = vld [vmem:[#allocation2 + $0xa5] sm:$0xff]
      %v3163 = vld [vmem:[#allocation2 + $0xad] sm:$0xff]
      %v3164 = vld [vmem:[#allocation2 + $0xb5] sm:$0xff]
      %v3165 = vld [vmem:[#allocation2 + $0xbd] sm:$0xff]
      %v3166 = vld [vmem:[#allocation2 + $0xc5] sm:$0xff]
      %v3167 = vld [vmem:[#allocation2 + $0xcd] sm:$0xff]
      %v3168 = vld [vmem:[#allocation2 + $0xd5] sm:$0xff]
      %v3169 = vld [vmem:[#allocation2 + $0xdd] sm:$0xff]
      %v3170 = vld [vmem:[#allocation2 + $0xe5] sm:$0xff]
      %v3171 = vld [vmem:[#allocation2 + $0xed] sm:$0xff]
      %v3172 = vld [vmem:[#allocation2 + $0xf5] sm:$0xff]
      %v3173 = vld [vmem:[#allocation2 + $0xfd] sm:$0xff]
      %v3174 = vld [vmem:[#allocation2 + $0x105] sm:$0xff]
      %v3175 = vld [vmem:[#allocation2 + $0x10d] sm:$0xff]
      %v3176 = vld [vmem:[#allocation2 + $0x115] sm:$0xff]
      %v3177 = vld [vmem:[#allocation2 + $0x11d] sm:$0xff]
      %v3178 = vld [vmem:[#allocation2 + $0x125] sm:$0xff]
      %v3179 = vld [vmem:[#allocation2 + $0x12d] sm:$0xff]
      %v3180 = vld [vmem:[#allocation2 + $0x135] sm:$0xff]
      %v3181 = vld [vmem:[#allocation2 + $0x13d] sm:$0xff]
      %v3182 = vpack.c.bf16 %v3147, %v3146
      %v3183 = vpack.c.bf16 %v3149, %v3148
      %v3184 = vpack.c.bf16 %v3151, %v3150
      %v3185 = vpack.c.bf16 %v3153, %v3152
      %v3186 = vpack.c.bf16 %v3155, %v3154
      %v3187 = vpack.c.bf16 %v3157, %v3156
      %v3188 = vpack.c.bf16 %v3159, %v3158
      %v3189 = vpack.c.bf16 %v3161, %v3160
      %v3190 = vpack.c.bf16 %v3163, %v3162
      %v3191 = vpack.c.bf16 %v3165, %v3164
      %v3192 = vpack.c.bf16 %v3167, %v3166
      %v3193 = vpack.c.bf16 %v3169, %v3168
      %v3194 = vpack.c.bf16 %v3171, %v3170
      %v3195 = vpack.c.bf16 %v3173, %v3172
      %v3196 = vpack.c.bf16 %v3175, %v3174
      %v3197 = vpack.c.bf16 %v3177, %v3176
      %v3198 = vpack.c.bf16 %v3179, %v3178
      %v3199 = vpack.c.bf16 %v3181, %v3180
      %v3200 = vld [vmem:[#allocation3] sm:$0xff]
      %v3201 = vld [vmem:[#allocation3 + $0x8] sm:$0xff]
      %v3202 = vld [vmem:[#allocation3 + $0x10] sm:$0xff]
      %v3203 = vld [vmem:[#allocation3 + $0x18] sm:$0xff]
      %v3204 = vld [vmem:[#allocation3 + $0x20] sm:$0xff]
      %v3205 = vld [vmem:[#allocation3 + $0x28] sm:$0xff]
      %v3206 = vld [vmem:[#allocation3 + $0x30] sm:$0xff]
      %v3207 = vld [vmem:[#allocation3 + $0x38] sm:$0xff]
      %v3208 = vld [vmem:[#allocation3 + $0x40] sm:$0xff]
      %v3209 = vld [vmem:[#allocation3 + $0x48] sm:$0xff]
      %v3210 = vld [vmem:[#allocation3 + $0x50] sm:$0xff]
      %v3211 = vld [vmem:[#allocation3 + $0x58] sm:$0xff]
      %v3212 = vld [vmem:[#allocation3 + $0x60] sm:$0xff]
      %v3213 = vld [vmem:[#allocation3 + $0x68] sm:$0xff]
      %v3214 = vld [vmem:[#allocation3 + $0x70] sm:$0xff]
      %v3215 = vld [vmem:[#allocation3 + $0x78] sm:$0xff]
      %v3216 = vld [vmem:[#allocation3 + $0x80] sm:$0xff]
      %v3217 = vld [vmem:[#allocation3 + $0x88] sm:$0xff]
      %v3218 = vld [vmem:[#allocation3 + $0x90] sm:$0xff]
      %v3219 = vld [vmem:[#allocation3 + $0x98] sm:$0xff]
      %v3220 = vld [vmem:[#allocation3 + $0xa0] sm:$0xff]
      %v3221 = vld [vmem:[#allocation3 + $0xa8] sm:$0xff]
      %v3222 = vld [vmem:[#allocation3 + $0xb0] sm:$0xff]
      %v3223 = vld [vmem:[#allocation3 + $0xb8] sm:$0xff]
      %v3224 = vld [vmem:[#allocation3 + $0xc0] sm:$0xff]
      %v3225 = vld [vmem:[#allocation3 + $0xc8] sm:$0xff]
      %v3226 = vld [vmem:[#allocation3 + $0xd0] sm:$0xff]
      %v3227 = vld [vmem:[#allocation3 + $0xd8] sm:$0xff]
      %v3228 = vld [vmem:[#allocation3 + $0xe0] sm:$0xff]
      %v3229 = vld [vmem:[#allocation3 + $0xe8] sm:$0xff]
      %v3230 = vld [vmem:[#allocation3 + $0xf0] sm:$0xff]
      %v3231 = vld [vmem:[#allocation3 + $0xf8] sm:$0xff]
      %v3232 = vld [vmem:[#allocation3 + $0x100] sm:$0xff]
      %v3233 = vld [vmem:[#allocation3 + $0x108] sm:$0xff]
      %v3234 = vld [vmem:[#allocation3 + $0x110] sm:$0xff]
      %v3235 = vld [vmem:[#allocation3 + $0x118] sm:$0xff]
      %s3236 = scalar_lea.vmem %s1, 14
      %v3237 = vld [vmem:[%s3236] sm:$0x3]
      %v3239 = vsel %vm281, %v3182, 0
      %v3242 = vsel %vm281, %v3183, 0
      %v3245 = vsel %vm281, %v3184, 0
      %v3248 = vsel %vm281, %v3185, 0
      %v3251 = vsel %vm281, %v3186, 0
      %v3254 = vsel %vm281, %v3187, 0
      %v3257 = vsel %vm281, %v3188, 0
      %v3260 = vsel %vm281, %v3189, 0
      %v3263 = vsel %vm281, %v3190, 0
      %v3266 = vsel %vm281, %v3191, 0
      %v3269 = vsel %vm281, %v3192, 0
      %v3272 = vsel %vm281, %v3193, 0
      %v3275 = vsel %vm281, %v3194, 0
      %v3278 = vsel %vm281, %v3195, 0
      %v3281 = vsel %vm281, %v3196, 0
      %v3284 = vsel %vm281, %v3197, 0
      %v3287 = vsel %vm281, %v3198, 0
      %v3290 = vsel %vm281, %v3199, 0
      %v3293 = vsel %vm505, %v3237, 0
      %3295 = vmatprep.subr.bf16.mxu0 0
      %3296 = vmatpush1.bf16.msra.mxu0 0
      %3297 = vmatprep.subr.bf16.mxu0 0
      %3298 = vmatpush1.bf16.msra.mxu0 0
      %3299 = vmatprep.subr.bf16.mxu0 0
      %3300 = vmatpush1.bf16.msra.mxu0 0
      %3301 = vmatprep.subr.bf16.mxu0 0
      %3302 = vmatpush1.bf16.msra.mxu0 0
      %3303 = vmatprep.subr.bf16.mxu0 0
      %3304 = vmatpush1.bf16.msra.mxu0 0
      %3305 = vmatprep.subr.bf16.mxu0 0
      %3306 = vmatpush1.bf16.msra.mxu0 0
      %3307 = vmatprep.subr.bf16.mxu0 0
      %3308 = vmatpush1.bf16.msra.mxu0 0
      %3309 = vmatprep.subr.bf16.mxu0 0
      %3310 = vmatpush1.bf16.msra.mxu0 %v3293
      %3311 = vmatprep.subr.bf16.mxu0 0
      %3312 = vmatpush2.bf16.msra.mxu0 0
      %3313 = vmatprep.subr.bf16.mxu0 0
      %3314 = vmatpush2.bf16.msra.mxu0 0
      %3315 = vmatprep.subr.bf16.mxu0 0
      %3316 = vmatpush2.bf16.msra.mxu0 0
      %3317 = vmatprep.subr.bf16.mxu0 0
      %3318 = vmatpush2.bf16.msra.mxu0 0
      %3319 = vmatprep.subr.bf16.mxu0 0
      %3320 = vmatpush2.bf16.msra.mxu0 0
      %3321 = vmatprep.subr.bf16.mxu0 0
      %3322 = vmatpush2.bf16.msra.mxu0 0
      %3323 = vmatprep.subr.bf16.mxu0 0
      %3324 = vmatpush2.bf16.msra.mxu0 0
      %3325 = vmatprep.subr.bf16.mxu0 0
      %3326 = vmatpush2.bf16.msra.mxu0 0
      %3327 = vmatprep.mubr.bf16.mxu0 0
      %3328 = vmatmul.mubr.bf16.gmra.mxu0 %v3239
      %v3329 = vpop.f32.mrf.mxu0
      %v3330 = vadd.f32 0.0, %v3329
      %v3331 = vpop.f32.mrf.mxu0
      %v3332 = vpop.f32.mrf.mxu0
      %v3333 = vadd.f32 0.0, %v3332
      %v3334 = vpop.f32.mrf.mxu0
      %3335 = vmatprep.mubr.bf16.mxu0 0
      %3336 = vmatmul.mubr.bf16.gmra.mxu0 %v3242
      %v3337 = vpop.f32.mrf.mxu0
      %v3338 = vadd.f32 0.0, %v3337
      %v3339 = vpop.f32.mrf.mxu0
      %v3340 = vpop.f32.mrf.mxu0
      %v3341 = vadd.f32 0.0, %v3340
      %v3342 = vpop.f32.mrf.mxu0
      %3343 = vmatprep.mubr.bf16.mxu0 0
      %3344 = vmatmul.mubr.bf16.gmra.mxu0 %v3245
      %v3345 = vpop.f32.mrf.mxu0
      %v3346 = vadd.f32 0.0, %v3345
      %v3347 = vpop.f32.mrf.mxu0
      %v3348 = vpop.f32.mrf.mxu0
      %v3349 = vadd.f32 0.0, %v3348
      %v3350 = vpop.f32.mrf.mxu0
      %3351 = vmatprep.mubr.bf16.mxu0 0
      %3352 = vmatmul.mubr.bf16.gmra.mxu0 %v3248
      %v3353 = vpop.f32.mrf.mxu0
      %v3354 = vadd.f32 0.0, %v3353
      %v3355 = vpop.f32.mrf.mxu0
      %v3356 = vpop.f32.mrf.mxu0
      %v3357 = vadd.f32 0.0, %v3356
      %v3358 = vpop.f32.mrf.mxu0
      %3359 = vmatprep.mubr.bf16.mxu0 0
      %3360 = vmatmul.mubr.bf16.gmra.mxu0 %v3251
      %v3361 = vpop.f32.mrf.mxu0
      %v3362 = vadd.f32 0.0, %v3361
      %v3363 = vpop.f32.mrf.mxu0
      %v3364 = vpop.f32.mrf.mxu0
      %v3365 = vadd.f32 0.0, %v3364
      %v3366 = vpop.f32.mrf.mxu0
      %3367 = vmatprep.mubr.bf16.mxu0 0
      %3368 = vmatmul.mubr.bf16.gmra.mxu0 %v3254
      %v3369 = vpop.f32.mrf.mxu0
      %v3370 = vadd.f32 0.0, %v3369
      %v3371 = vpop.f32.mrf.mxu0
      %v3372 = vpop.f32.mrf.mxu0
      %v3373 = vadd.f32 0.0, %v3372
      %v3374 = vpop.f32.mrf.mxu0
      %3375 = vmatprep.mubr.bf16.mxu0 0
      %3376 = vmatmul.mubr.bf16.gmra.mxu0 %v3257
      %v3377 = vpop.f32.mrf.mxu0
      %v3378 = vadd.f32 0.0, %v3377
      %v3379 = vpop.f32.mrf.mxu0
      %v3380 = vpop.f32.mrf.mxu0
      %v3381 = vadd.f32 0.0, %v3380
      %v3382 = vpop.f32.mrf.mxu0
      %3383 = vmatprep.mubr.bf16.mxu0 0
      %3384 = vmatmul.mubr.bf16.gmra.mxu0 %v3260
      %v3385 = vpop.f32.mrf.mxu0
      %v3386 = vadd.f32 0.0, %v3385
      %v3387 = vpop.f32.mrf.mxu0
      %v3388 = vpop.f32.mrf.mxu0
      %v3389 = vadd.f32 0.0, %v3388
      %v3390 = vpop.f32.mrf.mxu0
      %3391 = vmatprep.mubr.bf16.mxu0 0
      %3392 = vmatmul.mubr.bf16.gmra.mxu0 %v3263
      %v3393 = vpop.f32.mrf.mxu0
      %v3394 = vadd.f32 0.0, %v3393
      %v3395 = vpop.f32.mrf.mxu0
      %v3396 = vpop.f32.mrf.mxu0
      %v3397 = vadd.f32 0.0, %v3396
      %v3398 = vpop.f32.mrf.mxu0
      %3399 = vmatprep.mubr.bf16.mxu0 0
      %3400 = vmatmul.mubr.bf16.gmra.mxu0 %v3266
      %v3401 = vpop.f32.mrf.mxu0
      %v3402 = vadd.f32 0.0, %v3401
      %v3403 = vpop.f32.mrf.mxu0
      %v3404 = vpop.f32.mrf.mxu0
      %v3405 = vadd.f32 0.0, %v3404
      %v3406 = vpop.f32.mrf.mxu0
      %3407 = vmatprep.mubr.bf16.mxu0 0
      %3408 = vmatmul.mubr.bf16.gmra.mxu0 %v3269
      %v3409 = vpop.f32.mrf.mxu0
      %v3410 = vadd.f32 0.0, %v3409
      %v3411 = vpop.f32.mrf.mxu0
      %v3412 = vpop.f32.mrf.mxu0
      %v3413 = vadd.f32 0.0, %v3412
      %v3414 = vpop.f32.mrf.mxu0
      %3415 = vmatprep.mubr.bf16.mxu0 0
      %3416 = vmatmul.mubr.bf16.gmra.mxu0 %v3272
      %v3417 = vpop.f32.mrf.mxu0
      %v3418 = vadd.f32 0.0, %v3417
      %v3419 = vpop.f32.mrf.mxu0
      %v3420 = vpop.f32.mrf.mxu0
      %v3421 = vadd.f32 0.0, %v3420
      %v3422 = vpop.f32.mrf.mxu0
      %3423 = vmatprep.mubr.bf16.mxu0 0
      %3424 = vmatmul.mubr.bf16.gmra.mxu0 %v3275
      %v3425 = vpop.f32.mrf.mxu0
      %v3426 = vadd.f32 0.0, %v3425
      %v3427 = vpop.f32.mrf.mxu0
      %v3428 = vpop.f32.mrf.mxu0
      %v3429 = vadd.f32 0.0, %v3428
      %v3430 = vpop.f32.mrf.mxu0
      %3431 = vmatprep.mubr.bf16.mxu0 0
      %3432 = vmatmul.mubr.bf16.gmra.mxu0 %v3278
      %v3433 = vpop.f32.mrf.mxu0
      %v3434 = vadd.f32 0.0, %v3433
      %v3435 = vpop.f32.mrf.mxu0
      %v3436 = vpop.f32.mrf.mxu0
      %v3437 = vadd.f32 0.0, %v3436
      %v3438 = vpop.f32.mrf.mxu0
      %3439 = vmatprep.mubr.bf16.mxu0 0
      %3440 = vmatmul.mubr.bf16.gmra.mxu0 %v3281
      %v3441 = vpop.f32.mrf.mxu0
      %v3442 = vadd.f32 0.0, %v3441
      %v3443 = vpop.f32.mrf.mxu0
      %v3444 = vpop.f32.mrf.mxu0
      %v3445 = vadd.f32 0.0, %v3444
      %v3446 = vpop.f32.mrf.mxu0
      %3447 = vmatprep.mubr.bf16.mxu0 0
      %3448 = vmatmul.mubr.bf16.gmra.mxu0 %v3284
      %v3449 = vpop.f32.mrf.mxu0
      %v3450 = vadd.f32 0.0, %v3449
      %v3451 = vpop.f32.mrf.mxu0
      %v3452 = vpop.f32.mrf.mxu0
      %v3453 = vadd.f32 0.0, %v3452
      %v3454 = vpop.f32.mrf.mxu0
      %3455 = vmatprep.mubr.bf16.mxu0 0
      %3456 = vmatmul.mubr.bf16.gmra.mxu0 %v3287
      %v3457 = vpop.f32.mrf.mxu0
      %v3458 = vadd.f32 0.0, %v3457
      %v3459 = vpop.f32.mrf.mxu0
      %v3460 = vpop.f32.mrf.mxu0
      %v3461 = vadd.f32 0.0, %v3460
      %v3462 = vpop.f32.mrf.mxu0
      %3463 = vmatprep.mubr.bf16.mxu0 0
      %3464 = vmatmul.mubr.bf16.gmra.mxu0 %v3290
      %v3465 = vpop.f32.mrf.mxu0
      %v3466 = vadd.f32 0.0, %v3465
      %v3467 = vpop.f32.mrf.mxu0
      %v3468 = vpop.f32.mrf.mxu0
      %v3469 = vadd.f32 0.0, %v3468
      %v3470 = vpop.f32.mrf.mxu0
      %3471 = vdwg.mxu0
      %v3472 = vadd.f32 %v3200, %v3330
      %v3473 = vadd.f32 %v3201, %v3333
      %v3474 = vadd.f32 %v3202, %v3338
      %v3475 = vadd.f32 %v3203, %v3341
      %v3476 = vadd.f32 %v3204, %v3346
      %v3477 = vadd.f32 %v3205, %v3349
      %v3478 = vadd.f32 %v3206, %v3354
      %v3479 = vadd.f32 %v3207, %v3357
      %v3480 = vadd.f32 %v3208, %v3362
      %v3481 = vadd.f32 %v3209, %v3365
      %v3482 = vadd.f32 %v3210, %v3370
      %v3483 = vadd.f32 %v3211, %v3373
      %v3484 = vadd.f32 %v3212, %v3378
      %v3485 = vadd.f32 %v3213, %v3381
      %v3486 = vadd.f32 %v3214, %v3386
      %v3487 = vadd.f32 %v3215, %v3389
      %v3488 = vadd.f32 %v3216, %v3394
      %v3489 = vadd.f32 %v3217, %v3397
      %v3490 = vadd.f32 %v3218, %v3402
      %v3491 = vadd.f32 %v3219, %v3405
      %v3492 = vadd.f32 %v3220, %v3410
      %v3493 = vadd.f32 %v3221, %v3413
      %v3494 = vadd.f32 %v3222, %v3418
      %v3495 = vadd.f32 %v3223, %v3421
      %v3496 = vadd.f32 %v3224, %v3426
      %v3497 = vadd.f32 %v3225, %v3429
      %v3498 = vadd.f32 %v3226, %v3434
      %v3499 = vadd.f32 %v3227, %v3437
      %v3500 = vadd.f32 %v3228, %v3442
      %v3501 = vadd.f32 %v3229, %v3445
      %v3502 = vadd.f32 %v3230, %v3450
      %v3503 = vadd.f32 %v3231, %v3453
      %v3504 = vadd.f32 %v3232, %v3458
      %v3505 = vadd.f32 %v3233, %v3461
      %v3506 = vadd.f32 %v3234, %v3466
      %v3507 = vadd.f32 %v3235, %v3469
      %3508 = vst.msk [vmem:[#allocation3] sm:$0xff] %vm323, %v3472
      %3509 = vst.msk [vmem:[#allocation3 + $0x8] sm:$0xff] %vm323, %v3473
      %3510 = vst.msk [vmem:[#allocation3 + $0x10] sm:$0xff] %vm323, %v3474
      %3511 = vst.msk [vmem:[#allocation3 + $0x18] sm:$0xff] %vm323, %v3475
      %3512 = vst.msk [vmem:[#allocation3 + $0x20] sm:$0xff] %vm323, %v3476
      %3513 = vst.msk [vmem:[#allocation3 + $0x28] sm:$0xff] %vm323, %v3477
      %3514 = vst.msk [vmem:[#allocation3 + $0x30] sm:$0xff] %vm323, %v3478
      %3515 = vst.msk [vmem:[#allocation3 + $0x38] sm:$0xff] %vm323, %v3479
      %3516 = vst.msk [vmem:[#allocation3 + $0x40] sm:$0xff] %vm323, %v3480
      %3517 = vst.msk [vmem:[#allocation3 + $0x48] sm:$0xff] %vm323, %v3481
      %3518 = vst.msk [vmem:[#allocation3 + $0x50] sm:$0xff] %vm323, %v3482
      %3519 = vst.msk [vmem:[#allocation3 + $0x58] sm:$0xff] %vm323, %v3483
      %3520 = vst.msk [vmem:[#allocation3 + $0x60] sm:$0xff] %vm323, %v3484
      %3521 = vst.msk [vmem:[#allocation3 + $0x68] sm:$0xff] %vm323, %v3485
      %3522 = vst.msk [vmem:[#allocation3 + $0x70] sm:$0xff] %vm323, %v3486
      %3523 = vst.msk [vmem:[#allocation3 + $0x78] sm:$0xff] %vm323, %v3487
      %3524 = vst.msk [vmem:[#allocation3 + $0x80] sm:$0xff] %vm323, %v3488
      %3525 = vst.msk [vmem:[#allocation3 + $0x88] sm:$0xff] %vm323, %v3489
      %3526 = vst.msk [vmem:[#allocation3 + $0x90] sm:$0xff] %vm323, %v3490
      %3527 = vst.msk [vmem:[#allocation3 + $0x98] sm:$0xff] %vm323, %v3491
      %3528 = vst.msk [vmem:[#allocation3 + $0xa0] sm:$0xff] %vm323, %v3492
      %3529 = vst.msk [vmem:[#allocation3 + $0xa8] sm:$0xff] %vm323, %v3493
      %3530 = vst.msk [vmem:[#allocation3 + $0xb0] sm:$0xff] %vm323, %v3494
      %3531 = vst.msk [vmem:[#allocation3 + $0xb8] sm:$0xff] %vm323, %v3495
      %3532 = vst.msk [vmem:[#allocation3 + $0xc0] sm:$0xff] %vm323, %v3496
      %3533 = vst.msk [vmem:[#allocation3 + $0xc8] sm:$0xff] %vm323, %v3497
      %3534 = vst.msk [vmem:[#allocation3 + $0xd0] sm:$0xff] %vm323, %v3498
      %3535 = vst.msk [vmem:[#allocation3 + $0xd8] sm:$0xff] %vm323, %v3499
      %3536 = vst.msk [vmem:[#allocation3 + $0xe0] sm:$0xff] %vm323, %v3500
      %3537 = vst.msk [vmem:[#allocation3 + $0xe8] sm:$0xff] %vm323, %v3501
      %3538 = vst.msk [vmem:[#allocation3 + $0xf0] sm:$0xff] %vm323, %v3502
      %3539 = vst.msk [vmem:[#allocation3 + $0xf8] sm:$0xff] %vm323, %v3503
      %3540 = vst.msk [vmem:[#allocation3 + $0x100] sm:$0xff] %vm323, %v3504
      %3541 = vst.msk [vmem:[#allocation3 + $0x108] sm:$0xff] %vm323, %v3505
      %3542 = vst.msk [vmem:[#allocation3 + $0x110] sm:$0xff] %vm323, %v3506
      %3543 = vst.msk [vmem:[#allocation3 + $0x118] sm:$0xff] %vm323, %v3507
      %v3544 = vld [vmem:[#allocation2 + $0x26] sm:$0xff]
      %v3545 = vld [vmem:[#allocation2 + $0x2e] sm:$0xff]
      %v3546 = vld [vmem:[#allocation2 + $0x36] sm:$0xff]
      %v3547 = vld [vmem:[#allocation2 + $0x3e] sm:$0xff]
      %v3548 = vld [vmem:[#allocation2 + $0x46] sm:$0xff]
      %v3549 = vld [vmem:[#allocation2 + $0x4e] sm:$0xff]
      %v3550 = vld [vmem:[#allocation2 + $0x56] sm:$0xff]
      %v3551 = vld [vmem:[#allocation2 + $0x5e] sm:$0xff]
      %v3552 = vld [vmem:[#allocation2 + $0x66] sm:$0xff]
      %v3553 = vld [vmem:[#allocation2 + $0x6e] sm:$0xff]
      %v3554 = vld [vmem:[#allocation2 + $0x76] sm:$0xff]
      %v3555 = vld [vmem:[#allocation2 + $0x7e] sm:$0xff]
      %v3556 = vld [vmem:[#allocation2 + $0x86] sm:$0xff]
      %v3557 = vld [vmem:[#allocation2 + $0x8e] sm:$0xff]
      %v3558 = vld [vmem:[#allocation2 + $0x96] sm:$0xff]
      %v3559 = vld [vmem:[#allocation2 + $0x9e] sm:$0xff]
      %v3560 = vld [vmem:[#allocation2 + $0xa6] sm:$0xff]
      %v3561 = vld [vmem:[#allocation2 + $0xae] sm:$0xff]
      %v3562 = vld [vmem:[#allocation2 + $0xb6] sm:$0xff]
      %v3563 = vld [vmem:[#allocation2 + $0xbe] sm:$0xff]
      %v3564 = vld [vmem:[#allocation2 + $0xc6] sm:$0xff]
      %v3565 = vld [vmem:[#allocation2 + $0xce] sm:$0xff]
      %v3566 = vld [vmem:[#allocation2 + $0xd6] sm:$0xff]
      %v3567 = vld [vmem:[#allocation2 + $0xde] sm:$0xff]
      %v3568 = vld [vmem:[#allocation2 + $0xe6] sm:$0xff]
      %v3569 = vld [vmem:[#allocation2 + $0xee] sm:$0xff]
      %v3570 = vld [vmem:[#allocation2 + $0xf6] sm:$0xff]
      %v3571 = vld [vmem:[#allocation2 + $0xfe] sm:$0xff]
      %v3572 = vld [vmem:[#allocation2 + $0x106] sm:$0xff]
      %v3573 = vld [vmem:[#allocation2 + $0x10e] sm:$0xff]
      %v3574 = vld [vmem:[#allocation2 + $0x116] sm:$0xff]
      %v3575 = vld [vmem:[#allocation2 + $0x11e] sm:$0xff]
      %v3576 = vld [vmem:[#allocation2 + $0x126] sm:$0xff]
      %v3577 = vld [vmem:[#allocation2 + $0x12e] sm:$0xff]
      %v3578 = vld [vmem:[#allocation2 + $0x136] sm:$0xff]
      %v3579 = vld [vmem:[#allocation2 + $0x13e] sm:$0xff]
      %v3580 = vpack.c.bf16 %v3545, %v3544
      %v3581 = vpack.c.bf16 %v3547, %v3546
      %v3582 = vpack.c.bf16 %v3549, %v3548
      %v3583 = vpack.c.bf16 %v3551, %v3550
      %v3584 = vpack.c.bf16 %v3553, %v3552
      %v3585 = vpack.c.bf16 %v3555, %v3554
      %v3586 = vpack.c.bf16 %v3557, %v3556
      %v3587 = vpack.c.bf16 %v3559, %v3558
      %v3588 = vpack.c.bf16 %v3561, %v3560
      %v3589 = vpack.c.bf16 %v3563, %v3562
      %v3590 = vpack.c.bf16 %v3565, %v3564
      %v3591 = vpack.c.bf16 %v3567, %v3566
      %v3592 = vpack.c.bf16 %v3569, %v3568
      %v3593 = vpack.c.bf16 %v3571, %v3570
      %v3594 = vpack.c.bf16 %v3573, %v3572
      %v3595 = vpack.c.bf16 %v3575, %v3574
      %v3596 = vpack.c.bf16 %v3577, %v3576
      %v3597 = vpack.c.bf16 %v3579, %v3578
      %v3598 = vld [vmem:[#allocation3] sm:$0xff]
      %v3599 = vld [vmem:[#allocation3 + $0x8] sm:$0xff]
      %v3600 = vld [vmem:[#allocation3 + $0x10] sm:$0xff]
      %v3601 = vld [vmem:[#allocation3 + $0x18] sm:$0xff]
      %v3602 = vld [vmem:[#allocation3 + $0x20] sm:$0xff]
      %v3603 = vld [vmem:[#allocation3 + $0x28] sm:$0xff]
      %v3604 = vld [vmem:[#allocation3 + $0x30] sm:$0xff]
      %v3605 = vld [vmem:[#allocation3 + $0x38] sm:$0xff]
      %v3606 = vld [vmem:[#allocation3 + $0x40] sm:$0xff]
      %v3607 = vld [vmem:[#allocation3 + $0x48] sm:$0xff]
      %v3608 = vld [vmem:[#allocation3 + $0x50] sm:$0xff]
      %v3609 = vld [vmem:[#allocation3 + $0x58] sm:$0xff]
      %v3610 = vld [vmem:[#allocation3 + $0x60] sm:$0xff]
      %v3611 = vld [vmem:[#allocation3 + $0x68] sm:$0xff]
      %v3612 = vld [vmem:[#allocation3 + $0x70] sm:$0xff]
      %v3613 = vld [vmem:[#allocation3 + $0x78] sm:$0xff]
      %v3614 = vld [vmem:[#allocation3 + $0x80] sm:$0xff]
      %v3615 = vld [vmem:[#allocation3 + $0x88] sm:$0xff]
      %v3616 = vld [vmem:[#allocation3 + $0x90] sm:$0xff]
      %v3617 = vld [vmem:[#allocation3 + $0x98] sm:$0xff]
      %v3618 = vld [vmem:[#allocation3 + $0xa0] sm:$0xff]
      %v3619 = vld [vmem:[#allocation3 + $0xa8] sm:$0xff]
      %v3620 = vld [vmem:[#allocation3 + $0xb0] sm:$0xff]
      %v3621 = vld [vmem:[#allocation3 + $0xb8] sm:$0xff]
      %v3622 = vld [vmem:[#allocation3 + $0xc0] sm:$0xff]
      %v3623 = vld [vmem:[#allocation3 + $0xc8] sm:$0xff]
      %v3624 = vld [vmem:[#allocation3 + $0xd0] sm:$0xff]
      %v3625 = vld [vmem:[#allocation3 + $0xd8] sm:$0xff]
      %v3626 = vld [vmem:[#allocation3 + $0xe0] sm:$0xff]
      %v3627 = vld [vmem:[#allocation3 + $0xe8] sm:$0xff]
      %v3628 = vld [vmem:[#allocation3 + $0xf0] sm:$0xff]
      %v3629 = vld [vmem:[#allocation3 + $0xf8] sm:$0xff]
      %v3630 = vld [vmem:[#allocation3 + $0x100] sm:$0xff]
      %v3631 = vld [vmem:[#allocation3 + $0x108] sm:$0xff]
      %v3632 = vld [vmem:[#allocation3 + $0x110] sm:$0xff]
      %v3633 = vld [vmem:[#allocation3 + $0x118] sm:$0xff]
      %s3634 = scalar_lea.vmem %s1, 16
      %v3635 = vld [vmem:[%s3634] sm:$0x3]
      %v3637 = vsel %vm281, %v3580, 0
      %v3640 = vsel %vm281, %v3581, 0
      %v3643 = vsel %vm281, %v3582, 0
      %v3646 = vsel %vm281, %v3583, 0
      %v3649 = vsel %vm281, %v3584, 0
      %v3652 = vsel %vm281, %v3585, 0
      %v3655 = vsel %vm281, %v3586, 0
      %v3658 = vsel %vm281, %v3587, 0
      %v3661 = vsel %vm281, %v3588, 0
      %v3664 = vsel %vm281, %v3589, 0
      %v3667 = vsel %vm281, %v3590, 0
      %v3670 = vsel %vm281, %v3591, 0
      %v3673 = vsel %vm281, %v3592, 0
      %v3676 = vsel %vm281, %v3593, 0
      %v3679 = vsel %vm281, %v3594, 0
      %v3682 = vsel %vm281, %v3595, 0
      %v3685 = vsel %vm281, %v3596, 0
      %v3688 = vsel %vm281, %v3597, 0
      %v3691 = vsel %vm505, %v3635, 0
      %3693 = vmatprep.subr.bf16.mxu0 0
      %3694 = vmatpush1.bf16.msra.mxu0 0
      %3695 = vmatprep.subr.bf16.mxu0 0
      %3696 = vmatpush1.bf16.msra.mxu0 0
      %3697 = vmatprep.subr.bf16.mxu0 0
      %3698 = vmatpush1.bf16.msra.mxu0 0
      %3699 = vmatprep.subr.bf16.mxu0 0
      %3700 = vmatpush1.bf16.msra.mxu0 0
      %3701 = vmatprep.subr.bf16.mxu0 0
      %3702 = vmatpush1.bf16.msra.mxu0 0
      %3703 = vmatprep.subr.bf16.mxu0 0
      %3704 = vmatpush1.bf16.msra.mxu0 0
      %3705 = vmatprep.subr.bf16.mxu0 0
      %3706 = vmatpush1.bf16.msra.mxu0 0
      %3707 = vmatprep.subr.bf16.mxu0 0
      %3708 = vmatpush1.bf16.msra.mxu0 %v3691
      %3709 = vmatprep.subr.bf16.mxu0 0
      %3710 = vmatpush2.bf16.msra.mxu0 0
      %3711 = vmatprep.subr.bf16.mxu0 0
      %3712 = vmatpush2.bf16.msra.mxu0 0
      %3713 = vmatprep.subr.bf16.mxu0 0
      %3714 = vmatpush2.bf16.msra.mxu0 0
      %3715 = vmatprep.subr.bf16.mxu0 0
      %3716 = vmatpush2.bf16.msra.mxu0 0
      %3717 = vmatprep.subr.bf16.mxu0 0
      %3718 = vmatpush2.bf16.msra.mxu0 0
      %3719 = vmatprep.subr.bf16.mxu0 0
      %3720 = vmatpush2.bf16.msra.mxu0 0
      %3721 = vmatprep.subr.bf16.mxu0 0
      %3722 = vmatpush2.bf16.msra.mxu0 0
      %3723 = vmatprep.subr.bf16.mxu0 0
      %3724 = vmatpush2.bf16.msra.mxu0 0
      %3725 = vmatprep.mubr.bf16.mxu0 0
      %3726 = vmatmul.mubr.bf16.gmra.mxu0 %v3637
      %v3727 = vpop.f32.mrf.mxu0
      %v3728 = vadd.f32 0.0, %v3727
      %v3729 = vpop.f32.mrf.mxu0
      %v3730 = vpop.f32.mrf.mxu0
      %v3731 = vadd.f32 0.0, %v3730
      %v3732 = vpop.f32.mrf.mxu0
      %3733 = vmatprep.mubr.bf16.mxu0 0
      %3734 = vmatmul.mubr.bf16.gmra.mxu0 %v3640
      %v3735 = vpop.f32.mrf.mxu0
      %v3736 = vadd.f32 0.0, %v3735
      %v3737 = vpop.f32.mrf.mxu0
      %v3738 = vpop.f32.mrf.mxu0
      %v3739 = vadd.f32 0.0, %v3738
      %v3740 = vpop.f32.mrf.mxu0
      %3741 = vmatprep.mubr.bf16.mxu0 0
      %3742 = vmatmul.mubr.bf16.gmra.mxu0 %v3643
      %v3743 = vpop.f32.mrf.mxu0
      %v3744 = vadd.f32 0.0, %v3743
      %v3745 = vpop.f32.mrf.mxu0
      %v3746 = vpop.f32.mrf.mxu0
      %v3747 = vadd.f32 0.0, %v3746
      %v3748 = vpop.f32.mrf.mxu0
      %3749 = vmatprep.mubr.bf16.mxu0 0
      %3750 = vmatmul.mubr.bf16.gmra.mxu0 %v3646
      %v3751 = vpop.f32.mrf.mxu0
      %v3752 = vadd.f32 0.0, %v3751
      %v3753 = vpop.f32.mrf.mxu0
      %v3754 = vpop.f32.mrf.mxu0
      %v3755 = vadd.f32 0.0, %v3754
      %v3756 = vpop.f32.mrf.mxu0
      %3757 = vmatprep.mubr.bf16.mxu0 0
      %3758 = vmatmul.mubr.bf16.gmra.mxu0 %v3649
      %v3759 = vpop.f32.mrf.mxu0
      %v3760 = vadd.f32 0.0, %v3759
      %v3761 = vpop.f32.mrf.mxu0
      %v3762 = vpop.f32.mrf.mxu0
      %v3763 = vadd.f32 0.0, %v3762
      %v3764 = vpop.f32.mrf.mxu0
      %3765 = vmatprep.mubr.bf16.mxu0 0
      %3766 = vmatmul.mubr.bf16.gmra.mxu0 %v3652
      %v3767 = vpop.f32.mrf.mxu0
      %v3768 = vadd.f32 0.0, %v3767
      %v3769 = vpop.f32.mrf.mxu0
      %v3770 = vpop.f32.mrf.mxu0
      %v3771 = vadd.f32 0.0, %v3770
      %v3772 = vpop.f32.mrf.mxu0
      %3773 = vmatprep.mubr.bf16.mxu0 0
      %3774 = vmatmul.mubr.bf16.gmra.mxu0 %v3655
      %v3775 = vpop.f32.mrf.mxu0
      %v3776 = vadd.f32 0.0, %v3775
      %v3777 = vpop.f32.mrf.mxu0
      %v3778 = vpop.f32.mrf.mxu0
      %v3779 = vadd.f32 0.0, %v3778
      %v3780 = vpop.f32.mrf.mxu0
      %3781 = vmatprep.mubr.bf16.mxu0 0
      %3782 = vmatmul.mubr.bf16.gmra.mxu0 %v3658
      %v3783 = vpop.f32.mrf.mxu0
      %v3784 = vadd.f32 0.0, %v3783
      %v3785 = vpop.f32.mrf.mxu0
      %v3786 = vpop.f32.mrf.mxu0
      %v3787 = vadd.f32 0.0, %v3786
      %v3788 = vpop.f32.mrf.mxu0
      %3789 = vmatprep.mubr.bf16.mxu0 0
      %3790 = vmatmul.mubr.bf16.gmra.mxu0 %v3661
      %v3791 = vpop.f32.mrf.mxu0
      %v3792 = vadd.f32 0.0, %v3791
      %v3793 = vpop.f32.mrf.mxu0
      %v3794 = vpop.f32.mrf.mxu0
      %v3795 = vadd.f32 0.0, %v3794
      %v3796 = vpop.f32.mrf.mxu0
      %3797 = vmatprep.mubr.bf16.mxu0 0
      %3798 = vmatmul.mubr.bf16.gmra.mxu0 %v3664
      %v3799 = vpop.f32.mrf.mxu0
      %v3800 = vadd.f32 0.0, %v3799
      %v3801 = vpop.f32.mrf.mxu0
      %v3802 = vpop.f32.mrf.mxu0
      %v3803 = vadd.f32 0.0, %v3802
      %v3804 = vpop.f32.mrf.mxu0
      %3805 = vmatprep.mubr.bf16.mxu0 0
      %3806 = vmatmul.mubr.bf16.gmra.mxu0 %v3667
      %v3807 = vpop.f32.mrf.mxu0
      %v3808 = vadd.f32 0.0, %v3807
      %v3809 = vpop.f32.mrf.mxu0
      %v3810 = vpop.f32.mrf.mxu0
      %v3811 = vadd.f32 0.0, %v3810
      %v3812 = vpop.f32.mrf.mxu0
      %3813 = vmatprep.mubr.bf16.mxu0 0
      %3814 = vmatmul.mubr.bf16.gmra.mxu0 %v3670
      %v3815 = vpop.f32.mrf.mxu0
      %v3816 = vadd.f32 0.0, %v3815
      %v3817 = vpop.f32.mrf.mxu0
      %v3818 = vpop.f32.mrf.mxu0
      %v3819 = vadd.f32 0.0, %v3818
      %v3820 = vpop.f32.mrf.mxu0
      %3821 = vmatprep.mubr.bf16.mxu0 0
      %3822 = vmatmul.mubr.bf16.gmra.mxu0 %v3673
      %v3823 = vpop.f32.mrf.mxu0
      %v3824 = vadd.f32 0.0, %v3823
      %v3825 = vpop.f32.mrf.mxu0
      %v3826 = vpop.f32.mrf.mxu0
      %v3827 = vadd.f32 0.0, %v3826
      %v3828 = vpop.f32.mrf.mxu0
      %3829 = vmatprep.mubr.bf16.mxu0 0
      %3830 = vmatmul.mubr.bf16.gmra.mxu0 %v3676
      %v3831 = vpop.f32.mrf.mxu0
      %v3832 = vadd.f32 0.0, %v3831
      %v3833 = vpop.f32.mrf.mxu0
      %v3834 = vpop.f32.mrf.mxu0
      %v3835 = vadd.f32 0.0, %v3834
      %v3836 = vpop.f32.mrf.mxu0
      %3837 = vmatprep.mubr.bf16.mxu0 0
      %3838 = vmatmul.mubr.bf16.gmra.mxu0 %v3679
      %v3839 = vpop.f32.mrf.mxu0
      %v3840 = vadd.f32 0.0, %v3839
      %v3841 = vpop.f32.mrf.mxu0
      %v3842 = vpop.f32.mrf.mxu0
      %v3843 = vadd.f32 0.0, %v3842
      %v3844 = vpop.f32.mrf.mxu0
      %3845 = vmatprep.mubr.bf16.mxu0 0
      %3846 = vmatmul.mubr.bf16.gmra.mxu0 %v3682
      %v3847 = vpop.f32.mrf.mxu0
      %v3848 = vadd.f32 0.0, %v3847
      %v3849 = vpop.f32.mrf.mxu0
      %v3850 = vpop.f32.mrf.mxu0
      %v3851 = vadd.f32 0.0, %v3850
      %v3852 = vpop.f32.mrf.mxu0
      %3853 = vmatprep.mubr.bf16.mxu0 0
      %3854 = vmatmul.mubr.bf16.gmra.mxu0 %v3685
      %v3855 = vpop.f32.mrf.mxu0
      %v3856 = vadd.f32 0.0, %v3855
      %v3857 = vpop.f32.mrf.mxu0
      %v3858 = vpop.f32.mrf.mxu0
      %v3859 = vadd.f32 0.0, %v3858
      %v3860 = vpop.f32.mrf.mxu0
      %3861 = vmatprep.mubr.bf16.mxu0 0
      %3862 = vmatmul.mubr.bf16.gmra.mxu0 %v3688
      %v3863 = vpop.f32.mrf.mxu0
      %v3864 = vadd.f32 0.0, %v3863
      %v3865 = vpop.f32.mrf.mxu0
      %v3866 = vpop.f32.mrf.mxu0
      %v3867 = vadd.f32 0.0, %v3866
      %v3868 = vpop.f32.mrf.mxu0
      %3869 = vdwg.mxu0
      %v3870 = vadd.f32 %v3598, %v3728
      %v3871 = vadd.f32 %v3599, %v3731
      %v3872 = vadd.f32 %v3600, %v3736
      %v3873 = vadd.f32 %v3601, %v3739
      %v3874 = vadd.f32 %v3602, %v3744
      %v3875 = vadd.f32 %v3603, %v3747
      %v3876 = vadd.f32 %v3604, %v3752
      %v3877 = vadd.f32 %v3605, %v3755
      %v3878 = vadd.f32 %v3606, %v3760
      %v3879 = vadd.f32 %v3607, %v3763
      %v3880 = vadd.f32 %v3608, %v3768
      %v3881 = vadd.f32 %v3609, %v3771
      %v3882 = vadd.f32 %v3610, %v3776
      %v3883 = vadd.f32 %v3611, %v3779
      %v3884 = vadd.f32 %v3612, %v3784
      %v3885 = vadd.f32 %v3613, %v3787
      %v3886 = vadd.f32 %v3614, %v3792
      %v3887 = vadd.f32 %v3615, %v3795
      %v3888 = vadd.f32 %v3616, %v3800
      %v3889 = vadd.f32 %v3617, %v3803
      %v3890 = vadd.f32 %v3618, %v3808
      %v3891 = vadd.f32 %v3619, %v3811
      %v3892 = vadd.f32 %v3620, %v3816
      %v3893 = vadd.f32 %v3621, %v3819
      %v3894 = vadd.f32 %v3622, %v3824
      %v3895 = vadd.f32 %v3623, %v3827
      %v3896 = vadd.f32 %v3624, %v3832
      %v3897 = vadd.f32 %v3625, %v3835
      %v3898 = vadd.f32 %v3626, %v3840
      %v3899 = vadd.f32 %v3627, %v3843
      %v3900 = vadd.f32 %v3628, %v3848
      %v3901 = vadd.f32 %v3629, %v3851
      %v3902 = vadd.f32 %v3630, %v3856
      %v3903 = vadd.f32 %v3631, %v3859
      %v3904 = vadd.f32 %v3632, %v3864
      %v3905 = vadd.f32 %v3633, %v3867
      %3906 = vst.msk [vmem:[#allocation3] sm:$0xff] %vm323, %v3870
      %3907 = vst.msk [vmem:[#allocation3 + $0x8] sm:$0xff] %vm323, %v3871
      %3908 = vst.msk [vmem:[#allocation3 + $0x10] sm:$0xff] %vm323, %v3872
      %3909 = vst.msk [vmem:[#allocation3 + $0x18] sm:$0xff] %vm323, %v3873
      %3910 = vst.msk [vmem:[#allocation3 + $0x20] sm:$0xff] %vm323, %v3874
      %3911 = vst.msk [vmem:[#allocation3 + $0x28] sm:$0xff] %vm323, %v3875
      %3912 = vst.msk [vmem:[#allocation3 + $0x30] sm:$0xff] %vm323, %v3876
      %3913 = vst.msk [vmem:[#allocation3 + $0x38] sm:$0xff] %vm323, %v3877
      %3914 = vst.msk [vmem:[#allocation3 + $0x40] sm:$0xff] %vm323, %v3878
      %3915 = vst.msk [vmem:[#allocation3 + $0x48] sm:$0xff] %vm323, %v3879
      %3916 = vst.msk [vmem:[#allocation3 + $0x50] sm:$0xff] %vm323, %v3880
      %3917 = vst.msk [vmem:[#allocation3 + $0x58] sm:$0xff] %vm323, %v3881
      %3918 = vst.msk [vmem:[#allocation3 + $0x60] sm:$0xff] %vm323, %v3882
      %3919 = vst.msk [vmem:[#allocation3 + $0x68] sm:$0xff] %vm323, %v3883
      %3920 = vst.msk [vmem:[#allocation3 + $0x70] sm:$0xff] %vm323, %v3884
      %3921 = vst.msk [vmem:[#allocation3 + $0x78] sm:$0xff] %vm323, %v3885
      %3922 = vst.msk [vmem:[#allocation3 + $0x80] sm:$0xff] %vm323, %v3886
      %3923 = vst.msk [vmem:[#allocation3 + $0x88] sm:$0xff] %vm323, %v3887
      %3924 = vst.msk [vmem:[#allocation3 + $0x90] sm:$0xff] %vm323, %v3888
      %3925 = vst.msk [vmem:[#allocation3 + $0x98] sm:$0xff] %vm323, %v3889
      %3926 = vst.msk [vmem:[#allocation3 + $0xa0] sm:$0xff] %vm323, %v3890
      %3927 = vst.msk [vmem:[#allocation3 + $0xa8] sm:$0xff] %vm323, %v3891
      %3928 = vst.msk [vmem:[#allocation3 + $0xb0] sm:$0xff] %vm323, %v3892
      %3929 = vst.msk [vmem:[#allocation3 + $0xb8] sm:$0xff] %vm323, %v3893
      %3930 = vst.msk [vmem:[#allocation3 + $0xc0] sm:$0xff] %vm323, %v3894
      %3931 = vst.msk [vmem:[#allocation3 + $0xc8] sm:$0xff] %vm323, %v3895
      %3932 = vst.msk [vmem:[#allocation3 + $0xd0] sm:$0xff] %vm323, %v3896
      %3933 = vst.msk [vmem:[#allocation3 + $0xd8] sm:$0xff] %vm323, %v3897
      %3934 = vst.msk [vmem:[#allocation3 + $0xe0] sm:$0xff] %vm323, %v3898
      %3935 = vst.msk [vmem:[#allocation3 + $0xe8] sm:$0xff] %vm323, %v3899
      %3936 = vst.msk [vmem:[#allocation3 + $0xf0] sm:$0xff] %vm323, %v3900
      %3937 = vst.msk [vmem:[#allocation3 + $0xf8] sm:$0xff] %vm323, %v3901
      %3938 = vst.msk [vmem:[#allocation3 + $0x100] sm:$0xff] %vm323, %v3902
      %3939 = vst.msk [vmem:[#allocation3 + $0x108] sm:$0xff] %vm323, %v3903
      %3940 = vst.msk [vmem:[#allocation3 + $0x110] sm:$0xff] %vm323, %v3904
      %3941 = vst.msk [vmem:[#allocation3 + $0x118] sm:$0xff] %vm323, %v3905
      %v3942 = vld [vmem:[#allocation3] sm:$0xff]
      %v3943 = vld [vmem:[#allocation3 + $0x8] sm:$0xff]
      %v3944 = vld [vmem:[#allocation3 + $0x10] sm:$0xff]
      %v3945 = vld [vmem:[#allocation3 + $0x18] sm:$0xff]
      %v3946 = vld [vmem:[#allocation3 + $0x20] sm:$0xff]
      %v3947 = vld [vmem:[#allocation3 + $0x28] sm:$0xff]
      %v3948 = vld [vmem:[#allocation3 + $0x30] sm:$0xff]
      %v3949 = vld [vmem:[#allocation3 + $0x38] sm:$0xff]
      %v3950 = vld [vmem:[#allocation3 + $0x40] sm:$0xff]
      %v3951 = vld [vmem:[#allocation3 + $0x48] sm:$0xff]
      %v3952 = vld [vmem:[#allocation3 + $0x50] sm:$0xff]
      %v3953 = vld [vmem:[#allocation3 + $0x58] sm:$0xff]
      %v3954 = vld [vmem:[#allocation3 + $0x60] sm:$0xff]
      %v3955 = vld [vmem:[#allocation3 + $0x68] sm:$0xff]
      %v3956 = vld [vmem:[#allocation3 + $0x70] sm:$0xff]
      %v3957 = vld [vmem:[#allocation3 + $0x78] sm:$0xff]
      %v3958 = vld [vmem:[#allocation3 + $0x80] sm:$0xff]
      %v3959 = vld [vmem:[#allocation3 + $0x88] sm:$0xff]
      %v3960 = vld [vmem:[#allocation3 + $0x90] sm:$0xff]
      %v3961 = vld [vmem:[#allocation3 + $0x98] sm:$0xff]
      %v3962 = vld [vmem:[#allocation3 + $0xa0] sm:$0xff]
      %v3963 = vld [vmem:[#allocation3 + $0xa8] sm:$0xff]
      %v3964 = vld [vmem:[#allocation3 + $0xb0] sm:$0xff]
      %v3965 = vld [vmem:[#allocation3 + $0xb8] sm:$0xff]
      %v3966 = vld [vmem:[#allocation3 + $0xc0] sm:$0xff]
      %v3967 = vld [vmem:[#allocation3 + $0xc8] sm:$0xff]
      %v3968 = vld [vmem:[#allocation3 + $0xd0] sm:$0xff]
      %v3969 = vld [vmem:[#allocation3 + $0xd8] sm:$0xff]
      %v3970 = vld [vmem:[#allocation3 + $0xe0] sm:$0xff]
      %v3971 = vld [vmem:[#allocation3 + $0xe8] sm:$0xff]
      %v3972 = vld [vmem:[#allocation3 + $0xf0] sm:$0xff]
      %v3973 = vld [vmem:[#allocation3 + $0xf8] sm:$0xff]
      %v3974 = vld [vmem:[#allocation3 + $0x100] sm:$0xff]
      %v3975 = vld [vmem:[#allocation3 + $0x108] sm:$0xff]
      %v3976 = vld [vmem:[#allocation3 + $0x110] sm:$0xff]
      %v3977 = vld [vmem:[#allocation3 + $0x118] sm:$0xff]
      %v3978 = vld [vmem:[%s2] sm:$0x1]
      %v3980 = vlaneseq
      %v3981 = vshrl.u32 %v3980, 7
      %v3982 = vsub.s32 0, %v3981
      %v3983 = vrot.slane %v3978, %v3982
      %v3985 = vmul.f32 %v3942, %v3983
      %v3986 = vmul.f32 %v3943, %v3983
      %v3987 = vmul.f32 %v3944, %v3983
      %v3988 = vmul.f32 %v3945, %v3983
      %v3989 = vmul.f32 %v3946, %v3983
      %v3990 = vmul.f32 %v3947, %v3983
      %v3991 = vmul.f32 %v3948, %v3983
      %v3992 = vmul.f32 %v3949, %v3983
      %v3993 = vmul.f32 %v3950, %v3983
      %v3994 = vmul.f32 %v3951, %v3983
      %v3995 = vmul.f32 %v3952, %v3983
      %v3996 = vmul.f32 %v3953, %v3983
      %v3997 = vmul.f32 %v3954, %v3983
      %v3998 = vmul.f32 %v3955, %v3983
      %v3999 = vmul.f32 %v3956, %v3983
      %v4000 = vmul.f32 %v3957, %v3983
      %v4001 = vmul.f32 %v3958, %v3983
      %v4002 = vmul.f32 %v3959, %v3983
      %v4003 = vmul.f32 %v3960, %v3983
      %v4004 = vmul.f32 %v3961, %v3983
      %v4005 = vmul.f32 %v3962, %v3983
      %v4006 = vmul.f32 %v3963, %v3983
      %v4007 = vmul.f32 %v3964, %v3983
      %v4008 = vmul.f32 %v3965, %v3983
      %v4009 = vmul.f32 %v3966, %v3983
      %v4010 = vmul.f32 %v3967, %v3983
      %v4011 = vmul.f32 %v3968, %v3983
      %v4012 = vmul.f32 %v3969, %v3983
      %v4013 = vmul.f32 %v3970, %v3983
      %v4014 = vmul.f32 %v3971, %v3983
      %v4015 = vmul.f32 %v3972, %v3983
      %v4016 = vmul.f32 %v3973, %v3983
      %v4017 = vmul.f32 %v3974, %v3983
      %v4018 = vmul.f32 %v3975, %v3983
      %v4019 = vmul.f32 %v3976, %v3983
      %v4020 = vmul.f32 %v3977, %v3983
      %v4021 = vld [vmem:[%s3] sm:$0x1]
      %v4023 = vlaneseq
      %v4024 = vshrl.u32 %v4023, 7
      %v4025 = vsub.s32 0, %v4024
      %v4026 = vrot.slane %v4021, %v4025
      %v4028 = vadd.f32 %v3985, %v4026
      %v4029 = vadd.f32 %v3986, %v4026
      %v4030 = vadd.f32 %v3987, %v4026
      %v4031 = vadd.f32 %v3988, %v4026
      %v4032 = vadd.f32 %v3989, %v4026
      %v4033 = vadd.f32 %v3990, %v4026
      %v4034 = vadd.f32 %v3991, %v4026
      %v4035 = vadd.f32 %v3992, %v4026
      %v4036 = vadd.f32 %v3993, %v4026
      %v4037 = vadd.f32 %v3994, %v4026
      %v4038 = vadd.f32 %v3995, %v4026
      %v4039 = vadd.f32 %v3996, %v4026
      %v4040 = vadd.f32 %v3997, %v4026
      %v4041 = vadd.f32 %v3998, %v4026
      %v4042 = vadd.f32 %v3999, %v4026
      %v4043 = vadd.f32 %v4000, %v4026
      %v4044 = vadd.f32 %v4001, %v4026
      %v4045 = vadd.f32 %v4002, %v4026
      %v4046 = vadd.f32 %v4003, %v4026
      %v4047 = vadd.f32 %v4004, %v4026
      %v4048 = vadd.f32 %v4005, %v4026
      %v4049 = vadd.f32 %v4006, %v4026
      %v4050 = vadd.f32 %v4007, %v4026
      %v4051 = vadd.f32 %v4008, %v4026
      %v4052 = vadd.f32 %v4009, %v4026
      %v4053 = vadd.f32 %v4010, %v4026
      %v4054 = vadd.f32 %v4011, %v4026
      %v4055 = vadd.f32 %v4012, %v4026
      %v4056 = vadd.f32 %v4013, %v4026
      %v4057 = vadd.f32 %v4014, %v4026
      %v4058 = vadd.f32 %v4015, %v4026
      %v4059 = vadd.f32 %v4016, %v4026
      %v4060 = vadd.f32 %v4017, %v4026
      %v4061 = vadd.f32 %v4018, %v4026
      %v4062 = vadd.f32 %v4019, %v4026
      %v4063 = vadd.f32 %v4020, %v4026
      %v4064 = vmax.f32 %v4028, 0.0
      %v4065 = vmax.f32 %v4029, 0.0
      %v4066 = vmax.f32 %v4030, 0.0
      %v4067 = vmax.f32 %v4031, 0.0
      %v4068 = vmax.f32 %v4032, 0.0
      %v4069 = vmax.f32 %v4033, 0.0
      %v4070 = vmax.f32 %v4034, 0.0
      %v4071 = vmax.f32 %v4035, 0.0
      %v4072 = vmax.f32 %v4036, 0.0
      %v4073 = vmax.f32 %v4037, 0.0
      %v4074 = vmax.f32 %v4038, 0.0
      %v4075 = vmax.f32 %v4039, 0.0
      %v4076 = vmax.f32 %v4040, 0.0
      %v4077 = vmax.f32 %v4041, 0.0
      %v4078 = vmax.f32 %v4042, 0.0
      %v4079 = vmax.f32 %v4043, 0.0
      %v4080 = vmax.f32 %v4044, 0.0
      %v4081 = vmax.f32 %v4045, 0.0
      %v4082 = vmax.f32 %v4046, 0.0
      %v4083 = vmax.f32 %v4047, 0.0
      %v4084 = vmax.f32 %v4048, 0.0
      %v4085 = vmax.f32 %v4049, 0.0
      %v4086 = vmax.f32 %v4050, 0.0
      %v4087 = vmax.f32 %v4051, 0.0
      %v4088 = vmax.f32 %v4052, 0.0
      %v4089 = vmax.f32 %v4053, 0.0
      %v4090 = vmax.f32 %v4054, 0.0
      %v4091 = vmax.f32 %v4055, 0.0
      %v4092 = vmax.f32 %v4056, 0.0
      %v4093 = vmax.f32 %v4057, 0.0
      %v4094 = vmax.f32 %v4058, 0.0
      %v4095 = vmax.f32 %v4059, 0.0
      %v4096 = vmax.f32 %v4060, 0.0
      %v4097 = vmax.f32 %v4061, 0.0
      %v4098 = vmax.f32 %v4062, 0.0
      %v4099 = vmax.f32 %v4063, 0.0
      %v4100 = vpack.c.bf16 %v4065, %v4064
      %v4101 = vpack.c.bf16 %v4067, %v4066
      %v4102 = vpack.c.bf16 %v4069, %v4068
      %v4103 = vpack.c.bf16 %v4071, %v4070
      %v4104 = vpack.c.bf16 %v4073, %v4072
      %v4105 = vpack.c.bf16 %v4075, %v4074
      %v4106 = vpack.c.bf16 %v4077, %v4076
      %v4107 = vpack.c.bf16 %v4079, %v4078
      %v4108 = vpack.c.bf16 %v4081, %v4080
      %v4109 = vpack.c.bf16 %v4083, %v4082
      %v4110 = vpack.c.bf16 %v4085, %v4084
      %v4111 = vpack.c.bf16 %v4087, %v4086
      %v4112 = vpack.c.bf16 %v4089, %v4088
      %v4113 = vpack.c.bf16 %v4091, %v4090
      %v4114 = vpack.c.bf16 %v4093, %v4092
      %v4115 = vpack.c.bf16 %v4095, %v4094
      %v4116 = vpack.c.bf16 %v4097, %v4096
      %v4117 = vpack.c.bf16 %v4099, %v4098
      %v4136 = vunpack.c.l.b16 %v4100
      %v4137 = vunpack.c.h.b16 %v4100
      %v4138 = vunpack.c.l.b16 %v4101
      %v4139 = vunpack.c.h.b16 %v4101
      %v4140 = vunpack.c.l.b16 %v4102
      %v4141 = vunpack.c.h.b16 %v4102
      %v4142 = vunpack.c.l.b16 %v4103
      %v4143 = vunpack.c.h.b16 %v4103
      %v4144 = vunpack.c.l.b16 %v4104
      %v4145 = vunpack.c.h.b16 %v4104
      %v4146 = vunpack.c.l.b16 %v4105
      %v4147 = vunpack.c.h.b16 %v4105
      %v4148 = vunpack.c.l.b16 %v4106
      %v4149 = vunpack.c.h.b16 %v4106
      %v4150 = vunpack.c.l.b16 %v4107
      %v4151 = vunpack.c.h.b16 %v4107
      %v4152 = vunpack.c.l.b16 %v4108
      %v4153 = vunpack.c.h.b16 %v4108
      %v4154 = vunpack.c.l.b16 %v4109
      %v4155 = vunpack.c.h.b16 %v4109
      %v4156 = vunpack.c.l.b16 %v4110
      %v4157 = vunpack.c.h.b16 %v4110
      %v4158 = vunpack.c.l.b16 %v4111
      %v4159 = vunpack.c.h.b16 %v4111
      %v4160 = vunpack.c.l.b16 %v4112
      %v4161 = vunpack.c.h.b16 %v4112
      %v4162 = vunpack.c.l.b16 %v4113
      %v4163 = vunpack.c.h.b16 %v4113
      %v4164 = vunpack.c.l.b16 %v4114
      %v4165 = vunpack.c.h.b16 %v4114
      %v4166 = vunpack.c.l.b16 %v4115
      %v4167 = vunpack.c.h.b16 %v4115
      %v4168 = vunpack.c.l.b16 %v4116
      %v4169 = vunpack.c.h.b16 %v4116
      %v4170 = vunpack.c.l.b16 %v4117
      %v4171 = vunpack.c.h.b16 %v4117
      %v4172 = vpack.c.b16 %v4136, %v4136
      %v4173 = vpack.c.b16 %v4137, %v4137
      %v4174 = vpack.c.b16 %v4138, %v4138
      %v4175 = vpack.c.b16 %v4139, %v4139
      %v4176 = vpack.c.b16 %v4140, %v4140
      %v4177 = vpack.c.b16 %v4141, %v4141
      %v4178 = vpack.c.b16 %v4142, %v4142
      %v4179 = vpack.c.b16 %v4143, %v4143
      %v4180 = vpack.c.b16 %v4144, %v4144
      %v4181 = vpack.c.b16 %v4145, %v4145
      %v4182 = vpack.c.b16 %v4146, %v4146
      %v4183 = vpack.c.b16 %v4147, %v4147
      %v4184 = vpack.c.b16 %v4148, %v4148
      %v4185 = vpack.c.b16 %v4149, %v4149
      %v4186 = vpack.c.b16 %v4150, %v4150
      %v4187 = vpack.c.b16 %v4151, %v4151
      %v4188 = vpack.c.b16 %v4152, %v4152
      %v4189 = vpack.c.b16 %v4153, %v4153
      %v4190 = vpack.c.b16 %v4154, %v4154
      %v4191 = vpack.c.b16 %v4155, %v4155
      %v4192 = vpack.c.b16 %v4156, %v4156
      %v4193 = vpack.c.b16 %v4157, %v4157
      %v4194 = vpack.c.b16 %v4158, %v4158
      %v4195 = vpack.c.b16 %v4159, %v4159
      %v4196 = vpack.c.b16 %v4160, %v4160
      %v4197 = vpack.c.b16 %v4161, %v4161
      %v4198 = vpack.c.b16 %v4162, %v4162
      %v4199 = vpack.c.b16 %v4163, %v4163
      %v4200 = vpack.c.b16 %v4164, %v4164
      %v4201 = vpack.c.b16 %v4165, %v4165
      %v4202 = vpack.c.b16 %v4166, %v4166
      %v4203 = vpack.c.b16 %v4167, %v4167
      %v4204 = vpack.c.b16 %v4168, %v4168
      %v4205 = vpack.c.b16 %v4169, %v4169
      %v4206 = vpack.c.b16 %v4170, %v4170
      %v4207 = vpack.c.b16 %v4171, %v4171
      %vm4244 = vcmask 60416
      %4245 = vst.msk [vmem:[%s197] sm:$0xf] %vm4244, %v4172
      %4246 = vst.msk [vmem:[%s197 + $0x4] sm:$0xf] %vm4244, %v4173
      %4247 = vst.msk [vmem:[%s197 + $0x8] sm:$0xf] %vm4244, %v4174
      %4248 = vst.msk [vmem:[%s197 + $0xc] sm:$0xf] %vm4244, %v4175
      %4249 = vst.msk [vmem:[%s197 + $0x10] sm:$0xf] %vm4244, %v4176
      %4250 = vst.msk [vmem:[%s197 + $0x14] sm:$0xf] %vm4244, %v4177
      %4251 = vst.msk [vmem:[%s197 + $0x18] sm:$0xf] %vm4244, %v4178
      %4252 = vst.msk [vmem:[%s197 + $0x1c] sm:$0xf] %vm4244, %v4179
      %4253 = vst.msk [vmem:[%s197 + $0x20] sm:$0xf] %vm4244, %v4180
      %4254 = vst.msk [vmem:[%s197 + $0x24] sm:$0xf] %vm4244, %v4181
      %4255 = vst.msk [vmem:[%s197 + $0x28] sm:$0xf] %vm4244, %v4182
      %4256 = vst.msk [vmem:[%s197 + $0x2c] sm:$0xf] %vm4244, %v4183
      %4257 = vst.msk [vmem:[%s197 + $0x30] sm:$0xf] %vm4244, %v4184
      %4258 = vst.msk [vmem:[%s197 + $0x34] sm:$0xf] %vm4244, %v4185
      %4259 = vst.msk [vmem:[%s197 + $0x38] sm:$0xf] %vm4244, %v4186
      %4260 = vst.msk [vmem:[%s197 + $0x3c] sm:$0xf] %vm4244, %v4187
      %4261 = vst.msk [vmem:[%s197 + $0x40] sm:$0xf] %vm4244, %v4188
      %4262 = vst.msk [vmem:[%s197 + $0x44] sm:$0xf] %vm4244, %v4189
      %4263 = vst.msk [vmem:[%s197 + $0x48] sm:$0xf] %vm4244, %v4190
      %4264 = vst.msk [vmem:[%s197 + $0x4c] sm:$0xf] %vm4244, %v4191
      %4265 = vst.msk [vmem:[%s197 + $0x50] sm:$0xf] %vm4244, %v4192
      %4266 = vst.msk [vmem:[%s197 + $0x54] sm:$0xf] %vm4244, %v4193
      %4267 = vst.msk [vmem:[%s197 + $0x58] sm:$0xf] %vm4244, %v4194
      %4268 = vst.msk [vmem:[%s197 + $0x5c] sm:$0xf] %vm4244, %v4195
      %4269 = vst.msk [vmem:[%s197 + $0x60] sm:$0xf] %vm4244, %v4196
      %4270 = vst.msk [vmem:[%s197 + $0x64] sm:$0xf] %vm4244, %v4197
      %4271 = vst.msk [vmem:[%s197 + $0x68] sm:$0xf] %vm4244, %v4198
      %4272 = vst.msk [vmem:[%s197 + $0x6c] sm:$0xf] %vm4244, %v4199
      %4273 = vst.msk [vmem:[%s197 + $0x70] sm:$0xf] %vm4244, %v4200
      %4274 = vst.msk [vmem:[%s197 + $0x74] sm:$0xf] %vm4244, %v4201
      %4275 = vst.msk [vmem:[%s197 + $0x78] sm:$0xf] %vm4244, %v4202
      %4276 = vst.msk [vmem:[%s197 + $0x7c] sm:$0xf] %vm4244, %v4203
      %4277 = vst.msk [vmem:[%s197 + $0x80] sm:$0xf] %vm4244, %v4204
      %4278 = vst.msk [vmem:[%s197 + $0x84] sm:$0xf] %vm4244, %v4205
      %4279 = vst.msk [vmem:[%s197 + $0x88] sm:$0xf] %vm4244, %v4206
      %4280 = vst.msk [vmem:[%s197 + $0x8c] sm:$0xf] %vm4244, %v4207
      %p4281 = scmp.lt.s32.totalorder %s15, 1
      %s4282 = scalar_select %p4281, %s15, 1
      %s4283 = smul.addr %s4282, 36
      %s4284 = smul.addr %s4283, 4
      %s4285 = scalar_lea.vmem %s4, %s4284
      // Predicated region
      $region37: #{base_conv.3} parent=35 // pred_check
        %p4286 = pneg %p122
      $region38: #{base_conv.3} parent=35 // pred_check_branch
        %4288 = sbr.rel (%p4286) target = $region40
      $region39: #{base_conv.3} parent=35 // pred_region
        _
      $region40: #{base_conv.3} parent=35 // pred_fallthru
        _
    $region36: #{base_conv.3} parent=5 // pred_fallthru
      _
    %p4289 = scmp.le.s32.totalorder 2, %s10
    // Predicated region
    $region41: #{base_conv.3} parent=5 // pred_check
      %p4290 = pneg %p4289
    $region42: #{base_conv.3} parent=5 // pred_check_branch
      %4292 = sbr.rel (%p4290) target = $region44
    $region43: #{base_conv.3} parent=5 // pred_region
      %s4293 = ssub.s32 %s10, 2
      // Predicated region
      $region45: #{base_conv.3} parent=43 // pred_check
        %p4294 = pneg %p128
      $region46: #{base_conv.3} parent=43 // pred_check_branch
        %4296 = sbr.rel (%p4294) target = $region48
      $region47: #{base_conv.3} parent=43 // pred_region
        %p4297 = scmp.lt.s32.totalorder %s16, 1
        %s4298 = scalar_select %p4297, %s16, 1
        %s4299 = smul.addr %s4298, 36
        %s4300 = smul.addr %s4299, 4
        %s4301 = scalar_lea.vmem %s4, %s4300
      $region48: #{base_conv.3} parent=43 // pred_fallthru
        _
    $region44: #{base_conv.3} parent=5 // pred_fallthru
      _
  $region6: #{base_conv.3} parent=0 // loop_footer
    %s14 = sadd.s32 1, %s10
  $region7: #{base_conv.3} parent=0 // loop_footer_branch
    %9 = sbr.rel target = $region3
  $region8: #{base_conv.3} parent=0 // loop_exit
    _

</llo_original>
